<compile_context>
chip_gen: v7x
topology: tpu7x:2x2x1
jax: 0.10.0
libtpu: 0.0.40
codegen_flags: <defaults>
</compile_context>

<pallas_src>
import numpy as np

import jax
import jax.numpy as jnp
from jax.experimental import pallas as pl
from jax.experimental.pallas import tpu as pltpu

BIN_NUM = (1, 2, 4, 8, 16)
TOTAL_BINS = sum(BIN_NUM)                       # 31
OUT_COLS = 11
OUT_PAD = ((TOTAL_BINS * OUT_COLS + 127) // 128) * 128   # 341 -> 384 (3*128)


# --------------------------------------------------------------------------
# kernel
# --------------------------------------------------------------------------
def hpm_kernel(x_ref, pool_ref, w_ref, out_ref, feat_ref):
    """x_ref:    (tn, C, H*W)  f32 input tile
       pool_ref: (H*W, 16)     f32 finest-segment mean matrix (1/seg baked in)
       w_ref:    (31*C, 384)   bf16 fused block-diagonal weight (cols >=341 zero)
       out_ref:  (tn, 384)     f32 output slab
       feat_ref: (tn, 31*C)    bf16 scratch holding all 31 bins, torch order."""
    tn, c, hw = x_ref.shape
    nfine = pool_ref.shape[1]                   # 16 finest segments
    seg = hw // nfine
    x = x_ref[...]

    # ---- finest-level segment maxes (XLU reduces; unavoidable for max) ----
    maxs = [jnp.max(x[:, :, s * seg:(s + 1) * seg], axis=-1)
            for s in range(nfine)]              # 16 x (tn, C)

    # ---- finest-level segment means: on the MXU via the pooling matrix when
    # the (tn, C, hw) <-> (tn*C, hw) reshape is layout-trivial (C % 8 == 0),
    # otherwise fall back to VPU/XLU sums. ----
    if c % 8 == 0:
        m = jnp.dot(x.reshape(tn * c, hw), pool_ref[...],
                    preferred_element_type=jnp.float32)       # (tn*C, 16)
        m = m.reshape(tn, c, nfine)
        means = [m[:, :, s] for s in range(nfine)]            # 16 x (tn, C)
    else:
        scale = float(nfine) / float(hw)
        means = [jnp.sum(x[:, :, s * seg:(s + 1) * seg], axis=-1) * scale
                 for s in range(nfine)]

    # ---- hierarchical combine: coarser bins from the 16 finest partials.
    # Each bin's mean+max goes straight into the feat scratch at its
    # torch-order column offset -- no concatenates. ----
    col = {1: 0, 2: c, 4: 3 * c, 8: 7 * c, 16: 15 * c}
    cur_mean, cur_max, nb = means, maxs, nfine
    while True:
        base = col[nb]
        for j in range(nb):
            feat_ref[:, base + j * c: base + (j + 1) * c] = (
                cur_mean[j] + cur_max[j]).astype(feat_ref.dtype)
        if nb == 1:
            break
        cur_mean = [(cur_mean[2 * j] + cur_mean[2 * j + 1]) * 0.5
                    for j in range(nb // 2)]
        cur_max = [jnp.maximum(cur_max[2 * j], cur_max[2 * j + 1])
                   for j in range(nb // 2)]
        nb //= 2

    # ---- one lane-dense bf16 MXU matmul for all 31 bins, f32 accumulation ----
    out_ref[...] = jnp.dot(feat_ref[...], w_ref[...],
                           preferred_element_type=jnp.float32)


# --------------------------------------------------------------------------
# one-time weight / pooling-matrix preparation (hoisted out of the hot path)
# --------------------------------------------------------------------------
def prepare_hpm_weights(w1, w2, hw):
    """Build (once per weight update) the fused block-diagonal bf16 weight and
    the f32 segment-mean pooling matrix.  Do NOT rebuild per forward call."""
    nbins, c, _ = w1.shape
    assert nbins == TOTAL_BINS
    if hw % BIN_NUM[-1]:
        raise ValueError("H*W must be divisible by 16 (finest bin level)")

    wc = jnp.einsum('bcd,bdk->bck', w1, w2)                    # fc1@fc2: (31, C, 11)
    eye = jnp.eye(nbins, dtype=wc.dtype)
    w_blk = jnp.einsum('bck,bB->bcBk', wc, eye).reshape(
        nbins * c, nbins * OUT_COLS)                           # (31C, 341)
    w_big = jnp.pad(w_blk, ((0, 0), (0, OUT_PAD - nbins * OUT_COLS)))
    w_big = w_big.astype(jnp.bfloat16)                         # (31C, 384) bf16

    nfine = BIN_NUM[-1]
    seg = hw // nfine
    pool = np.zeros((hw, nfine), np.float32)
    for j in range(nfine):
        pool[j * seg:(j + 1) * seg, j] = 1.0 / seg
    return w_big, jnp.asarray(pool)


# --------------------------------------------------------------------------
# tiling / VMEM budget
# --------------------------------------------------------------------------
def _round_up(v, m):
    return ((v + m - 1) // m) * m


def _pick_batch_tile(n, c, hw):
    """Per-generation VMEM budget that counts the x double-buffer, the
    single-buffered invariant operands, the lane-padded in-kernel temporaries
    and the feat scratch."""
    try:
        vmem_cap = int(getattr(pltpu.get_tpu_info(), "vmem_capacity_bytes",
                               64 * 2 ** 20))
    except Exception:
        vmem_cap = 64 * 2 ** 20
    if vmem_cap < (32 << 20):
        vmem_cap = 64 * 2 ** 20
    budget = (vmem_cap * 6) // 10                     # ~38 MB v7x, ~77 MB v5e/v6e
    vmem_limit = int(min((vmem_cap * 8) // 10, vmem_cap - (4 << 20)))

    # grid-invariant operands (single-buffered)
    w_bytes = _round_up(TOTAL_BINS * c, 8) * OUT_PAD * 2       # bf16
    pool_bytes = _round_up(hw, 8) * 128 * 4                    # 16 cols -> 128 lanes
    fixed = w_bytes + pool_bytes

    # per-batch-row cost of one grid step (with (8,128) lane/sublane padding)
    c_sub, c_ln = _round_up(c, 8), _round_up(c, 128)
    hw_ln = _round_up(hw, 128)
    row_x = c_sub * hw_ln * 4
    per_row = (
        2 * row_x                                # double-buffered x tile
        + row_x                                  # possible reshape copy for the pooling matmul
        + 2 * c_sub * 128 * 4                    # pooled means (16 -> 128 lanes) + reshape
        + 40 * c_ln * 4                          # segment maxes/means + combine-tree temps
        + _round_up(TOTAL_BINS * c, 128) * 2     # bf16 feat scratch
        + 2 * OUT_PAD * 4                        # double-buffered output row
    )

    if n <= 8:
        return n, vmem_limit                     # one block == full batch dim

    tn_cap = min(n, 1024)
    if n >= 16:                                  # >= 2 grid steps -> v7x's two TCs
        tn_cap = min(tn_cap, _round_up(pl.cdiv(n, 2), 8))
    avail = budget - fixed
    tn = min(avail // per_row, tn_cap) if avail > 0 else 0
    if tn < n:
        tn = (tn // 8) * 8                       # sublane-aligned partial tiles (round DOWN)
    if tn < 8:
        # TODO(synk): add an H*W chunking loop for very large C*H*W instead of erroring.
        raise ValueError("HPM: an 8-row batch tile does not fit in the VMEM "
                         "budget; reduce C*H*W or add spatial chunking.")
    return int(tn), vmem_limit


# --------------------------------------------------------------------------
# pallas_call wrapper
# --------------------------------------------------------------------------
def _make_call(n, c, hw, tn, vmem_limit, single_buffer_invariants):
    inv_kwargs = ({"pipeline_mode": pl.Buffered(1)}
                  if single_buffer_invariants else {})
    return pl.pallas_call(
        hpm_kernel,
        out_shape=jax.ShapeDtypeStruct((n, OUT_PAD), jnp.float32),
        grid=(pl.cdiv(n, tn),),
        in_specs=[
            pl.BlockSpec((tn, c, hw), lambda i: (i, 0, 0)),
            pl.BlockSpec((hw, BIN_NUM[-1]), lambda i: (0, 0), **inv_kwargs),
            pl.BlockSpec((TOTAL_BINS * c, OUT_PAD), lambda i: (0, 0),
                         **inv_kwargs),
        ],
        out_specs=pl.BlockSpec((tn, OUT_PAD), lambda i: (i, 0)),
        scratch_shapes=[pltpu.VMEM((tn, TOTAL_BINS * c), jnp.bfloat16)],
        compiler_params=pltpu.CompilerParams(
            dimension_semantics=("parallel",),
            vmem_limit_bytes=vmem_limit),
    )


def hpm_apply(x, w_big, pool):
    n, c, h, w = x.shape
    hw = h * w
    if hw % BIN_NUM[-1]:
        raise ValueError("H*W must be divisible by 16 (finest bin level)")
    if w_big.shape != (TOTAL_BINS * c, OUT_PAD) or pool.shape != (hw, BIN_NUM[-1]):
        raise ValueError("weights/pool do not match x; rebuild with "
                         "prepare_hpm_weights")

    x_flat = x.reshape(n, c, hw).astype(jnp.float32)     # free view reshape
    tn, vmem_limit = _pick_batch_tile(n, c, hw)

    try:
        out = _make_call(n, c, hw, tn, vmem_limit, True)(x_flat, pool, w_big)
    except Exception:
        # Fallback for Pallas builds without BlockSpec.pipeline_mode /
        # single-buffered inputs: identical kernel, default double buffering.
        out = _make_call(n, c, hw, tn, vmem_limit, False)(x_flat, pool, w_big)

    return out[:, :TOTAL_BINS * OUT_COLS].reshape(n, TOTAL_BINS, OUT_COLS)


def hpm_forward(x, w1, w2):
    """Convenience wrapper matching the torch forward; for repeated calls use
    prepare_hpm_weights once and hpm_apply per step."""
    w_big, pool = prepare_hpm_weights(w1, w2, x.shape[2] * x.shape[3])
    return hpm_apply(x, w_big, pool)


# --------------------------------------------------------------------------
# pure-JAX reference + test
# --------------------------------------------------------------------------
def hpm_reference(x, w1, w2):
    """Pure-JAX replica of the PyTorch forward (unfused, f32)."""
    n, c, h, w = x.shape
    feats = []
    for nb in BIN_NUM:
        z = x.reshape(n, c, nb, -1)
        feats.append(z.mean(axis=3) + z.max(axis=3))
    feature = jnp.concatenate(feats, axis=2)             # (n, c, 31)
    feature = jnp.transpose(feature, (2, 0, 1))          # (31, n, c)
    feature = jnp.einsum('bnc,bcd->bnd', feature, w1)    # (31, n, D)
    feature = jnp.einsum('bnd,bdk->bnk', feature, w2)    # (31, n, 11)
    return jnp.transpose(feature, (1, 0, 2))             # (n, 31, 11)


def xavier_uniform(key, shape):
    # torch xavier_uniform on a 3D tensor (B, f0, f1):
    #   fan_in = f0 * f1, fan_out = B * f1
    fan_in = shape[1] * shape[2]
    fan_out = shape[0] * shape[2]
    bound = (6.0 / (fan_in + fan_out)) ** 0.5
    return jax.random.uniform(key, shape, jnp.float32, -bound, bound)


if __name__ == "__main__":
    key = jax.random.PRNGKey(0)
    kx, k1, k2 = jax.random.split(key, 3)

    # small NCHW input consistent with the module; in_dim = C (=8 so the
    # MXU pooling path is exercised), H*W = 256
    n, c, h, w = 2, 8, 16, 16
    in_dim, out_dim = c, 32

    x = jax.random.normal(kx, (n, c, h, w), jnp.float32)
    w1 = xavier_uniform(k1, (TOTAL_BINS, in_dim, out_dim))   # fc_bin1
    w2 = xavier_uniform(k2, (TOTAL_BINS, out_dim, 11))       # fc_bin2

    # weight fusion / pooling matrix hoisted out of the per-call path
    w_big, pool = prepare_hpm_weights(w1, w2, h * w)

    out = jax.block_until_ready(hpm_apply(x, w_big, pool))
    ref = hpm_reference(x, w1, w2)

    assert out.shape == (n, TOTAL_BINS, OUT_COLS), out.shape
    # bf16 feat/weights on the MXU (f32 accumulation) => ~1e-3-level abs error
    assert jnp.allclose(out, ref, atol=2e-2, rtol=2e-2), \
        float(jnp.max(jnp.abs(out - ref)))
    print("KERNEL_OK")
</pallas_src>

<mosaic_0001>
module attributes {stable_mosaic.version = 11 : i64} {
  func.func @hpm_kernel(%arg0: i32, %arg1: memref<2x8x256xf32, #tpu.memory_space<vmem>>, %arg2: memref<256x16xf32, #tpu.memory_space<vmem>>, %arg3: memref<248x384xbf16, #tpu.memory_space<vmem>>, %arg4: memref<2x384xf32, #tpu.memory_space<vmem>>, %arg5: memref<2x248xbf16, #tpu.memory_space<vmem>>) attributes {dimension_semantics = [#tpu.dimension_semantics<parallel>], iteration_bounds = array<i64: 1>, scalar_prefetch = 0 : i64, scratch_operands = 1 : i64, tpu.core_type = #tpu.core_type<tc>, window_params = [{transform_indices = @transform_0, window_bounds = array<i64: 2, 8, 256>}, {pipeline_mode = #tpu.pipeline_mode<synchronous>, transform_indices = @transform_1, window_bounds = array<i64: 256, 16>}, {pipeline_mode = #tpu.pipeline_mode<synchronous>, transform_indices = @transform_2, window_bounds = array<i64: 248, 384>}, {transform_indices = @transform_3, window_bounds = array<i64: 2, 384>}]} {
    %c0 = arith.constant 0 : index
    %c0_0 = arith.constant 0 : index
    %c0_1 = arith.constant 0 : index
    %0 = vector.load %arg1[%c0, %c0_0, %c0_1] : memref<2x8x256xf32, #tpu.memory_space<vmem>>, vector<2x8x256xf32>
    %1 = vector.extract_strided_slice %0 {offsets = [0, 0, 0], sizes = [2, 8, 16], strides = [1, 1, 1]} : vector<2x8x256xf32> to vector<2x8x16xf32>
    %cst = arith.constant dense<0xFF800000> : vector<2x8xf32>
    %2 = vector.multi_reduction <maximumf>, %1, %cst [2] : vector<2x8x16xf32> to vector<2x8xf32>
    %3 = vector.extract_strided_slice %0 {offsets = [0, 0, 16], sizes = [2, 8, 16], strides = [1, 1, 1]} : vector<2x8x256xf32> to vector<2x8x16xf32>
    %cst_2 = arith.constant dense<0xFF800000> : vector<2x8xf32>
    %4 = vector.multi_reduction <maximumf>, %3, %cst_2 [2] : vector<2x8x16xf32> to vector<2x8xf32>
    %5 = vector.extract_strided_slice %0 {offsets = [0, 0, 32], sizes = [2, 8, 16], strides = [1, 1, 1]} : vector<2x8x256xf32> to vector<2x8x16xf32>
    %cst_3 = arith.constant dense<0xFF800000> : vector<2x8xf32>
    %6 = vector.multi_reduction <maximumf>, %5, %cst_3 [2] : vector<2x8x16xf32> to vector<2x8xf32>
    %7 = vector.extract_strided_slice %0 {offsets = [0, 0, 48], sizes = [2, 8, 16], strides = [1, 1, 1]} : vector<2x8x256xf32> to vector<2x8x16xf32>
    %cst_4 = arith.constant dense<0xFF800000> : vector<2x8xf32>
    %8 = vector.multi_reduction <maximumf>, %7, %cst_4 [2] : vector<2x8x16xf32> to vector<2x8xf32>
    %9 = vector.extract_strided_slice %0 {offsets = [0, 0, 64], sizes = [2, 8, 16], strides = [1, 1, 1]} : vector<2x8x256xf32> to vector<2x8x16xf32>
    %cst_5 = arith.constant dense<0xFF800000> : vector<2x8xf32>
    %10 = vector.multi_reduction <maximumf>, %9, %cst_5 [2] : vector<2x8x16xf32> to vector<2x8xf32>
    %11 = vector.extract_strided_slice %0 {offsets = [0, 0, 80], sizes = [2, 8, 16], strides = [1, 1, 1]} : vector<2x8x256xf32> to vector<2x8x16xf32>
    %cst_6 = arith.constant dense<0xFF800000> : vector<2x8xf32>
    %12 = vector.multi_reduction <maximumf>, %11, %cst_6 [2] : vector<2x8x16xf32> to vector<2x8xf32>
    %13 = vector.extract_strided_slice %0 {offsets = [0, 0, 96], sizes = [2, 8, 16], strides = [1, 1, 1]} : vector<2x8x256xf32> to vector<2x8x16xf32>
    %cst_7 = arith.constant dense<0xFF800000> : vector<2x8xf32>
    %14 = vector.multi_reduction <maximumf>, %13, %cst_7 [2] : vector<2x8x16xf32> to vector<2x8xf32>
    %15 = vector.extract_strided_slice %0 {offsets = [0, 0, 112], sizes = [2, 8, 16], strides = [1, 1, 1]} : vector<2x8x256xf32> to vector<2x8x16xf32>
    %cst_8 = arith.constant dense<0xFF800000> : vector<2x8xf32>
    %16 = vector.multi_reduction <maximumf>, %15, %cst_8 [2] : vector<2x8x16xf32> to vector<2x8xf32>
    %17 = vector.extract_strided_slice %0 {offsets = [0, 0, 128], sizes = [2, 8, 16], strides = [1, 1, 1]} : vector<2x8x256xf32> to vector<2x8x16xf32>
    %cst_9 = arith.constant dense<0xFF800000> : vector<2x8xf32>
    %18 = vector.multi_reduction <maximumf>, %17, %cst_9 [2] : vector<2x8x16xf32> to vector<2x8xf32>
    %19 = vector.extract_strided_slice %0 {offsets = [0, 0, 144], sizes = [2, 8, 16], strides = [1, 1, 1]} : vector<2x8x256xf32> to vector<2x8x16xf32>
    %cst_10 = arith.constant dense<0xFF800000> : vector<2x8xf32>
    %20 = vector.multi_reduction <maximumf>, %19, %cst_10 [2] : vector<2x8x16xf32> to vector<2x8xf32>
    %21 = vector.extract_strided_slice %0 {offsets = [0, 0, 160], sizes = [2, 8, 16], strides = [1, 1, 1]} : vector<2x8x256xf32> to vector<2x8x16xf32>
    %cst_11 = arith.constant dense<0xFF800000> : vector<2x8xf32>
    %22 = vector.multi_reduction <maximumf>, %21, %cst_11 [2] : vector<2x8x16xf32> to vector<2x8xf32>
    %23 = vector.extract_strided_slice %0 {offsets = [0, 0, 176], sizes = [2, 8, 16], strides = [1, 1, 1]} : vector<2x8x256xf32> to vector<2x8x16xf32>
    %cst_12 = arith.constant dense<0xFF800000> : vector<2x8xf32>
    %24 = vector.multi_reduction <maximumf>, %23, %cst_12 [2] : vector<2x8x16xf32> to vector<2x8xf32>
    %25 = vector.extract_strided_slice %0 {offsets = [0, 0, 192], sizes = [2, 8, 16], strides = [1, 1, 1]} : vector<2x8x256xf32> to vector<2x8x16xf32>
    %cst_13 = arith.constant dense<0xFF800000> : vector<2x8xf32>
    %26 = vector.multi_reduction <maximumf>, %25, %cst_13 [2] : vector<2x8x16xf32> to vector<2x8xf32>
    %27 = vector.extract_strided_slice %0 {offsets = [0, 0, 208], sizes = [2, 8, 16], strides = [1, 1, 1]} : vector<2x8x256xf32> to vector<2x8x16xf32>
    %cst_14 = arith.constant dense<0xFF800000> : vector<2x8xf32>
    %28 = vector.multi_reduction <maximumf>, %27, %cst_14 [2] : vector<2x8x16xf32> to vector<2x8xf32>
    %29 = vector.extract_strided_slice %0 {offsets = [0, 0, 224], sizes = [2, 8, 16], strides = [1, 1, 1]} : vector<2x8x256xf32> to vector<2x8x16xf32>
    %cst_15 = arith.constant dense<0xFF800000> : vector<2x8xf32>
    %30 = vector.multi_reduction <maximumf>, %29, %cst_15 [2] : vector<2x8x16xf32> to vector<2x8xf32>
    %31 = vector.extract_strided_slice %0 {offsets = [0, 0, 240], sizes = [2, 8, 16], strides = [1, 1, 1]} : vector<2x8x256xf32> to vector<2x8x16xf32>
    %cst_16 = arith.constant dense<0xFF800000> : vector<2x8xf32>
    %32 = vector.multi_reduction <maximumf>, %31, %cst_16 [2] : vector<2x8x16xf32> to vector<2x8xf32>
    %33 = vector.shape_cast %0 : vector<2x8x256xf32> to vector<16x256xf32>
    %c0_17 = arith.constant 0 : index
    %c0_18 = arith.constant 0 : index
    %34 = vector.load %arg2[%c0_17, %c0_18] : memref<256x16xf32, #tpu.memory_space<vmem>>, vector<256x16xf32>
    %cst_19 = arith.constant dense<0.000000e+00> : vector<16x16xf32>
    %35 = tpu.matmul %33, %34, %cst_19 {dimension_numbers = #tpu.dot_dimension_numbers<[1], [0], [0], [1], [0, 0, 1, 1], [], []>} : vector<16x256xf32>, vector<256x16xf32>, vector<16x16xf32> -> vector<16x16xf32>
    %36 = vector.shape_cast %35 : vector<16x16xf32> to vector<2x8x16xf32>
    %37 = vector.extract_strided_slice %36 {offsets = [0, 0, 0], sizes = [2, 8, 1], strides = [1, 1, 1]} : vector<2x8x16xf32> to vector<2x8x1xf32>
    %38 = vector.shape_cast %37 : vector<2x8x1xf32> to vector<2x8xf32>
    %39 = vector.extract_strided_slice %36 {offsets = [0, 0, 1], sizes = [2, 8, 1], strides = [1, 1, 1]} : vector<2x8x16xf32> to vector<2x8x1xf32>
    %40 = vector.shape_cast %39 : vector<2x8x1xf32> to vector<2x8xf32>
    %41 = vector.extract_strided_slice %36 {offsets = [0, 0, 2], sizes = [2, 8, 1], strides = [1, 1, 1]} : vector<2x8x16xf32> to vector<2x8x1xf32>
    %42 = vector.shape_cast %41 : vector<2x8x1xf32> to vector<2x8xf32>
    %43 = vector.extract_strided_slice %36 {offsets = [0, 0, 3], sizes = [2, 8, 1], strides = [1, 1, 1]} : vector<2x8x16xf32> to vector<2x8x1xf32>
    %44 = vector.shape_cast %43 : vector<2x8x1xf32> to vector<2x8xf32>
    %45 = vector.extract_strided_slice %36 {offsets = [0, 0, 4], sizes = [2, 8, 1], strides = [1, 1, 1]} : vector<2x8x16xf32> to vector<2x8x1xf32>
    %46 = vector.shape_cast %45 : vector<2x8x1xf32> to vector<2x8xf32>
    %47 = vector.extract_strided_slice %36 {offsets = [0, 0, 5], sizes = [2, 8, 1], strides = [1, 1, 1]} : vector<2x8x16xf32> to vector<2x8x1xf32>
    %48 = vector.shape_cast %47 : vector<2x8x1xf32> to vector<2x8xf32>
    %49 = vector.extract_strided_slice %36 {offsets = [0, 0, 6], sizes = [2, 8, 1], strides = [1, 1, 1]} : vector<2x8x16xf32> to vector<2x8x1xf32>
    %50 = vector.shape_cast %49 : vector<2x8x1xf32> to vector<2x8xf32>
    %51 = vector.extract_strided_slice %36 {offsets = [0, 0, 7], sizes = [2, 8, 1], strides = [1, 1, 1]} : vector<2x8x16xf32> to vector<2x8x1xf32>
    %52 = vector.shape_cast %51 : vector<2x8x1xf32> to vector<2x8xf32>
    %53 = vector.extract_strided_slice %36 {offsets = [0, 0, 8], sizes = [2, 8, 1], strides = [1, 1, 1]} : vector<2x8x16xf32> to vector<2x8x1xf32>
    %54 = vector.shape_cast %53 : vector<2x8x1xf32> to vector<2x8xf32>
    %55 = vector.extract_strided_slice %36 {offsets = [0, 0, 9], sizes = [2, 8, 1], strides = [1, 1, 1]} : vector<2x8x16xf32> to vector<2x8x1xf32>
    %56 = vector.shape_cast %55 : vector<2x8x1xf32> to vector<2x8xf32>
    %57 = vector.extract_strided_slice %36 {offsets = [0, 0, 10], sizes = [2, 8, 1], strides = [1, 1, 1]} : vector<2x8x16xf32> to vector<2x8x1xf32>
    %58 = vector.shape_cast %57 : vector<2x8x1xf32> to vector<2x8xf32>
    %59 = vector.extract_strided_slice %36 {offsets = [0, 0, 11], sizes = [2, 8, 1], strides = [1, 1, 1]} : vector<2x8x16xf32> to vector<2x8x1xf32>
    %60 = vector.shape_cast %59 : vector<2x8x1xf32> to vector<2x8xf32>
    %61 = vector.extract_strided_slice %36 {offsets = [0, 0, 12], sizes = [2, 8, 1], strides = [1, 1, 1]} : vector<2x8x16xf32> to vector<2x8x1xf32>
    %62 = vector.shape_cast %61 : vector<2x8x1xf32> to vector<2x8xf32>
    %63 = vector.extract_strided_slice %36 {offsets = [0, 0, 13], sizes = [2, 8, 1], strides = [1, 1, 1]} : vector<2x8x16xf32> to vector<2x8x1xf32>
    %64 = vector.shape_cast %63 : vector<2x8x1xf32> to vector<2x8xf32>
    %65 = vector.extract_strided_slice %36 {offsets = [0, 0, 14], sizes = [2, 8, 1], strides = [1, 1, 1]} : vector<2x8x16xf32> to vector<2x8x1xf32>
    %66 = vector.shape_cast %65 : vector<2x8x1xf32> to vector<2x8xf32>
    %67 = vector.extract_strided_slice %36 {offsets = [0, 0, 15], sizes = [2, 8, 1], strides = [1, 1, 1]} : vector<2x8x16xf32> to vector<2x8x1xf32>
    %68 = vector.shape_cast %67 : vector<2x8x1xf32> to vector<2x8xf32>
    %69 = arith.addf %38, %2 : vector<2x8xf32>
    %70 = arith.truncf %69 : vector<2x8xf32> to vector<2x8xbf16>
    %c0_20 = arith.constant 0 : index
    %c120 = arith.constant 120 : index
    %71 = vector.load %arg5[%c0_20, %c120] : memref<2x248xbf16, #tpu.memory_space<vmem>>, vector<2x8xbf16>
    tpu.vector_store %arg5[%c0_20, %c120], %70 {strides = array<i32>} : memref<2x248xbf16, #tpu.memory_space<vmem>>, vector<2x8xbf16>,
    %72 = arith.addf %40, %4 : vector<2x8xf32>
    %73 = arith.truncf %72 : vector<2x8xf32> to vector<2x8xbf16>
    %c0_21 = arith.constant 0 : index
    %c128 = arith.constant 128 : index
    %74 = vector.load %arg5[%c0_21, %c128] : memref<2x248xbf16, #tpu.memory_space<vmem>>, vector<2x8xbf16>
    tpu.vector_store %arg5[%c0_21, %c128], %73 {strides = array<i32>} : memref<2x248xbf16, #tpu.memory_space<vmem>>, vector<2x8xbf16>,
    %75 = arith.addf %42, %6 : vector<2x8xf32>
    %76 = arith.truncf %75 : vector<2x8xf32> to vector<2x8xbf16>
    %c0_22 = arith.constant 0 : index
    %c136 = arith.constant 136 : index
    %77 = vector.load %arg5[%c0_22, %c136] : memref<2x248xbf16, #tpu.memory_space<vmem>>, vector<2x8xbf16>
    tpu.vector_store %arg5[%c0_22, %c136], %76 {strides = array<i32>} : memref<2x248xbf16, #tpu.memory_space<vmem>>, vector<2x8xbf16>,
    %78 = arith.addf %44, %8 : vector<2x8xf32>
    %79 = arith.truncf %78 : vector<2x8xf32> to vector<2x8xbf16>
    %c0_23 = arith.constant 0 : index
    %c144 = arith.constant 144 : index
    %80 = vector.load %arg5[%c0_23, %c144] : memref<2x248xbf16, #tpu.memory_space<vmem>>, vector<2x8xbf16>
    tpu.vector_store %arg5[%c0_23, %c144], %79 {strides = array<i32>} : memref<2x248xbf16, #tpu.memory_space<vmem>>, vector<2x8xbf16>,
    %81 = arith.addf %46, %10 : vector<2x8xf32>
    %82 = arith.truncf %81 : vector<2x8xf32> to vector<2x8xbf16>
    %c0_24 = arith.constant 0 : index
    %c152 = arith.constant 152 : index
    %83 = vector.load %arg5[%c0_24, %c152] : memref<2x248xbf16, #tpu.memory_space<vmem>>, vector<2x8xbf16>
    tpu.vector_store %arg5[%c0_24, %c152], %82 {strides = array<i32>} : memref<2x248xbf16, #tpu.memory_space<vmem>>, vector<2x8xbf16>,
    %84 = arith.addf %48, %12 : vector<2x8xf32>
    %85 = arith.truncf %84 : vector<2x8xf32> to vector<2x8xbf16>
    %c0_25 = arith.constant 0 : index
    %c160 = arith.constant 160 : index
    %86 = vector.load %arg5[%c0_25, %c160] : memref<2x248xbf16, #tpu.memory_space<vmem>>, vector<2x8xbf16>
    tpu.vector_store %arg5[%c0_25, %c160], %85 {strides = array<i32>} : memref<2x248xbf16, #tpu.memory_space<vmem>>, vector<2x8xbf16>,
    %87 = arith.addf %50, %14 : vector<2x8xf32>
    %88 = arith.truncf %87 : vector<2x8xf32> to vector<2x8xbf16>
    %c0_26 = arith.constant 0 : index
    %c168 = arith.constant 168 : index
    %89 = vector.load %arg5[%c0_26, %c168] : memref<2x248xbf16, #tpu.memory_space<vmem>>, vector<2x8xbf16>
    tpu.vector_store %arg5[%c0_26, %c168], %88 {strides = array<i32>} : memref<2x248xbf16, #tpu.memory_space<vmem>>, vector<2x8xbf16>,
    %90 = arith.addf %52, %16 : vector<2x8xf32>
    %91 = arith.truncf %90 : vector<2x8xf32> to vector<2x8xbf16>
    %c0_27 = arith.constant 0 : index
    %c176 = arith.constant 176 : index
    %92 = vector.load %arg5[%c0_27, %c176] : memref<2x248xbf16, #tpu.memory_space<vmem>>, vector<2x8xbf16>
    tpu.vector_store %arg5[%c0_27, %c176], %91 {strides = array<i32>} : memref<2x248xbf16, #tpu.memory_space<vmem>>, vector<2x8xbf16>,
    %93 = arith.addf %54, %18 : vector<2x8xf32>
    %94 = arith.truncf %93 : vector<2x8xf32> to vector<2x8xbf16>
    %c0_28 = arith.constant 0 : index
    %c184 = arith.constant 184 : index
    %95 = vector.load %arg5[%c0_28, %c184] : memref<2x248xbf16, #tpu.memory_space<vmem>>, vector<2x8xbf16>
    tpu.vector_store %arg5[%c0_28, %c184], %94 {strides = array<i32>} : memref<2x248xbf16, #tpu.memory_space<vmem>>, vector<2x8xbf16>,
    %96 = arith.addf %56, %20 : vector<2x8xf32>
    %97 = arith.truncf %96 : vector<2x8xf32> to vector<2x8xbf16>
    %c0_29 = arith.constant 0 : index
    %c192 = arith.constant 192 : index
    %98 = vector.load %arg5[%c0_29, %c192] : memref<2x248xbf16, #tpu.memory_space<vmem>>, vector<2x8xbf16>
    tpu.vector_store %arg5[%c0_29, %c192], %97 {strides = array<i32>} : memref<2x248xbf16, #tpu.memory_space<vmem>>, vector<2x8xbf16>,
    %99 = arith.addf %58, %22 : vector<2x8xf32>
    %100 = arith.truncf %99 : vector<2x8xf32> to vector<2x8xbf16>
    %c0_30 = arith.constant 0 : index
    %c200 = arith.constant 200 : index
    %101 = vector.load %arg5[%c0_30, %c200] : memref<2x248xbf16, #tpu.memory_space<vmem>>, vector<2x8xbf16>
    tpu.vector_store %arg5[%c0_30, %c200], %100 {strides = array<i32>} : memref<2x248xbf16, #tpu.memory_space<vmem>>, vector<2x8xbf16>,
    %102 = arith.addf %60, %24 : vector<2x8xf32>
    %103 = arith.truncf %102 : vector<2x8xf32> to vector<2x8xbf16>
    %c0_31 = arith.constant 0 : index
    %c208 = arith.constant 208 : index
    %104 = vector.load %arg5[%c0_31, %c208] : memref<2x248xbf16, #tpu.memory_space<vmem>>, vector<2x8xbf16>
    tpu.vector_store %arg5[%c0_31, %c208], %103 {strides = array<i32>} : memref<2x248xbf16, #tpu.memory_space<vmem>>, vector<2x8xbf16>,
    %105 = arith.addf %62, %26 : vector<2x8xf32>
    %106 = arith.truncf %105 : vector<2x8xf32> to vector<2x8xbf16>
    %c0_32 = arith.constant 0 : index
    %c216 = arith.constant 216 : index
    %107 = vector.load %arg5[%c0_32, %c216] : memref<2x248xbf16, #tpu.memory_space<vmem>>, vector<2x8xbf16>
    tpu.vector_store %arg5[%c0_32, %c216], %106 {strides = array<i32>} : memref<2x248xbf16, #tpu.memory_space<vmem>>, vector<2x8xbf16>,
    %108 = arith.addf %64, %28 : vector<2x8xf32>
    %109 = arith.truncf %108 : vector<2x8xf32> to vector<2x8xbf16>
    %c0_33 = arith.constant 0 : index
    %c224 = arith.constant 224 : index
    %110 = vector.load %arg5[%c0_33, %c224] : memref<2x248xbf16, #tpu.memory_space<vmem>>, vector<2x8xbf16>
    tpu.vector_store %arg5[%c0_33, %c224], %109 {strides = array<i32>} : memref<2x248xbf16, #tpu.memory_space<vmem>>, vector<2x8xbf16>,
    %111 = arith.addf %66, %30 : vector<2x8xf32>
    %112 = arith.truncf %111 : vector<2x8xf32> to vector<2x8xbf16>
    %c0_34 = arith.constant 0 : index
    %c232 = arith.constant 232 : index
    %113 = vector.load %arg5[%c0_34, %c232] : memref<2x248xbf16, #tpu.memory_space<vmem>>, vector<2x8xbf16>
    tpu.vector_store %arg5[%c0_34, %c232], %112 {strides = array<i32>} : memref<2x248xbf16, #tpu.memory_space<vmem>>, vector<2x8xbf16>,
    %114 = arith.addf %68, %32 : vector<2x8xf32>
    %115 = arith.truncf %114 : vector<2x8xf32> to vector<2x8xbf16>
    %c0_35 = arith.constant 0 : index
    %c240 = arith.constant 240 : index
    %116 = vector.load %arg5[%c0_35, %c240] : memref<2x248xbf16, #tpu.memory_space<vmem>>, vector<2x8xbf16>
    tpu.vector_store %arg5[%c0_35, %c240], %115 {strides = array<i32>} : memref<2x248xbf16, #tpu.memory_space<vmem>>, vector<2x8xbf16>,
    %117 = arith.addf %38, %40 : vector<2x8xf32>
    %cst_36 = arith.constant 5.000000e-01 : f32
    %118 = vector.broadcast %cst_36 : f32 to vector<2x8xf32>
    %119 = arith.mulf %117, %118 : vector<2x8xf32>
    %120 = arith.addf %42, %44 : vector<2x8xf32>
    %cst_37 = arith.constant 5.000000e-01 : f32
    %121 = vector.broadcast %cst_37 : f32 to vector<2x8xf32>
    %122 = arith.mulf %120, %121 : vector<2x8xf32>
    %123 = arith.addf %46, %48 : vector<2x8xf32>
    %cst_38 = arith.constant 5.000000e-01 : f32
    %124 = vector.broadcast %cst_38 : f32 to vector<2x8xf32>
    %125 = arith.mulf %123, %124 : vector<2x8xf32>
    %126 = arith.addf %50, %52 : vector<2x8xf32>
    %cst_39 = arith.constant 5.000000e-01 : f32
    %127 = vector.broadcast %cst_39 : f32 to vector<2x8xf32>
    %128 = arith.mulf %126, %127 : vector<2x8xf32>
    %129 = arith.addf %54, %56 : vector<2x8xf32>
    %cst_40 = arith.constant 5.000000e-01 : f32
    %130 = vector.broadcast %cst_40 : f32 to vector<2x8xf32>
    %131 = arith.mulf %129, %130 : vector<2x8xf32>
    %132 = arith.addf %58, %60 : vector<2x8xf32>
    %cst_41 = arith.constant 5.000000e-01 : f32
    %133 = vector.broadcast %cst_41 : f32 to vector<2x8xf32>
    %134 = arith.mulf %132, %133 : vector<2x8xf32>
    %135 = arith.addf %62, %64 : vector<2x8xf32>
    %cst_42 = arith.constant 5.000000e-01 : f32
    %136 = vector.broadcast %cst_42 : f32 to vector<2x8xf32>
    %137 = arith.mulf %135, %136 : vector<2x8xf32>
    %138 = arith.addf %66, %68 : vector<2x8xf32>
    %cst_43 = arith.constant 5.000000e-01 : f32
    %139 = vector.broadcast %cst_43 : f32 to vector<2x8xf32>
    %140 = arith.mulf %138, %139 : vector<2x8xf32>
    %141 = arith.maximumf %2, %4 : vector<2x8xf32>
    %142 = arith.maximumf %6, %8 : vector<2x8xf32>
    %143 = arith.maximumf %10, %12 : vector<2x8xf32>
    %144 = arith.maximumf %14, %16 : vector<2x8xf32>
    %145 = arith.maximumf %18, %20 : vector<2x8xf32>
    %146 = arith.maximumf %22, %24 : vector<2x8xf32>
    %147 = arith.maximumf %26, %28 : vector<2x8xf32>
    %148 = arith.maximumf %30, %32 : vector<2x8xf32>
    %149 = arith.addf %119, %141 : vector<2x8xf32>
    %150 = arith.truncf %149 : vector<2x8xf32> to vector<2x8xbf16>
    %c0_44 = arith.constant 0 : index
    %c56 = arith.constant 56 : index
    %151 = vector.load %arg5[%c0_44, %c56] : memref<2x248xbf16, #tpu.memory_space<vmem>>, vector<2x8xbf16>
    tpu.vector_store %arg5[%c0_44, %c56], %150 {strides = array<i32>} : memref<2x248xbf16, #tpu.memory_space<vmem>>, vector<2x8xbf16>,
    %152 = arith.addf %122, %142 : vector<2x8xf32>
    %153 = arith.truncf %152 : vector<2x8xf32> to vector<2x8xbf16>
    %c0_45 = arith.constant 0 : index
    %c64 = arith.constant 64 : index
    %154 = vector.load %arg5[%c0_45, %c64] : memref<2x248xbf16, #tpu.memory_space<vmem>>, vector<2x8xbf16>
    tpu.vector_store %arg5[%c0_45, %c64], %153 {strides = array<i32>} : memref<2x248xbf16, #tpu.memory_space<vmem>>, vector<2x8xbf16>,
    %155 = arith.addf %125, %143 : vector<2x8xf32>
    %156 = arith.truncf %155 : vector<2x8xf32> to vector<2x8xbf16>
    %c0_46 = arith.constant 0 : index
    %c72 = arith.constant 72 : index
    %157 = vector.load %arg5[%c0_46, %c72] : memref<2x248xbf16, #tpu.memory_space<vmem>>, vector<2x8xbf16>
    tpu.vector_store %arg5[%c0_46, %c72], %156 {strides = array<i32>} : memref<2x248xbf16, #tpu.memory_space<vmem>>, vector<2x8xbf16>,
    %158 = arith.addf %128, %144 : vector<2x8xf32>
    %159 = arith.truncf %158 : vector<2x8xf32> to vector<2x8xbf16>
    %c0_47 = arith.constant 0 : index
    %c80 = arith.constant 80 : index
    %160 = vector.load %arg5[%c0_47, %c80] : memref<2x248xbf16, #tpu.memory_space<vmem>>, vector<2x8xbf16>
    tpu.vector_store %arg5[%c0_47, %c80], %159 {strides = array<i32>} : memref<2x248xbf16, #tpu.memory_space<vmem>>, vector<2x8xbf16>,
    %161 = arith.addf %131, %145 : vector<2x8xf32>
    %162 = arith.truncf %161 : vector<2x8xf32> to vector<2x8xbf16>
    %c0_48 = arith.constant 0 : index
    %c88 = arith.constant 88 : index
    %163 = vector.load %arg5[%c0_48, %c88] : memref<2x248xbf16, #tpu.memory_space<vmem>>, vector<2x8xbf16>
    tpu.vector_store %arg5[%c0_48, %c88], %162 {strides = array<i32>} : memref<2x248xbf16, #tpu.memory_space<vmem>>, vector<2x8xbf16>,
    %164 = arith.addf %134, %146 : vector<2x8xf32>
    %165 = arith.truncf %164 : vector<2x8xf32> to vector<2x8xbf16>
    %c0_49 = arith.constant 0 : index
    %c96 = arith.constant 96 : index
    %166 = vector.load %arg5[%c0_49, %c96] : memref<2x248xbf16, #tpu.memory_space<vmem>>, vector<2x8xbf16>
    tpu.vector_store %arg5[%c0_49, %c96], %165 {strides = array<i32>} : memref<2x248xbf16, #tpu.memory_space<vmem>>, vector<2x8xbf16>,
    %167 = arith.addf %137, %147 : vector<2x8xf32>
    %168 = arith.truncf %167 : vector<2x8xf32> to vector<2x8xbf16>
    %c0_50 = arith.constant 0 : index
    %c104 = arith.constant 104 : index
    %169 = vector.load %arg5[%c0_50, %c104] : memref<2x248xbf16, #tpu.memory_space<vmem>>, vector<2x8xbf16>
    tpu.vector_store %arg5[%c0_50, %c104], %168 {strides = array<i32>} : memref<2x248xbf16, #tpu.memory_space<vmem>>, vector<2x8xbf16>,
    %170 = arith.addf %140, %148 : vector<2x8xf32>
    %171 = arith.truncf %170 : vector<2x8xf32> to vector<2x8xbf16>
    %c0_51 = arith.constant 0 : index
    %c112 = arith.constant 112 : index
    %172 = vector.load %arg5[%c0_51, %c112] : memref<2x248xbf16, #tpu.memory_space<vmem>>, vector<2x8xbf16>
    tpu.vector_store %arg5[%c0_51, %c112], %171 {strides = array<i32>} : memref<2x248xbf16, #tpu.memory_space<vmem>>, vector<2x8xbf16>,
    %173 = arith.addf %119, %122 : vector<2x8xf32>
    %cst_52 = arith.constant 5.000000e-01 : f32
    %174 = vector.broadcast %cst_52 : f32 to vector<2x8xf32>
    %175 = arith.mulf %173, %174 : vector<2x8xf32>
    %176 = arith.addf %125, %128 : vector<2x8xf32>
    %cst_53 = arith.constant 5.000000e-01 : f32
    %177 = vector.broadcast %cst_53 : f32 to vector<2x8xf32>
    %178 = arith.mulf %176, %177 : vector<2x8xf32>
    %179 = arith.addf %131, %134 : vector<2x8xf32>
    %cst_54 = arith.constant 5.000000e-01 : f32
    %180 = vector.broadcast %cst_54 : f32 to vector<2x8xf32>
    %181 = arith.mulf %179, %180 : vector<2x8xf32>
    %182 = arith.addf %137, %140 : vector<2x8xf32>
    %cst_55 = arith.constant 5.000000e-01 : f32
    %183 = vector.broadcast %cst_55 : f32 to vector<2x8xf32>
    %184 = arith.mulf %182, %183 : vector<2x8xf32>
    %185 = arith.maximumf %141, %142 : vector<2x8xf32>
    %186 = arith.maximumf %143, %144 : vector<2x8xf32>
    %187 = arith.maximumf %145, %146 : vector<2x8xf32>
    %188 = arith.maximumf %147, %148 : vector<2x8xf32>
    %189 = arith.addf %175, %185 : vector<2x8xf32>
    %190 = arith.truncf %189 : vector<2x8xf32> to vector<2x8xbf16>
    %c0_56 = arith.constant 0 : index
    %c24 = arith.constant 24 : index
    %191 = vector.load %arg5[%c0_56, %c24] : memref<2x248xbf16, #tpu.memory_space<vmem>>, vector<2x8xbf16>
    tpu.vector_store %arg5[%c0_56, %c24], %190 {strides = array<i32>} : memref<2x248xbf16, #tpu.memory_space<vmem>>, vector<2x8xbf16>,
    %192 = arith.addf %178, %186 : vector<2x8xf32>
    %193 = arith.truncf %192 : vector<2x8xf32> to vector<2x8xbf16>
    %c0_57 = arith.constant 0 : index
    %c32 = arith.constant 32 : index
    %194 = vector.load %arg5[%c0_57, %c32] : memref<2x248xbf16, #tpu.memory_space<vmem>>, vector<2x8xbf16>
    tpu.vector_store %arg5[%c0_57, %c32], %193 {strides = array<i32>} : memref<2x248xbf16, #tpu.memory_space<vmem>>, vector<2x8xbf16>,
    %195 = arith.addf %181, %187 : vector<2x8xf32>
    %196 = arith.truncf %195 : vector<2x8xf32> to vector<2x8xbf16>
    %c0_58 = arith.constant 0 : index
    %c40 = arith.constant 40 : index
    %197 = vector.load %arg5[%c0_58, %c40] : memref<2x248xbf16, #tpu.memory_space<vmem>>, vector<2x8xbf16>
    tpu.vector_store %arg5[%c0_58, %c40], %196 {strides = array<i32>} : memref<2x248xbf16, #tpu.memory_space<vmem>>, vector<2x8xbf16>,
    %198 = arith.addf %184, %188 : vector<2x8xf32>
    %199 = arith.truncf %198 : vector<2x8xf32> to vector<2x8xbf16>
    %c0_59 = arith.constant 0 : index
    %c48 = arith.constant 48 : index
    %200 = vector.load %arg5[%c0_59, %c48] : memref<2x248xbf16, #tpu.memory_space<vmem>>, vector<2x8xbf16>
    tpu.vector_store %arg5[%c0_59, %c48], %199 {strides = array<i32>} : memref<2x248xbf16, #tpu.memory_space<vmem>>, vector<2x8xbf16>,
    %201 = arith.addf %175, %178 : vector<2x8xf32>
    %cst_60 = arith.constant 5.000000e-01 : f32
    %202 = vector.broadcast %cst_60 : f32 to vector<2x8xf32>
    %203 = arith.mulf %201, %202 : vector<2x8xf32>
    %204 = arith.addf %181, %184 : vector<2x8xf32>
    %cst_61 = arith.constant 5.000000e-01 : f32
    %205 = vector.broadcast %cst_61 : f32 to vector<2x8xf32>
    %206 = arith.mulf %204, %205 : vector<2x8xf32>
    %207 = arith.maximumf %185, %186 : vector<2x8xf32>
    %208 = arith.maximumf %187, %188 : vector<2x8xf32>
    %209 = arith.addf %203, %207 : vector<2x8xf32>
    %210 = arith.truncf %209 : vector<2x8xf32> to vector<2x8xbf16>
    %c0_62 = arith.constant 0 : index
    %c8 = arith.constant 8 : index
    %211 = vector.load %arg5[%c0_62, %c8] : memref<2x248xbf16, #tpu.memory_space<vmem>>, vector<2x8xbf16>
    tpu.vector_store %arg5[%c0_62, %c8], %210 {strides = array<i32>} : memref<2x248xbf16, #tpu.memory_space<vmem>>, vector<2x8xbf16>,
    %212 = arith.addf %206, %208 : vector<2x8xf32>
    %213 = arith.truncf %212 : vector<2x8xf32> to vector<2x8xbf16>
    %c0_63 = arith.constant 0 : index
    %c16 = arith.constant 16 : index
    %214 = vector.load %arg5[%c0_63, %c16] : memref<2x248xbf16, #tpu.memory_space<vmem>>, vector<2x8xbf16>
    tpu.vector_store %arg5[%c0_63, %c16], %213 {strides = array<i32>} : memref<2x248xbf16, #tpu.memory_space<vmem>>, vector<2x8xbf16>,
    %215 = arith.addf %203, %206 : vector<2x8xf32>
    %cst_64 = arith.constant 5.000000e-01 : f32
    %216 = vector.broadcast %cst_64 : f32 to vector<2x8xf32>
    %217 = arith.mulf %215, %216 : vector<2x8xf32>
    %218 = arith.maximumf %207, %208 : vector<2x8xf32>
    %219 = arith.addf %217, %218 : vector<2x8xf32>
    %220 = arith.truncf %219 : vector<2x8xf32> to vector<2x8xbf16>
    %c0_65 = arith.constant 0 : index
    %c0_66 = arith.constant 0 : index
    %221 = vector.load %arg5[%c0_65, %c0_66] : memref<2x248xbf16, #tpu.memory_space<vmem>>, vector<2x8xbf16>
    tpu.vector_store %arg5[%c0_65, %c0_66], %220 {strides = array<i32>} : memref<2x248xbf16, #tpu.memory_space<vmem>>, vector<2x8xbf16>,
    %c0_67 = arith.constant 0 : index
    %c0_68 = arith.constant 0 : index
    %222 = vector.load %arg5[%c0_67, %c0_68] : memref<2x248xbf16, #tpu.memory_space<vmem>>, vector<2x248xbf16>
    %c0_69 = arith.constant 0 : index
    %c0_70 = arith.constant 0 : index
    %223 = vector.load %arg3[%c0_69, %c0_70] : memref<248x384xbf16, #tpu.memory_space<vmem>>, vector<248x384xbf16>
    %cst_71 = arith.constant dense<0.000000e+00> : vector<2x384xf32>
    %224 = tpu.matmul %222, %223, %cst_71 {dimension_numbers = #tpu.dot_dimension_numbers<[1], [0], [0], [1], [0, 0, 1, 1], [], []>} : vector<2x248xbf16>, vector<248x384xbf16>, vector<2x384xf32> -> vector<2x384xf32>
    %c0_72 = arith.constant 0 : index
    %c0_73 = arith.constant 0 : index
    %225 = vector.load %arg4[%c0_72, %c0_73] : memref<2x384xf32, #tpu.memory_space<vmem>>, vector<2x384xf32>
    tpu.vector_store %arg4[%c0_72, %c0_73], %224 {strides = array<i32>} : memref<2x384xf32, #tpu.memory_space<vmem>>, vector<2x384xf32>,
    return
  }
  func.func @transform_0(%arg0: i32) -> (i32, i32, i32) {
    %c0_i32 = arith.constant 0 : i32
    %c0_i32_0 = arith.constant 0 : i32
    %c0_i32_1 = arith.constant 0 : i32
    return %arg0, %c0_i32, %c0_i32_0 : i32, i32, i32
  }
  func.func @transform_1(%arg0: i32) -> (i32, i32) {
    %c0_i32 = arith.constant 0 : i32
    %c0_i32_0 = arith.constant 0 : i32
    %c0_i32_1 = arith.constant 0 : i32
    return %c0_i32, %c0_i32_0 : i32, i32
  }
  func.func @transform_2(%arg0: i32) -> (i32, i32) {
    %c0_i32 = arith.constant 0 : i32
    %c0_i32_0 = arith.constant 0 : i32
    %c0_i32_1 = arith.constant 0 : i32
    return %c0_i32, %c0_i32_0 : i32, i32
  }
  func.func @transform_3(%arg0: i32) -> (i32, i32) {
    %c0_i32 = arith.constant 0 : i32
    %c0_i32_0 = arith.constant 0 : i32
    return %arg0, %c0_i32 : i32, i32
  }
}

module attributes {stable_mosaic.version = 11 : i64} {
  func.func @hpm_kernel(%arg0: i32, %arg1: memref<2x8x256xf32, #tpu.memory_space<vmem>>, %arg2: memref<256x16xf32, #tpu.memory_space<vmem>>, %arg3: memref<248x384xbf16, #tpu.memory_space<vmem>>, %arg4: memref<2x384xf32, #tpu.memory_space<vmem>>, %arg5: memref<2x248xbf16, #tpu.memory_space<vmem>>) attributes {dimension_semantics = [#tpu.dimension_semantics<parallel>], iteration_bounds = array<i64: 1>, scalar_prefetch = 0 : i64, scratch_operands = 1 : i64, tpu.core_type = #tpu.core_type<tc>, window_params = [{transform_indices = @transform_0, window_bounds = array<i64: 2, 8, 256>}, {pipeline_mode = #tpu.pipeline_mode<synchronous>, transform_indices = @transform_1, window_bounds = array<i64: 256, 16>}, {pipeline_mode = #tpu.pipeline_mode<synchronous>, transform_indices = @transform_2, window_bounds = array<i64: 248, 384>}, {transform_indices = @transform_3, window_bounds = array<i64: 2, 384>}]} {
    %c0 = arith.constant 0 : index
    %c0_0 = arith.constant 0 : index
    %c0_1 = arith.constant 0 : index
    %0 = vector.load %arg1[%c0, %c0_0, %c0_1] : memref<2x8x256xf32, #tpu.memory_space<vmem>>, vector<2x8x256xf32>
    %1 = vector.extract_strided_slice %0 {offsets = [0, 0, 0], sizes = [2, 8, 16], strides = [1, 1, 1]} : vector<2x8x256xf32> to vector<2x8x16xf32>
    %cst = arith.constant dense<0xFF800000> : vector<2x8xf32>
    %2 = vector.multi_reduction <maximumf>, %1, %cst [2] : vector<2x8x16xf32> to vector<2x8xf32>
    %3 = vector.extract_strided_slice %0 {offsets = [0, 0, 16], sizes = [2, 8, 16], strides = [1, 1, 1]} : vector<2x8x256xf32> to vector<2x8x16xf32>
    %cst_2 = arith.constant dense<0xFF800000> : vector<2x8xf32>
    %4 = vector.multi_reduction <maximumf>, %3, %cst_2 [2] : vector<2x8x16xf32> to vector<2x8xf32>
    %5 = vector.extract_strided_slice %0 {offsets = [0, 0, 32], sizes = [2, 8, 16], strides = [1, 1, 1]} : vector<2x8x256xf32> to vector<2x8x16xf32>
    %cst_3 = arith.constant dense<0xFF800000> : vector<2x8xf32>
    %6 = vector.multi_reduction <maximumf>, %5, %cst_3 [2] : vector<2x8x16xf32> to vector<2x8xf32>
    %7 = vector.extract_strided_slice %0 {offsets = [0, 0, 48], sizes = [2, 8, 16], strides = [1, 1, 1]} : vector<2x8x256xf32> to vector<2x8x16xf32>
    %cst_4 = arith.constant dense<0xFF800000> : vector<2x8xf32>
    %8 = vector.multi_reduction <maximumf>, %7, %cst_4 [2] : vector<2x8x16xf32> to vector<2x8xf32>
    %9 = vector.extract_strided_slice %0 {offsets = [0, 0, 64], sizes = [2, 8, 16], strides = [1, 1, 1]} : vector<2x8x256xf32> to vector<2x8x16xf32>
    %cst_5 = arith.constant dense<0xFF800000> : vector<2x8xf32>
    %10 = vector.multi_reduction <maximumf>, %9, %cst_5 [2] : vector<2x8x16xf32> to vector<2x8xf32>
    %11 = vector.extract_strided_slice %0 {offsets = [0, 0, 80], sizes = [2, 8, 16], strides = [1, 1, 1]} : vector<2x8x256xf32> to vector<2x8x16xf32>
    %cst_6 = arith.constant dense<0xFF800000> : vector<2x8xf32>
    %12 = vector.multi_reduction <maximumf>, %11, %cst_6 [2] : vector<2x8x16xf32> to vector<2x8xf32>
    %13 = vector.extract_strided_slice %0 {offsets = [0, 0, 96], sizes = [2, 8, 16], strides = [1, 1, 1]} : vector<2x8x256xf32> to vector<2x8x16xf32>
    %cst_7 = arith.constant dense<0xFF800000> : vector<2x8xf32>
    %14 = vector.multi_reduction <maximumf>, %13, %cst_7 [2] : vector<2x8x16xf32> to vector<2x8xf32>
    %15 = vector.extract_strided_slice %0 {offsets = [0, 0, 112], sizes = [2, 8, 16], strides = [1, 1, 1]} : vector<2x8x256xf32> to vector<2x8x16xf32>
    %cst_8 = arith.constant dense<0xFF800000> : vector<2x8xf32>
    %16 = vector.multi_reduction <maximumf>, %15, %cst_8 [2] : vector<2x8x16xf32> to vector<2x8xf32>
    %17 = vector.extract_strided_slice %0 {offsets = [0, 0, 128], sizes = [2, 8, 16], strides = [1, 1, 1]} : vector<2x8x256xf32> to vector<2x8x16xf32>
    %cst_9 = arith.constant dense<0xFF800000> : vector<2x8xf32>
    %18 = vector.multi_reduction <maximumf>, %17, %cst_9 [2] : vector<2x8x16xf32> to vector<2x8xf32>
    %19 = vector.extract_strided_slice %0 {offsets = [0, 0, 144], sizes = [2, 8, 16], strides = [1, 1, 1]} : vector<2x8x256xf32> to vector<2x8x16xf32>
    %cst_10 = arith.constant dense<0xFF800000> : vector<2x8xf32>
    %20 = vector.multi_reduction <maximumf>, %19, %cst_10 [2] : vector<2x8x16xf32> to vector<2x8xf32>
    %21 = vector.extract_strided_slice %0 {offsets = [0, 0, 160], sizes = [2, 8, 16], strides = [1, 1, 1]} : vector<2x8x256xf32> to vector<2x8x16xf32>
    %cst_11 = arith.constant dense<0xFF800000> : vector<2x8xf32>
    %22 = vector.multi_reduction <maximumf>, %21, %cst_11 [2] : vector<2x8x16xf32> to vector<2x8xf32>
    %23 = vector.extract_strided_slice %0 {offsets = [0, 0, 176], sizes = [2, 8, 16], strides = [1, 1, 1]} : vector<2x8x256xf32> to vector<2x8x16xf32>
    %cst_12 = arith.constant dense<0xFF800000> : vector<2x8xf32>
    %24 = vector.multi_reduction <maximumf>, %23, %cst_12 [2] : vector<2x8x16xf32> to vector<2x8xf32>
    %25 = vector.extract_strided_slice %0 {offsets = [0, 0, 192], sizes = [2, 8, 16], strides = [1, 1, 1]} : vector<2x8x256xf32> to vector<2x8x16xf32>
    %cst_13 = arith.constant dense<0xFF800000> : vector<2x8xf32>
    %26 = vector.multi_reduction <maximumf>, %25, %cst_13 [2] : vector<2x8x16xf32> to vector<2x8xf32>
    %27 = vector.extract_strided_slice %0 {offsets = [0, 0, 208], sizes = [2, 8, 16], strides = [1, 1, 1]} : vector<2x8x256xf32> to vector<2x8x16xf32>
    %cst_14 = arith.constant dense<0xFF800000> : vector<2x8xf32>
    %28 = vector.multi_reduction <maximumf>, %27, %cst_14 [2] : vector<2x8x16xf32> to vector<2x8xf32>
    %29 = vector.extract_strided_slice %0 {offsets = [0, 0, 224], sizes = [2, 8, 16], strides = [1, 1, 1]} : vector<2x8x256xf32> to vector<2x8x16xf32>
    %cst_15 = arith.constant dense<0xFF800000> : vector<2x8xf32>
    %30 = vector.multi_reduction <maximumf>, %29, %cst_15 [2] : vector<2x8x16xf32> to vector<2x8xf32>
    %31 = vector.extract_strided_slice %0 {offsets = [0, 0, 240], sizes = [2, 8, 16], strides = [1, 1, 1]} : vector<2x8x256xf32> to vector<2x8x16xf32>
    %cst_16 = arith.constant dense<0xFF800000> : vector<2x8xf32>
    %32 = vector.multi_reduction <maximumf>, %31, %cst_16 [2] : vector<2x8x16xf32> to vector<2x8xf32>
    %33 = vector.shape_cast %0 : vector<2x8x256xf32> to vector<16x256xf32>
    %c0_17 = arith.constant 0 : index
    %c0_18 = arith.constant 0 : index
    %34 = vector.load %arg2[%c0_17, %c0_18] : memref<256x16xf32, #tpu.memory_space<vmem>>, vector<256x16xf32>
    %cst_19 = arith.constant dense<0.000000e+00> : vector<16x16xf32>
    %35 = tpu.matmul %33, %34, %cst_19 {dimension_numbers = #tpu.dot_dimension_numbers<[1], [0], [0], [1], [0, 0, 1, 1], [], []>} : vector<16x256xf32>, vector<256x16xf32>, vector<16x16xf32> -> vector<16x16xf32>
    %36 = vector.shape_cast %35 : vector<16x16xf32> to vector<2x8x16xf32>
    %37 = vector.extract_strided_slice %36 {offsets = [0, 0, 0], sizes = [2, 8, 1], strides = [1, 1, 1]} : vector<2x8x16xf32> to vector<2x8x1xf32>
    %38 = vector.shape_cast %37 : vector<2x8x1xf32> to vector<2x8xf32>
    %39 = vector.extract_strided_slice %36 {offsets = [0, 0, 1], sizes = [2, 8, 1], strides = [1, 1, 1]} : vector<2x8x16xf32> to vector<2x8x1xf32>
    %40 = vector.shape_cast %39 : vector<2x8x1xf32> to vector<2x8xf32>
    %41 = vector.extract_strided_slice %36 {offsets = [0, 0, 2], sizes = [2, 8, 1], strides = [1, 1, 1]} : vector<2x8x16xf32> to vector<2x8x1xf32>
    %42 = vector.shape_cast %41 : vector<2x8x1xf32> to vector<2x8xf32>
    %43 = vector.extract_strided_slice %36 {offsets = [0, 0, 3], sizes = [2, 8, 1], strides = [1, 1, 1]} : vector<2x8x16xf32> to vector<2x8x1xf32>
    %44 = vector.shape_cast %43 : vector<2x8x1xf32> to vector<2x8xf32>
    %45 = vector.extract_strided_slice %36 {offsets = [0, 0, 4], sizes = [2, 8, 1], strides = [1, 1, 1]} : vector<2x8x16xf32> to vector<2x8x1xf32>
    %46 = vector.shape_cast %45 : vector<2x8x1xf32> to vector<2x8xf32>
    %47 = vector.extract_strided_slice %36 {offsets = [0, 0, 5], sizes = [2, 8, 1], strides = [1, 1, 1]} : vector<2x8x16xf32> to vector<2x8x1xf32>
    %48 = vector.shape_cast %47 : vector<2x8x1xf32> to vector<2x8xf32>
    %49 = vector.extract_strided_slice %36 {offsets = [0, 0, 6], sizes = [2, 8, 1], strides = [1, 1, 1]} : vector<2x8x16xf32> to vector<2x8x1xf32>
    %50 = vector.shape_cast %49 : vector<2x8x1xf32> to vector<2x8xf32>
    %51 = vector.extract_strided_slice %36 {offsets = [0, 0, 7], sizes = [2, 8, 1], strides = [1, 1, 1]} : vector<2x8x16xf32> to vector<2x8x1xf32>
    %52 = vector.shape_cast %51 : vector<2x8x1xf32> to vector<2x8xf32>
    %53 = vector.extract_strided_slice %36 {offsets = [0, 0, 8], sizes = [2, 8, 1], strides = [1, 1, 1]} : vector<2x8x16xf32> to vector<2x8x1xf32>
    %54 = vector.shape_cast %53 : vector<2x8x1xf32> to vector<2x8xf32>
    %55 = vector.extract_strided_slice %36 {offsets = [0, 0, 9], sizes = [2, 8, 1], strides = [1, 1, 1]} : vector<2x8x16xf32> to vector<2x8x1xf32>
    %56 = vector.shape_cast %55 : vector<2x8x1xf32> to vector<2x8xf32>
    %57 = vector.extract_strided_slice %36 {offsets = [0, 0, 10], sizes = [2, 8, 1], strides = [1, 1, 1]} : vector<2x8x16xf32> to vector<2x8x1xf32>
    %58 = vector.shape_cast %57 : vector<2x8x1xf32> to vector<2x8xf32>
    %59 = vector.extract_strided_slice %36 {offsets = [0, 0, 11], sizes = [2, 8, 1], strides = [1, 1, 1]} : vector<2x8x16xf32> to vector<2x8x1xf32>
    %60 = vector.shape_cast %59 : vector<2x8x1xf32> to vector<2x8xf32>
    %61 = vector.extract_strided_slice %36 {offsets = [0, 0, 12], sizes = [2, 8, 1], strides = [1, 1, 1]} : vector<2x8x16xf32> to vector<2x8x1xf32>
    %62 = vector.shape_cast %61 : vector<2x8x1xf32> to vector<2x8xf32>
    %63 = vector.extract_strided_slice %36 {offsets = [0, 0, 13], sizes = [2, 8, 1], strides = [1, 1, 1]} : vector<2x8x16xf32> to vector<2x8x1xf32>
    %64 = vector.shape_cast %63 : vector<2x8x1xf32> to vector<2x8xf32>
    %65 = vector.extract_strided_slice %36 {offsets = [0, 0, 14], sizes = [2, 8, 1], strides = [1, 1, 1]} : vector<2x8x16xf32> to vector<2x8x1xf32>
    %66 = vector.shape_cast %65 : vector<2x8x1xf32> to vector<2x8xf32>
    %67 = vector.extract_strided_slice %36 {offsets = [0, 0, 15], sizes = [2, 8, 1], strides = [1, 1, 1]} : vector<2x8x16xf32> to vector<2x8x1xf32>
    %68 = vector.shape_cast %67 : vector<2x8x1xf32> to vector<2x8xf32>
    %69 = arith.addf %38, %2 : vector<2x8xf32>
    %70 = arith.truncf %69 : vector<2x8xf32> to vector<2x8xbf16>
    %c0_20 = arith.constant 0 : index
    %c120 = arith.constant 120 : index
    %71 = vector.load %arg5[%c0_20, %c120] : memref<2x248xbf16, #tpu.memory_space<vmem>>, vector<2x8xbf16>
    tpu.vector_store %arg5[%c0_20, %c120], %70 {strides = array<i32>} : memref<2x248xbf16, #tpu.memory_space<vmem>>, vector<2x8xbf16>,
    %72 = arith.addf %40, %4 : vector<2x8xf32>
    %73 = arith.truncf %72 : vector<2x8xf32> to vector<2x8xbf16>
    %c0_21 = arith.constant 0 : index
    %c128 = arith.constant 128 : index
    %74 = vector.load %arg5[%c0_21, %c128] : memref<2x248xbf16, #tpu.memory_space<vmem>>, vector<2x8xbf16>
    tpu.vector_store %arg5[%c0_21, %c128], %73 {strides = array<i32>} : memref<2x248xbf16, #tpu.memory_space<vmem>>, vector<2x8xbf16>,
    %75 = arith.addf %42, %6 : vector<2x8xf32>
    %76 = arith.truncf %75 : vector<2x8xf32> to vector<2x8xbf16>
    %c0_22 = arith.constant 0 : index
    %c136 = arith.constant 136 : index
    %77 = vector.load %arg5[%c0_22, %c136] : memref<2x248xbf16, #tpu.memory_space<vmem>>, vector<2x8xbf16>
    tpu.vector_store %arg5[%c0_22, %c136], %76 {strides = array<i32>} : memref<2x248xbf16, #tpu.memory_space<vmem>>, vector<2x8xbf16>,
    %78 = arith.addf %44, %8 : vector<2x8xf32>
    %79 = arith.truncf %78 : vector<2x8xf32> to vector<2x8xbf16>
    %c0_23 = arith.constant 0 : index
    %c144 = arith.constant 144 : index
    %80 = vector.load %arg5[%c0_23, %c144] : memref<2x248xbf16, #tpu.memory_space<vmem>>, vector<2x8xbf16>
    tpu.vector_store %arg5[%c0_23, %c144], %79 {strides = array<i32>} : memref<2x248xbf16, #tpu.memory_space<vmem>>, vector<2x8xbf16>,
    %81 = arith.addf %46, %10 : vector<2x8xf32>
    %82 = arith.truncf %81 : vector<2x8xf32> to vector<2x8xbf16>
    %c0_24 = arith.constant 0 : index
    %c152 = arith.constant 152 : index
    %83 = vector.load %arg5[%c0_24, %c152] : memref<2x248xbf16, #tpu.memory_space<vmem>>, vector<2x8xbf16>
    tpu.vector_store %arg5[%c0_24, %c152], %82 {strides = array<i32>} : memref<2x248xbf16, #tpu.memory_space<vmem>>, vector<2x8xbf16>,
    %84 = arith.addf %48, %12 : vector<2x8xf32>
    %85 = arith.truncf %84 : vector<2x8xf32> to vector<2x8xbf16>
    %c0_25 = arith.constant 0 : index
    %c160 = arith.constant 160 : index
    %86 = vector.load %arg5[%c0_25, %c160] : memref<2x248xbf16, #tpu.memory_space<vmem>>, vector<2x8xbf16>
    tpu.vector_store %arg5[%c0_25, %c160], %85 {strides = array<i32>} : memref<2x248xbf16, #tpu.memory_space<vmem>>, vector<2x8xbf16>,
    %87 = arith.addf %50, %14 : vector<2x8xf32>
    %88 = arith.truncf %87 : vector<2x8xf32> to vector<2x8xbf16>
    %c0_26 = arith.constant 0 : index
    %c168 = arith.constant 168 : index
    %89 = vector.load %arg5[%c0_26, %c168] : memref<2x248xbf16, #tpu.memory_space<vmem>>, vector<2x8xbf16>
    tpu.vector_store %arg5[%c0_26, %c168], %88 {strides = array<i32>} : memref<2x248xbf16, #tpu.memory_space<vmem>>, vector<2x8xbf16>,
    %90 = arith.addf %52, %16 : vector<2x8xf32>
    %91 = arith.truncf %90 : vector<2x8xf32> to vector<2x8xbf16>
    %c0_27 = arith.constant 0 : index
    %c176 = arith.constant 176 : index
    %92 = vector.load %arg5[%c0_27, %c176] : memref<2x248xbf16, #tpu.memory_space<vmem>>, vector<2x8xbf16>
    tpu.vector_store %arg5[%c0_27, %c176], %91 {strides = array<i32>} : memref<2x248xbf16, #tpu.memory_space<vmem>>, vector<2x8xbf16>,
    %93 = arith.addf %54, %18 : vector<2x8xf32>
    %94 = arith.truncf %93 : vector<2x8xf32> to vector<2x8xbf16>
    %c0_28 = arith.constant 0 : index
    %c184 = arith.constant 184 : index
    %95 = vector.load %arg5[%c0_28, %c184] : memref<2x248xbf16, #tpu.memory_space<vmem>>, vector<2x8xbf16>
    tpu.vector_store %arg5[%c0_28, %c184], %94 {strides = array<i32>} : memref<2x248xbf16, #tpu.memory_space<vmem>>, vector<2x8xbf16>,
    %96 = arith.addf %56, %20 : vector<2x8xf32>
    %97 = arith.truncf %96 : vector<2x8xf32> to vector<2x8xbf16>
    %c0_29 = arith.constant 0 : index
    %c192 = arith.constant 192 : index
    %98 = vector.load %arg5[%c0_29, %c192] : memref<2x248xbf16, #tpu.memory_space<vmem>>, vector<2x8xbf16>
    tpu.vector_store %arg5[%c0_29, %c192], %97 {strides = array<i32>} : memref<2x248xbf16, #tpu.memory_space<vmem>>, vector<2x8xbf16>,
    %99 = arith.addf %58, %22 : vector<2x8xf32>
    %100 = arith.truncf %99 : vector<2x8xf32> to vector<2x8xbf16>
    %c0_30 = arith.constant 0 : index
    %c200 = arith.constant 200 : index
    %101 = vector.load %arg5[%c0_30, %c200] : memref<2x248xbf16, #tpu.memory_space<vmem>>, vector<2x8xbf16>
    tpu.vector_store %arg5[%c0_30, %c200], %100 {strides = array<i32>} : memref<2x248xbf16, #tpu.memory_space<vmem>>, vector<2x8xbf16>,
    %102 = arith.addf %60, %24 : vector<2x8xf32>
    %103 = arith.truncf %102 : vector<2x8xf32> to vector<2x8xbf16>
    %c0_31 = arith.constant 0 : index
    %c208 = arith.constant 208 : index
    %104 = vector.load %arg5[%c0_31, %c208] : memref<2x248xbf16, #tpu.memory_space<vmem>>, vector<2x8xbf16>
    tpu.vector_store %arg5[%c0_31, %c208], %103 {strides = array<i32>} : memref<2x248xbf16, #tpu.memory_space<vmem>>, vector<2x8xbf16>,
    %105 = arith.addf %62, %26 : vector<2x8xf32>
    %106 = arith.truncf %105 : vector<2x8xf32> to vector<2x8xbf16>
    %c0_32 = arith.constant 0 : index
    %c216 = arith.constant 216 : index
    %107 = vector.load %arg5[%c0_32, %c216] : memref<2x248xbf16, #tpu.memory_space<vmem>>, vector<2x8xbf16>
    tpu.vector_store %arg5[%c0_32, %c216], %106 {strides = array<i32>} : memref<2x248xbf16, #tpu.memory_space<vmem>>, vector<2x8xbf16>,
    %108 = arith.addf %64, %28 : vector<2x8xf32>
    %109 = arith.truncf %108 : vector<2x8xf32> to vector<2x8xbf16>
    %c0_33 = arith.constant 0 : index
    %c224 = arith.constant 224 : index
    %110 = vector.load %arg5[%c0_33, %c224] : memref<2x248xbf16, #tpu.memory_space<vmem>>, vector<2x8xbf16>
    tpu.vector_store %arg5[%c0_33, %c224], %109 {strides = array<i32>} : memref<2x248xbf16, #tpu.memory_space<vmem>>, vector<2x8xbf16>,
    %111 = arith.addf %66, %30 : vector<2x8xf32>
    %112 = arith.truncf %111 : vector<2x8xf32> to vector<2x8xbf16>
    %c0_34 = arith.constant 0 : index
    %c232 = arith.constant 232 : index
    %113 = vector.load %arg5[%c0_34, %c232] : memref<2x248xbf16, #tpu.memory_space<vmem>>, vector<2x8xbf16>
    tpu.vector_store %arg5[%c0_34, %c232], %112 {strides = array<i32>} : memref<2x248xbf16, #tpu.memory_space<vmem>>, vector<2x8xbf16>,
    %114 = arith.addf %68, %32 : vector<2x8xf32>
    %115 = arith.truncf %114 : vector<2x8xf32> to vector<2x8xbf16>
    %c0_35 = arith.constant 0 : index
    %c240 = arith.constant 240 : index
    %116 = vector.load %arg5[%c0_35, %c240] : memref<2x248xbf16, #tpu.memory_space<vmem>>, vector<2x8xbf16>
    tpu.vector_store %arg5[%c0_35, %c240], %115 {strides = array<i32>} : memref<2x248xbf16, #tpu.memory_space<vmem>>, vector<2x8xbf16>,
    %117 = arith.addf %38, %40 : vector<2x8xf32>
    %cst_36 = arith.constant 5.000000e-01 : f32
    %118 = vector.broadcast %cst_36 : f32 to vector<2x8xf32>
    %119 = arith.mulf %117, %118 : vector<2x8xf32>
    %120 = arith.addf %42, %44 : vector<2x8xf32>
    %cst_37 = arith.constant 5.000000e-01 : f32
    %121 = vector.broadcast %cst_37 : f32 to vector<2x8xf32>
    %122 = arith.mulf %120, %121 : vector<2x8xf32>
    %123 = arith.addf %46, %48 : vector<2x8xf32>
    %cst_38 = arith.constant 5.000000e-01 : f32
    %124 = vector.broadcast %cst_38 : f32 to vector<2x8xf32>
    %125 = arith.mulf %123, %124 : vector<2x8xf32>
    %126 = arith.addf %50, %52 : vector<2x8xf32>
    %cst_39 = arith.constant 5.000000e-01 : f32
    %127 = vector.broadcast %cst_39 : f32 to vector<2x8xf32>
    %128 = arith.mulf %126, %127 : vector<2x8xf32>
    %129 = arith.addf %54, %56 : vector<2x8xf32>
    %cst_40 = arith.constant 5.000000e-01 : f32
    %130 = vector.broadcast %cst_40 : f32 to vector<2x8xf32>
    %131 = arith.mulf %129, %130 : vector<2x8xf32>
    %132 = arith.addf %58, %60 : vector<2x8xf32>
    %cst_41 = arith.constant 5.000000e-01 : f32
    %133 = vector.broadcast %cst_41 : f32 to vector<2x8xf32>
    %134 = arith.mulf %132, %133 : vector<2x8xf32>
    %135 = arith.addf %62, %64 : vector<2x8xf32>
    %cst_42 = arith.constant 5.000000e-01 : f32
    %136 = vector.broadcast %cst_42 : f32 to vector<2x8xf32>
    %137 = arith.mulf %135, %136 : vector<2x8xf32>
    %138 = arith.addf %66, %68 : vector<2x8xf32>
    %cst_43 = arith.constant 5.000000e-01 : f32
    %139 = vector.broadcast %cst_43 : f32 to vector<2x8xf32>
    %140 = arith.mulf %138, %139 : vector<2x8xf32>
    %141 = arith.maximumf %2, %4 : vector<2x8xf32>
    %142 = arith.maximumf %6, %8 : vector<2x8xf32>
    %143 = arith.maximumf %10, %12 : vector<2x8xf32>
    %144 = arith.maximumf %14, %16 : vector<2x8xf32>
    %145 = arith.maximumf %18, %20 : vector<2x8xf32>
    %146 = arith.maximumf %22, %24 : vector<2x8xf32>
    %147 = arith.maximumf %26, %28 : vector<2x8xf32>
    %148 = arith.maximumf %30, %32 : vector<2x8xf32>
    %149 = arith.addf %119, %141 : vector<2x8xf32>
    %150 = arith.truncf %149 : vector<2x8xf32> to vector<2x8xbf16>
    %c0_44 = arith.constant 0 : index
    %c56 = arith.constant 56 : index
    %151 = vector.load %arg5[%c0_44, %c56] : memref<2x248xbf16, #tpu.memory_space<vmem>>, vector<2x8xbf16>
    tpu.vector_store %arg5[%c0_44, %c56], %150 {strides = array<i32>} : memref<2x248xbf16, #tpu.memory_space<vmem>>, vector<2x8xbf16>,
    %152 = arith.addf %122, %142 : vector<2x8xf32>
    %153 = arith.truncf %152 : vector<2x8xf32> to vector<2x8xbf16>
    %c0_45 = arith.constant 0 : index
    %c64 = arith.constant 64 : index
    %154 = vector.load %arg5[%c0_45, %c64] : memref<2x248xbf16, #tpu.memory_space<vmem>>, vector<2x8xbf16>
    tpu.vector_store %arg5[%c0_45, %c64], %153 {strides = array<i32>} : memref<2x248xbf16, #tpu.memory_space<vmem>>, vector<2x8xbf16>,
    %155 = arith.addf %125, %143 : vector<2x8xf32>
    %156 = arith.truncf %155 : vector<2x8xf32> to vector<2x8xbf16>
    %c0_46 = arith.constant 0 : index
    %c72 = arith.constant 72 : index
    %157 = vector.load %arg5[%c0_46, %c72] : memref<2x248xbf16, #tpu.memory_space<vmem>>, vector<2x8xbf16>
    tpu.vector_store %arg5[%c0_46, %c72], %156 {strides = array<i32>} : memref<2x248xbf16, #tpu.memory_space<vmem>>, vector<2x8xbf16>,
    %158 = arith.addf %128, %144 : vector<2x8xf32>
    %159 = arith.truncf %158 : vector<2x8xf32> to vector<2x8xbf16>
    %c0_47 = arith.constant 0 : index
    %c80 = arith.constant 80 : index
    %160 = vector.load %arg5[%c0_47, %c80] : memref<2x248xbf16, #tpu.memory_space<vmem>>, vector<2x8xbf16>
    tpu.vector_store %arg5[%c0_47, %c80], %159 {strides = array<i32>} : memref<2x248xbf16, #tpu.memory_space<vmem>>, vector<2x8xbf16>,
    %161 = arith.addf %131, %145 : vector<2x8xf32>
    %162 = arith.truncf %161 : vector<2x8xf32> to vector<2x8xbf16>
    %c0_48 = arith.constant 0 : index
    %c88 = arith.constant 88 : index
    %163 = vector.load %arg5[%c0_48, %c88] : memref<2x248xbf16, #tpu.memory_space<vmem>>, vector<2x8xbf16>
    tpu.vector_store %arg5[%c0_48, %c88], %162 {strides = array<i32>} : memref<2x248xbf16, #tpu.memory_space<vmem>>, vector<2x8xbf16>,
    %164 = arith.addf %134, %146 : vector<2x8xf32>
    %165 = arith.truncf %164 : vector<2x8xf32> to vector<2x8xbf16>
    %c0_49 = arith.constant 0 : index
    %c96 = arith.constant 96 : index
    %166 = vector.load %arg5[%c0_49, %c96] : memref<2x248xbf16, #tpu.memory_space<vmem>>, vector<2x8xbf16>
    tpu.vector_store %arg5[%c0_49, %c96], %165 {strides = array<i32>} : memref<2x248xbf16, #tpu.memory_space<vmem>>, vector<2x8xbf16>,
    %167 = arith.addf %137, %147 : vector<2x8xf32>
    %168 = arith.truncf %167 : vector<2x8xf32> to vector<2x8xbf16>
    %c0_50 = arith.constant 0 : index
    %c104 = arith.constant 104 : index
    %169 = vector.load %arg5[%c0_50, %c104] : memref<2x248xbf16, #tpu.memory_space<vmem>>, vector<2x8xbf16>
    tpu.vector_store %arg5[%c0_50, %c104], %168 {strides = array<i32>} : memref<2x248xbf16, #tpu.memory_space<vmem>>, vector<2x8xbf16>,
    %170 = arith.addf %140, %148 : vector<2x8xf32>
    %171 = arith.truncf %170 : vector<2x8xf32> to vector<2x8xbf16>
    %c0_51 = arith.constant 0 : index
    %c112 = arith.constant 112 : index
    %172 = vector.load %arg5[%c0_51, %c112] : memref<2x248xbf16, #tpu.memory_space<vmem>>, vector<2x8xbf16>
    tpu.vector_store %arg5[%c0_51, %c112], %171 {strides = array<i32>} : memref<2x248xbf16, #tpu.memory_space<vmem>>, vector<2x8xbf16>,
    %173 = arith.addf %119, %122 : vector<2x8xf32>
    %cst_52 = arith.constant 5.000000e-01 : f32
    %174 = vector.broadcast %cst_52 : f32 to vector<2x8xf32>
    %175 = arith.mulf %173, %174 : vector<2x8xf32>
    %176 = arith.addf %125, %128 : vector<2x8xf32>
    %cst_53 = arith.constant 5.000000e-01 : f32
    %177 = vector.broadcast %cst_53 : f32 to vector<2x8xf32>
    %178 = arith.mulf %176, %177 : vector<2x8xf32>
    %179 = arith.addf %131, %134 : vector<2x8xf32>
    %cst_54 = arith.constant 5.000000e-01 : f32
    %180 = vector.broadcast %cst_54 : f32 to vector<2x8xf32>
    %181 = arith.mulf %179, %180 : vector<2x8xf32>
    %182 = arith.addf %137, %140 : vector<2x8xf32>
    %cst_55 = arith.constant 5.000000e-01 : f32
    %183 = vector.broadcast %cst_55 : f32 to vector<2x8xf32>
    %184 = arith.mulf %182, %183 : vector<2x8xf32>
    %185 = arith.maximumf %141, %142 : vector<2x8xf32>
    %186 = arith.maximumf %143, %144 : vector<2x8xf32>
    %187 = arith.maximumf %145, %146 : vector<2x8xf32>
    %188 = arith.maximumf %147, %148 : vector<2x8xf32>
    %189 = arith.addf %175, %185 : vector<2x8xf32>
    %190 = arith.truncf %189 : vector<2x8xf32> to vector<2x8xbf16>
    %c0_56 = arith.constant 0 : index
    %c24 = arith.constant 24 : index
    %191 = vector.load %arg5[%c0_56, %c24] : memref<2x248xbf16, #tpu.memory_space<vmem>>, vector<2x8xbf16>
    tpu.vector_store %arg5[%c0_56, %c24], %190 {strides = array<i32>} : memref<2x248xbf16, #tpu.memory_space<vmem>>, vector<2x8xbf16>,
    %192 = arith.addf %178, %186 : vector<2x8xf32>
    %193 = arith.truncf %192 : vector<2x8xf32> to vector<2x8xbf16>
    %c0_57 = arith.constant 0 : index
    %c32 = arith.constant 32 : index
    %194 = vector.load %arg5[%c0_57, %c32] : memref<2x248xbf16, #tpu.memory_space<vmem>>, vector<2x8xbf16>
    tpu.vector_store %arg5[%c0_57, %c32], %193 {strides = array<i32>} : memref<2x248xbf16, #tpu.memory_space<vmem>>, vector<2x8xbf16>,
    %195 = arith.addf %181, %187 : vector<2x8xf32>
    %196 = arith.truncf %195 : vector<2x8xf32> to vector<2x8xbf16>
    %c0_58 = arith.constant 0 : index
    %c40 = arith.constant 40 : index
    %197 = vector.load %arg5[%c0_58, %c40] : memref<2x248xbf16, #tpu.memory_space<vmem>>, vector<2x8xbf16>
    tpu.vector_store %arg5[%c0_58, %c40], %196 {strides = array<i32>} : memref<2x248xbf16, #tpu.memory_space<vmem>>, vector<2x8xbf16>,
    %198 = arith.addf %184, %188 : vector<2x8xf32>
    %199 = arith.truncf %198 : vector<2x8xf32> to vector<2x8xbf16>
    %c0_59 = arith.constant 0 : index
    %c48 = arith.constant 48 : index
    %200 = vector.load %arg5[%c0_59, %c48] : memref<2x248xbf16, #tpu.memory_space<vmem>>, vector<2x8xbf16>
    tpu.vector_store %arg5[%c0_59, %c48], %199 {strides = array<i32>} : memref<2x248xbf16, #tpu.memory_space<vmem>>, vector<2x8xbf16>,
    %201 = arith.addf %175, %178 : vector<2x8xf32>
    %cst_60 = arith.constant 5.000000e-01 : f32
    %202 = vector.broadcast %cst_60 : f32 to vector<2x8xf32>
    %203 = arith.mulf %201, %202 : vector<2x8xf32>
    %204 = arith.addf %181, %184 : vector<2x8xf32>
    %cst_61 = arith.constant 5.000000e-01 : f32
    %205 = vector.broadcast %cst_61 : f32 to vector<2x8xf32>
    %206 = arith.mulf %204, %205 : vector<2x8xf32>
    %207 = arith.maximumf %185, %186 : vector<2x8xf32>
    %208 = arith.maximumf %187, %188 : vector<2x8xf32>
    %209 = arith.addf %203, %207 : vector<2x8xf32>
    %210 = arith.truncf %209 : vector<2x8xf32> to vector<2x8xbf16>
    %c0_62 = arith.constant 0 : index
    %c8 = arith.constant 8 : index
    %211 = vector.load %arg5[%c0_62, %c8] : memref<2x248xbf16, #tpu.memory_space<vmem>>, vector<2x8xbf16>
    tpu.vector_store %arg5[%c0_62, %c8], %210 {strides = array<i32>} : memref<2x248xbf16, #tpu.memory_space<vmem>>, vector<2x8xbf16>,
    %212 = arith.addf %206, %208 : vector<2x8xf32>
    %213 = arith.truncf %212 : vector<2x8xf32> to vector<2x8xbf16>
    %c0_63 = arith.constant 0 : index
    %c16 = arith.constant 16 : index
    %214 = vector.load %arg5[%c0_63, %c16] : memref<2x248xbf16, #tpu.memory_space<vmem>>, vector<2x8xbf16>
    tpu.vector_store %arg5[%c0_63, %c16], %213 {strides = array<i32>} : memref<2x248xbf16, #tpu.memory_space<vmem>>, vector<2x8xbf16>,
    %215 = arith.addf %203, %206 : vector<2x8xf32>
    %cst_64 = arith.constant 5.000000e-01 : f32
    %216 = vector.broadcast %cst_64 : f32 to vector<2x8xf32>
    %217 = arith.mulf %215, %216 : vector<2x8xf32>
    %218 = arith.maximumf %207, %208 : vector<2x8xf32>
    %219 = arith.addf %217, %218 : vector<2x8xf32>
    %220 = arith.truncf %219 : vector<2x8xf32> to vector<2x8xbf16>
    %c0_65 = arith.constant 0 : index
    %c0_66 = arith.constant 0 : index
    %221 = vector.load %arg5[%c0_65, %c0_66] : memref<2x248xbf16, #tpu.memory_space<vmem>>, vector<2x8xbf16>
    tpu.vector_store %arg5[%c0_65, %c0_66], %220 {strides = array<i32>} : memref<2x248xbf16, #tpu.memory_space<vmem>>, vector<2x8xbf16>,
    %c0_67 = arith.constant 0 : index
    %c0_68 = arith.constant 0 : index
    %222 = vector.load %arg5[%c0_67, %c0_68] : memref<2x248xbf16, #tpu.memory_space<vmem>>, vector<2x248xbf16>
    %c0_69 = arith.constant 0 : index
    %c0_70 = arith.constant 0 : index
    %223 = vector.load %arg3[%c0_69, %c0_70] : memref<248x384xbf16, #tpu.memory_space<vmem>>, vector<248x384xbf16>
    %cst_71 = arith.constant dense<0.000000e+00> : vector<2x384xf32>
    %224 = tpu.matmul %222, %223, %cst_71 {dimension_numbers = #tpu.dot_dimension_numbers<[1], [0], [0], [1], [0, 0, 1, 1], [], []>} : vector<2x248xbf16>, vector<248x384xbf16>, vector<2x384xf32> -> vector<2x384xf32>
    %c0_72 = arith.constant 0 : index
    %c0_73 = arith.constant 0 : index
    %225 = vector.load %arg4[%c0_72, %c0_73] : memref<2x384xf32, #tpu.memory_space<vmem>>, vector<2x384xf32>
    tpu.vector_store %arg4[%c0_72, %c0_73], %224 {strides = array<i32>} : memref<2x384xf32, #tpu.memory_space<vmem>>, vector<2x384xf32>,
    return
  }
  func.func @transform_0(%arg0: i32) -> (i32, i32, i32) {
    %c0_i32 = arith.constant 0 : i32
    %c0_i32_0 = arith.constant 0 : i32
    %c0_i32_1 = arith.constant 0 : i32
    return %arg0, %c0_i32, %c0_i32_0 : i32, i32, i32
  }
  func.func @transform_1(%arg0: i32) -> (i32, i32) {
    %c0_i32 = arith.constant 0 : i32
    %c0_i32_0 = arith.constant 0 : i32
    %c0_i32_1 = arith.constant 0 : i32
    return %c0_i32, %c0_i32_0 : i32, i32
  }
  func.func @transform_2(%arg0: i32) -> (i32, i32) {
    %c0_i32 = arith.constant 0 : i32
    %c0_i32_0 = arith.constant 0 : i32
    %c0_i32_1 = arith.constant 0 : i32
    return %c0_i32, %c0_i32_0 : i32, i32
  }
  func.func @transform_3(%arg0: i32) -> (i32, i32) {
    %c0_i32 = arith.constant 0 : i32
    %c0_i32_0 = arith.constant 0 : i32
    return %arg0, %c0_i32 : i32, i32
  }
}

</mosaic_0001>

<llo_original>
// kernel: tpu_custom_call.1
$region0: #{tpu_custom_call.1}
  #allocation0 [shape = 'u32[]', space=smem, size = 0x4, offset = 0x4, fixed_abs, tag = 'smem constant byte address 0x4 - core index']
  #allocation1 [shape = 'u32[144,128]{1,0:T(1,128)}', space=vmem, size = 0x12000, scoped, tag = 'internal scratch']
  #allocation2 [shape = 'bf16[2,248]{1,0:T(2,128)(2,1)}', space=vmem, size = 0x400, scoped, tag = 'scratch operand']
  %s0 = inlined_call_operand.vmem [shape: f32[2,8,256], index: 0, kind: input, shape index: {}]
  %s1 = inlined_call_operand.vmem [shape: f32[256,16], index: 1, kind: input, shape index: {}]
  %s2 = inlined_call_operand.hbm [shape: bf16[248,384], index: 2, kind: input, shape index: {}]
  %s3 = inlined_call_operand.hbm [shape: f32[2,384], index: 3, kind: output, shape index: {}]
  %s4 = sld [smem:[#allocation0]]
  $region26: #{tpu_custom_call.1} parent=0
    _
  %s6 = ssub.s32 1, %s4
  %s7 = scalar_select 0, %s6, %s4
  $region1: #{tpu_custom_call.1} parent=0
    #allocation3 [shape = 'u8[190464]{0}', space=vmem, size = 0x2e800, scoped, tag = 'input window, operand 2, single buffered']
    #allocation4 [shape = 's32[1]{0}', space=sflag, size = 0x4, scoped, tag = 'scoped memory for tpu_custom_call.1']
    #allocation5 [shape = 's32[1]{0}', space=sflag, size = 0x4, scoped, tag = 'scoped memory for tpu_custom_call.1']
    #allocation6 [shape = 'u8[3072]{0}', space=vmem, size = 0xc00, scoped, tag = 'output window, operand 0, single buffered']
    %8 = vsyncpa [#allocation4], 0
    %9 = vsyncpa [#allocation5], 0
    // Predicated region
    $region2: #{tpu_custom_call.1} parent=1 // pred_check
      _
    $region3: #{tpu_custom_call.1} parent=1 // pred_check_branch
      %11 = sbr.rel (0) target = $region5
    $region4: #{tpu_custom_call.1} parent=1 // pred_region
      _
    $region5: #{tpu_custom_call.1} parent=1 // pred_fallthru
      _
    // Predicated region
    $region6: #{tpu_custom_call.1} parent=1 // pred_check
      _
    $region7: #{tpu_custom_call.1} parent=1 // pred_check_branch
      %13 = sbr.rel (0) target = $region9
    $region8: #{tpu_custom_call.1} parent=1 // pred_region
      _
    $region9: #{tpu_custom_call.1} parent=1 // pred_fallthru
      _
    // Predicated region
    $region10: #{tpu_custom_call.1} parent=1 // pred_check
      _
    $region11: #{tpu_custom_call.1} parent=1 // pred_check_branch
      %15 = sbr.rel (0) target = $region13
    $region12: #{tpu_custom_call.1} parent=1 // pred_region
      %s17 = ssub.s32 5952, 5952
      %18 = vsyncadd [#allocation4], %s17
      %s19 = sshll.u32 [#allocation3], 4
      %s20 = int_to_ptr.vmem [resolvable:$true] %s19
      %25 = dma.hbm_to_vmem [thread:$0]  %s2, 5952, %s20, [#allocation4], 192, 192, 12
    $region13: #{tpu_custom_call.1} parent=1 // pred_fallthru
      _
    // Predicated region
    $region14: #{tpu_custom_call.1} parent=1 // pred_check
      _
    $region15: #{tpu_custom_call.1} parent=1 // pred_check_branch
      %27 = sbr.rel (0) target = $region17
    $region16: #{tpu_custom_call.1} parent=1 // pred_region
      %28 = dma.done [#allocation4], 5952
    $region17: #{tpu_custom_call.1} parent=1 // pred_fallthru
      _
    %v30 = vld [vmem:[%s0] sm:$0xff]
    %v31 = vld [vmem:[%s0 + $0x8] sm:$0xff]
    %v32 = vld [vmem:[%s0 + $0x10] sm:$0xff]
    %v33 = vld [vmem:[%s0 + $0x18] sm:$0xff]
    %vm34 = vcmask 130048
    %v35 = vsel %vm34, %v30, -inf
    %36 = vmax.xlane.f32.xlu0 %v35
    %v37 = vpop.xlane.xlu0 %36
    %v38 = vsel %vm34, %v32, -inf
    %39 = vmax.xlane.f32.xlu0 %v38
    %v40 = vpop.xlane.xlu0 %39
    %vm41 = vcmask 261248
    %v42 = vsel %vm41, %v30, -inf
    %43 = vmax.xlane.f32.xlu0 %v42
    %v44 = vpop.xlane.xlu0 %43
    %v45 = vsel %vm41, %v32, -inf
    %46 = vmax.xlane.f32.xlu0 %v45
    %v47 = vpop.xlane.xlu0 %46
    %vm48 = vcmask 392448
    %v49 = vsel %vm48, %v30, -inf
    %50 = vmax.xlane.f32.xlu0 %v49
    %v51 = vpop.xlane.xlu0 %50
    %v52 = vsel %vm48, %v32, -inf
    %53 = vmax.xlane.f32.xlu0 %v52
    %v54 = vpop.xlane.xlu0 %53
    %vm55 = vcmask 523648
    %v56 = vsel %vm55, %v30, -inf
    %57 = vmax.xlane.f32.xlu0 %v56
    %v58 = vpop.xlane.xlu0 %57
    %v59 = vsel %vm55, %v32, -inf
    %60 = vmax.xlane.f32.xlu0 %v59
    %v61 = vpop.xlane.xlu0 %60
    %vm62 = vcmask 654848
    %v63 = vsel %vm62, %v30, -inf
    %64 = vmax.xlane.f32.xlu0 %v63
    %v65 = vpop.xlane.xlu0 %64
    %v66 = vsel %vm62, %v32, -inf
    %67 = vmax.xlane.f32.xlu0 %v66
    %v68 = vpop.xlane.xlu0 %67
    %vm69 = vcmask 786048
    %v70 = vsel %vm69, %v30, -inf
    %71 = vmax.xlane.f32.xlu0 %v70
    %v72 = vpop.xlane.xlu0 %71
    %v73 = vsel %vm69, %v32, -inf
    %74 = vmax.xlane.f32.xlu0 %v73
    %v75 = vpop.xlane.xlu0 %74
    %vm76 = vcmask 917248
    %v77 = vsel %vm76, %v30, -inf
    %78 = vmax.xlane.f32.xlu0 %v77
    %v79 = vpop.xlane.xlu0 %78
    %v80 = vsel %vm76, %v32, -inf
    %81 = vmax.xlane.f32.xlu0 %v80
    %v82 = vpop.xlane.xlu0 %81
    %vm83 = vcmask 1048448
    %v84 = vsel %vm83, %v30, -inf
    %85 = vmax.xlane.f32.xlu0 %v84
    %v86 = vpop.xlane.xlu0 %85
    %v87 = vsel %vm83, %v32, -inf
    %88 = vmax.xlane.f32.xlu0 %v87
    %v89 = vpop.xlane.xlu0 %88
    %v90 = vsel %vm34, %v31, -inf
    %91 = vmax.xlane.f32.xlu0 %v90
    %v92 = vpop.xlane.xlu0 %91
    %v93 = vsel %vm34, %v33, -inf
    %94 = vmax.xlane.f32.xlu0 %v93
    %v95 = vpop.xlane.xlu0 %94
    %v96 = vsel %vm41, %v31, -inf
    %97 = vmax.xlane.f32.xlu0 %v96
    %v98 = vpop.xlane.xlu0 %97
    %v99 = vsel %vm41, %v33, -inf
    %100 = vmax.xlane.f32.xlu0 %v99
    %v101 = vpop.xlane.xlu0 %100
    %v102 = vsel %vm48, %v31, -inf
    %103 = vmax.xlane.f32.xlu0 %v102
    %v104 = vpop.xlane.xlu0 %103
    %v105 = vsel %vm48, %v33, -inf
    %106 = vmax.xlane.f32.xlu0 %v105
    %v107 = vpop.xlane.xlu0 %106
    %v108 = vsel %vm55, %v31, -inf
    %109 = vmax.xlane.f32.xlu0 %v108
    %v110 = vpop.xlane.xlu0 %109
    %v111 = vsel %vm55, %v33, -inf
    %112 = vmax.xlane.f32.xlu0 %v111
    %v113 = vpop.xlane.xlu0 %112
    %v114 = vsel %vm62, %v31, -inf
    %115 = vmax.xlane.f32.xlu0 %v114
    %v116 = vpop.xlane.xlu0 %115
    %v117 = vsel %vm62, %v33, -inf
    %118 = vmax.xlane.f32.xlu0 %v117
    %v119 = vpop.xlane.xlu0 %118
    %v120 = vsel %vm69, %v31, -inf
    %121 = vmax.xlane.f32.xlu0 %v120
    %v122 = vpop.xlane.xlu0 %121
    %v123 = vsel %vm69, %v33, -inf
    %124 = vmax.xlane.f32.xlu0 %v123
    %v125 = vpop.xlane.xlu0 %124
    %v126 = vsel %vm76, %v31, -inf
    %127 = vmax.xlane.f32.xlu0 %v126
    %v128 = vpop.xlane.xlu0 %127
    %v129 = vsel %vm76, %v33, -inf
    %130 = vmax.xlane.f32.xlu0 %v129
    %v131 = vpop.xlane.xlu0 %130
    %v132 = vsel %vm83, %v31, -inf
    %133 = vmax.xlane.f32.xlu0 %v132
    %v134 = vpop.xlane.xlu0 %133
    %v135 = vsel %vm83, %v33, -inf
    %136 = vmax.xlane.f32.xlu0 %v135
    %v137 = vpop.xlane.xlu0 %136
    %v138 = vld [vmem:[%s1] sm:$0xff]
    %v139 = vld [vmem:[%s1 + $0x8] sm:$0xff]
    %v140 = vld [vmem:[%s1 + $0x10] sm:$0xff]
    %v141 = vld [vmem:[%s1 + $0x18] sm:$0xff]
    %v142 = vld [vmem:[%s1 + $0x20] sm:$0xff]
    %v143 = vld [vmem:[%s1 + $0x28] sm:$0xff]
    %v144 = vld [vmem:[%s1 + $0x30] sm:$0xff]
    %v145 = vld [vmem:[%s1 + $0x38] sm:$0xff]
    %v146 = vld [vmem:[%s1 + $0x40] sm:$0xff]
    %v147 = vld [vmem:[%s1 + $0x48] sm:$0xff]
    %v148 = vld [vmem:[%s1 + $0x50] sm:$0xff]
    %v149 = vld [vmem:[%s1 + $0x58] sm:$0xff]
    %v150 = vld [vmem:[%s1 + $0x60] sm:$0xff]
    %v151 = vld [vmem:[%s1 + $0x68] sm:$0xff]
    %v152 = vld [vmem:[%s1 + $0x70] sm:$0xff]
    %v153 = vld [vmem:[%s1 + $0x78] sm:$0xff]
    %v154 = vld [vmem:[%s1 + $0x80] sm:$0xff]
    %v155 = vld [vmem:[%s1 + $0x88] sm:$0xff]
    %v156 = vld [vmem:[%s1 + $0x90] sm:$0xff]
    %v157 = vld [vmem:[%s1 + $0x98] sm:$0xff]
    %v158 = vld [vmem:[%s1 + $0xa0] sm:$0xff]
    %v159 = vld [vmem:[%s1 + $0xa8] sm:$0xff]
    %v160 = vld [vmem:[%s1 + $0xb0] sm:$0xff]
    %v161 = vld [vmem:[%s1 + $0xb8] sm:$0xff]
    %v162 = vld [vmem:[%s1 + $0xc0] sm:$0xff]
    %v163 = vld [vmem:[%s1 + $0xc8] sm:$0xff]
    %v164 = vld [vmem:[%s1 + $0xd0] sm:$0xff]
    %v165 = vld [vmem:[%s1 + $0xd8] sm:$0xff]
    %v166 = vld [vmem:[%s1 + $0xe0] sm:$0xff]
    %v167 = vld [vmem:[%s1 + $0xe8] sm:$0xff]
    %v168 = vld [vmem:[%s1 + $0xf0] sm:$0xff]
    %v169 = vld [vmem:[%s1 + $0xf8] sm:$0xff]
    %170 = vmatprep.subr.mxu0 0.0
    %171 = vmatpush1.msra.mxu0 %v138
    %172 = vmatprep.subr.mxu0 0.0
    %173 = vmatpush1.msra.mxu0 %v139
    %174 = vmatprep.subr.mxu0 0.0
    %175 = vmatpush1.msra.mxu0 %v140
    %176 = vmatprep.subr.mxu0 0.0
    %177 = vmatpush1.msra.mxu0 %v141
    %178 = vmatprep.subr.mxu0 0.0
    %179 = vmatpush1.msra.mxu0 %v142
    %180 = vmatprep.subr.mxu0 0.0
    %181 = vmatpush1.msra.mxu0 %v143
    %182 = vmatprep.subr.mxu0 0.0
    %183 = vmatpush1.msra.mxu0 %v144
    %184 = vmatprep.subr.mxu0 0.0
    %185 = vmatpush1.msra.mxu0 %v145
    %186 = vmatprep.subr.mxu0 0.0
    %187 = vmatpush1.msra.mxu0 %v146
    %188 = vmatprep.subr.mxu0 0.0
    %189 = vmatpush1.msra.mxu0 %v147
    %190 = vmatprep.subr.mxu0 0.0
    %191 = vmatpush1.msra.mxu0 %v148
    %192 = vmatprep.subr.mxu0 0.0
    %193 = vmatpush1.msra.mxu0 %v149
    %194 = vmatprep.subr.mxu0 0.0
    %195 = vmatpush1.msra.mxu0 %v150
    %196 = vmatprep.subr.mxu0 0.0
    %197 = vmatpush1.msra.mxu0 %v151
    %198 = vmatprep.subr.mxu0 0.0
    %199 = vmatpush1.msra.mxu0 %v152
    %200 = vmatprep.subr.mxu0 0.0
    %201 = vmatpush1.msra.mxu0 %v153
    %202 = vmatprep.subr.mxu0 0.0
    %203 = vmatpush1.msra.mxu0 %v154
    %204 = vmatprep.subr.mxu0 0.0
    %205 = vmatpush1.msra.mxu0 %v155
    %206 = vmatprep.subr.mxu0 0.0
    %207 = vmatpush1.msra.mxu0 %v156
    %208 = vmatprep.subr.mxu0 0.0
    %209 = vmatpush1.msra.mxu0 %v157
    %210 = vmatprep.subr.mxu0 0.0
    %211 = vmatpush1.msra.mxu0 %v158
    %212 = vmatprep.subr.mxu0 0.0
    %213 = vmatpush1.msra.mxu0 %v159
    %214 = vmatprep.subr.mxu0 0.0
    %215 = vmatpush1.msra.mxu0 %v160
    %216 = vmatprep.subr.mxu0 0.0
    %217 = vmatpush1.msra.mxu0 %v161
    %218 = vmatprep.subr.mxu0 0.0
    %219 = vmatpush1.msra.mxu0 %v162
    %220 = vmatprep.subr.mxu0 0.0
    %221 = vmatpush1.msra.mxu0 %v163
    %222 = vmatprep.subr.mxu0 0.0
    %223 = vmatpush1.msra.mxu0 %v164
    %224 = vmatprep.subr.mxu0 0.0
    %225 = vmatpush1.msra.mxu0 %v165
    %226 = vmatprep.subr.mxu0 0.0
    %227 = vmatpush1.msra.mxu0 %v166
    %228 = vmatprep.subr.mxu0 0.0
    %229 = vmatpush1.msra.mxu0 %v167
    %230 = vmatprep.subr.mxu0 0.0
    %231 = vmatpush1.msra.mxu0 %v168
    %232 = vmatprep.subr.mxu0 0.0
    %233 = vmatpush1.msra.mxu0 %v169
    %234 = vmatprep.mubr.f32.mxu0 %v31
    %235 = vmatmul.mubr.f32.gmra.mrb[0].mxu0 %v30
    %v236 = vpop.f32.mrb[0].mxu0
    %v237 = vadd.f32 0.0, %v236
    %v238 = vpop.f32.mrb[0].mxu0
    %239 = vmatprep.mubr.f32.mxu0 %v33
    %240 = vmatmul.mubr.f32.gmra.mrb[0].mxu0 %v32
    %v241 = vpop.f32.mrb[0].mxu0
    %v242 = vadd.f32 0.0, %v241
    %v243 = vpop.f32.mrb[0].mxu0
    %244 = vdwg.mxu0
    %v245 = vadd.f32 %v237, %v37
    %v246 = vadd.f32 %v242, %v40
    %v247 = vpack.c.bf16 %v245, %v245
    %v248 = vpack.c.bf16 %v246, %v246
    %v252 = vunpack.c.l.s4 1966171168
    %v253 = vunpack.c.0.s8 %v252
    %v254 = vlaneseq
    %v255 = vshrl.u32 %v254, 7
    %v256 = vsub.s32 %v253, %v255
    %v257 = vrot.slane %v247, %v256
    %v258 = vcombine.high %v257, %v257
    %v260 = vunpack.c.l.s4 1966171168
    %v261 = vunpack.c.0.s8 %v260
    %v262 = vlaneseq
    %v263 = vshrl.u32 %v262, 7
    %v264 = vsub.s32 %v261, %v263
    %v265 = vrot.slane %v257, %v264
    %v267 = vunpack.c.l.s4 1966171168
    %v268 = vunpack.c.0.s8 %v267
    %v269 = vlaneseq
    %v270 = vshrl.u32 %v269, 7
    %v271 = vsub.s32 %v268, %v270
    %v272 = vrot.slane %v258, %v271
    %v273 = vcombine.high %v265, %v265
    %v274 = vcombine.high %v272, %v272
    %v276 = vunpack.c.l.s4 1966171168
    %v277 = vunpack.c.0.s8 %v276
    %v278 = vlaneseq
    %v279 = vshrl.u32 %v278, 7
    %v280 = vsub.s32 %v277, %v279
    %v281 = vrot.slane %v248, %v280
    %v282 = vcombine.high %v281, %v281
    %v284 = vunpack.c.l.s4 1966171168
    %v285 = vunpack.c.0.s8 %v284
    %v286 = vlaneseq
    %v287 = vshrl.u32 %v286, 7
    %v288 = vsub.s32 %v285, %v287
    %v289 = vrot.slane %v281, %v288
    %v291 = vunpack.c.l.s4 1966171168
    %v292 = vunpack.c.0.s8 %v291
    %v293 = vlaneseq
    %v294 = vshrl.u32 %v293, 7
    %v295 = vsub.s32 %v292, %v294
    %v296 = vrot.slane %v282, %v295
    %v297 = vcombine.high %v289, %v289
    %v298 = vcombine.high %v296, %v296
    %v299 = vcombine.low %v265, %v273
    %v300 = vcombine.low %v272, %v274
    %v302 = vunpack.c.l.s4 1935823168
    %v303 = vunpack.c.0.s8 %v302
    %v304 = vlaneseq
    %v305 = vshrl.u32 %v304, 7
    %v306 = vsub.s32 %v303, %v305
    %v307 = vrot.slane %v299, %v306
    %v309 = vunpack.c.l.s4 1935823168
    %v310 = vunpack.c.0.s8 %v309
    %v311 = vlaneseq
    %v312 = vshrl.u32 %v311, 7
    %v313 = vsub.s32 %v310, %v312
    %v314 = vrot.slane %v300, %v313
    %v315 = vcombine.low %v307, %v314
    %v317 = vunpack.c.l.s4 1935823168
    %v318 = vunpack.c.0.s8 %v317
    %v319 = vlaneseq
    %v320 = vshrl.u32 %v319, 7
    %v321 = vsub.s32 %v318, %v320
    %v322 = vrot.slane %v315, %v321
    %v323 = vcombine.low %v289, %v297
    %v324 = vcombine.low %v296, %v298
    %v326 = vunpack.c.l.s4 1935823168
    %v327 = vunpack.c.0.s8 %v326
    %v328 = vlaneseq
    %v329 = vshrl.u32 %v328, 7
    %v330 = vsub.s32 %v327, %v329
    %v331 = vrot.slane %v323, %v330
    %v333 = vunpack.c.l.s4 1935823168
    %v334 = vunpack.c.0.s8 %v333
    %v335 = vlaneseq
    %v336 = vshrl.u32 %v335, 7
    %v337 = vsub.s32 %v334, %v336
    %v338 = vrot.slane %v324, %v337
    %v339 = vcombine.low %v331, %v338
    %v341 = vunpack.c.l.s4 1935823168
    %v342 = vunpack.c.0.s8 %v341
    %v343 = vlaneseq
    %v344 = vshrl.u32 %v343, 7
    %v345 = vsub.s32 %v342, %v344
    %v346 = vrot.slane %v339, %v345
    %v347 = vunpack.c.l.b16 %v322
    %v348 = vunpack.c.l.b16 %v346
    %349 = vset.pattern.permute.xlu0 0
    %350 = vperm.xlu0 %349, %v347
    %v351 = vpop.permute.xlu0 %350
    %352 = vset.pattern.permute.xlu0 0
    %353 = vperm.xlu0 %352, %v348
    %v354 = vpop.permute.xlu0 %353
    %v355 = vlaneseq
    %v356 = vand.u32 %v355, 127
    %v357 = vadd.s32 %v356, 4294967176
    %v358 = vlaneseq
    %v359 = vshrl.u32 %v358, 7
    %v360 = vsub.s32 %v357, %v359
    %v361 = vrot.slane %v351, %v360
    %v362 = vlaneseq
    %v363 = vshrl.u32 %v362, 7
    %v364 = vsub.s32 %v357, %v363
    %v365 = vrot.slane %v354, %v364
    %vm366 = vcmask 1041409
    %v367 = vsel %vm366, %v365, %v361
    %v368 = vpack.c.b16 %v367, %v367
    %v370 = vunpack.c.l.s4 1966171168
    %v371 = vunpack.c.0.s8 %v370
    %v372 = vlaneseq
    %v373 = vshrl.u32 %v372, 7
    %v374 = vsub.s32 %v371, %v373
    %v375 = vrot.slane %v368, %v374
    %v377 = vunpack.c.l.s4 1966171168
    %v378 = vunpack.c.0.s8 %v377
    %v379 = vlaneseq
    %v380 = vshrl.u32 %v379, 7
    %v381 = vsub.s32 %v378, %v380
    %v382 = vrot.slane %v375, %v381
    %vm384 = vcmask 1041344
    %385 = vst.msk [vmem:[#allocation2] sm:$0x1] %vm384, %v382
    %v386 = vadd.f32 %v237, %v44
    %v387 = vadd.f32 %v242, %v47
    %v388 = vpack.c.bf16 %v386, %v386
    %v389 = vpack.c.bf16 %v387, %v387
    %v393 = vunpack.c.l.s4 1966171168
    %v394 = vunpack.c.0.s8 %v393
    %v395 = vlaneseq
    %v396 = vshrl.u32 %v395, 7
    %v397 = vsub.s32 %v394, %v396
    %v398 = vrot.slane %v388, %v397
    %v399 = vcombine.high %v398, %v398
    %v401 = vunpack.c.l.s4 1966171168
    %v402 = vunpack.c.0.s8 %v401
    %v403 = vlaneseq
    %v404 = vshrl.u32 %v403, 7
    %v405 = vsub.s32 %v402, %v404
    %v406 = vrot.slane %v398, %v405
    %v408 = vunpack.c.l.s4 1966171168
    %v409 = vunpack.c.0.s8 %v408
    %v410 = vlaneseq
    %v411 = vshrl.u32 %v410, 7
    %v412 = vsub.s32 %v409, %v411
    %v413 = vrot.slane %v399, %v412
    %v414 = vcombine.high %v406, %v406
    %v415 = vcombine.high %v413, %v413
    %v417 = vunpack.c.l.s4 1966171168
    %v418 = vunpack.c.0.s8 %v417
    %v419 = vlaneseq
    %v420 = vshrl.u32 %v419, 7
    %v421 = vsub.s32 %v418, %v420
    %v422 = vrot.slane %v389, %v421
    %v423 = vcombine.high %v422, %v422
    %v425 = vunpack.c.l.s4 1966171168
    %v426 = vunpack.c.0.s8 %v425
    %v427 = vlaneseq
    %v428 = vshrl.u32 %v427, 7
    %v429 = vsub.s32 %v426, %v428
    %v430 = vrot.slane %v422, %v429
    %v432 = vunpack.c.l.s4 1966171168
    %v433 = vunpack.c.0.s8 %v432
    %v434 = vlaneseq
    %v435 = vshrl.u32 %v434, 7
    %v436 = vsub.s32 %v433, %v435
    %v437 = vrot.slane %v423, %v436
    %v438 = vcombine.high %v430, %v430
    %v439 = vcombine.high %v437, %v437
    %v440 = vcombine.low %v406, %v414
    %v441 = vcombine.low %v413, %v415
    %v443 = vunpack.c.l.s4 1935823168
    %v444 = vunpack.c.0.s8 %v443
    %v445 = vlaneseq
    %v446 = vshrl.u32 %v445, 7
    %v447 = vsub.s32 %v444, %v446
    %v448 = vrot.slane %v440, %v447
    %v450 = vunpack.c.l.s4 1935823168
    %v451 = vunpack.c.0.s8 %v450
    %v452 = vlaneseq
    %v453 = vshrl.u32 %v452, 7
    %v454 = vsub.s32 %v451, %v453
    %v455 = vrot.slane %v441, %v454
    %v456 = vcombine.low %v448, %v455
    %v458 = vunpack.c.l.s4 1935823168
    %v459 = vunpack.c.0.s8 %v458
    %v460 = vlaneseq
    %v461 = vshrl.u32 %v460, 7
    %v462 = vsub.s32 %v459, %v461
    %v463 = vrot.slane %v456, %v462
    %v464 = vcombine.low %v430, %v438
    %v465 = vcombine.low %v437, %v439
    %v467 = vunpack.c.l.s4 1935823168
    %v468 = vunpack.c.0.s8 %v467
    %v469 = vlaneseq
    %v470 = vshrl.u32 %v469, 7
    %v471 = vsub.s32 %v468, %v470
    %v472 = vrot.slane %v464, %v471
    %v474 = vunpack.c.l.s4 1935823168
    %v475 = vunpack.c.0.s8 %v474
    %v476 = vlaneseq
    %v477 = vshrl.u32 %v476, 7
    %v478 = vsub.s32 %v475, %v477
    %v479 = vrot.slane %v465, %v478
    %v480 = vcombine.low %v472, %v479
    %v482 = vunpack.c.l.s4 1935823168
    %v483 = vunpack.c.0.s8 %v482
    %v484 = vlaneseq
    %v485 = vshrl.u32 %v484, 7
    %v486 = vsub.s32 %v483, %v485
    %v487 = vrot.slane %v480, %v486
    %v488 = vunpack.c.l.b16 %v463
    %v489 = vunpack.c.l.b16 %v487
    %490 = vset.pattern.permute.xlu0 1
    %491 = vperm.xlu0 %490, %v488
    %v492 = vpop.permute.xlu0 %491
    %493 = vset.pattern.permute.xlu0 1
    %494 = vperm.xlu0 %493, %v489
    %v495 = vpop.permute.xlu0 %494
    %v496 = vlaneseq
    %v497 = vshrl.u32 %v496, 7
    %v498 = vsub.s32 %v356, %v497
    %v499 = vrot.slane %v492, %v498
    %v500 = vlaneseq
    %v501 = vshrl.u32 %v500, 7
    %v502 = vsub.s32 %v356, %v501
    %v503 = vrot.slane %v495, %v502
    %v504 = vsel %vm366, %v503, %v499
    %v505 = vpack.c.b16 %v504, %v504
    %v507 = vunpack.c.l.s4 1966171168
    %v508 = vunpack.c.0.s8 %v507
    %v509 = vlaneseq
    %v510 = vshrl.u32 %v509, 7
    %v511 = vsub.s32 %v508, %v510
    %v512 = vrot.slane %v505, %v511
    %v514 = vunpack.c.l.s4 1966171168
    %v515 = vunpack.c.0.s8 %v514
    %v516 = vlaneseq
    %v517 = vshrl.u32 %v516, 7
    %v518 = vsub.s32 %v515, %v517
    %v519 = vrot.slane %v512, %v518
    %vm521 = vcmask 57344
    %522 = vst.msk [vmem:[#allocation2 + $0x1] sm:$0x1] %vm521, %v519
    %v523 = vadd.f32 %v237, %v51
    %v524 = vadd.f32 %v242, %v54
    %v525 = vpack.c.bf16 %v523, %v523
    %v526 = vpack.c.bf16 %v524, %v524
    %v530 = vunpack.c.l.s4 1966171168
    %v531 = vunpack.c.0.s8 %v530
    %v532 = vlaneseq
    %v533 = vshrl.u32 %v532, 7
    %v534 = vsub.s32 %v531, %v533
    %v535 = vrot.slane %v525, %v534
    %v536 = vcombine.high %v535, %v535
    %v538 = vunpack.c.l.s4 1966171168
    %v539 = vunpack.c.0.s8 %v538
    %v540 = vlaneseq
    %v541 = vshrl.u32 %v540, 7
    %v542 = vsub.s32 %v539, %v541
    %v543 = vrot.slane %v535, %v542
    %v545 = vunpack.c.l.s4 1966171168
    %v546 = vunpack.c.0.s8 %v545
    %v547 = vlaneseq
    %v548 = vshrl.u32 %v547, 7
    %v549 = vsub.s32 %v546, %v548
    %v550 = vrot.slane %v536, %v549
    %v551 = vcombine.high %v543, %v543
    %v552 = vcombine.high %v550, %v550
    %v554 = vunpack.c.l.s4 1966171168
    %v555 = vunpack.c.0.s8 %v554
    %v556 = vlaneseq
    %v557 = vshrl.u32 %v556, 7
    %v558 = vsub.s32 %v555, %v557
    %v559 = vrot.slane %v526, %v558
    %v560 = vcombine.high %v559, %v559
    %v562 = vunpack.c.l.s4 1966171168
    %v563 = vunpack.c.0.s8 %v562
    %v564 = vlaneseq
    %v565 = vshrl.u32 %v564, 7
    %v566 = vsub.s32 %v563, %v565
    %v567 = vrot.slane %v559, %v566
    %v569 = vunpack.c.l.s4 1966171168
    %v570 = vunpack.c.0.s8 %v569
    %v571 = vlaneseq
    %v572 = vshrl.u32 %v571, 7
    %v573 = vsub.s32 %v570, %v572
    %v574 = vrot.slane %v560, %v573
    %v575 = vcombine.high %v567, %v567
    %v576 = vcombine.high %v574, %v574
    %v577 = vcombine.low %v543, %v551
    %v578 = vcombine.low %v550, %v552
    %v580 = vunpack.c.l.s4 1935823168
    %v581 = vunpack.c.0.s8 %v580
    %v582 = vlaneseq
    %v583 = vshrl.u32 %v582, 7
    %v584 = vsub.s32 %v581, %v583
    %v585 = vrot.slane %v577, %v584
    %v587 = vunpack.c.l.s4 1935823168
    %v588 = vunpack.c.0.s8 %v587
    %v589 = vlaneseq
    %v590 = vshrl.u32 %v589, 7
    %v591 = vsub.s32 %v588, %v590
    %v592 = vrot.slane %v578, %v591
    %v593 = vcombine.low %v585, %v592
    %v595 = vunpack.c.l.s4 1935823168
    %v596 = vunpack.c.0.s8 %v595
    %v597 = vlaneseq
    %v598 = vshrl.u32 %v597, 7
    %v599 = vsub.s32 %v596, %v598
    %v600 = vrot.slane %v593, %v599
    %v601 = vcombine.low %v567, %v575
    %v602 = vcombine.low %v574, %v576
    %v604 = vunpack.c.l.s4 1935823168
    %v605 = vunpack.c.0.s8 %v604
    %v606 = vlaneseq
    %v607 = vshrl.u32 %v606, 7
    %v608 = vsub.s32 %v605, %v607
    %v609 = vrot.slane %v601, %v608
    %v611 = vunpack.c.l.s4 1935823168
    %v612 = vunpack.c.0.s8 %v611
    %v613 = vlaneseq
    %v614 = vshrl.u32 %v613, 7
    %v615 = vsub.s32 %v612, %v614
    %v616 = vrot.slane %v602, %v615
    %v617 = vcombine.low %v609, %v616
    %v619 = vunpack.c.l.s4 1935823168
    %v620 = vunpack.c.0.s8 %v619
    %v621 = vlaneseq
    %v622 = vshrl.u32 %v621, 7
    %v623 = vsub.s32 %v620, %v622
    %v624 = vrot.slane %v617, %v623
    %v625 = vunpack.c.l.b16 %v600
    %v626 = vunpack.c.l.b16 %v624
    %627 = vset.pattern.permute.xlu0 2
    %628 = vperm.xlu0 %627, %v625
    %v629 = vpop.permute.xlu0 %628
    %630 = vset.pattern.permute.xlu0 2
    %631 = vperm.xlu0 %630, %v626
    %v632 = vpop.permute.xlu0 %631
    %v633 = vadd.s32 %v356, 4294967288
    %v634 = vlaneseq
    %v635 = vshrl.u32 %v634, 7
    %v636 = vsub.s32 %v633, %v635
    %v637 = vrot.slane %v629, %v636
    %v638 = vlaneseq
    %v639 = vshrl.u32 %v638, 7
    %v640 = vsub.s32 %v633, %v639
    %v641 = vrot.slane %v632, %v640
    %v642 = vsel %vm366, %v641, %v637
    %v643 = vpack.c.b16 %v642, %v642
    %v645 = vunpack.c.l.s4 1966171168
    %v646 = vunpack.c.0.s8 %v645
    %v647 = vlaneseq
    %v648 = vshrl.u32 %v647, 7
    %v649 = vsub.s32 %v646, %v648
    %v650 = vrot.slane %v643, %v649
    %v652 = vunpack.c.l.s4 1966171168
    %v653 = vunpack.c.0.s8 %v652
    %v654 = vlaneseq
    %v655 = vshrl.u32 %v654, 7
    %v656 = vsub.s32 %v653, %v655
    %v657 = vrot.slane %v650, %v656
    %vm659 = vcmask 122944
    %660 = vst.msk [vmem:[#allocation2 + $0x1] sm:$0x1] %vm659, %v657
    %v661 = vadd.f32 %v237, %v58
    %v662 = vadd.f32 %v242, %v61
    %v663 = vpack.c.bf16 %v661, %v661
    %v664 = vpack.c.bf16 %v662, %v662
    %v668 = vunpack.c.l.s4 1966171168
    %v669 = vunpack.c.0.s8 %v668
    %v670 = vlaneseq
    %v671 = vshrl.u32 %v670, 7
    %v672 = vsub.s32 %v669, %v671
    %v673 = vrot.slane %v663, %v672
    %v674 = vcombine.high %v673, %v673
    %v676 = vunpack.c.l.s4 1966171168
    %v677 = vunpack.c.0.s8 %v676
    %v678 = vlaneseq
    %v679 = vshrl.u32 %v678, 7
    %v680 = vsub.s32 %v677, %v679
    %v681 = vrot.slane %v673, %v680
    %v683 = vunpack.c.l.s4 1966171168
    %v684 = vunpack.c.0.s8 %v683
    %v685 = vlaneseq
    %v686 = vshrl.u32 %v685, 7
    %v687 = vsub.s32 %v684, %v686
    %v688 = vrot.slane %v674, %v687
    %v689 = vcombine.high %v681, %v681
    %v690 = vcombine.high %v688, %v688
    %v692 = vunpack.c.l.s4 1966171168
    %v693 = vunpack.c.0.s8 %v692
    %v694 = vlaneseq
    %v695 = vshrl.u32 %v694, 7
    %v696 = vsub.s32 %v693, %v695
    %v697 = vrot.slane %v664, %v696
    %v698 = vcombine.high %v697, %v697
    %v700 = vunpack.c.l.s4 1966171168
    %v701 = vunpack.c.0.s8 %v700
    %v702 = vlaneseq
    %v703 = vshrl.u32 %v702, 7
    %v704 = vsub.s32 %v701, %v703
    %v705 = vrot.slane %v697, %v704
    %v707 = vunpack.c.l.s4 1966171168
    %v708 = vunpack.c.0.s8 %v707
    %v709 = vlaneseq
    %v710 = vshrl.u32 %v709, 7
    %v711 = vsub.s32 %v708, %v710
    %v712 = vrot.slane %v698, %v711
    %v713 = vcombine.high %v705, %v705
    %v714 = vcombine.high %v712, %v712
    %v715 = vcombine.low %v681, %v689
    %v716 = vcombine.low %v688, %v690
    %v718 = vunpack.c.l.s4 1935823168
    %v719 = vunpack.c.0.s8 %v718
    %v720 = vlaneseq
    %v721 = vshrl.u32 %v720, 7
    %v722 = vsub.s32 %v719, %v721
    %v723 = vrot.slane %v715, %v722
    %v725 = vunpack.c.l.s4 1935823168
    %v726 = vunpack.c.0.s8 %v725
    %v727 = vlaneseq
    %v728 = vshrl.u32 %v727, 7
    %v729 = vsub.s32 %v726, %v728
    %v730 = vrot.slane %v716, %v729
    %v731 = vcombine.low %v723, %v730
    %v733 = vunpack.c.l.s4 1935823168
    %v734 = vunpack.c.0.s8 %v733
    %v735 = vlaneseq
    %v736 = vshrl.u32 %v735, 7
    %v737 = vsub.s32 %v734, %v736
    %v738 = vrot.slane %v731, %v737
    %v739 = vcombine.low %v705, %v713
    %v740 = vcombine.low %v712, %v714
    %v742 = vunpack.c.l.s4 1935823168
    %v743 = vunpack.c.0.s8 %v742
    %v744 = vlaneseq
    %v745 = vshrl.u32 %v744, 7
    %v746 = vsub.s32 %v743, %v745
    %v747 = vrot.slane %v739, %v746
    %v749 = vunpack.c.l.s4 1935823168
    %v750 = vunpack.c.0.s8 %v749
    %v751 = vlaneseq
    %v752 = vshrl.u32 %v751, 7
    %v753 = vsub.s32 %v750, %v752
    %v754 = vrot.slane %v740, %v753
    %v755 = vcombine.low %v747, %v754
    %v757 = vunpack.c.l.s4 1935823168
    %v758 = vunpack.c.0.s8 %v757
    %v759 = vlaneseq
    %v760 = vshrl.u32 %v759, 7
    %v761 = vsub.s32 %v758, %v760
    %v762 = vrot.slane %v755, %v761
    %v763 = vunpack.c.l.b16 %v738
    %v764 = vunpack.c.l.b16 %v762
    %765 = vset.pattern.permute.xlu0 3
    %766 = vperm.xlu0 %765, %v763
    %v767 = vpop.permute.xlu0 %766
    %768 = vset.pattern.permute.xlu0 3
    %769 = vperm.xlu0 %768, %v764
    %v770 = vpop.permute.xlu0 %769
    %v771 = vadd.s32 %v356, 4294967280
    %v772 = vlaneseq
    %v773 = vshrl.u32 %v772, 7
    %v774 = vsub.s32 %v771, %v773
    %v775 = vrot.slane %v767, %v774
    %v776 = vlaneseq
    %v777 = vshrl.u32 %v776, 7
    %v778 = vsub.s32 %v771, %v777
    %v779 = vrot.slane %v770, %v778
    %v780 = vsel %vm366, %v779, %v775
    %v781 = vpack.c.b16 %v780, %v780
    %v783 = vunpack.c.l.s4 1966171168
    %v784 = vunpack.c.0.s8 %v783
    %v785 = vlaneseq
    %v786 = vshrl.u32 %v785, 7
    %v787 = vsub.s32 %v784, %v786
    %v788 = vrot.slane %v781, %v787
    %v790 = vunpack.c.l.s4 1966171168
    %v791 = vunpack.c.0.s8 %v790
    %v792 = vlaneseq
    %v793 = vshrl.u32 %v792, 7
    %v794 = vsub.s32 %v791, %v793
    %v795 = vrot.slane %v788, %v794
    %vm797 = vcmask 188544
    %798 = vst.msk [vmem:[#allocation2 + $0x1] sm:$0x1] %vm797, %v795
    %v799 = vadd.f32 %v237, %v65
    %v800 = vadd.f32 %v242, %v68
    %v801 = vpack.c.bf16 %v799, %v799
    %v802 = vpack.c.bf16 %v800, %v800
    %v806 = vunpack.c.l.s4 1966171168
    %v807 = vunpack.c.0.s8 %v806
    %v808 = vlaneseq
    %v809 = vshrl.u32 %v808, 7
    %v810 = vsub.s32 %v807, %v809
    %v811 = vrot.slane %v801, %v810
    %v812 = vcombine.high %v811, %v811
    %v814 = vunpack.c.l.s4 1966171168
    %v815 = vunpack.c.0.s8 %v814
    %v816 = vlaneseq
    %v817 = vshrl.u32 %v816, 7
    %v818 = vsub.s32 %v815, %v817
    %v819 = vrot.slane %v811, %v818
    %v821 = vunpack.c.l.s4 1966171168
    %v822 = vunpack.c.0.s8 %v821
    %v823 = vlaneseq
    %v824 = vshrl.u32 %v823, 7
    %v825 = vsub.s32 %v822, %v824
    %v826 = vrot.slane %v812, %v825
    %v827 = vcombine.high %v819, %v819
    %v828 = vcombine.high %v826, %v826
    %v830 = vunpack.c.l.s4 1966171168
    %v831 = vunpack.c.0.s8 %v830
    %v832 = vlaneseq
    %v833 = vshrl.u32 %v832, 7
    %v834 = vsub.s32 %v831, %v833
    %v835 = vrot.slane %v802, %v834
    %v836 = vcombine.high %v835, %v835
    %v838 = vunpack.c.l.s4 1966171168
    %v839 = vunpack.c.0.s8 %v838
    %v840 = vlaneseq
    %v841 = vshrl.u32 %v840, 7
    %v842 = vsub.s32 %v839, %v841
    %v843 = vrot.slane %v835, %v842
    %v845 = vunpack.c.l.s4 1966171168
    %v846 = vunpack.c.0.s8 %v845
    %v847 = vlaneseq
    %v848 = vshrl.u32 %v847, 7
    %v849 = vsub.s32 %v846, %v848
    %v850 = vrot.slane %v836, %v849
    %v851 = vcombine.high %v843, %v843
    %v852 = vcombine.high %v850, %v850
    %v853 = vcombine.low %v819, %v827
    %v854 = vcombine.low %v826, %v828
    %v856 = vunpack.c.l.s4 1935823168
    %v857 = vunpack.c.0.s8 %v856
    %v858 = vlaneseq
    %v859 = vshrl.u32 %v858, 7
    %v860 = vsub.s32 %v857, %v859
    %v861 = vrot.slane %v853, %v860
    %v863 = vunpack.c.l.s4 1935823168
    %v864 = vunpack.c.0.s8 %v863
    %v865 = vlaneseq
    %v866 = vshrl.u32 %v865, 7
    %v867 = vsub.s32 %v864, %v866
    %v868 = vrot.slane %v854, %v867
    %v869 = vcombine.low %v861, %v868
    %v871 = vunpack.c.l.s4 1935823168
    %v872 = vunpack.c.0.s8 %v871
    %v873 = vlaneseq
    %v874 = vshrl.u32 %v873, 7
    %v875 = vsub.s32 %v872, %v874
    %v876 = vrot.slane %v869, %v875
    %v877 = vcombine.low %v843, %v851
    %v878 = vcombine.low %v850, %v852
    %v880 = vunpack.c.l.s4 1935823168
    %v881 = vunpack.c.0.s8 %v880
    %v882 = vlaneseq
    %v883 = vshrl.u32 %v882, 7
    %v884 = vsub.s32 %v881, %v883
    %v885 = vrot.slane %v877, %v884
    %v887 = vunpack.c.l.s4 1935823168
    %v888 = vunpack.c.0.s8 %v887
    %v889 = vlaneseq
    %v890 = vshrl.u32 %v889, 7
    %v891 = vsub.s32 %v888, %v890
    %v892 = vrot.slane %v878, %v891
    %v893 = vcombine.low %v885, %v892
    %v895 = vunpack.c.l.s4 1935823168
    %v896 = vunpack.c.0.s8 %v895
    %v897 = vlaneseq
    %v898 = vshrl.u32 %v897, 7
    %v899 = vsub.s32 %v896, %v898
    %v900 = vrot.slane %v893, %v899
    %v901 = vunpack.c.l.b16 %v876
    %v902 = vunpack.c.l.b16 %v900
    %903 = vset.pattern.permute.xlu0 4
    %904 = vperm.xlu0 %903, %v901
    %v905 = vpop.permute.xlu0 %904
    %906 = vset.pattern.permute.xlu0 4
    %907 = vperm.xlu0 %906, %v902
    %v908 = vpop.permute.xlu0 %907
    %v909 = vadd.s32 %v356, 4294967272
    %v910 = vlaneseq
    %v911 = vshrl.u32 %v910, 7
    %v912 = vsub.s32 %v909, %v911
    %v913 = vrot.slane %v905, %v912
    %v914 = vlaneseq
    %v915 = vshrl.u32 %v914, 7
    %v916 = vsub.s32 %v909, %v915
    %v917 = vrot.slane %v908, %v916
    %v918 = vsel %vm366, %v917, %v913
    %v919 = vpack.c.b16 %v918, %v918
    %v921 = vunpack.c.l.s4 1966171168
    %v922 = vunpack.c.0.s8 %v921
    %v923 = vlaneseq
    %v924 = vshrl.u32 %v923, 7
    %v925 = vsub.s32 %v922, %v924
    %v926 = vrot.slane %v919, %v925
    %v928 = vunpack.c.l.s4 1966171168
    %v929 = vunpack.c.0.s8 %v928
    %v930 = vlaneseq
    %v931 = vshrl.u32 %v930, 7
    %v932 = vsub.s32 %v929, %v931
    %v933 = vrot.slane %v926, %v932
    %vm935 = vcmask 254144
    %936 = vst.msk [vmem:[#allocation2 + $0x1] sm:$0x1] %vm935, %v933
    %v937 = vadd.f32 %v237, %v72
    %v938 = vadd.f32 %v242, %v75
    %v939 = vpack.c.bf16 %v937, %v937
    %v940 = vpack.c.bf16 %v938, %v938
    %v944 = vunpack.c.l.s4 1966171168
    %v945 = vunpack.c.0.s8 %v944
    %v946 = vlaneseq
    %v947 = vshrl.u32 %v946, 7
    %v948 = vsub.s32 %v945, %v947
    %v949 = vrot.slane %v939, %v948
    %v950 = vcombine.high %v949, %v949
    %v952 = vunpack.c.l.s4 1966171168
    %v953 = vunpack.c.0.s8 %v952
    %v954 = vlaneseq
    %v955 = vshrl.u32 %v954, 7
    %v956 = vsub.s32 %v953, %v955
    %v957 = vrot.slane %v949, %v956
    %v959 = vunpack.c.l.s4 1966171168
    %v960 = vunpack.c.0.s8 %v959
    %v961 = vlaneseq
    %v962 = vshrl.u32 %v961, 7
    %v963 = vsub.s32 %v960, %v962
    %v964 = vrot.slane %v950, %v963
    %v965 = vcombine.high %v957, %v957
    %v966 = vcombine.high %v964, %v964
    %v968 = vunpack.c.l.s4 1966171168
    %v969 = vunpack.c.0.s8 %v968
    %v970 = vlaneseq
    %v971 = vshrl.u32 %v970, 7
    %v972 = vsub.s32 %v969, %v971
    %v973 = vrot.slane %v940, %v972
    %v974 = vcombine.high %v973, %v973
    %v976 = vunpack.c.l.s4 1966171168
    %v977 = vunpack.c.0.s8 %v976
    %v978 = vlaneseq
    %v979 = vshrl.u32 %v978, 7
    %v980 = vsub.s32 %v977, %v979
    %v981 = vrot.slane %v973, %v980
    %v983 = vunpack.c.l.s4 1966171168
    %v984 = vunpack.c.0.s8 %v983
    %v985 = vlaneseq
    %v986 = vshrl.u32 %v985, 7
    %v987 = vsub.s32 %v984, %v986
    %v988 = vrot.slane %v974, %v987
    %v989 = vcombine.high %v981, %v981
    %v990 = vcombine.high %v988, %v988
    %v991 = vcombine.low %v957, %v965
    %v992 = vcombine.low %v964, %v966
    %v994 = vunpack.c.l.s4 1935823168
    %v995 = vunpack.c.0.s8 %v994
    %v996 = vlaneseq
    %v997 = vshrl.u32 %v996, 7
    %v998 = vsub.s32 %v995, %v997
    %v999 = vrot.slane %v991, %v998
    %v1001 = vunpack.c.l.s4 1935823168
    %v1002 = vunpack.c.0.s8 %v1001
    %v1003 = vlaneseq
    %v1004 = vshrl.u32 %v1003, 7
    %v1005 = vsub.s32 %v1002, %v1004
    %v1006 = vrot.slane %v992, %v1005
    %v1007 = vcombine.low %v999, %v1006
    %v1009 = vunpack.c.l.s4 1935823168
    %v1010 = vunpack.c.0.s8 %v1009
    %v1011 = vlaneseq
    %v1012 = vshrl.u32 %v1011, 7
    %v1013 = vsub.s32 %v1010, %v1012
    %v1014 = vrot.slane %v1007, %v1013
    %v1015 = vcombine.low %v981, %v989
    %v1016 = vcombine.low %v988, %v990
    %v1018 = vunpack.c.l.s4 1935823168
    %v1019 = vunpack.c.0.s8 %v1018
    %v1020 = vlaneseq
    %v1021 = vshrl.u32 %v1020, 7
    %v1022 = vsub.s32 %v1019, %v1021
    %v1023 = vrot.slane %v1015, %v1022
    %v1025 = vunpack.c.l.s4 1935823168
    %v1026 = vunpack.c.0.s8 %v1025
    %v1027 = vlaneseq
    %v1028 = vshrl.u32 %v1027, 7
    %v1029 = vsub.s32 %v1026, %v1028
    %v1030 = vrot.slane %v1016, %v1029
    %v1031 = vcombine.low %v1023, %v1030
    %v1033 = vunpack.c.l.s4 1935823168
    %v1034 = vunpack.c.0.s8 %v1033
    %v1035 = vlaneseq
    %v1036 = vshrl.u32 %v1035, 7
    %v1037 = vsub.s32 %v1034, %v1036
    %v1038 = vrot.slane %v1031, %v1037
    %v1039 = vunpack.c.l.b16 %v1014
    %v1040 = vunpack.c.l.b16 %v1038
    %1041 = vset.pattern.permute.xlu0 5
    %1042 = vperm.xlu0 %1041, %v1039
    %v1043 = vpop.permute.xlu0 %1042
    %1044 = vset.pattern.permute.xlu0 5
    %1045 = vperm.xlu0 %1044, %v1040
    %v1046 = vpop.permute.xlu0 %1045
    %v1047 = vadd.s32 %v356, 4294967264
    %v1048 = vlaneseq
    %v1049 = vshrl.u32 %v1048, 7
    %v1050 = vsub.s32 %v1047, %v1049
    %v1051 = vrot.slane %v1043, %v1050
    %v1052 = vlaneseq
    %v1053 = vshrl.u32 %v1052, 7
    %v1054 = vsub.s32 %v1047, %v1053
    %v1055 = vrot.slane %v1046, %v1054
    %v1056 = vsel %vm366, %v1055, %v1051
    %v1057 = vpack.c.b16 %v1056, %v1056
    %v1059 = vunpack.c.l.s4 1966171168
    %v1060 = vunpack.c.0.s8 %v1059
    %v1061 = vlaneseq
    %v1062 = vshrl.u32 %v1061, 7
    %v1063 = vsub.s32 %v1060, %v1062
    %v1064 = vrot.slane %v1057, %v1063
    %v1066 = vunpack.c.l.s4 1966171168
    %v1067 = vunpack.c.0.s8 %v1066
    %v1068 = vlaneseq
    %v1069 = vshrl.u32 %v1068, 7
    %v1070 = vsub.s32 %v1067, %v1069
    %v1071 = vrot.slane %v1064, %v1070
    %vm1073 = vcmask 319744
    %1074 = vst.msk [vmem:[#allocation2 + $0x1] sm:$0x1] %vm1073, %v1071
    %v1075 = vadd.f32 %v237, %v79
    %v1076 = vadd.f32 %v242, %v82
    %v1077 = vpack.c.bf16 %v1075, %v1075
    %v1078 = vpack.c.bf16 %v1076, %v1076
    %v1082 = vunpack.c.l.s4 1966171168
    %v1083 = vunpack.c.0.s8 %v1082
    %v1084 = vlaneseq
    %v1085 = vshrl.u32 %v1084, 7
    %v1086 = vsub.s32 %v1083, %v1085
    %v1087 = vrot.slane %v1077, %v1086
    %v1088 = vcombine.high %v1087, %v1087
    %v1090 = vunpack.c.l.s4 1966171168
    %v1091 = vunpack.c.0.s8 %v1090
    %v1092 = vlaneseq
    %v1093 = vshrl.u32 %v1092, 7
    %v1094 = vsub.s32 %v1091, %v1093
    %v1095 = vrot.slane %v1087, %v1094
    %v1097 = vunpack.c.l.s4 1966171168
    %v1098 = vunpack.c.0.s8 %v1097
    %v1099 = vlaneseq
    %v1100 = vshrl.u32 %v1099, 7
    %v1101 = vsub.s32 %v1098, %v1100
    %v1102 = vrot.slane %v1088, %v1101
    %v1103 = vcombine.high %v1095, %v1095
    %v1104 = vcombine.high %v1102, %v1102
    %v1106 = vunpack.c.l.s4 1966171168
    %v1107 = vunpack.c.0.s8 %v1106
    %v1108 = vlaneseq
    %v1109 = vshrl.u32 %v1108, 7
    %v1110 = vsub.s32 %v1107, %v1109
    %v1111 = vrot.slane %v1078, %v1110
    %v1112 = vcombine.high %v1111, %v1111
    %v1114 = vunpack.c.l.s4 1966171168
    %v1115 = vunpack.c.0.s8 %v1114
    %v1116 = vlaneseq
    %v1117 = vshrl.u32 %v1116, 7
    %v1118 = vsub.s32 %v1115, %v1117
    %v1119 = vrot.slane %v1111, %v1118
    %v1121 = vunpack.c.l.s4 1966171168
    %v1122 = vunpack.c.0.s8 %v1121
    %v1123 = vlaneseq
    %v1124 = vshrl.u32 %v1123, 7
    %v1125 = vsub.s32 %v1122, %v1124
    %v1126 = vrot.slane %v1112, %v1125
    %v1127 = vcombine.high %v1119, %v1119
    %v1128 = vcombine.high %v1126, %v1126
    %v1129 = vcombine.low %v1095, %v1103
    %v1130 = vcombine.low %v1102, %v1104
    %v1132 = vunpack.c.l.s4 1935823168
    %v1133 = vunpack.c.0.s8 %v1132
    %v1134 = vlaneseq
    %v1135 = vshrl.u32 %v1134, 7
    %v1136 = vsub.s32 %v1133, %v1135
    %v1137 = vrot.slane %v1129, %v1136
    %v1139 = vunpack.c.l.s4 1935823168
    %v1140 = vunpack.c.0.s8 %v1139
    %v1141 = vlaneseq
    %v1142 = vshrl.u32 %v1141, 7
    %v1143 = vsub.s32 %v1140, %v1142
    %v1144 = vrot.slane %v1130, %v1143
    %v1145 = vcombine.low %v1137, %v1144
    %v1147 = vunpack.c.l.s4 1935823168
    %v1148 = vunpack.c.0.s8 %v1147
    %v1149 = vlaneseq
    %v1150 = vshrl.u32 %v1149, 7
    %v1151 = vsub.s32 %v1148, %v1150
    %v1152 = vrot.slane %v1145, %v1151
    %v1153 = vcombine.low %v1119, %v1127
    %v1154 = vcombine.low %v1126, %v1128
    %v1156 = vunpack.c.l.s4 1935823168
    %v1157 = vunpack.c.0.s8 %v1156
    %v1158 = vlaneseq
    %v1159 = vshrl.u32 %v1158, 7
    %v1160 = vsub.s32 %v1157, %v1159
    %v1161 = vrot.slane %v1153, %v1160
    %v1163 = vunpack.c.l.s4 1935823168
    %v1164 = vunpack.c.0.s8 %v1163
    %v1165 = vlaneseq
    %v1166 = vshrl.u32 %v1165, 7
    %v1167 = vsub.s32 %v1164, %v1166
    %v1168 = vrot.slane %v1154, %v1167
    %v1169 = vcombine.low %v1161, %v1168
    %v1171 = vunpack.c.l.s4 1935823168
    %v1172 = vunpack.c.0.s8 %v1171
    %v1173 = vlaneseq
    %v1174 = vshrl.u32 %v1173, 7
    %v1175 = vsub.s32 %v1172, %v1174
    %v1176 = vrot.slane %v1169, %v1175
    %v1177 = vunpack.c.l.b16 %v1152
    %v1178 = vunpack.c.l.b16 %v1176
    %1179 = vset.pattern.permute.xlu0 6
    %1180 = vperm.xlu0 %1179, %v1177
    %v1181 = vpop.permute.xlu0 %1180
    %1182 = vset.pattern.permute.xlu0 6
    %1183 = vperm.xlu0 %1182, %v1178
    %v1184 = vpop.permute.xlu0 %1183
    %v1185 = vadd.s32 %v356, 4294967256
    %v1186 = vlaneseq
    %v1187 = vshrl.u32 %v1186, 7
    %v1188 = vsub.s32 %v1185, %v1187
    %v1189 = vrot.slane %v1181, %v1188
    %v1190 = vlaneseq
    %v1191 = vshrl.u32 %v1190, 7
    %v1192 = vsub.s32 %v1185, %v1191
    %v1193 = vrot.slane %v1184, %v1192
    %v1194 = vsel %vm366, %v1193, %v1189
    %v1195 = vpack.c.b16 %v1194, %v1194
    %v1197 = vunpack.c.l.s4 1966171168
    %v1198 = vunpack.c.0.s8 %v1197
    %v1199 = vlaneseq
    %v1200 = vshrl.u32 %v1199, 7
    %v1201 = vsub.s32 %v1198, %v1200
    %v1202 = vrot.slane %v1195, %v1201
    %v1204 = vunpack.c.l.s4 1966171168
    %v1205 = vunpack.c.0.s8 %v1204
    %v1206 = vlaneseq
    %v1207 = vshrl.u32 %v1206, 7
    %v1208 = vsub.s32 %v1205, %v1207
    %v1209 = vrot.slane %v1202, %v1208
    %vm1211 = vcmask 385344
    %1212 = vst.msk [vmem:[#allocation2 + $0x1] sm:$0x1] %vm1211, %v1209
    %v1213 = vadd.f32 %v237, %v86
    %v1214 = vadd.f32 %v242, %v89
    %v1215 = vpack.c.bf16 %v1213, %v1213
    %v1216 = vpack.c.bf16 %v1214, %v1214
    %v1220 = vunpack.c.l.s4 1966171168
    %v1221 = vunpack.c.0.s8 %v1220
    %v1222 = vlaneseq
    %v1223 = vshrl.u32 %v1222, 7
    %v1224 = vsub.s32 %v1221, %v1223
    %v1225 = vrot.slane %v1215, %v1224
    %v1226 = vcombine.high %v1225, %v1225
    %v1228 = vunpack.c.l.s4 1966171168
    %v1229 = vunpack.c.0.s8 %v1228
    %v1230 = vlaneseq
    %v1231 = vshrl.u32 %v1230, 7
    %v1232 = vsub.s32 %v1229, %v1231
    %v1233 = vrot.slane %v1225, %v1232
    %v1235 = vunpack.c.l.s4 1966171168
    %v1236 = vunpack.c.0.s8 %v1235
    %v1237 = vlaneseq
    %v1238 = vshrl.u32 %v1237, 7
    %v1239 = vsub.s32 %v1236, %v1238
    %v1240 = vrot.slane %v1226, %v1239
    %v1241 = vcombine.high %v1233, %v1233
    %v1242 = vcombine.high %v1240, %v1240
    %v1244 = vunpack.c.l.s4 1966171168
    %v1245 = vunpack.c.0.s8 %v1244
    %v1246 = vlaneseq
    %v1247 = vshrl.u32 %v1246, 7
    %v1248 = vsub.s32 %v1245, %v1247
    %v1249 = vrot.slane %v1216, %v1248
    %v1250 = vcombine.high %v1249, %v1249
    %v1252 = vunpack.c.l.s4 1966171168
    %v1253 = vunpack.c.0.s8 %v1252
    %v1254 = vlaneseq
    %v1255 = vshrl.u32 %v1254, 7
    %v1256 = vsub.s32 %v1253, %v1255
    %v1257 = vrot.slane %v1249, %v1256
    %v1259 = vunpack.c.l.s4 1966171168
    %v1260 = vunpack.c.0.s8 %v1259
    %v1261 = vlaneseq
    %v1262 = vshrl.u32 %v1261, 7
    %v1263 = vsub.s32 %v1260, %v1262
    %v1264 = vrot.slane %v1250, %v1263
    %v1265 = vcombine.high %v1257, %v1257
    %v1266 = vcombine.high %v1264, %v1264
    %v1267 = vcombine.low %v1233, %v1241
    %v1268 = vcombine.low %v1240, %v1242
    %v1270 = vunpack.c.l.s4 1935823168
    %v1271 = vunpack.c.0.s8 %v1270
    %v1272 = vlaneseq
    %v1273 = vshrl.u32 %v1272, 7
    %v1274 = vsub.s32 %v1271, %v1273
    %v1275 = vrot.slane %v1267, %v1274
    %v1277 = vunpack.c.l.s4 1935823168
    %v1278 = vunpack.c.0.s8 %v1277
    %v1279 = vlaneseq
    %v1280 = vshrl.u32 %v1279, 7
    %v1281 = vsub.s32 %v1278, %v1280
    %v1282 = vrot.slane %v1268, %v1281
    %v1283 = vcombine.low %v1275, %v1282
    %v1285 = vunpack.c.l.s4 1935823168
    %v1286 = vunpack.c.0.s8 %v1285
    %v1287 = vlaneseq
    %v1288 = vshrl.u32 %v1287, 7
    %v1289 = vsub.s32 %v1286, %v1288
    %v1290 = vrot.slane %v1283, %v1289
    %v1291 = vcombine.low %v1257, %v1265
    %v1292 = vcombine.low %v1264, %v1266
    %v1294 = vunpack.c.l.s4 1935823168
    %v1295 = vunpack.c.0.s8 %v1294
    %v1296 = vlaneseq
    %v1297 = vshrl.u32 %v1296, 7
    %v1298 = vsub.s32 %v1295, %v1297
    %v1299 = vrot.slane %v1291, %v1298
    %v1301 = vunpack.c.l.s4 1935823168
    %v1302 = vunpack.c.0.s8 %v1301
    %v1303 = vlaneseq
    %v1304 = vshrl.u32 %v1303, 7
    %v1305 = vsub.s32 %v1302, %v1304
    %v1306 = vrot.slane %v1292, %v1305
    %v1307 = vcombine.low %v1299, %v1306
    %v1309 = vunpack.c.l.s4 1935823168
    %v1310 = vunpack.c.0.s8 %v1309
    %v1311 = vlaneseq
    %v1312 = vshrl.u32 %v1311, 7
    %v1313 = vsub.s32 %v1310, %v1312
    %v1314 = vrot.slane %v1307, %v1313
    %v1315 = vunpack.c.l.b16 %v1290
    %v1316 = vunpack.c.l.b16 %v1314
    %1317 = vset.pattern.permute.xlu0 7
    %1318 = vperm.xlu0 %1317, %v1315
    %v1319 = vpop.permute.xlu0 %1318
    %1320 = vset.pattern.permute.xlu0 7
    %1321 = vperm.xlu0 %1320, %v1316
    %v1322 = vpop.permute.xlu0 %1321
    %v1323 = vadd.s32 %v356, 4294967248
    %v1324 = vlaneseq
    %v1325 = vshrl.u32 %v1324, 7
    %v1326 = vsub.s32 %v1323, %v1325
    %v1327 = vrot.slane %v1319, %v1326
    %v1328 = vlaneseq
    %v1329 = vshrl.u32 %v1328, 7
    %v1330 = vsub.s32 %v1323, %v1329
    %v1331 = vrot.slane %v1322, %v1330
    %v1332 = vsel %vm366, %v1331, %v1327
    %v1333 = vpack.c.b16 %v1332, %v1332
    %v1335 = vunpack.c.l.s4 1966171168
    %v1336 = vunpack.c.0.s8 %v1335
    %v1337 = vlaneseq
    %v1338 = vshrl.u32 %v1337, 7
    %v1339 = vsub.s32 %v1336, %v1338
    %v1340 = vrot.slane %v1333, %v1339
    %v1342 = vunpack.c.l.s4 1966171168
    %v1343 = vunpack.c.0.s8 %v1342
    %v1344 = vlaneseq
    %v1345 = vshrl.u32 %v1344, 7
    %v1346 = vsub.s32 %v1343, %v1345
    %v1347 = vrot.slane %v1340, %v1346
    %vm1349 = vcmask 450944
    %1350 = vst.msk [vmem:[#allocation2 + $0x1] sm:$0x1] %vm1349, %v1347
    %v1351 = vadd.f32 %v237, %v92
    %v1352 = vadd.f32 %v242, %v95
    %v1353 = vpack.c.bf16 %v1351, %v1351
    %v1354 = vpack.c.bf16 %v1352, %v1352
    %v1358 = vunpack.c.l.s4 1966171168
    %v1359 = vunpack.c.0.s8 %v1358
    %v1360 = vlaneseq
    %v1361 = vshrl.u32 %v1360, 7
    %v1362 = vsub.s32 %v1359, %v1361
    %v1363 = vrot.slane %v1353, %v1362
    %v1364 = vcombine.high %v1363, %v1363
    %v1366 = vunpack.c.l.s4 1966171168
    %v1367 = vunpack.c.0.s8 %v1366
    %v1368 = vlaneseq
    %v1369 = vshrl.u32 %v1368, 7
    %v1370 = vsub.s32 %v1367, %v1369
    %v1371 = vrot.slane %v1363, %v1370
    %v1373 = vunpack.c.l.s4 1966171168
    %v1374 = vunpack.c.0.s8 %v1373
    %v1375 = vlaneseq
    %v1376 = vshrl.u32 %v1375, 7
    %v1377 = vsub.s32 %v1374, %v1376
    %v1378 = vrot.slane %v1364, %v1377
    %v1379 = vcombine.high %v1371, %v1371
    %v1380 = vcombine.high %v1378, %v1378
    %v1382 = vunpack.c.l.s4 1966171168
    %v1383 = vunpack.c.0.s8 %v1382
    %v1384 = vlaneseq
    %v1385 = vshrl.u32 %v1384, 7
    %v1386 = vsub.s32 %v1383, %v1385
    %v1387 = vrot.slane %v1354, %v1386
    %v1388 = vcombine.high %v1387, %v1387
    %v1390 = vunpack.c.l.s4 1966171168
    %v1391 = vunpack.c.0.s8 %v1390
    %v1392 = vlaneseq
    %v1393 = vshrl.u32 %v1392, 7
    %v1394 = vsub.s32 %v1391, %v1393
    %v1395 = vrot.slane %v1387, %v1394
    %v1397 = vunpack.c.l.s4 1966171168
    %v1398 = vunpack.c.0.s8 %v1397
    %v1399 = vlaneseq
    %v1400 = vshrl.u32 %v1399, 7
    %v1401 = vsub.s32 %v1398, %v1400
    %v1402 = vrot.slane %v1388, %v1401
    %v1403 = vcombine.high %v1395, %v1395
    %v1404 = vcombine.high %v1402, %v1402
    %v1405 = vcombine.low %v1371, %v1379
    %v1406 = vcombine.low %v1378, %v1380
    %v1408 = vunpack.c.l.s4 1935823168
    %v1409 = vunpack.c.0.s8 %v1408
    %v1410 = vlaneseq
    %v1411 = vshrl.u32 %v1410, 7
    %v1412 = vsub.s32 %v1409, %v1411
    %v1413 = vrot.slane %v1405, %v1412
    %v1415 = vunpack.c.l.s4 1935823168
    %v1416 = vunpack.c.0.s8 %v1415
    %v1417 = vlaneseq
    %v1418 = vshrl.u32 %v1417, 7
    %v1419 = vsub.s32 %v1416, %v1418
    %v1420 = vrot.slane %v1406, %v1419
    %v1421 = vcombine.low %v1413, %v1420
    %v1423 = vunpack.c.l.s4 1935823168
    %v1424 = vunpack.c.0.s8 %v1423
    %v1425 = vlaneseq
    %v1426 = vshrl.u32 %v1425, 7
    %v1427 = vsub.s32 %v1424, %v1426
    %v1428 = vrot.slane %v1421, %v1427
    %v1429 = vcombine.low %v1395, %v1403
    %v1430 = vcombine.low %v1402, %v1404
    %v1432 = vunpack.c.l.s4 1935823168
    %v1433 = vunpack.c.0.s8 %v1432
    %v1434 = vlaneseq
    %v1435 = vshrl.u32 %v1434, 7
    %v1436 = vsub.s32 %v1433, %v1435
    %v1437 = vrot.slane %v1429, %v1436
    %v1439 = vunpack.c.l.s4 1935823168
    %v1440 = vunpack.c.0.s8 %v1439
    %v1441 = vlaneseq
    %v1442 = vshrl.u32 %v1441, 7
    %v1443 = vsub.s32 %v1440, %v1442
    %v1444 = vrot.slane %v1430, %v1443
    %v1445 = vcombine.low %v1437, %v1444
    %v1447 = vunpack.c.l.s4 1935823168
    %v1448 = vunpack.c.0.s8 %v1447
    %v1449 = vlaneseq
    %v1450 = vshrl.u32 %v1449, 7
    %v1451 = vsub.s32 %v1448, %v1450
    %v1452 = vrot.slane %v1445, %v1451
    %v1453 = vunpack.c.l.b16 %v1428
    %v1454 = vunpack.c.l.b16 %v1452
    %1455 = vset.pattern.permute.xlu0 8
    %1456 = vperm.xlu0 %1455, %v1453
    %v1457 = vpop.permute.xlu0 %1456
    %1458 = vset.pattern.permute.xlu0 8
    %1459 = vperm.xlu0 %1458, %v1454
    %v1460 = vpop.permute.xlu0 %1459
    %v1461 = vadd.s32 %v356, 4294967240
    %v1462 = vlaneseq
    %v1463 = vshrl.u32 %v1462, 7
    %v1464 = vsub.s32 %v1461, %v1463
    %v1465 = vrot.slane %v1457, %v1464
    %v1466 = vlaneseq
    %v1467 = vshrl.u32 %v1466, 7
    %v1468 = vsub.s32 %v1461, %v1467
    %v1469 = vrot.slane %v1460, %v1468
    %v1470 = vsel %vm366, %v1469, %v1465
    %v1471 = vpack.c.b16 %v1470, %v1470
    %v1473 = vunpack.c.l.s4 1966171168
    %v1474 = vunpack.c.0.s8 %v1473
    %v1475 = vlaneseq
    %v1476 = vshrl.u32 %v1475, 7
    %v1477 = vsub.s32 %v1474, %v1476
    %v1478 = vrot.slane %v1471, %v1477
    %v1480 = vunpack.c.l.s4 1966171168
    %v1481 = vunpack.c.0.s8 %v1480
    %v1482 = vlaneseq
    %v1483 = vshrl.u32 %v1482, 7
    %v1484 = vsub.s32 %v1481, %v1483
    %v1485 = vrot.slane %v1478, %v1484
    %vm1487 = vcmask 516544
    %1488 = vst.msk [vmem:[#allocation2 + $0x1] sm:$0x1] %vm1487, %v1485
    %v1489 = vadd.f32 %v237, %v98
    %v1490 = vadd.f32 %v242, %v101
    %v1491 = vpack.c.bf16 %v1489, %v1489
    %v1492 = vpack.c.bf16 %v1490, %v1490
    %v1496 = vunpack.c.l.s4 1966171168
    %v1497 = vunpack.c.0.s8 %v1496
    %v1498 = vlaneseq
    %v1499 = vshrl.u32 %v1498, 7
    %v1500 = vsub.s32 %v1497, %v1499
    %v1501 = vrot.slane %v1491, %v1500
    %v1502 = vcombine.high %v1501, %v1501
    %v1504 = vunpack.c.l.s4 1966171168
    %v1505 = vunpack.c.0.s8 %v1504
    %v1506 = vlaneseq
    %v1507 = vshrl.u32 %v1506, 7
    %v1508 = vsub.s32 %v1505, %v1507
    %v1509 = vrot.slane %v1501, %v1508
    %v1511 = vunpack.c.l.s4 1966171168
    %v1512 = vunpack.c.0.s8 %v1511
    %v1513 = vlaneseq
    %v1514 = vshrl.u32 %v1513, 7
    %v1515 = vsub.s32 %v1512, %v1514
    %v1516 = vrot.slane %v1502, %v1515
    %v1517 = vcombine.high %v1509, %v1509
    %v1518 = vcombine.high %v1516, %v1516
    %v1520 = vunpack.c.l.s4 1966171168
    %v1521 = vunpack.c.0.s8 %v1520
    %v1522 = vlaneseq
    %v1523 = vshrl.u32 %v1522, 7
    %v1524 = vsub.s32 %v1521, %v1523
    %v1525 = vrot.slane %v1492, %v1524
    %v1526 = vcombine.high %v1525, %v1525
    %v1528 = vunpack.c.l.s4 1966171168
    %v1529 = vunpack.c.0.s8 %v1528
    %v1530 = vlaneseq
    %v1531 = vshrl.u32 %v1530, 7
    %v1532 = vsub.s32 %v1529, %v1531
    %v1533 = vrot.slane %v1525, %v1532
    %v1535 = vunpack.c.l.s4 1966171168
    %v1536 = vunpack.c.0.s8 %v1535
    %v1537 = vlaneseq
    %v1538 = vshrl.u32 %v1537, 7
    %v1539 = vsub.s32 %v1536, %v1538
    %v1540 = vrot.slane %v1526, %v1539
    %v1541 = vcombine.high %v1533, %v1533
    %v1542 = vcombine.high %v1540, %v1540
    %v1543 = vcombine.low %v1509, %v1517
    %v1544 = vcombine.low %v1516, %v1518
    %v1546 = vunpack.c.l.s4 1935823168
    %v1547 = vunpack.c.0.s8 %v1546
    %v1548 = vlaneseq
    %v1549 = vshrl.u32 %v1548, 7
    %v1550 = vsub.s32 %v1547, %v1549
    %v1551 = vrot.slane %v1543, %v1550
    %v1553 = vunpack.c.l.s4 1935823168
    %v1554 = vunpack.c.0.s8 %v1553
    %v1555 = vlaneseq
    %v1556 = vshrl.u32 %v1555, 7
    %v1557 = vsub.s32 %v1554, %v1556
    %v1558 = vrot.slane %v1544, %v1557
    %v1559 = vcombine.low %v1551, %v1558
    %v1561 = vunpack.c.l.s4 1935823168
    %v1562 = vunpack.c.0.s8 %v1561
    %v1563 = vlaneseq
    %v1564 = vshrl.u32 %v1563, 7
    %v1565 = vsub.s32 %v1562, %v1564
    %v1566 = vrot.slane %v1559, %v1565
    %v1567 = vcombine.low %v1533, %v1541
    %v1568 = vcombine.low %v1540, %v1542
    %v1570 = vunpack.c.l.s4 1935823168
    %v1571 = vunpack.c.0.s8 %v1570
    %v1572 = vlaneseq
    %v1573 = vshrl.u32 %v1572, 7
    %v1574 = vsub.s32 %v1571, %v1573
    %v1575 = vrot.slane %v1567, %v1574
    %v1577 = vunpack.c.l.s4 1935823168
    %v1578 = vunpack.c.0.s8 %v1577
    %v1579 = vlaneseq
    %v1580 = vshrl.u32 %v1579, 7
    %v1581 = vsub.s32 %v1578, %v1580
    %v1582 = vrot.slane %v1568, %v1581
    %v1583 = vcombine.low %v1575, %v1582
    %v1585 = vunpack.c.l.s4 1935823168
    %v1586 = vunpack.c.0.s8 %v1585
    %v1587 = vlaneseq
    %v1588 = vshrl.u32 %v1587, 7
    %v1589 = vsub.s32 %v1586, %v1588
    %v1590 = vrot.slane %v1583, %v1589
    %v1591 = vunpack.c.l.b16 %v1566
    %v1592 = vunpack.c.l.b16 %v1590
    %1593 = vset.pattern.permute.xlu0 9
    %1594 = vperm.xlu0 %1593, %v1591
    %v1595 = vpop.permute.xlu0 %1594
    %1596 = vset.pattern.permute.xlu0 9
    %1597 = vperm.xlu0 %1596, %v1592
    %v1598 = vpop.permute.xlu0 %1597
    %v1599 = vadd.s32 %v356, 4294967232
    %v1600 = vlaneseq
    %v1601 = vshrl.u32 %v1600, 7
    %v1602 = vsub.s32 %v1599, %v1601
    %v1603 = vrot.slane %v1595, %v1602
    %v1604 = vlaneseq
    %v1605 = vshrl.u32 %v1604, 7
    %v1606 = vsub.s32 %v1599, %v1605
    %v1607 = vrot.slane %v1598, %v1606
    %v1608 = vsel %vm366, %v1607, %v1603
    %v1609 = vpack.c.b16 %v1608, %v1608
    %v1611 = vunpack.c.l.s4 1966171168
    %v1612 = vunpack.c.0.s8 %v1611
    %v1613 = vlaneseq
    %v1614 = vshrl.u32 %v1613, 7
    %v1615 = vsub.s32 %v1612, %v1614
    %v1616 = vrot.slane %v1609, %v1615
    %v1618 = vunpack.c.l.s4 1966171168
    %v1619 = vunpack.c.0.s8 %v1618
    %v1620 = vlaneseq
    %v1621 = vshrl.u32 %v1620, 7
    %v1622 = vsub.s32 %v1619, %v1621
    %v1623 = vrot.slane %v1616, %v1622
    %vm1625 = vcmask 582144
    %1626 = vst.msk [vmem:[#allocation2 + $0x1] sm:$0x1] %vm1625, %v1623
    %v1627 = vadd.f32 %v237, %v104
    %v1628 = vadd.f32 %v242, %v107
    %v1629 = vpack.c.bf16 %v1627, %v1627
    %v1630 = vpack.c.bf16 %v1628, %v1628
    %v1634 = vunpack.c.l.s4 1966171168
    %v1635 = vunpack.c.0.s8 %v1634
    %v1636 = vlaneseq
    %v1637 = vshrl.u32 %v1636, 7
    %v1638 = vsub.s32 %v1635, %v1637
    %v1639 = vrot.slane %v1629, %v1638
    %v1640 = vcombine.high %v1639, %v1639
    %v1642 = vunpack.c.l.s4 1966171168
    %v1643 = vunpack.c.0.s8 %v1642
    %v1644 = vlaneseq
    %v1645 = vshrl.u32 %v1644, 7
    %v1646 = vsub.s32 %v1643, %v1645
    %v1647 = vrot.slane %v1639, %v1646
    %v1649 = vunpack.c.l.s4 1966171168
    %v1650 = vunpack.c.0.s8 %v1649
    %v1651 = vlaneseq
    %v1652 = vshrl.u32 %v1651, 7
    %v1653 = vsub.s32 %v1650, %v1652
    %v1654 = vrot.slane %v1640, %v1653
    %v1655 = vcombine.high %v1647, %v1647
    %v1656 = vcombine.high %v1654, %v1654
    %v1658 = vunpack.c.l.s4 1966171168
    %v1659 = vunpack.c.0.s8 %v1658
    %v1660 = vlaneseq
    %v1661 = vshrl.u32 %v1660, 7
    %v1662 = vsub.s32 %v1659, %v1661
    %v1663 = vrot.slane %v1630, %v1662
    %v1664 = vcombine.high %v1663, %v1663
    %v1666 = vunpack.c.l.s4 1966171168
    %v1667 = vunpack.c.0.s8 %v1666
    %v1668 = vlaneseq
    %v1669 = vshrl.u32 %v1668, 7
    %v1670 = vsub.s32 %v1667, %v1669
    %v1671 = vrot.slane %v1663, %v1670
    %v1673 = vunpack.c.l.s4 1966171168
    %v1674 = vunpack.c.0.s8 %v1673
    %v1675 = vlaneseq
    %v1676 = vshrl.u32 %v1675, 7
    %v1677 = vsub.s32 %v1674, %v1676
    %v1678 = vrot.slane %v1664, %v1677
    %v1679 = vcombine.high %v1671, %v1671
    %v1680 = vcombine.high %v1678, %v1678
    %v1681 = vcombine.low %v1647, %v1655
    %v1682 = vcombine.low %v1654, %v1656
    %v1684 = vunpack.c.l.s4 1935823168
    %v1685 = vunpack.c.0.s8 %v1684
    %v1686 = vlaneseq
    %v1687 = vshrl.u32 %v1686, 7
    %v1688 = vsub.s32 %v1685, %v1687
    %v1689 = vrot.slane %v1681, %v1688
    %v1691 = vunpack.c.l.s4 1935823168
    %v1692 = vunpack.c.0.s8 %v1691
    %v1693 = vlaneseq
    %v1694 = vshrl.u32 %v1693, 7
    %v1695 = vsub.s32 %v1692, %v1694
    %v1696 = vrot.slane %v1682, %v1695
    %v1697 = vcombine.low %v1689, %v1696
    %v1699 = vunpack.c.l.s4 1935823168
    %v1700 = vunpack.c.0.s8 %v1699
    %v1701 = vlaneseq
    %v1702 = vshrl.u32 %v1701, 7
    %v1703 = vsub.s32 %v1700, %v1702
    %v1704 = vrot.slane %v1697, %v1703
    %v1705 = vcombine.low %v1671, %v1679
    %v1706 = vcombine.low %v1678, %v1680
    %v1708 = vunpack.c.l.s4 1935823168
    %v1709 = vunpack.c.0.s8 %v1708
    %v1710 = vlaneseq
    %v1711 = vshrl.u32 %v1710, 7
    %v1712 = vsub.s32 %v1709, %v1711
    %v1713 = vrot.slane %v1705, %v1712
    %v1715 = vunpack.c.l.s4 1935823168
    %v1716 = vunpack.c.0.s8 %v1715
    %v1717 = vlaneseq
    %v1718 = vshrl.u32 %v1717, 7
    %v1719 = vsub.s32 %v1716, %v1718
    %v1720 = vrot.slane %v1706, %v1719
    %v1721 = vcombine.low %v1713, %v1720
    %v1723 = vunpack.c.l.s4 1935823168
    %v1724 = vunpack.c.0.s8 %v1723
    %v1725 = vlaneseq
    %v1726 = vshrl.u32 %v1725, 7
    %v1727 = vsub.s32 %v1724, %v1726
    %v1728 = vrot.slane %v1721, %v1727
    %v1729 = vunpack.c.l.b16 %v1704
    %v1730 = vunpack.c.l.b16 %v1728
    %1731 = vset.pattern.permute.xlu0 10
    %1732 = vperm.xlu0 %1731, %v1729
    %v1733 = vpop.permute.xlu0 %1732
    %1734 = vset.pattern.permute.xlu0 10
    %1735 = vperm.xlu0 %1734, %v1730
    %v1736 = vpop.permute.xlu0 %1735
    %v1737 = vadd.s32 %v356, 4294967224
    %v1738 = vlaneseq
    %v1739 = vshrl.u32 %v1738, 7
    %v1740 = vsub.s32 %v1737, %v1739
    %v1741 = vrot.slane %v1733, %v1740
    %v1742 = vlaneseq
    %v1743 = vshrl.u32 %v1742, 7
    %v1744 = vsub.s32 %v1737, %v1743
    %v1745 = vrot.slane %v1736, %v1744
    %v1746 = vsel %vm366, %v1745, %v1741
    %v1747 = vpack.c.b16 %v1746, %v1746
    %v1749 = vunpack.c.l.s4 1966171168
    %v1750 = vunpack.c.0.s8 %v1749
    %v1751 = vlaneseq
    %v1752 = vshrl.u32 %v1751, 7
    %v1753 = vsub.s32 %v1750, %v1752
    %v1754 = vrot.slane %v1747, %v1753
    %v1756 = vunpack.c.l.s4 1966171168
    %v1757 = vunpack.c.0.s8 %v1756
    %v1758 = vlaneseq
    %v1759 = vshrl.u32 %v1758, 7
    %v1760 = vsub.s32 %v1757, %v1759
    %v1761 = vrot.slane %v1754, %v1760
    %vm1763 = vcmask 647744
    %1764 = vst.msk [vmem:[#allocation2 + $0x1] sm:$0x1] %vm1763, %v1761
    %v1765 = vadd.f32 %v237, %v110
    %v1766 = vadd.f32 %v242, %v113
    %v1767 = vpack.c.bf16 %v1765, %v1765
    %v1768 = vpack.c.bf16 %v1766, %v1766
    %v1772 = vunpack.c.l.s4 1966171168
    %v1773 = vunpack.c.0.s8 %v1772
    %v1774 = vlaneseq
    %v1775 = vshrl.u32 %v1774, 7
    %v1776 = vsub.s32 %v1773, %v1775
    %v1777 = vrot.slane %v1767, %v1776
    %v1778 = vcombine.high %v1777, %v1777
    %v1780 = vunpack.c.l.s4 1966171168
    %v1781 = vunpack.c.0.s8 %v1780
    %v1782 = vlaneseq
    %v1783 = vshrl.u32 %v1782, 7
    %v1784 = vsub.s32 %v1781, %v1783
    %v1785 = vrot.slane %v1777, %v1784
    %v1787 = vunpack.c.l.s4 1966171168
    %v1788 = vunpack.c.0.s8 %v1787
    %v1789 = vlaneseq
    %v1790 = vshrl.u32 %v1789, 7
    %v1791 = vsub.s32 %v1788, %v1790
    %v1792 = vrot.slane %v1778, %v1791
    %v1793 = vcombine.high %v1785, %v1785
    %v1794 = vcombine.high %v1792, %v1792
    %v1796 = vunpack.c.l.s4 1966171168
    %v1797 = vunpack.c.0.s8 %v1796
    %v1798 = vlaneseq
    %v1799 = vshrl.u32 %v1798, 7
    %v1800 = vsub.s32 %v1797, %v1799
    %v1801 = vrot.slane %v1768, %v1800
    %v1802 = vcombine.high %v1801, %v1801
    %v1804 = vunpack.c.l.s4 1966171168
    %v1805 = vunpack.c.0.s8 %v1804
    %v1806 = vlaneseq
    %v1807 = vshrl.u32 %v1806, 7
    %v1808 = vsub.s32 %v1805, %v1807
    %v1809 = vrot.slane %v1801, %v1808
    %v1811 = vunpack.c.l.s4 1966171168
    %v1812 = vunpack.c.0.s8 %v1811
    %v1813 = vlaneseq
    %v1814 = vshrl.u32 %v1813, 7
    %v1815 = vsub.s32 %v1812, %v1814
    %v1816 = vrot.slane %v1802, %v1815
    %v1817 = vcombine.high %v1809, %v1809
    %v1818 = vcombine.high %v1816, %v1816
    %v1819 = vcombine.low %v1785, %v1793
    %v1820 = vcombine.low %v1792, %v1794
    %v1822 = vunpack.c.l.s4 1935823168
    %v1823 = vunpack.c.0.s8 %v1822
    %v1824 = vlaneseq
    %v1825 = vshrl.u32 %v1824, 7
    %v1826 = vsub.s32 %v1823, %v1825
    %v1827 = vrot.slane %v1819, %v1826
    %v1829 = vunpack.c.l.s4 1935823168
    %v1830 = vunpack.c.0.s8 %v1829
    %v1831 = vlaneseq
    %v1832 = vshrl.u32 %v1831, 7
    %v1833 = vsub.s32 %v1830, %v1832
    %v1834 = vrot.slane %v1820, %v1833
    %v1835 = vcombine.low %v1827, %v1834
    %v1837 = vunpack.c.l.s4 1935823168
    %v1838 = vunpack.c.0.s8 %v1837
    %v1839 = vlaneseq
    %v1840 = vshrl.u32 %v1839, 7
    %v1841 = vsub.s32 %v1838, %v1840
    %v1842 = vrot.slane %v1835, %v1841
    %v1843 = vcombine.low %v1809, %v1817
    %v1844 = vcombine.low %v1816, %v1818
    %v1846 = vunpack.c.l.s4 1935823168
    %v1847 = vunpack.c.0.s8 %v1846
    %v1848 = vlaneseq
    %v1849 = vshrl.u32 %v1848, 7
    %v1850 = vsub.s32 %v1847, %v1849
    %v1851 = vrot.slane %v1843, %v1850
    %v1853 = vunpack.c.l.s4 1935823168
    %v1854 = vunpack.c.0.s8 %v1853
    %v1855 = vlaneseq
    %v1856 = vshrl.u32 %v1855, 7
    %v1857 = vsub.s32 %v1854, %v1856
    %v1858 = vrot.slane %v1844, %v1857
    %v1859 = vcombine.low %v1851, %v1858
    %v1861 = vunpack.c.l.s4 1935823168
    %v1862 = vunpack.c.0.s8 %v1861
    %v1863 = vlaneseq
    %v1864 = vshrl.u32 %v1863, 7
    %v1865 = vsub.s32 %v1862, %v1864
    %v1866 = vrot.slane %v1859, %v1865
    %v1867 = vunpack.c.l.b16 %v1842
    %v1868 = vunpack.c.l.b16 %v1866
    %1869 = vset.pattern.permute.xlu0 11
    %1870 = vperm.xlu0 %1869, %v1867
    %v1871 = vpop.permute.xlu0 %1870
    %1872 = vset.pattern.permute.xlu0 11
    %1873 = vperm.xlu0 %1872, %v1868
    %v1874 = vpop.permute.xlu0 %1873
    %v1875 = vadd.s32 %v356, 4294967216
    %v1876 = vlaneseq
    %v1877 = vshrl.u32 %v1876, 7
    %v1878 = vsub.s32 %v1875, %v1877
    %v1879 = vrot.slane %v1871, %v1878
    %v1880 = vlaneseq
    %v1881 = vshrl.u32 %v1880, 7
    %v1882 = vsub.s32 %v1875, %v1881
    %v1883 = vrot.slane %v1874, %v1882
    %v1884 = vsel %vm366, %v1883, %v1879
    %v1885 = vpack.c.b16 %v1884, %v1884
    %v1887 = vunpack.c.l.s4 1966171168
    %v1888 = vunpack.c.0.s8 %v1887
    %v1889 = vlaneseq
    %v1890 = vshrl.u32 %v1889, 7
    %v1891 = vsub.s32 %v1888, %v1890
    %v1892 = vrot.slane %v1885, %v1891
    %v1894 = vunpack.c.l.s4 1966171168
    %v1895 = vunpack.c.0.s8 %v1894
    %v1896 = vlaneseq
    %v1897 = vshrl.u32 %v1896, 7
    %v1898 = vsub.s32 %v1895, %v1897
    %v1899 = vrot.slane %v1892, %v1898
    %vm1901 = vcmask 713344
    %1902 = vst.msk [vmem:[#allocation2 + $0x1] sm:$0x1] %vm1901, %v1899
    %v1903 = vadd.f32 %v237, %v116
    %v1904 = vadd.f32 %v242, %v119
    %v1905 = vpack.c.bf16 %v1903, %v1903
    %v1906 = vpack.c.bf16 %v1904, %v1904
    %v1910 = vunpack.c.l.s4 1966171168
    %v1911 = vunpack.c.0.s8 %v1910
    %v1912 = vlaneseq
    %v1913 = vshrl.u32 %v1912, 7
    %v1914 = vsub.s32 %v1911, %v1913
    %v1915 = vrot.slane %v1905, %v1914
    %v1916 = vcombine.high %v1915, %v1915
    %v1918 = vunpack.c.l.s4 1966171168
    %v1919 = vunpack.c.0.s8 %v1918
    %v1920 = vlaneseq
    %v1921 = vshrl.u32 %v1920, 7
    %v1922 = vsub.s32 %v1919, %v1921
    %v1923 = vrot.slane %v1915, %v1922
    %v1925 = vunpack.c.l.s4 1966171168
    %v1926 = vunpack.c.0.s8 %v1925
    %v1927 = vlaneseq
    %v1928 = vshrl.u32 %v1927, 7
    %v1929 = vsub.s32 %v1926, %v1928
    %v1930 = vrot.slane %v1916, %v1929
    %v1931 = vcombine.high %v1923, %v1923
    %v1932 = vcombine.high %v1930, %v1930
    %v1934 = vunpack.c.l.s4 1966171168
    %v1935 = vunpack.c.0.s8 %v1934
    %v1936 = vlaneseq
    %v1937 = vshrl.u32 %v1936, 7
    %v1938 = vsub.s32 %v1935, %v1937
    %v1939 = vrot.slane %v1906, %v1938
    %v1940 = vcombine.high %v1939, %v1939
    %v1942 = vunpack.c.l.s4 1966171168
    %v1943 = vunpack.c.0.s8 %v1942
    %v1944 = vlaneseq
    %v1945 = vshrl.u32 %v1944, 7
    %v1946 = vsub.s32 %v1943, %v1945
    %v1947 = vrot.slane %v1939, %v1946
    %v1949 = vunpack.c.l.s4 1966171168
    %v1950 = vunpack.c.0.s8 %v1949
    %v1951 = vlaneseq
    %v1952 = vshrl.u32 %v1951, 7
    %v1953 = vsub.s32 %v1950, %v1952
    %v1954 = vrot.slane %v1940, %v1953
    %v1955 = vcombine.high %v1947, %v1947
    %v1956 = vcombine.high %v1954, %v1954
    %v1957 = vcombine.low %v1923, %v1931
    %v1958 = vcombine.low %v1930, %v1932
    %v1960 = vunpack.c.l.s4 1935823168
    %v1961 = vunpack.c.0.s8 %v1960
    %v1962 = vlaneseq
    %v1963 = vshrl.u32 %v1962, 7
    %v1964 = vsub.s32 %v1961, %v1963
    %v1965 = vrot.slane %v1957, %v1964
    %v1967 = vunpack.c.l.s4 1935823168
    %v1968 = vunpack.c.0.s8 %v1967
    %v1969 = vlaneseq
    %v1970 = vshrl.u32 %v1969, 7
    %v1971 = vsub.s32 %v1968, %v1970
    %v1972 = vrot.slane %v1958, %v1971
    %v1973 = vcombine.low %v1965, %v1972
    %v1975 = vunpack.c.l.s4 1935823168
    %v1976 = vunpack.c.0.s8 %v1975
    %v1977 = vlaneseq
    %v1978 = vshrl.u32 %v1977, 7
    %v1979 = vsub.s32 %v1976, %v1978
    %v1980 = vrot.slane %v1973, %v1979
    %v1981 = vcombine.low %v1947, %v1955
    %v1982 = vcombine.low %v1954, %v1956
    %v1984 = vunpack.c.l.s4 1935823168
    %v1985 = vunpack.c.0.s8 %v1984
    %v1986 = vlaneseq
    %v1987 = vshrl.u32 %v1986, 7
    %v1988 = vsub.s32 %v1985, %v1987
    %v1989 = vrot.slane %v1981, %v1988
    %v1991 = vunpack.c.l.s4 1935823168
    %v1992 = vunpack.c.0.s8 %v1991
    %v1993 = vlaneseq
    %v1994 = vshrl.u32 %v1993, 7
    %v1995 = vsub.s32 %v1992, %v1994
    %v1996 = vrot.slane %v1982, %v1995
    %v1997 = vcombine.low %v1989, %v1996
    %v1999 = vunpack.c.l.s4 1935823168
    %v2000 = vunpack.c.0.s8 %v1999
    %v2001 = vlaneseq
    %v2002 = vshrl.u32 %v2001, 7
    %v2003 = vsub.s32 %v2000, %v2002
    %v2004 = vrot.slane %v1997, %v2003
    %v2005 = vunpack.c.l.b16 %v1980
    %v2006 = vunpack.c.l.b16 %v2004
    %2007 = vset.pattern.permute.xlu0 12
    %2008 = vperm.xlu0 %2007, %v2005
    %v2009 = vpop.permute.xlu0 %2008
    %2010 = vset.pattern.permute.xlu0 12
    %2011 = vperm.xlu0 %2010, %v2006
    %v2012 = vpop.permute.xlu0 %2011
    %v2013 = vadd.s32 %v356, 4294967208
    %v2014 = vlaneseq
    %v2015 = vshrl.u32 %v2014, 7
    %v2016 = vsub.s32 %v2013, %v2015
    %v2017 = vrot.slane %v2009, %v2016
    %v2018 = vlaneseq
    %v2019 = vshrl.u32 %v2018, 7
    %v2020 = vsub.s32 %v2013, %v2019
    %v2021 = vrot.slane %v2012, %v2020
    %v2022 = vsel %vm366, %v2021, %v2017
    %v2023 = vpack.c.b16 %v2022, %v2022
    %v2025 = vunpack.c.l.s4 1966171168
    %v2026 = vunpack.c.0.s8 %v2025
    %v2027 = vlaneseq
    %v2028 = vshrl.u32 %v2027, 7
    %v2029 = vsub.s32 %v2026, %v2028
    %v2030 = vrot.slane %v2023, %v2029
    %v2032 = vunpack.c.l.s4 1966171168
    %v2033 = vunpack.c.0.s8 %v2032
    %v2034 = vlaneseq
    %v2035 = vshrl.u32 %v2034, 7
    %v2036 = vsub.s32 %v2033, %v2035
    %v2037 = vrot.slane %v2030, %v2036
    %vm2039 = vcmask 778944
    %2040 = vst.msk [vmem:[#allocation2 + $0x1] sm:$0x1] %vm2039, %v2037
    %v2041 = vadd.f32 %v237, %v122
    %v2042 = vadd.f32 %v242, %v125
    %v2043 = vpack.c.bf16 %v2041, %v2041
    %v2044 = vpack.c.bf16 %v2042, %v2042
    %v2048 = vunpack.c.l.s4 1966171168
    %v2049 = vunpack.c.0.s8 %v2048
    %v2050 = vlaneseq
    %v2051 = vshrl.u32 %v2050, 7
    %v2052 = vsub.s32 %v2049, %v2051
    %v2053 = vrot.slane %v2043, %v2052
    %v2054 = vcombine.high %v2053, %v2053
    %v2056 = vunpack.c.l.s4 1966171168
    %v2057 = vunpack.c.0.s8 %v2056
    %v2058 = vlaneseq
    %v2059 = vshrl.u32 %v2058, 7
    %v2060 = vsub.s32 %v2057, %v2059
    %v2061 = vrot.slane %v2053, %v2060
    %v2063 = vunpack.c.l.s4 1966171168
    %v2064 = vunpack.c.0.s8 %v2063
    %v2065 = vlaneseq
    %v2066 = vshrl.u32 %v2065, 7
    %v2067 = vsub.s32 %v2064, %v2066
    %v2068 = vrot.slane %v2054, %v2067
    %v2069 = vcombine.high %v2061, %v2061
    %v2070 = vcombine.high %v2068, %v2068
    %v2072 = vunpack.c.l.s4 1966171168
    %v2073 = vunpack.c.0.s8 %v2072
    %v2074 = vlaneseq
    %v2075 = vshrl.u32 %v2074, 7
    %v2076 = vsub.s32 %v2073, %v2075
    %v2077 = vrot.slane %v2044, %v2076
    %v2078 = vcombine.high %v2077, %v2077
    %v2080 = vunpack.c.l.s4 1966171168
    %v2081 = vunpack.c.0.s8 %v2080
    %v2082 = vlaneseq
    %v2083 = vshrl.u32 %v2082, 7
    %v2084 = vsub.s32 %v2081, %v2083
    %v2085 = vrot.slane %v2077, %v2084
    %v2087 = vunpack.c.l.s4 1966171168
    %v2088 = vunpack.c.0.s8 %v2087
    %v2089 = vlaneseq
    %v2090 = vshrl.u32 %v2089, 7
    %v2091 = vsub.s32 %v2088, %v2090
    %v2092 = vrot.slane %v2078, %v2091
    %v2093 = vcombine.high %v2085, %v2085
    %v2094 = vcombine.high %v2092, %v2092
    %v2095 = vcombine.low %v2061, %v2069
    %v2096 = vcombine.low %v2068, %v2070
    %v2098 = vunpack.c.l.s4 1935823168
    %v2099 = vunpack.c.0.s8 %v2098
    %v2100 = vlaneseq
    %v2101 = vshrl.u32 %v2100, 7
    %v2102 = vsub.s32 %v2099, %v2101
    %v2103 = vrot.slane %v2095, %v2102
    %v2105 = vunpack.c.l.s4 1935823168
    %v2106 = vunpack.c.0.s8 %v2105
    %v2107 = vlaneseq
    %v2108 = vshrl.u32 %v2107, 7
    %v2109 = vsub.s32 %v2106, %v2108
    %v2110 = vrot.slane %v2096, %v2109
    %v2111 = vcombine.low %v2103, %v2110
    %v2113 = vunpack.c.l.s4 1935823168
    %v2114 = vunpack.c.0.s8 %v2113
    %v2115 = vlaneseq
    %v2116 = vshrl.u32 %v2115, 7
    %v2117 = vsub.s32 %v2114, %v2116
    %v2118 = vrot.slane %v2111, %v2117
    %v2119 = vcombine.low %v2085, %v2093
    %v2120 = vcombine.low %v2092, %v2094
    %v2122 = vunpack.c.l.s4 1935823168
    %v2123 = vunpack.c.0.s8 %v2122
    %v2124 = vlaneseq
    %v2125 = vshrl.u32 %v2124, 7
    %v2126 = vsub.s32 %v2123, %v2125
    %v2127 = vrot.slane %v2119, %v2126
    %v2129 = vunpack.c.l.s4 1935823168
    %v2130 = vunpack.c.0.s8 %v2129
    %v2131 = vlaneseq
    %v2132 = vshrl.u32 %v2131, 7
    %v2133 = vsub.s32 %v2130, %v2132
    %v2134 = vrot.slane %v2120, %v2133
    %v2135 = vcombine.low %v2127, %v2134
    %v2137 = vunpack.c.l.s4 1935823168
    %v2138 = vunpack.c.0.s8 %v2137
    %v2139 = vlaneseq
    %v2140 = vshrl.u32 %v2139, 7
    %v2141 = vsub.s32 %v2138, %v2140
    %v2142 = vrot.slane %v2135, %v2141
    %v2143 = vunpack.c.l.b16 %v2118
    %v2144 = vunpack.c.l.b16 %v2142
    %2145 = vset.pattern.permute.xlu0 13
    %2146 = vperm.xlu0 %2145, %v2143
    %v2147 = vpop.permute.xlu0 %2146
    %2148 = vset.pattern.permute.xlu0 13
    %2149 = vperm.xlu0 %2148, %v2144
    %v2150 = vpop.permute.xlu0 %2149
    %v2151 = vadd.s32 %v356, 4294967200
    %v2152 = vlaneseq
    %v2153 = vshrl.u32 %v2152, 7
    %v2154 = vsub.s32 %v2151, %v2153
    %v2155 = vrot.slane %v2147, %v2154
    %v2156 = vlaneseq
    %v2157 = vshrl.u32 %v2156, 7
    %v2158 = vsub.s32 %v2151, %v2157
    %v2159 = vrot.slane %v2150, %v2158
    %v2160 = vsel %vm366, %v2159, %v2155
    %v2161 = vpack.c.b16 %v2160, %v2160
    %v2163 = vunpack.c.l.s4 1966171168
    %v2164 = vunpack.c.0.s8 %v2163
    %v2165 = vlaneseq
    %v2166 = vshrl.u32 %v2165, 7
    %v2167 = vsub.s32 %v2164, %v2166
    %v2168 = vrot.slane %v2161, %v2167
    %v2170 = vunpack.c.l.s4 1966171168
    %v2171 = vunpack.c.0.s8 %v2170
    %v2172 = vlaneseq
    %v2173 = vshrl.u32 %v2172, 7
    %v2174 = vsub.s32 %v2171, %v2173
    %v2175 = vrot.slane %v2168, %v2174
    %vm2177 = vcmask 844544
    %2178 = vst.msk [vmem:[#allocation2 + $0x1] sm:$0x1] %vm2177, %v2175
    %v2179 = vadd.f32 %v237, %v128
    %v2180 = vadd.f32 %v242, %v131
    %v2181 = vpack.c.bf16 %v2179, %v2179
    %v2182 = vpack.c.bf16 %v2180, %v2180
    %v2186 = vunpack.c.l.s4 1966171168
    %v2187 = vunpack.c.0.s8 %v2186
    %v2188 = vlaneseq
    %v2189 = vshrl.u32 %v2188, 7
    %v2190 = vsub.s32 %v2187, %v2189
    %v2191 = vrot.slane %v2181, %v2190
    %v2192 = vcombine.high %v2191, %v2191
    %v2194 = vunpack.c.l.s4 1966171168
    %v2195 = vunpack.c.0.s8 %v2194
    %v2196 = vlaneseq
    %v2197 = vshrl.u32 %v2196, 7
    %v2198 = vsub.s32 %v2195, %v2197
    %v2199 = vrot.slane %v2191, %v2198
    %v2201 = vunpack.c.l.s4 1966171168
    %v2202 = vunpack.c.0.s8 %v2201
    %v2203 = vlaneseq
    %v2204 = vshrl.u32 %v2203, 7
    %v2205 = vsub.s32 %v2202, %v2204
    %v2206 = vrot.slane %v2192, %v2205
    %v2207 = vcombine.high %v2199, %v2199
    %v2208 = vcombine.high %v2206, %v2206
    %v2210 = vunpack.c.l.s4 1966171168
    %v2211 = vunpack.c.0.s8 %v2210
    %v2212 = vlaneseq
    %v2213 = vshrl.u32 %v2212, 7
    %v2214 = vsub.s32 %v2211, %v2213
    %v2215 = vrot.slane %v2182, %v2214
    %v2216 = vcombine.high %v2215, %v2215
    %v2218 = vunpack.c.l.s4 1966171168
    %v2219 = vunpack.c.0.s8 %v2218
    %v2220 = vlaneseq
    %v2221 = vshrl.u32 %v2220, 7
    %v2222 = vsub.s32 %v2219, %v2221
    %v2223 = vrot.slane %v2215, %v2222
    %v2225 = vunpack.c.l.s4 1966171168
    %v2226 = vunpack.c.0.s8 %v2225
    %v2227 = vlaneseq
    %v2228 = vshrl.u32 %v2227, 7
    %v2229 = vsub.s32 %v2226, %v2228
    %v2230 = vrot.slane %v2216, %v2229
    %v2231 = vcombine.high %v2223, %v2223
    %v2232 = vcombine.high %v2230, %v2230
    %v2233 = vcombine.low %v2199, %v2207
    %v2234 = vcombine.low %v2206, %v2208
    %v2236 = vunpack.c.l.s4 1935823168
    %v2237 = vunpack.c.0.s8 %v2236
    %v2238 = vlaneseq
    %v2239 = vshrl.u32 %v2238, 7
    %v2240 = vsub.s32 %v2237, %v2239
    %v2241 = vrot.slane %v2233, %v2240
    %v2243 = vunpack.c.l.s4 1935823168
    %v2244 = vunpack.c.0.s8 %v2243
    %v2245 = vlaneseq
    %v2246 = vshrl.u32 %v2245, 7
    %v2247 = vsub.s32 %v2244, %v2246
    %v2248 = vrot.slane %v2234, %v2247
    %v2249 = vcombine.low %v2241, %v2248
    %v2251 = vunpack.c.l.s4 1935823168
    %v2252 = vunpack.c.0.s8 %v2251
    %v2253 = vlaneseq
    %v2254 = vshrl.u32 %v2253, 7
    %v2255 = vsub.s32 %v2252, %v2254
    %v2256 = vrot.slane %v2249, %v2255
    %v2257 = vcombine.low %v2223, %v2231
    %v2258 = vcombine.low %v2230, %v2232
    %v2260 = vunpack.c.l.s4 1935823168
    %v2261 = vunpack.c.0.s8 %v2260
    %v2262 = vlaneseq
    %v2263 = vshrl.u32 %v2262, 7
    %v2264 = vsub.s32 %v2261, %v2263
    %v2265 = vrot.slane %v2257, %v2264
    %v2267 = vunpack.c.l.s4 1935823168
    %v2268 = vunpack.c.0.s8 %v2267
    %v2269 = vlaneseq
    %v2270 = vshrl.u32 %v2269, 7
    %v2271 = vsub.s32 %v2268, %v2270
    %v2272 = vrot.slane %v2258, %v2271
    %v2273 = vcombine.low %v2265, %v2272
    %v2275 = vunpack.c.l.s4 1935823168
    %v2276 = vunpack.c.0.s8 %v2275
    %v2277 = vlaneseq
    %v2278 = vshrl.u32 %v2277, 7
    %v2279 = vsub.s32 %v2276, %v2278
    %v2280 = vrot.slane %v2273, %v2279
    %v2281 = vunpack.c.l.b16 %v2256
    %v2282 = vunpack.c.l.b16 %v2280
    %2283 = vset.pattern.permute.xlu0 14
    %2284 = vperm.xlu0 %2283, %v2281
    %v2285 = vpop.permute.xlu0 %2284
    %2286 = vset.pattern.permute.xlu0 14
    %2287 = vperm.xlu0 %2286, %v2282
    %v2288 = vpop.permute.xlu0 %2287
    %v2289 = vadd.s32 %v356, 4294967192
    %v2290 = vlaneseq
    %v2291 = vshrl.u32 %v2290, 7
    %v2292 = vsub.s32 %v2289, %v2291
    %v2293 = vrot.slane %v2285, %v2292
    %v2294 = vlaneseq
    %v2295 = vshrl.u32 %v2294, 7
    %v2296 = vsub.s32 %v2289, %v2295
    %v2297 = vrot.slane %v2288, %v2296
    %v2298 = vsel %vm366, %v2297, %v2293
    %v2299 = vpack.c.b16 %v2298, %v2298
    %v2301 = vunpack.c.l.s4 1966171168
    %v2302 = vunpack.c.0.s8 %v2301
    %v2303 = vlaneseq
    %v2304 = vshrl.u32 %v2303, 7
    %v2305 = vsub.s32 %v2302, %v2304
    %v2306 = vrot.slane %v2299, %v2305
    %v2308 = vunpack.c.l.s4 1966171168
    %v2309 = vunpack.c.0.s8 %v2308
    %v2310 = vlaneseq
    %v2311 = vshrl.u32 %v2310, 7
    %v2312 = vsub.s32 %v2309, %v2311
    %v2313 = vrot.slane %v2306, %v2312
    %vm2315 = vcmask 910144
    %2316 = vst.msk [vmem:[#allocation2 + $0x1] sm:$0x1] %vm2315, %v2313
    %v2317 = vadd.f32 %v237, %v134
    %v2318 = vadd.f32 %v242, %v137
    %v2319 = vpack.c.bf16 %v2317, %v2317
    %v2320 = vpack.c.bf16 %v2318, %v2318
    %v2324 = vunpack.c.l.s4 1966171168
    %v2325 = vunpack.c.0.s8 %v2324
    %v2326 = vlaneseq
    %v2327 = vshrl.u32 %v2326, 7
    %v2328 = vsub.s32 %v2325, %v2327
    %v2329 = vrot.slane %v2319, %v2328
    %v2330 = vcombine.high %v2329, %v2329
    %v2332 = vunpack.c.l.s4 1966171168
    %v2333 = vunpack.c.0.s8 %v2332
    %v2334 = vlaneseq
    %v2335 = vshrl.u32 %v2334, 7
    %v2336 = vsub.s32 %v2333, %v2335
    %v2337 = vrot.slane %v2329, %v2336
    %v2339 = vunpack.c.l.s4 1966171168
    %v2340 = vunpack.c.0.s8 %v2339
    %v2341 = vlaneseq
    %v2342 = vshrl.u32 %v2341, 7
    %v2343 = vsub.s32 %v2340, %v2342
    %v2344 = vrot.slane %v2330, %v2343
    %v2345 = vcombine.high %v2337, %v2337
    %v2346 = vcombine.high %v2344, %v2344
    %v2348 = vunpack.c.l.s4 1966171168
    %v2349 = vunpack.c.0.s8 %v2348
    %v2350 = vlaneseq
    %v2351 = vshrl.u32 %v2350, 7
    %v2352 = vsub.s32 %v2349, %v2351
    %v2353 = vrot.slane %v2320, %v2352
    %v2354 = vcombine.high %v2353, %v2353
    %v2356 = vunpack.c.l.s4 1966171168
    %v2357 = vunpack.c.0.s8 %v2356
    %v2358 = vlaneseq
    %v2359 = vshrl.u32 %v2358, 7
    %v2360 = vsub.s32 %v2357, %v2359
    %v2361 = vrot.slane %v2353, %v2360
    %v2363 = vunpack.c.l.s4 1966171168
    %v2364 = vunpack.c.0.s8 %v2363
    %v2365 = vlaneseq
    %v2366 = vshrl.u32 %v2365, 7
    %v2367 = vsub.s32 %v2364, %v2366
    %v2368 = vrot.slane %v2354, %v2367
    %v2369 = vcombine.high %v2361, %v2361
    %v2370 = vcombine.high %v2368, %v2368
    %v2371 = vcombine.low %v2337, %v2345
    %v2372 = vcombine.low %v2344, %v2346
    %v2374 = vunpack.c.l.s4 1935823168
    %v2375 = vunpack.c.0.s8 %v2374
    %v2376 = vlaneseq
    %v2377 = vshrl.u32 %v2376, 7
    %v2378 = vsub.s32 %v2375, %v2377
    %v2379 = vrot.slane %v2371, %v2378
    %v2381 = vunpack.c.l.s4 1935823168
    %v2382 = vunpack.c.0.s8 %v2381
    %v2383 = vlaneseq
    %v2384 = vshrl.u32 %v2383, 7
    %v2385 = vsub.s32 %v2382, %v2384
    %v2386 = vrot.slane %v2372, %v2385
    %v2387 = vcombine.low %v2379, %v2386
    %v2389 = vunpack.c.l.s4 1935823168
    %v2390 = vunpack.c.0.s8 %v2389
    %v2391 = vlaneseq
    %v2392 = vshrl.u32 %v2391, 7
    %v2393 = vsub.s32 %v2390, %v2392
    %v2394 = vrot.slane %v2387, %v2393
    %v2395 = vcombine.low %v2361, %v2369
    %v2396 = vcombine.low %v2368, %v2370
    %v2398 = vunpack.c.l.s4 1935823168
    %v2399 = vunpack.c.0.s8 %v2398
    %v2400 = vlaneseq
    %v2401 = vshrl.u32 %v2400, 7
    %v2402 = vsub.s32 %v2399, %v2401
    %v2403 = vrot.slane %v2395, %v2402
    %v2405 = vunpack.c.l.s4 1935823168
    %v2406 = vunpack.c.0.s8 %v2405
    %v2407 = vlaneseq
    %v2408 = vshrl.u32 %v2407, 7
    %v2409 = vsub.s32 %v2406, %v2408
    %v2410 = vrot.slane %v2396, %v2409
    %v2411 = vcombine.low %v2403, %v2410
    %v2413 = vunpack.c.l.s4 1935823168
    %v2414 = vunpack.c.0.s8 %v2413
    %v2415 = vlaneseq
    %v2416 = vshrl.u32 %v2415, 7
    %v2417 = vsub.s32 %v2414, %v2416
    %v2418 = vrot.slane %v2411, %v2417
    %v2419 = vunpack.c.l.b16 %v2394
    %v2420 = vunpack.c.l.b16 %v2418
    %2421 = vset.pattern.permute.xlu0 15
    %2422 = vperm.xlu0 %2421, %v2419
    %v2423 = vpop.permute.xlu0 %2422
    %2424 = vset.pattern.permute.xlu0 15
    %2425 = vperm.xlu0 %2424, %v2420
    %v2426 = vpop.permute.xlu0 %2425
    %v2427 = vadd.s32 %v356, 4294967184
    %v2428 = vlaneseq
    %v2429 = vshrl.u32 %v2428, 7
    %v2430 = vsub.s32 %v2427, %v2429
    %v2431 = vrot.slane %v2423, %v2430
    %v2432 = vlaneseq
    %v2433 = vshrl.u32 %v2432, 7
    %v2434 = vsub.s32 %v2427, %v2433
    %v2435 = vrot.slane %v2426, %v2434
    %v2436 = vsel %vm366, %v2435, %v2431
    %v2437 = vpack.c.b16 %v2436, %v2436
    %v2439 = vunpack.c.l.s4 1966171168
    %v2440 = vunpack.c.0.s8 %v2439
    %v2441 = vlaneseq
    %v2442 = vshrl.u32 %v2441, 7
    %v2443 = vsub.s32 %v2440, %v2442
    %v2444 = vrot.slane %v2437, %v2443
    %v2446 = vunpack.c.l.s4 1966171168
    %v2447 = vunpack.c.0.s8 %v2446
    %v2448 = vlaneseq
    %v2449 = vshrl.u32 %v2448, 7
    %v2450 = vsub.s32 %v2447, %v2449
    %v2451 = vrot.slane %v2444, %v2450
    %vm2453 = vcmask 975744
    %2454 = vst.msk [vmem:[#allocation2 + $0x1] sm:$0x1] %vm2453, %v2451
    %2457 = vrot.lane.b32.xlu0 %v237, 127
    %v2458 = vpop.permute.xlu0 %2457
    %2459 = vrot.lane.b32.xlu0 %v242, 127
    %v2460 = vpop.permute.xlu0 %2459
    %v2463 = vadd.f32 %v237, %v2458
    %v2464 = vadd.f32 %v242, %v2460
    %v2465 = vmul.f32 %v2463, 0.5
    %v2466 = vmul.f32 %v2464, 0.5
    %v2467 = vmax.f32 %v37, %v44
    %v2468 = vmax.f32 %v40, %v47
    %v2469 = vmax.f32 %v51, %v58
    %v2470 = vmax.f32 %v54, %v61
    %v2471 = vmax.f32 %v65, %v72
    %v2472 = vmax.f32 %v68, %v75
    %v2473 = vmax.f32 %v79, %v86
    %v2474 = vmax.f32 %v82, %v89
    %v2475 = vmax.f32 %v92, %v98
    %v2476 = vmax.f32 %v95, %v101
    %v2477 = vmax.f32 %v104, %v110
    %v2478 = vmax.f32 %v107, %v113
    %v2479 = vmax.f32 %v116, %v122
    %v2480 = vmax.f32 %v119, %v125
    %v2481 = vmax.f32 %v128, %v134
    %v2482 = vmax.f32 %v131, %v137
    %v2483 = vadd.f32 %v2465, %v2467
    %v2484 = vadd.f32 %v2466, %v2468
    %v2485 = vpack.c.bf16 %v2483, %v2483
    %v2486 = vpack.c.bf16 %v2484, %v2484
    %v2490 = vunpack.c.l.s4 1966171168
    %v2491 = vunpack.c.0.s8 %v2490
    %v2492 = vlaneseq
    %v2493 = vshrl.u32 %v2492, 7
    %v2494 = vsub.s32 %v2491, %v2493
    %v2495 = vrot.slane %v2485, %v2494
    %v2496 = vcombine.high %v2495, %v2495
    %v2498 = vunpack.c.l.s4 1966171168
    %v2499 = vunpack.c.0.s8 %v2498
    %v2500 = vlaneseq
    %v2501 = vshrl.u32 %v2500, 7
    %v2502 = vsub.s32 %v2499, %v2501
    %v2503 = vrot.slane %v2495, %v2502
    %v2505 = vunpack.c.l.s4 1966171168
    %v2506 = vunpack.c.0.s8 %v2505
    %v2507 = vlaneseq
    %v2508 = vshrl.u32 %v2507, 7
    %v2509 = vsub.s32 %v2506, %v2508
    %v2510 = vrot.slane %v2496, %v2509
    %v2511 = vcombine.high %v2503, %v2503
    %v2512 = vcombine.high %v2510, %v2510
    %v2514 = vunpack.c.l.s4 1966171168
    %v2515 = vunpack.c.0.s8 %v2514
    %v2516 = vlaneseq
    %v2517 = vshrl.u32 %v2516, 7
    %v2518 = vsub.s32 %v2515, %v2517
    %v2519 = vrot.slane %v2486, %v2518
    %v2520 = vcombine.high %v2519, %v2519
    %v2522 = vunpack.c.l.s4 1966171168
    %v2523 = vunpack.c.0.s8 %v2522
    %v2524 = vlaneseq
    %v2525 = vshrl.u32 %v2524, 7
    %v2526 = vsub.s32 %v2523, %v2525
    %v2527 = vrot.slane %v2519, %v2526
    %v2529 = vunpack.c.l.s4 1966171168
    %v2530 = vunpack.c.0.s8 %v2529
    %v2531 = vlaneseq
    %v2532 = vshrl.u32 %v2531, 7
    %v2533 = vsub.s32 %v2530, %v2532
    %v2534 = vrot.slane %v2520, %v2533
    %v2535 = vcombine.high %v2527, %v2527
    %v2536 = vcombine.high %v2534, %v2534
    %v2537 = vcombine.low %v2503, %v2511
    %v2538 = vcombine.low %v2510, %v2512
    %v2540 = vunpack.c.l.s4 1935823168
    %v2541 = vunpack.c.0.s8 %v2540
    %v2542 = vlaneseq
    %v2543 = vshrl.u32 %v2542, 7
    %v2544 = vsub.s32 %v2541, %v2543
    %v2545 = vrot.slane %v2537, %v2544
    %v2547 = vunpack.c.l.s4 1935823168
    %v2548 = vunpack.c.0.s8 %v2547
    %v2549 = vlaneseq
    %v2550 = vshrl.u32 %v2549, 7
    %v2551 = vsub.s32 %v2548, %v2550
    %v2552 = vrot.slane %v2538, %v2551
    %v2553 = vcombine.low %v2545, %v2552
    %v2555 = vunpack.c.l.s4 1935823168
    %v2556 = vunpack.c.0.s8 %v2555
    %v2557 = vlaneseq
    %v2558 = vshrl.u32 %v2557, 7
    %v2559 = vsub.s32 %v2556, %v2558
    %v2560 = vrot.slane %v2553, %v2559
    %v2561 = vcombine.low %v2527, %v2535
    %v2562 = vcombine.low %v2534, %v2536
    %v2564 = vunpack.c.l.s4 1935823168
    %v2565 = vunpack.c.0.s8 %v2564
    %v2566 = vlaneseq
    %v2567 = vshrl.u32 %v2566, 7
    %v2568 = vsub.s32 %v2565, %v2567
    %v2569 = vrot.slane %v2561, %v2568
    %v2571 = vunpack.c.l.s4 1935823168
    %v2572 = vunpack.c.0.s8 %v2571
    %v2573 = vlaneseq
    %v2574 = vshrl.u32 %v2573, 7
    %v2575 = vsub.s32 %v2572, %v2574
    %v2576 = vrot.slane %v2562, %v2575
    %v2577 = vcombine.low %v2569, %v2576
    %v2579 = vunpack.c.l.s4 1935823168
    %v2580 = vunpack.c.0.s8 %v2579
    %v2581 = vlaneseq
    %v2582 = vshrl.u32 %v2581, 7
    %v2583 = vsub.s32 %v2580, %v2582
    %v2584 = vrot.slane %v2577, %v2583
    %v2585 = vunpack.c.l.b16 %v2560
    %v2586 = vunpack.c.l.b16 %v2584
    %2587 = vset.pattern.permute.xlu0 0
    %2588 = vperm.xlu0 %2587, %v2585
    %v2589 = vpop.permute.xlu0 %2588
    %2590 = vset.pattern.permute.xlu0 0
    %2591 = vperm.xlu0 %2590, %v2586
    %v2592 = vpop.permute.xlu0 %2591
    %v2593 = vlaneseq
    %v2594 = vshrl.u32 %v2593, 7
    %v2595 = vsub.s32 %v1461, %v2594
    %v2596 = vrot.slane %v2589, %v2595
    %v2597 = vlaneseq
    %v2598 = vshrl.u32 %v2597, 7
    %v2599 = vsub.s32 %v1461, %v2598
    %v2600 = vrot.slane %v2592, %v2599
    %v2601 = vsel %vm366, %v2600, %v2596
    %v2602 = vpack.c.b16 %v2601, %v2601
    %v2604 = vunpack.c.l.s4 1966171168
    %v2605 = vunpack.c.0.s8 %v2604
    %v2606 = vlaneseq
    %v2607 = vshrl.u32 %v2606, 7
    %v2608 = vsub.s32 %v2605, %v2607
    %v2609 = vrot.slane %v2602, %v2608
    %v2611 = vunpack.c.l.s4 1966171168
    %v2612 = vunpack.c.0.s8 %v2611
    %v2613 = vlaneseq
    %v2614 = vshrl.u32 %v2613, 7
    %v2615 = vsub.s32 %v2612, %v2614
    %v2616 = vrot.slane %v2609, %v2615
    %2618 = vst.msk [vmem:[#allocation2] sm:$0x1] %vm1487, %v2616
    %v2619 = vadd.f32 %v2465, %v2469
    %v2620 = vadd.f32 %v2466, %v2470
    %v2621 = vpack.c.bf16 %v2619, %v2619
    %v2622 = vpack.c.bf16 %v2620, %v2620
    %v2626 = vunpack.c.l.s4 1966171168
    %v2627 = vunpack.c.0.s8 %v2626
    %v2628 = vlaneseq
    %v2629 = vshrl.u32 %v2628, 7
    %v2630 = vsub.s32 %v2627, %v2629
    %v2631 = vrot.slane %v2621, %v2630
    %v2632 = vcombine.high %v2631, %v2631
    %v2634 = vunpack.c.l.s4 1966171168
    %v2635 = vunpack.c.0.s8 %v2634
    %v2636 = vlaneseq
    %v2637 = vshrl.u32 %v2636, 7
    %v2638 = vsub.s32 %v2635, %v2637
    %v2639 = vrot.slane %v2631, %v2638
    %v2641 = vunpack.c.l.s4 1966171168
    %v2642 = vunpack.c.0.s8 %v2641
    %v2643 = vlaneseq
    %v2644 = vshrl.u32 %v2643, 7
    %v2645 = vsub.s32 %v2642, %v2644
    %v2646 = vrot.slane %v2632, %v2645
    %v2647 = vcombine.high %v2639, %v2639
    %v2648 = vcombine.high %v2646, %v2646
    %v2650 = vunpack.c.l.s4 1966171168
    %v2651 = vunpack.c.0.s8 %v2650
    %v2652 = vlaneseq
    %v2653 = vshrl.u32 %v2652, 7
    %v2654 = vsub.s32 %v2651, %v2653
    %v2655 = vrot.slane %v2622, %v2654
    %v2656 = vcombine.high %v2655, %v2655
    %v2658 = vunpack.c.l.s4 1966171168
    %v2659 = vunpack.c.0.s8 %v2658
    %v2660 = vlaneseq
    %v2661 = vshrl.u32 %v2660, 7
    %v2662 = vsub.s32 %v2659, %v2661
    %v2663 = vrot.slane %v2655, %v2662
    %v2665 = vunpack.c.l.s4 1966171168
    %v2666 = vunpack.c.0.s8 %v2665
    %v2667 = vlaneseq
    %v2668 = vshrl.u32 %v2667, 7
    %v2669 = vsub.s32 %v2666, %v2668
    %v2670 = vrot.slane %v2656, %v2669
    %v2671 = vcombine.high %v2663, %v2663
    %v2672 = vcombine.high %v2670, %v2670
    %v2673 = vcombine.low %v2639, %v2647
    %v2674 = vcombine.low %v2646, %v2648
    %v2676 = vunpack.c.l.s4 1935823168
    %v2677 = vunpack.c.0.s8 %v2676
    %v2678 = vlaneseq
    %v2679 = vshrl.u32 %v2678, 7
    %v2680 = vsub.s32 %v2677, %v2679
    %v2681 = vrot.slane %v2673, %v2680
    %v2683 = vunpack.c.l.s4 1935823168
    %v2684 = vunpack.c.0.s8 %v2683
    %v2685 = vlaneseq
    %v2686 = vshrl.u32 %v2685, 7
    %v2687 = vsub.s32 %v2684, %v2686
    %v2688 = vrot.slane %v2674, %v2687
    %v2689 = vcombine.low %v2681, %v2688
    %v2691 = vunpack.c.l.s4 1935823168
    %v2692 = vunpack.c.0.s8 %v2691
    %v2693 = vlaneseq
    %v2694 = vshrl.u32 %v2693, 7
    %v2695 = vsub.s32 %v2692, %v2694
    %v2696 = vrot.slane %v2689, %v2695
    %v2697 = vcombine.low %v2663, %v2671
    %v2698 = vcombine.low %v2670, %v2672
    %v2700 = vunpack.c.l.s4 1935823168
    %v2701 = vunpack.c.0.s8 %v2700
    %v2702 = vlaneseq
    %v2703 = vshrl.u32 %v2702, 7
    %v2704 = vsub.s32 %v2701, %v2703
    %v2705 = vrot.slane %v2697, %v2704
    %v2707 = vunpack.c.l.s4 1935823168
    %v2708 = vunpack.c.0.s8 %v2707
    %v2709 = vlaneseq
    %v2710 = vshrl.u32 %v2709, 7
    %v2711 = vsub.s32 %v2708, %v2710
    %v2712 = vrot.slane %v2698, %v2711
    %v2713 = vcombine.low %v2705, %v2712
    %v2715 = vunpack.c.l.s4 1935823168
    %v2716 = vunpack.c.0.s8 %v2715
    %v2717 = vlaneseq
    %v2718 = vshrl.u32 %v2717, 7
    %v2719 = vsub.s32 %v2716, %v2718
    %v2720 = vrot.slane %v2713, %v2719
    %v2721 = vunpack.c.l.b16 %v2696
    %v2722 = vunpack.c.l.b16 %v2720
    %2723 = vset.pattern.permute.xlu0 2
    %2724 = vperm.xlu0 %2723, %v2721
    %v2725 = vpop.permute.xlu0 %2724
    %2726 = vset.pattern.permute.xlu0 2
    %2727 = vperm.xlu0 %2726, %v2722
    %v2728 = vpop.permute.xlu0 %2727
    %v2729 = vlaneseq
    %v2730 = vshrl.u32 %v2729, 7
    %v2731 = vsub.s32 %v1599, %v2730
    %v2732 = vrot.slane %v2725, %v2731
    %v2733 = vlaneseq
    %v2734 = vshrl.u32 %v2733, 7
    %v2735 = vsub.s32 %v1599, %v2734
    %v2736 = vrot.slane %v2728, %v2735
    %v2737 = vsel %vm366, %v2736, %v2732
    %v2738 = vpack.c.b16 %v2737, %v2737
    %v2740 = vunpack.c.l.s4 1966171168
    %v2741 = vunpack.c.0.s8 %v2740
    %v2742 = vlaneseq
    %v2743 = vshrl.u32 %v2742, 7
    %v2744 = vsub.s32 %v2741, %v2743
    %v2745 = vrot.slane %v2738, %v2744
    %v2747 = vunpack.c.l.s4 1966171168
    %v2748 = vunpack.c.0.s8 %v2747
    %v2749 = vlaneseq
    %v2750 = vshrl.u32 %v2749, 7
    %v2751 = vsub.s32 %v2748, %v2750
    %v2752 = vrot.slane %v2745, %v2751
    %2754 = vst.msk [vmem:[#allocation2] sm:$0x1] %vm1625, %v2752
    %v2755 = vadd.f32 %v2465, %v2471
    %v2756 = vadd.f32 %v2466, %v2472
    %v2757 = vpack.c.bf16 %v2755, %v2755
    %v2758 = vpack.c.bf16 %v2756, %v2756
    %v2762 = vunpack.c.l.s4 1966171168
    %v2763 = vunpack.c.0.s8 %v2762
    %v2764 = vlaneseq
    %v2765 = vshrl.u32 %v2764, 7
    %v2766 = vsub.s32 %v2763, %v2765
    %v2767 = vrot.slane %v2757, %v2766
    %v2768 = vcombine.high %v2767, %v2767
    %v2770 = vunpack.c.l.s4 1966171168
    %v2771 = vunpack.c.0.s8 %v2770
    %v2772 = vlaneseq
    %v2773 = vshrl.u32 %v2772, 7
    %v2774 = vsub.s32 %v2771, %v2773
    %v2775 = vrot.slane %v2767, %v2774
    %v2777 = vunpack.c.l.s4 1966171168
    %v2778 = vunpack.c.0.s8 %v2777
    %v2779 = vlaneseq
    %v2780 = vshrl.u32 %v2779, 7
    %v2781 = vsub.s32 %v2778, %v2780
    %v2782 = vrot.slane %v2768, %v2781
    %v2783 = vcombine.high %v2775, %v2775
    %v2784 = vcombine.high %v2782, %v2782
    %v2786 = vunpack.c.l.s4 1966171168
    %v2787 = vunpack.c.0.s8 %v2786
    %v2788 = vlaneseq
    %v2789 = vshrl.u32 %v2788, 7
    %v2790 = vsub.s32 %v2787, %v2789
    %v2791 = vrot.slane %v2758, %v2790
    %v2792 = vcombine.high %v2791, %v2791
    %v2794 = vunpack.c.l.s4 1966171168
    %v2795 = vunpack.c.0.s8 %v2794
    %v2796 = vlaneseq
    %v2797 = vshrl.u32 %v2796, 7
    %v2798 = vsub.s32 %v2795, %v2797
    %v2799 = vrot.slane %v2791, %v2798
    %v2801 = vunpack.c.l.s4 1966171168
    %v2802 = vunpack.c.0.s8 %v2801
    %v2803 = vlaneseq
    %v2804 = vshrl.u32 %v2803, 7
    %v2805 = vsub.s32 %v2802, %v2804
    %v2806 = vrot.slane %v2792, %v2805
    %v2807 = vcombine.high %v2799, %v2799
    %v2808 = vcombine.high %v2806, %v2806
    %v2809 = vcombine.low %v2775, %v2783
    %v2810 = vcombine.low %v2782, %v2784
    %v2812 = vunpack.c.l.s4 1935823168
    %v2813 = vunpack.c.0.s8 %v2812
    %v2814 = vlaneseq
    %v2815 = vshrl.u32 %v2814, 7
    %v2816 = vsub.s32 %v2813, %v2815
    %v2817 = vrot.slane %v2809, %v2816
    %v2819 = vunpack.c.l.s4 1935823168
    %v2820 = vunpack.c.0.s8 %v2819
    %v2821 = vlaneseq
    %v2822 = vshrl.u32 %v2821, 7
    %v2823 = vsub.s32 %v2820, %v2822
    %v2824 = vrot.slane %v2810, %v2823
    %v2825 = vcombine.low %v2817, %v2824
    %v2827 = vunpack.c.l.s4 1935823168
    %v2828 = vunpack.c.0.s8 %v2827
    %v2829 = vlaneseq
    %v2830 = vshrl.u32 %v2829, 7
    %v2831 = vsub.s32 %v2828, %v2830
    %v2832 = vrot.slane %v2825, %v2831
    %v2833 = vcombine.low %v2799, %v2807
    %v2834 = vcombine.low %v2806, %v2808
    %v2836 = vunpack.c.l.s4 1935823168
    %v2837 = vunpack.c.0.s8 %v2836
    %v2838 = vlaneseq
    %v2839 = vshrl.u32 %v2838, 7
    %v2840 = vsub.s32 %v2837, %v2839
    %v2841 = vrot.slane %v2833, %v2840
    %v2843 = vunpack.c.l.s4 1935823168
    %v2844 = vunpack.c.0.s8 %v2843
    %v2845 = vlaneseq
    %v2846 = vshrl.u32 %v2845, 7
    %v2847 = vsub.s32 %v2844, %v2846
    %v2848 = vrot.slane %v2834, %v2847
    %v2849 = vcombine.low %v2841, %v2848
    %v2851 = vunpack.c.l.s4 1935823168
    %v2852 = vunpack.c.0.s8 %v2851
    %v2853 = vlaneseq
    %v2854 = vshrl.u32 %v2853, 7
    %v2855 = vsub.s32 %v2852, %v2854
    %v2856 = vrot.slane %v2849, %v2855
    %v2857 = vunpack.c.l.b16 %v2832
    %v2858 = vunpack.c.l.b16 %v2856
    %2859 = vset.pattern.permute.xlu0 4
    %2860 = vperm.xlu0 %2859, %v2857
    %v2861 = vpop.permute.xlu0 %2860
    %2862 = vset.pattern.permute.xlu0 4
    %2863 = vperm.xlu0 %2862, %v2858
    %v2864 = vpop.permute.xlu0 %2863
    %v2865 = vlaneseq
    %v2866 = vshrl.u32 %v2865, 7
    %v2867 = vsub.s32 %v1737, %v2866
    %v2868 = vrot.slane %v2861, %v2867
    %v2869 = vlaneseq
    %v2870 = vshrl.u32 %v2869, 7
    %v2871 = vsub.s32 %v1737, %v2870
    %v2872 = vrot.slane %v2864, %v2871
    %v2873 = vsel %vm366, %v2872, %v2868
    %v2874 = vpack.c.b16 %v2873, %v2873
    %v2876 = vunpack.c.l.s4 1966171168
    %v2877 = vunpack.c.0.s8 %v2876
    %v2878 = vlaneseq
    %v2879 = vshrl.u32 %v2878, 7
    %v2880 = vsub.s32 %v2877, %v2879
    %v2881 = vrot.slane %v2874, %v2880
    %v2883 = vunpack.c.l.s4 1966171168
    %v2884 = vunpack.c.0.s8 %v2883
    %v2885 = vlaneseq
    %v2886 = vshrl.u32 %v2885, 7
    %v2887 = vsub.s32 %v2884, %v2886
    %v2888 = vrot.slane %v2881, %v2887
    %2890 = vst.msk [vmem:[#allocation2] sm:$0x1] %vm1763, %v2888
    %v2891 = vadd.f32 %v2465, %v2473
    %v2892 = vadd.f32 %v2466, %v2474
    %v2893 = vpack.c.bf16 %v2891, %v2891
    %v2894 = vpack.c.bf16 %v2892, %v2892
    %v2898 = vunpack.c.l.s4 1966171168
    %v2899 = vunpack.c.0.s8 %v2898
    %v2900 = vlaneseq
    %v2901 = vshrl.u32 %v2900, 7
    %v2902 = vsub.s32 %v2899, %v2901
    %v2903 = vrot.slane %v2893, %v2902
    %v2904 = vcombine.high %v2903, %v2903
    %v2906 = vunpack.c.l.s4 1966171168
    %v2907 = vunpack.c.0.s8 %v2906
    %v2908 = vlaneseq
    %v2909 = vshrl.u32 %v2908, 7
    %v2910 = vsub.s32 %v2907, %v2909
    %v2911 = vrot.slane %v2903, %v2910
    %v2913 = vunpack.c.l.s4 1966171168
    %v2914 = vunpack.c.0.s8 %v2913
    %v2915 = vlaneseq
    %v2916 = vshrl.u32 %v2915, 7
    %v2917 = vsub.s32 %v2914, %v2916
    %v2918 = vrot.slane %v2904, %v2917
    %v2919 = vcombine.high %v2911, %v2911
    %v2920 = vcombine.high %v2918, %v2918
    %v2922 = vunpack.c.l.s4 1966171168
    %v2923 = vunpack.c.0.s8 %v2922
    %v2924 = vlaneseq
    %v2925 = vshrl.u32 %v2924, 7
    %v2926 = vsub.s32 %v2923, %v2925
    %v2927 = vrot.slane %v2894, %v2926
    %v2928 = vcombine.high %v2927, %v2927
    %v2930 = vunpack.c.l.s4 1966171168
    %v2931 = vunpack.c.0.s8 %v2930
    %v2932 = vlaneseq
    %v2933 = vshrl.u32 %v2932, 7
    %v2934 = vsub.s32 %v2931, %v2933
    %v2935 = vrot.slane %v2927, %v2934
    %v2937 = vunpack.c.l.s4 1966171168
    %v2938 = vunpack.c.0.s8 %v2937
    %v2939 = vlaneseq
    %v2940 = vshrl.u32 %v2939, 7
    %v2941 = vsub.s32 %v2938, %v2940
    %v2942 = vrot.slane %v2928, %v2941
    %v2943 = vcombine.high %v2935, %v2935
    %v2944 = vcombine.high %v2942, %v2942
    %v2945 = vcombine.low %v2911, %v2919
    %v2946 = vcombine.low %v2918, %v2920
    %v2948 = vunpack.c.l.s4 1935823168
    %v2949 = vunpack.c.0.s8 %v2948
    %v2950 = vlaneseq
    %v2951 = vshrl.u32 %v2950, 7
    %v2952 = vsub.s32 %v2949, %v2951
    %v2953 = vrot.slane %v2945, %v2952
    %v2955 = vunpack.c.l.s4 1935823168
    %v2956 = vunpack.c.0.s8 %v2955
    %v2957 = vlaneseq
    %v2958 = vshrl.u32 %v2957, 7
    %v2959 = vsub.s32 %v2956, %v2958
    %v2960 = vrot.slane %v2946, %v2959
    %v2961 = vcombine.low %v2953, %v2960
    %v2963 = vunpack.c.l.s4 1935823168
    %v2964 = vunpack.c.0.s8 %v2963
    %v2965 = vlaneseq
    %v2966 = vshrl.u32 %v2965, 7
    %v2967 = vsub.s32 %v2964, %v2966
    %v2968 = vrot.slane %v2961, %v2967
    %v2969 = vcombine.low %v2935, %v2943
    %v2970 = vcombine.low %v2942, %v2944
    %v2972 = vunpack.c.l.s4 1935823168
    %v2973 = vunpack.c.0.s8 %v2972
    %v2974 = vlaneseq
    %v2975 = vshrl.u32 %v2974, 7
    %v2976 = vsub.s32 %v2973, %v2975
    %v2977 = vrot.slane %v2969, %v2976
    %v2979 = vunpack.c.l.s4 1935823168
    %v2980 = vunpack.c.0.s8 %v2979
    %v2981 = vlaneseq
    %v2982 = vshrl.u32 %v2981, 7
    %v2983 = vsub.s32 %v2980, %v2982
    %v2984 = vrot.slane %v2970, %v2983
    %v2985 = vcombine.low %v2977, %v2984
    %v2987 = vunpack.c.l.s4 1935823168
    %v2988 = vunpack.c.0.s8 %v2987
    %v2989 = vlaneseq
    %v2990 = vshrl.u32 %v2989, 7
    %v2991 = vsub.s32 %v2988, %v2990
    %v2992 = vrot.slane %v2985, %v2991
    %v2993 = vunpack.c.l.b16 %v2968
    %v2994 = vunpack.c.l.b16 %v2992
    %2995 = vset.pattern.permute.xlu0 6
    %2996 = vperm.xlu0 %2995, %v2993
    %v2997 = vpop.permute.xlu0 %2996
    %2998 = vset.pattern.permute.xlu0 6
    %2999 = vperm.xlu0 %2998, %v2994
    %v3000 = vpop.permute.xlu0 %2999
    %v3001 = vlaneseq
    %v3002 = vshrl.u32 %v3001, 7
    %v3003 = vsub.s32 %v1875, %v3002
    %v3004 = vrot.slane %v2997, %v3003
    %v3005 = vlaneseq
    %v3006 = vshrl.u32 %v3005, 7
    %v3007 = vsub.s32 %v1875, %v3006
    %v3008 = vrot.slane %v3000, %v3007
    %v3009 = vsel %vm366, %v3008, %v3004
    %v3010 = vpack.c.b16 %v3009, %v3009
    %v3012 = vunpack.c.l.s4 1966171168
    %v3013 = vunpack.c.0.s8 %v3012
    %v3014 = vlaneseq
    %v3015 = vshrl.u32 %v3014, 7
    %v3016 = vsub.s32 %v3013, %v3015
    %v3017 = vrot.slane %v3010, %v3016
    %v3019 = vunpack.c.l.s4 1966171168
    %v3020 = vunpack.c.0.s8 %v3019
    %v3021 = vlaneseq
    %v3022 = vshrl.u32 %v3021, 7
    %v3023 = vsub.s32 %v3020, %v3022
    %v3024 = vrot.slane %v3017, %v3023
    %3026 = vst.msk [vmem:[#allocation2] sm:$0x1] %vm1901, %v3024
    %v3027 = vadd.f32 %v2465, %v2475
    %v3028 = vadd.f32 %v2466, %v2476
    %v3029 = vpack.c.bf16 %v3027, %v3027
    %v3030 = vpack.c.bf16 %v3028, %v3028
    %v3034 = vunpack.c.l.s4 1966171168
    %v3035 = vunpack.c.0.s8 %v3034
    %v3036 = vlaneseq
    %v3037 = vshrl.u32 %v3036, 7
    %v3038 = vsub.s32 %v3035, %v3037
    %v3039 = vrot.slane %v3029, %v3038
    %v3040 = vcombine.high %v3039, %v3039
    %v3042 = vunpack.c.l.s4 1966171168
    %v3043 = vunpack.c.0.s8 %v3042
    %v3044 = vlaneseq
    %v3045 = vshrl.u32 %v3044, 7
    %v3046 = vsub.s32 %v3043, %v3045
    %v3047 = vrot.slane %v3039, %v3046
    %v3049 = vunpack.c.l.s4 1966171168
    %v3050 = vunpack.c.0.s8 %v3049
    %v3051 = vlaneseq
    %v3052 = vshrl.u32 %v3051, 7
    %v3053 = vsub.s32 %v3050, %v3052
    %v3054 = vrot.slane %v3040, %v3053
    %v3055 = vcombine.high %v3047, %v3047
    %v3056 = vcombine.high %v3054, %v3054
    %v3058 = vunpack.c.l.s4 1966171168
    %v3059 = vunpack.c.0.s8 %v3058
    %v3060 = vlaneseq
    %v3061 = vshrl.u32 %v3060, 7
    %v3062 = vsub.s32 %v3059, %v3061
    %v3063 = vrot.slane %v3030, %v3062
    %v3064 = vcombine.high %v3063, %v3063
    %v3066 = vunpack.c.l.s4 1966171168
    %v3067 = vunpack.c.0.s8 %v3066
    %v3068 = vlaneseq
    %v3069 = vshrl.u32 %v3068, 7
    %v3070 = vsub.s32 %v3067, %v3069
    %v3071 = vrot.slane %v3063, %v3070
    %v3073 = vunpack.c.l.s4 1966171168
    %v3074 = vunpack.c.0.s8 %v3073
    %v3075 = vlaneseq
    %v3076 = vshrl.u32 %v3075, 7
    %v3077 = vsub.s32 %v3074, %v3076
    %v3078 = vrot.slane %v3064, %v3077
    %v3079 = vcombine.high %v3071, %v3071
    %v3080 = vcombine.high %v3078, %v3078
    %v3081 = vcombine.low %v3047, %v3055
    %v3082 = vcombine.low %v3054, %v3056
    %v3084 = vunpack.c.l.s4 1935823168
    %v3085 = vunpack.c.0.s8 %v3084
    %v3086 = vlaneseq
    %v3087 = vshrl.u32 %v3086, 7
    %v3088 = vsub.s32 %v3085, %v3087
    %v3089 = vrot.slane %v3081, %v3088
    %v3091 = vunpack.c.l.s4 1935823168
    %v3092 = vunpack.c.0.s8 %v3091
    %v3093 = vlaneseq
    %v3094 = vshrl.u32 %v3093, 7
    %v3095 = vsub.s32 %v3092, %v3094
    %v3096 = vrot.slane %v3082, %v3095
    %v3097 = vcombine.low %v3089, %v3096
    %v3099 = vunpack.c.l.s4 1935823168
    %v3100 = vunpack.c.0.s8 %v3099
    %v3101 = vlaneseq
    %v3102 = vshrl.u32 %v3101, 7
    %v3103 = vsub.s32 %v3100, %v3102
    %v3104 = vrot.slane %v3097, %v3103
    %v3105 = vcombine.low %v3071, %v3079
    %v3106 = vcombine.low %v3078, %v3080
    %v3108 = vunpack.c.l.s4 1935823168
    %v3109 = vunpack.c.0.s8 %v3108
    %v3110 = vlaneseq
    %v3111 = vshrl.u32 %v3110, 7
    %v3112 = vsub.s32 %v3109, %v3111
    %v3113 = vrot.slane %v3105, %v3112
    %v3115 = vunpack.c.l.s4 1935823168
    %v3116 = vunpack.c.0.s8 %v3115
    %v3117 = vlaneseq
    %v3118 = vshrl.u32 %v3117, 7
    %v3119 = vsub.s32 %v3116, %v3118
    %v3120 = vrot.slane %v3106, %v3119
    %v3121 = vcombine.low %v3113, %v3120
    %v3123 = vunpack.c.l.s4 1935823168
    %v3124 = vunpack.c.0.s8 %v3123
    %v3125 = vlaneseq
    %v3126 = vshrl.u32 %v3125, 7
    %v3127 = vsub.s32 %v3124, %v3126
    %v3128 = vrot.slane %v3121, %v3127
    %v3129 = vunpack.c.l.b16 %v3104
    %v3130 = vunpack.c.l.b16 %v3128
    %3131 = vset.pattern.permute.xlu0 8
    %3132 = vperm.xlu0 %3131, %v3129
    %v3133 = vpop.permute.xlu0 %3132
    %3134 = vset.pattern.permute.xlu0 8
    %3135 = vperm.xlu0 %3134, %v3130
    %v3136 = vpop.permute.xlu0 %3135
    %v3137 = vlaneseq
    %v3138 = vshrl.u32 %v3137, 7
    %v3139 = vsub.s32 %v2013, %v3138
    %v3140 = vrot.slane %v3133, %v3139
    %v3141 = vlaneseq
    %v3142 = vshrl.u32 %v3141, 7
    %v3143 = vsub.s32 %v2013, %v3142
    %v3144 = vrot.slane %v3136, %v3143
    %v3145 = vsel %vm366, %v3144, %v3140
    %v3146 = vpack.c.b16 %v3145, %v3145
    %v3148 = vunpack.c.l.s4 1966171168
    %v3149 = vunpack.c.0.s8 %v3148
    %v3150 = vlaneseq
    %v3151 = vshrl.u32 %v3150, 7
    %v3152 = vsub.s32 %v3149, %v3151
    %v3153 = vrot.slane %v3146, %v3152
    %v3155 = vunpack.c.l.s4 1966171168
    %v3156 = vunpack.c.0.s8 %v3155
    %v3157 = vlaneseq
    %v3158 = vshrl.u32 %v3157, 7
    %v3159 = vsub.s32 %v3156, %v3158
    %v3160 = vrot.slane %v3153, %v3159
    %3162 = vst.msk [vmem:[#allocation2] sm:$0x1] %vm2039, %v3160
    %v3163 = vadd.f32 %v2465, %v2477
    %v3164 = vadd.f32 %v2466, %v2478
    %v3165 = vpack.c.bf16 %v3163, %v3163
    %v3166 = vpack.c.bf16 %v3164, %v3164
    %v3170 = vunpack.c.l.s4 1966171168
    %v3171 = vunpack.c.0.s8 %v3170
    %v3172 = vlaneseq
    %v3173 = vshrl.u32 %v3172, 7
    %v3174 = vsub.s32 %v3171, %v3173
    %v3175 = vrot.slane %v3165, %v3174
    %v3176 = vcombine.high %v3175, %v3175
    %v3178 = vunpack.c.l.s4 1966171168
    %v3179 = vunpack.c.0.s8 %v3178
    %v3180 = vlaneseq
    %v3181 = vshrl.u32 %v3180, 7
    %v3182 = vsub.s32 %v3179, %v3181
    %v3183 = vrot.slane %v3175, %v3182
    %v3185 = vunpack.c.l.s4 1966171168
    %v3186 = vunpack.c.0.s8 %v3185
    %v3187 = vlaneseq
    %v3188 = vshrl.u32 %v3187, 7
    %v3189 = vsub.s32 %v3186, %v3188
    %v3190 = vrot.slane %v3176, %v3189
    %v3191 = vcombine.high %v3183, %v3183
    %v3192 = vcombine.high %v3190, %v3190
    %v3194 = vunpack.c.l.s4 1966171168
    %v3195 = vunpack.c.0.s8 %v3194
    %v3196 = vlaneseq
    %v3197 = vshrl.u32 %v3196, 7
    %v3198 = vsub.s32 %v3195, %v3197
    %v3199 = vrot.slane %v3166, %v3198
    %v3200 = vcombine.high %v3199, %v3199
    %v3202 = vunpack.c.l.s4 1966171168
    %v3203 = vunpack.c.0.s8 %v3202
    %v3204 = vlaneseq
    %v3205 = vshrl.u32 %v3204, 7
    %v3206 = vsub.s32 %v3203, %v3205
    %v3207 = vrot.slane %v3199, %v3206
    %v3209 = vunpack.c.l.s4 1966171168
    %v3210 = vunpack.c.0.s8 %v3209
    %v3211 = vlaneseq
    %v3212 = vshrl.u32 %v3211, 7
    %v3213 = vsub.s32 %v3210, %v3212
    %v3214 = vrot.slane %v3200, %v3213
    %v3215 = vcombine.high %v3207, %v3207
    %v3216 = vcombine.high %v3214, %v3214
    %v3217 = vcombine.low %v3183, %v3191
    %v3218 = vcombine.low %v3190, %v3192
    %v3220 = vunpack.c.l.s4 1935823168
    %v3221 = vunpack.c.0.s8 %v3220
    %v3222 = vlaneseq
    %v3223 = vshrl.u32 %v3222, 7
    %v3224 = vsub.s32 %v3221, %v3223
    %v3225 = vrot.slane %v3217, %v3224
    %v3227 = vunpack.c.l.s4 1935823168
    %v3228 = vunpack.c.0.s8 %v3227
    %v3229 = vlaneseq
    %v3230 = vshrl.u32 %v3229, 7
    %v3231 = vsub.s32 %v3228, %v3230
    %v3232 = vrot.slane %v3218, %v3231
    %v3233 = vcombine.low %v3225, %v3232
    %v3235 = vunpack.c.l.s4 1935823168
    %v3236 = vunpack.c.0.s8 %v3235
    %v3237 = vlaneseq
    %v3238 = vshrl.u32 %v3237, 7
    %v3239 = vsub.s32 %v3236, %v3238
    %v3240 = vrot.slane %v3233, %v3239
    %v3241 = vcombine.low %v3207, %v3215
    %v3242 = vcombine.low %v3214, %v3216
    %v3244 = vunpack.c.l.s4 1935823168
    %v3245 = vunpack.c.0.s8 %v3244
    %v3246 = vlaneseq
    %v3247 = vshrl.u32 %v3246, 7
    %v3248 = vsub.s32 %v3245, %v3247
    %v3249 = vrot.slane %v3241, %v3248
    %v3251 = vunpack.c.l.s4 1935823168
    %v3252 = vunpack.c.0.s8 %v3251
    %v3253 = vlaneseq
    %v3254 = vshrl.u32 %v3253, 7
    %v3255 = vsub.s32 %v3252, %v3254
    %v3256 = vrot.slane %v3242, %v3255
    %v3257 = vcombine.low %v3249, %v3256
    %v3259 = vunpack.c.l.s4 1935823168
    %v3260 = vunpack.c.0.s8 %v3259
    %v3261 = vlaneseq
    %v3262 = vshrl.u32 %v3261, 7
    %v3263 = vsub.s32 %v3260, %v3262
    %v3264 = vrot.slane %v3257, %v3263
    %v3265 = vunpack.c.l.b16 %v3240
    %v3266 = vunpack.c.l.b16 %v3264
    %3267 = vset.pattern.permute.xlu0 10
    %3268 = vperm.xlu0 %3267, %v3265
    %v3269 = vpop.permute.xlu0 %3268
    %3270 = vset.pattern.permute.xlu0 10
    %3271 = vperm.xlu0 %3270, %v3266
    %v3272 = vpop.permute.xlu0 %3271
    %v3273 = vlaneseq
    %v3274 = vshrl.u32 %v3273, 7
    %v3275 = vsub.s32 %v2151, %v3274
    %v3276 = vrot.slane %v3269, %v3275
    %v3277 = vlaneseq
    %v3278 = vshrl.u32 %v3277, 7
    %v3279 = vsub.s32 %v2151, %v3278
    %v3280 = vrot.slane %v3272, %v3279
    %v3281 = vsel %vm366, %v3280, %v3276
    %v3282 = vpack.c.b16 %v3281, %v3281
    %v3284 = vunpack.c.l.s4 1966171168
    %v3285 = vunpack.c.0.s8 %v3284
    %v3286 = vlaneseq
    %v3287 = vshrl.u32 %v3286, 7
    %v3288 = vsub.s32 %v3285, %v3287
    %v3289 = vrot.slane %v3282, %v3288
    %v3291 = vunpack.c.l.s4 1966171168
    %v3292 = vunpack.c.0.s8 %v3291
    %v3293 = vlaneseq
    %v3294 = vshrl.u32 %v3293, 7
    %v3295 = vsub.s32 %v3292, %v3294
    %v3296 = vrot.slane %v3289, %v3295
    %3298 = vst.msk [vmem:[#allocation2] sm:$0x1] %vm2177, %v3296
    %v3299 = vadd.f32 %v2465, %v2479
    %v3300 = vadd.f32 %v2466, %v2480
    %v3301 = vpack.c.bf16 %v3299, %v3299
    %v3302 = vpack.c.bf16 %v3300, %v3300
    %v3306 = vunpack.c.l.s4 1966171168
    %v3307 = vunpack.c.0.s8 %v3306
    %v3308 = vlaneseq
    %v3309 = vshrl.u32 %v3308, 7
    %v3310 = vsub.s32 %v3307, %v3309
    %v3311 = vrot.slane %v3301, %v3310
    %v3312 = vcombine.high %v3311, %v3311
    %v3314 = vunpack.c.l.s4 1966171168
    %v3315 = vunpack.c.0.s8 %v3314
    %v3316 = vlaneseq
    %v3317 = vshrl.u32 %v3316, 7
    %v3318 = vsub.s32 %v3315, %v3317
    %v3319 = vrot.slane %v3311, %v3318
    %v3321 = vunpack.c.l.s4 1966171168
    %v3322 = vunpack.c.0.s8 %v3321
    %v3323 = vlaneseq
    %v3324 = vshrl.u32 %v3323, 7
    %v3325 = vsub.s32 %v3322, %v3324
    %v3326 = vrot.slane %v3312, %v3325
    %v3327 = vcombine.high %v3319, %v3319
    %v3328 = vcombine.high %v3326, %v3326
    %v3330 = vunpack.c.l.s4 1966171168
    %v3331 = vunpack.c.0.s8 %v3330
    %v3332 = vlaneseq
    %v3333 = vshrl.u32 %v3332, 7
    %v3334 = vsub.s32 %v3331, %v3333
    %v3335 = vrot.slane %v3302, %v3334
    %v3336 = vcombine.high %v3335, %v3335
    %v3338 = vunpack.c.l.s4 1966171168
    %v3339 = vunpack.c.0.s8 %v3338
    %v3340 = vlaneseq
    %v3341 = vshrl.u32 %v3340, 7
    %v3342 = vsub.s32 %v3339, %v3341
    %v3343 = vrot.slane %v3335, %v3342
    %v3345 = vunpack.c.l.s4 1966171168
    %v3346 = vunpack.c.0.s8 %v3345
    %v3347 = vlaneseq
    %v3348 = vshrl.u32 %v3347, 7
    %v3349 = vsub.s32 %v3346, %v3348
    %v3350 = vrot.slane %v3336, %v3349
    %v3351 = vcombine.high %v3343, %v3343
    %v3352 = vcombine.high %v3350, %v3350
    %v3353 = vcombine.low %v3319, %v3327
    %v3354 = vcombine.low %v3326, %v3328
    %v3356 = vunpack.c.l.s4 1935823168
    %v3357 = vunpack.c.0.s8 %v3356
    %v3358 = vlaneseq
    %v3359 = vshrl.u32 %v3358, 7
    %v3360 = vsub.s32 %v3357, %v3359
    %v3361 = vrot.slane %v3353, %v3360
    %v3363 = vunpack.c.l.s4 1935823168
    %v3364 = vunpack.c.0.s8 %v3363
    %v3365 = vlaneseq
    %v3366 = vshrl.u32 %v3365, 7
    %v3367 = vsub.s32 %v3364, %v3366
    %v3368 = vrot.slane %v3354, %v3367
    %v3369 = vcombine.low %v3361, %v3368
    %v3371 = vunpack.c.l.s4 1935823168
    %v3372 = vunpack.c.0.s8 %v3371
    %v3373 = vlaneseq
    %v3374 = vshrl.u32 %v3373, 7
    %v3375 = vsub.s32 %v3372, %v3374
    %v3376 = vrot.slane %v3369, %v3375
    %v3377 = vcombine.low %v3343, %v3351
    %v3378 = vcombine.low %v3350, %v3352
    %v3380 = vunpack.c.l.s4 1935823168
    %v3381 = vunpack.c.0.s8 %v3380
    %v3382 = vlaneseq
    %v3383 = vshrl.u32 %v3382, 7
    %v3384 = vsub.s32 %v3381, %v3383
    %v3385 = vrot.slane %v3377, %v3384
    %v3387 = vunpack.c.l.s4 1935823168
    %v3388 = vunpack.c.0.s8 %v3387
    %v3389 = vlaneseq
    %v3390 = vshrl.u32 %v3389, 7
    %v3391 = vsub.s32 %v3388, %v3390
    %v3392 = vrot.slane %v3378, %v3391
    %v3393 = vcombine.low %v3385, %v3392
    %v3395 = vunpack.c.l.s4 1935823168
    %v3396 = vunpack.c.0.s8 %v3395
    %v3397 = vlaneseq
    %v3398 = vshrl.u32 %v3397, 7
    %v3399 = vsub.s32 %v3396, %v3398
    %v3400 = vrot.slane %v3393, %v3399
    %v3401 = vunpack.c.l.b16 %v3376
    %v3402 = vunpack.c.l.b16 %v3400
    %3403 = vset.pattern.permute.xlu0 12
    %3404 = vperm.xlu0 %3403, %v3401
    %v3405 = vpop.permute.xlu0 %3404
    %3406 = vset.pattern.permute.xlu0 12
    %3407 = vperm.xlu0 %3406, %v3402
    %v3408 = vpop.permute.xlu0 %3407
    %v3409 = vlaneseq
    %v3410 = vshrl.u32 %v3409, 7
    %v3411 = vsub.s32 %v2289, %v3410
    %v3412 = vrot.slane %v3405, %v3411
    %v3413 = vlaneseq
    %v3414 = vshrl.u32 %v3413, 7
    %v3415 = vsub.s32 %v2289, %v3414
    %v3416 = vrot.slane %v3408, %v3415
    %v3417 = vsel %vm366, %v3416, %v3412
    %v3418 = vpack.c.b16 %v3417, %v3417
    %v3420 = vunpack.c.l.s4 1966171168
    %v3421 = vunpack.c.0.s8 %v3420
    %v3422 = vlaneseq
    %v3423 = vshrl.u32 %v3422, 7
    %v3424 = vsub.s32 %v3421, %v3423
    %v3425 = vrot.slane %v3418, %v3424
    %v3427 = vunpack.c.l.s4 1966171168
    %v3428 = vunpack.c.0.s8 %v3427
    %v3429 = vlaneseq
    %v3430 = vshrl.u32 %v3429, 7
    %v3431 = vsub.s32 %v3428, %v3430
    %v3432 = vrot.slane %v3425, %v3431
    %3434 = vst.msk [vmem:[#allocation2] sm:$0x1] %vm2315, %v3432
    %v3435 = vadd.f32 %v2465, %v2481
    %v3436 = vadd.f32 %v2466, %v2482
    %v3437 = vpack.c.bf16 %v3435, %v3435
    %v3438 = vpack.c.bf16 %v3436, %v3436
    %v3442 = vunpack.c.l.s4 1966171168
    %v3443 = vunpack.c.0.s8 %v3442
    %v3444 = vlaneseq
    %v3445 = vshrl.u32 %v3444, 7
    %v3446 = vsub.s32 %v3443, %v3445
    %v3447 = vrot.slane %v3437, %v3446
    %v3448 = vcombine.high %v3447, %v3447
    %v3450 = vunpack.c.l.s4 1966171168
    %v3451 = vunpack.c.0.s8 %v3450
    %v3452 = vlaneseq
    %v3453 = vshrl.u32 %v3452, 7
    %v3454 = vsub.s32 %v3451, %v3453
    %v3455 = vrot.slane %v3447, %v3454
    %v3457 = vunpack.c.l.s4 1966171168
    %v3458 = vunpack.c.0.s8 %v3457
    %v3459 = vlaneseq
    %v3460 = vshrl.u32 %v3459, 7
    %v3461 = vsub.s32 %v3458, %v3460
    %v3462 = vrot.slane %v3448, %v3461
    %v3463 = vcombine.high %v3455, %v3455
    %v3464 = vcombine.high %v3462, %v3462
    %v3466 = vunpack.c.l.s4 1966171168
    %v3467 = vunpack.c.0.s8 %v3466
    %v3468 = vlaneseq
    %v3469 = vshrl.u32 %v3468, 7
    %v3470 = vsub.s32 %v3467, %v3469
    %v3471 = vrot.slane %v3438, %v3470
    %v3472 = vcombine.high %v3471, %v3471
    %v3474 = vunpack.c.l.s4 1966171168
    %v3475 = vunpack.c.0.s8 %v3474
    %v3476 = vlaneseq
    %v3477 = vshrl.u32 %v3476, 7
    %v3478 = vsub.s32 %v3475, %v3477
    %v3479 = vrot.slane %v3471, %v3478
    %v3481 = vunpack.c.l.s4 1966171168
    %v3482 = vunpack.c.0.s8 %v3481
    %v3483 = vlaneseq
    %v3484 = vshrl.u32 %v3483, 7
    %v3485 = vsub.s32 %v3482, %v3484
    %v3486 = vrot.slane %v3472, %v3485
    %v3487 = vcombine.high %v3479, %v3479
    %v3488 = vcombine.high %v3486, %v3486
    %v3489 = vcombine.low %v3455, %v3463
    %v3490 = vcombine.low %v3462, %v3464
    %v3492 = vunpack.c.l.s4 1935823168
    %v3493 = vunpack.c.0.s8 %v3492
    %v3494 = vlaneseq
    %v3495 = vshrl.u32 %v3494, 7
    %v3496 = vsub.s32 %v3493, %v3495
    %v3497 = vrot.slane %v3489, %v3496
    %v3499 = vunpack.c.l.s4 1935823168
    %v3500 = vunpack.c.0.s8 %v3499
    %v3501 = vlaneseq
    %v3502 = vshrl.u32 %v3501, 7
    %v3503 = vsub.s32 %v3500, %v3502
    %v3504 = vrot.slane %v3490, %v3503
    %v3505 = vcombine.low %v3497, %v3504
    %v3507 = vunpack.c.l.s4 1935823168
    %v3508 = vunpack.c.0.s8 %v3507
    %v3509 = vlaneseq
    %v3510 = vshrl.u32 %v3509, 7
    %v3511 = vsub.s32 %v3508, %v3510
    %v3512 = vrot.slane %v3505, %v3511
    %v3513 = vcombine.low %v3479, %v3487
    %v3514 = vcombine.low %v3486, %v3488
    %v3516 = vunpack.c.l.s4 1935823168
    %v3517 = vunpack.c.0.s8 %v3516
    %v3518 = vlaneseq
    %v3519 = vshrl.u32 %v3518, 7
    %v3520 = vsub.s32 %v3517, %v3519
    %v3521 = vrot.slane %v3513, %v3520
    %v3523 = vunpack.c.l.s4 1935823168
    %v3524 = vunpack.c.0.s8 %v3523
    %v3525 = vlaneseq
    %v3526 = vshrl.u32 %v3525, 7
    %v3527 = vsub.s32 %v3524, %v3526
    %v3528 = vrot.slane %v3514, %v3527
    %v3529 = vcombine.low %v3521, %v3528
    %v3531 = vunpack.c.l.s4 1935823168
    %v3532 = vunpack.c.0.s8 %v3531
    %v3533 = vlaneseq
    %v3534 = vshrl.u32 %v3533, 7
    %v3535 = vsub.s32 %v3532, %v3534
    %v3536 = vrot.slane %v3529, %v3535
    %v3537 = vunpack.c.l.b16 %v3512
    %v3538 = vunpack.c.l.b16 %v3536
    %3539 = vset.pattern.permute.xlu0 14
    %3540 = vperm.xlu0 %3539, %v3537
    %v3541 = vpop.permute.xlu0 %3540
    %3542 = vset.pattern.permute.xlu0 14
    %3543 = vperm.xlu0 %3542, %v3538
    %v3544 = vpop.permute.xlu0 %3543
    %v3545 = vlaneseq
    %v3546 = vshrl.u32 %v3545, 7
    %v3547 = vsub.s32 %v2427, %v3546
    %v3548 = vrot.slane %v3541, %v3547
    %v3549 = vlaneseq
    %v3550 = vshrl.u32 %v3549, 7
    %v3551 = vsub.s32 %v2427, %v3550
    %v3552 = vrot.slane %v3544, %v3551
    %v3553 = vsel %vm366, %v3552, %v3548
    %v3554 = vpack.c.b16 %v3553, %v3553
    %v3556 = vunpack.c.l.s4 1966171168
    %v3557 = vunpack.c.0.s8 %v3556
    %v3558 = vlaneseq
    %v3559 = vshrl.u32 %v3558, 7
    %v3560 = vsub.s32 %v3557, %v3559
    %v3561 = vrot.slane %v3554, %v3560
    %v3563 = vunpack.c.l.s4 1966171168
    %v3564 = vunpack.c.0.s8 %v3563
    %v3565 = vlaneseq
    %v3566 = vshrl.u32 %v3565, 7
    %v3567 = vsub.s32 %v3564, %v3566
    %v3568 = vrot.slane %v3561, %v3567
    %3570 = vst.msk [vmem:[#allocation2] sm:$0x1] %vm2453, %v3568
    %3573 = vrot.lane.b32.xlu0 %v2465, 126
    %v3574 = vpop.permute.xlu0 %3573
    %3575 = vrot.lane.b32.xlu0 %v2466, 126
    %v3576 = vpop.permute.xlu0 %3575
    %v3579 = vadd.f32 %v2465, %v3574
    %v3580 = vadd.f32 %v2466, %v3576
    %v3581 = vmul.f32 %v3579, 0.5
    %v3582 = vmul.f32 %v3580, 0.5
    %v3583 = vmax.f32 %v2467, %v2469
    %v3584 = vmax.f32 %v2468, %v2470
    %v3585 = vmax.f32 %v2471, %v2473
    %v3586 = vmax.f32 %v2472, %v2474
    %v3587 = vmax.f32 %v2475, %v2477
    %v3588 = vmax.f32 %v2476, %v2478
    %v3589 = vmax.f32 %v2479, %v2481
    %v3590 = vmax.f32 %v2480, %v2482
    %v3591 = vadd.f32 %v3581, %v3583
    %v3592 = vadd.f32 %v3582, %v3584
    %v3593 = vpack.c.bf16 %v3591, %v3591
    %v3594 = vpack.c.bf16 %v3592, %v3592
    %v3598 = vunpack.c.l.s4 1966171168
    %v3599 = vunpack.c.0.s8 %v3598
    %v3600 = vlaneseq
    %v3601 = vshrl.u32 %v3600, 7
    %v3602 = vsub.s32 %v3599, %v3601
    %v3603 = vrot.slane %v3593, %v3602
    %v3604 = vcombine.high %v3603, %v3603
    %v3606 = vunpack.c.l.s4 1966171168
    %v3607 = vunpack.c.0.s8 %v3606
    %v3608 = vlaneseq
    %v3609 = vshrl.u32 %v3608, 7
    %v3610 = vsub.s32 %v3607, %v3609
    %v3611 = vrot.slane %v3603, %v3610
    %v3613 = vunpack.c.l.s4 1966171168
    %v3614 = vunpack.c.0.s8 %v3613
    %v3615 = vlaneseq
    %v3616 = vshrl.u32 %v3615, 7
    %v3617 = vsub.s32 %v3614, %v3616
    %v3618 = vrot.slane %v3604, %v3617
    %v3619 = vcombine.high %v3611, %v3611
    %v3620 = vcombine.high %v3618, %v3618
    %v3622 = vunpack.c.l.s4 1966171168
    %v3623 = vunpack.c.0.s8 %v3622
    %v3624 = vlaneseq
    %v3625 = vshrl.u32 %v3624, 7
    %v3626 = vsub.s32 %v3623, %v3625
    %v3627 = vrot.slane %v3594, %v3626
    %v3628 = vcombine.high %v3627, %v3627
    %v3630 = vunpack.c.l.s4 1966171168
    %v3631 = vunpack.c.0.s8 %v3630
    %v3632 = vlaneseq
    %v3633 = vshrl.u32 %v3632, 7
    %v3634 = vsub.s32 %v3631, %v3633
    %v3635 = vrot.slane %v3627, %v3634
    %v3637 = vunpack.c.l.s4 1966171168
    %v3638 = vunpack.c.0.s8 %v3637
    %v3639 = vlaneseq
    %v3640 = vshrl.u32 %v3639, 7
    %v3641 = vsub.s32 %v3638, %v3640
    %v3642 = vrot.slane %v3628, %v3641
    %v3643 = vcombine.high %v3635, %v3635
    %v3644 = vcombine.high %v3642, %v3642
    %v3645 = vcombine.low %v3611, %v3619
    %v3646 = vcombine.low %v3618, %v3620
    %v3648 = vunpack.c.l.s4 1935823168
    %v3649 = vunpack.c.0.s8 %v3648
    %v3650 = vlaneseq
    %v3651 = vshrl.u32 %v3650, 7
    %v3652 = vsub.s32 %v3649, %v3651
    %v3653 = vrot.slane %v3645, %v3652
    %v3655 = vunpack.c.l.s4 1935823168
    %v3656 = vunpack.c.0.s8 %v3655
    %v3657 = vlaneseq
    %v3658 = vshrl.u32 %v3657, 7
    %v3659 = vsub.s32 %v3656, %v3658
    %v3660 = vrot.slane %v3646, %v3659
    %v3661 = vcombine.low %v3653, %v3660
    %v3663 = vunpack.c.l.s4 1935823168
    %v3664 = vunpack.c.0.s8 %v3663
    %v3665 = vlaneseq
    %v3666 = vshrl.u32 %v3665, 7
    %v3667 = vsub.s32 %v3664, %v3666
    %v3668 = vrot.slane %v3661, %v3667
    %v3669 = vcombine.low %v3635, %v3643
    %v3670 = vcombine.low %v3642, %v3644
    %v3672 = vunpack.c.l.s4 1935823168
    %v3673 = vunpack.c.0.s8 %v3672
    %v3674 = vlaneseq
    %v3675 = vshrl.u32 %v3674, 7
    %v3676 = vsub.s32 %v3673, %v3675
    %v3677 = vrot.slane %v3669, %v3676
    %v3679 = vunpack.c.l.s4 1935823168
    %v3680 = vunpack.c.0.s8 %v3679
    %v3681 = vlaneseq
    %v3682 = vshrl.u32 %v3681, 7
    %v3683 = vsub.s32 %v3680, %v3682
    %v3684 = vrot.slane %v3670, %v3683
    %v3685 = vcombine.low %v3677, %v3684
    %v3687 = vunpack.c.l.s4 1935823168
    %v3688 = vunpack.c.0.s8 %v3687
    %v3689 = vlaneseq
    %v3690 = vshrl.u32 %v3689, 7
    %v3691 = vsub.s32 %v3688, %v3690
    %v3692 = vrot.slane %v3685, %v3691
    %v3693 = vunpack.c.l.b16 %v3668
    %v3694 = vunpack.c.l.b16 %v3692
    %3695 = vset.pattern.permute.xlu0 0
    %3696 = vperm.xlu0 %3695, %v3693
    %v3697 = vpop.permute.xlu0 %3696
    %3698 = vset.pattern.permute.xlu0 0
    %3699 = vperm.xlu0 %3698, %v3694
    %v3700 = vpop.permute.xlu0 %3699
    %v3701 = vlaneseq
    %v3702 = vshrl.u32 %v3701, 7
    %v3703 = vsub.s32 %v909, %v3702
    %v3704 = vrot.slane %v3697, %v3703
    %v3705 = vlaneseq
    %v3706 = vshrl.u32 %v3705, 7
    %v3707 = vsub.s32 %v909, %v3706
    %v3708 = vrot.slane %v3700, %v3707
    %v3709 = vsel %vm366, %v3708, %v3704
    %v3710 = vpack.c.b16 %v3709, %v3709
    %v3712 = vunpack.c.l.s4 1966171168
    %v3713 = vunpack.c.0.s8 %v3712
    %v3714 = vlaneseq
    %v3715 = vshrl.u32 %v3714, 7
    %v3716 = vsub.s32 %v3713, %v3715
    %v3717 = vrot.slane %v3710, %v3716
    %v3719 = vunpack.c.l.s4 1966171168
    %v3720 = vunpack.c.0.s8 %v3719
    %v3721 = vlaneseq
    %v3722 = vshrl.u32 %v3721, 7
    %v3723 = vsub.s32 %v3720, %v3722
    %v3724 = vrot.slane %v3717, %v3723
    %3726 = vst.msk [vmem:[#allocation2] sm:$0x1] %vm935, %v3724
    %v3727 = vadd.f32 %v3581, %v3585
    %v3728 = vadd.f32 %v3582, %v3586
    %v3729 = vpack.c.bf16 %v3727, %v3727
    %v3730 = vpack.c.bf16 %v3728, %v3728
    %v3734 = vunpack.c.l.s4 1966171168
    %v3735 = vunpack.c.0.s8 %v3734
    %v3736 = vlaneseq
    %v3737 = vshrl.u32 %v3736, 7
    %v3738 = vsub.s32 %v3735, %v3737
    %v3739 = vrot.slane %v3729, %v3738
    %v3740 = vcombine.high %v3739, %v3739
    %v3742 = vunpack.c.l.s4 1966171168
    %v3743 = vunpack.c.0.s8 %v3742
    %v3744 = vlaneseq
    %v3745 = vshrl.u32 %v3744, 7
    %v3746 = vsub.s32 %v3743, %v3745
    %v3747 = vrot.slane %v3739, %v3746
    %v3749 = vunpack.c.l.s4 1966171168
    %v3750 = vunpack.c.0.s8 %v3749
    %v3751 = vlaneseq
    %v3752 = vshrl.u32 %v3751, 7
    %v3753 = vsub.s32 %v3750, %v3752
    %v3754 = vrot.slane %v3740, %v3753
    %v3755 = vcombine.high %v3747, %v3747
    %v3756 = vcombine.high %v3754, %v3754
    %v3758 = vunpack.c.l.s4 1966171168
    %v3759 = vunpack.c.0.s8 %v3758
    %v3760 = vlaneseq
    %v3761 = vshrl.u32 %v3760, 7
    %v3762 = vsub.s32 %v3759, %v3761
    %v3763 = vrot.slane %v3730, %v3762
    %v3764 = vcombine.high %v3763, %v3763
    %v3766 = vunpack.c.l.s4 1966171168
    %v3767 = vunpack.c.0.s8 %v3766
    %v3768 = vlaneseq
    %v3769 = vshrl.u32 %v3768, 7
    %v3770 = vsub.s32 %v3767, %v3769
    %v3771 = vrot.slane %v3763, %v3770
    %v3773 = vunpack.c.l.s4 1966171168
    %v3774 = vunpack.c.0.s8 %v3773
    %v3775 = vlaneseq
    %v3776 = vshrl.u32 %v3775, 7
    %v3777 = vsub.s32 %v3774, %v3776
    %v3778 = vrot.slane %v3764, %v3777
    %v3779 = vcombine.high %v3771, %v3771
    %v3780 = vcombine.high %v3778, %v3778
    %v3781 = vcombine.low %v3747, %v3755
    %v3782 = vcombine.low %v3754, %v3756
    %v3784 = vunpack.c.l.s4 1935823168
    %v3785 = vunpack.c.0.s8 %v3784
    %v3786 = vlaneseq
    %v3787 = vshrl.u32 %v3786, 7
    %v3788 = vsub.s32 %v3785, %v3787
    %v3789 = vrot.slane %v3781, %v3788
    %v3791 = vunpack.c.l.s4 1935823168
    %v3792 = vunpack.c.0.s8 %v3791
    %v3793 = vlaneseq
    %v3794 = vshrl.u32 %v3793, 7
    %v3795 = vsub.s32 %v3792, %v3794
    %v3796 = vrot.slane %v3782, %v3795
    %v3797 = vcombine.low %v3789, %v3796
    %v3799 = vunpack.c.l.s4 1935823168
    %v3800 = vunpack.c.0.s8 %v3799
    %v3801 = vlaneseq
    %v3802 = vshrl.u32 %v3801, 7
    %v3803 = vsub.s32 %v3800, %v3802
    %v3804 = vrot.slane %v3797, %v3803
    %v3805 = vcombine.low %v3771, %v3779
    %v3806 = vcombine.low %v3778, %v3780
    %v3808 = vunpack.c.l.s4 1935823168
    %v3809 = vunpack.c.0.s8 %v3808
    %v3810 = vlaneseq
    %v3811 = vshrl.u32 %v3810, 7
    %v3812 = vsub.s32 %v3809, %v3811
    %v3813 = vrot.slane %v3805, %v3812
    %v3815 = vunpack.c.l.s4 1935823168
    %v3816 = vunpack.c.0.s8 %v3815
    %v3817 = vlaneseq
    %v3818 = vshrl.u32 %v3817, 7
    %v3819 = vsub.s32 %v3816, %v3818
    %v3820 = vrot.slane %v3806, %v3819
    %v3821 = vcombine.low %v3813, %v3820
    %v3823 = vunpack.c.l.s4 1935823168
    %v3824 = vunpack.c.0.s8 %v3823
    %v3825 = vlaneseq
    %v3826 = vshrl.u32 %v3825, 7
    %v3827 = vsub.s32 %v3824, %v3826
    %v3828 = vrot.slane %v3821, %v3827
    %v3829 = vunpack.c.l.b16 %v3804
    %v3830 = vunpack.c.l.b16 %v3828
    %3831 = vset.pattern.permute.xlu0 4
    %3832 = vperm.xlu0 %3831, %v3829
    %v3833 = vpop.permute.xlu0 %3832
    %3834 = vset.pattern.permute.xlu0 4
    %3835 = vperm.xlu0 %3834, %v3830
    %v3836 = vpop.permute.xlu0 %3835
    %v3837 = vlaneseq
    %v3838 = vshrl.u32 %v3837, 7
    %v3839 = vsub.s32 %v1047, %v3838
    %v3840 = vrot.slane %v3833, %v3839
    %v3841 = vlaneseq
    %v3842 = vshrl.u32 %v3841, 7
    %v3843 = vsub.s32 %v1047, %v3842
    %v3844 = vrot.slane %v3836, %v3843
    %v3845 = vsel %vm366, %v3844, %v3840
    %v3846 = vpack.c.b16 %v3845, %v3845
    %v3848 = vunpack.c.l.s4 1966171168
    %v3849 = vunpack.c.0.s8 %v3848
    %v3850 = vlaneseq
    %v3851 = vshrl.u32 %v3850, 7
    %v3852 = vsub.s32 %v3849, %v3851
    %v3853 = vrot.slane %v3846, %v3852
    %v3855 = vunpack.c.l.s4 1966171168
    %v3856 = vunpack.c.0.s8 %v3855
    %v3857 = vlaneseq
    %v3858 = vshrl.u32 %v3857, 7
    %v3859 = vsub.s32 %v3856, %v3858
    %v3860 = vrot.slane %v3853, %v3859
    %3862 = vst.msk [vmem:[#allocation2] sm:$0x1] %vm1073, %v3860
    %v3863 = vadd.f32 %v3581, %v3587
    %v3864 = vadd.f32 %v3582, %v3588
    %v3865 = vpack.c.bf16 %v3863, %v3863
    %v3866 = vpack.c.bf16 %v3864, %v3864
    %v3870 = vunpack.c.l.s4 1966171168
    %v3871 = vunpack.c.0.s8 %v3870
    %v3872 = vlaneseq
    %v3873 = vshrl.u32 %v3872, 7
    %v3874 = vsub.s32 %v3871, %v3873
    %v3875 = vrot.slane %v3865, %v3874
    %v3876 = vcombine.high %v3875, %v3875
    %v3878 = vunpack.c.l.s4 1966171168
    %v3879 = vunpack.c.0.s8 %v3878
    %v3880 = vlaneseq
    %v3881 = vshrl.u32 %v3880, 7
    %v3882 = vsub.s32 %v3879, %v3881
    %v3883 = vrot.slane %v3875, %v3882
    %v3885 = vunpack.c.l.s4 1966171168
    %v3886 = vunpack.c.0.s8 %v3885
    %v3887 = vlaneseq
    %v3888 = vshrl.u32 %v3887, 7
    %v3889 = vsub.s32 %v3886, %v3888
    %v3890 = vrot.slane %v3876, %v3889
    %v3891 = vcombine.high %v3883, %v3883
    %v3892 = vcombine.high %v3890, %v3890
    %v3894 = vunpack.c.l.s4 1966171168
    %v3895 = vunpack.c.0.s8 %v3894
    %v3896 = vlaneseq
    %v3897 = vshrl.u32 %v3896, 7
    %v3898 = vsub.s32 %v3895, %v3897
    %v3899 = vrot.slane %v3866, %v3898
    %v3900 = vcombine.high %v3899, %v3899
    %v3902 = vunpack.c.l.s4 1966171168
    %v3903 = vunpack.c.0.s8 %v3902
    %v3904 = vlaneseq
    %v3905 = vshrl.u32 %v3904, 7
    %v3906 = vsub.s32 %v3903, %v3905
    %v3907 = vrot.slane %v3899, %v3906
    %v3909 = vunpack.c.l.s4 1966171168
    %v3910 = vunpack.c.0.s8 %v3909
    %v3911 = vlaneseq
    %v3912 = vshrl.u32 %v3911, 7
    %v3913 = vsub.s32 %v3910, %v3912
    %v3914 = vrot.slane %v3900, %v3913
    %v3915 = vcombine.high %v3907, %v3907
    %v3916 = vcombine.high %v3914, %v3914
    %v3917 = vcombine.low %v3883, %v3891
    %v3918 = vcombine.low %v3890, %v3892
    %v3920 = vunpack.c.l.s4 1935823168
    %v3921 = vunpack.c.0.s8 %v3920
    %v3922 = vlaneseq
    %v3923 = vshrl.u32 %v3922, 7
    %v3924 = vsub.s32 %v3921, %v3923
    %v3925 = vrot.slane %v3917, %v3924
    %v3927 = vunpack.c.l.s4 1935823168
    %v3928 = vunpack.c.0.s8 %v3927
    %v3929 = vlaneseq
    %v3930 = vshrl.u32 %v3929, 7
    %v3931 = vsub.s32 %v3928, %v3930
    %v3932 = vrot.slane %v3918, %v3931
    %v3933 = vcombine.low %v3925, %v3932
    %v3935 = vunpack.c.l.s4 1935823168
    %v3936 = vunpack.c.0.s8 %v3935
    %v3937 = vlaneseq
    %v3938 = vshrl.u32 %v3937, 7
    %v3939 = vsub.s32 %v3936, %v3938
    %v3940 = vrot.slane %v3933, %v3939
    %v3941 = vcombine.low %v3907, %v3915
    %v3942 = vcombine.low %v3914, %v3916
    %v3944 = vunpack.c.l.s4 1935823168
    %v3945 = vunpack.c.0.s8 %v3944
    %v3946 = vlaneseq
    %v3947 = vshrl.u32 %v3946, 7
    %v3948 = vsub.s32 %v3945, %v3947
    %v3949 = vrot.slane %v3941, %v3948
    %v3951 = vunpack.c.l.s4 1935823168
    %v3952 = vunpack.c.0.s8 %v3951
    %v3953 = vlaneseq
    %v3954 = vshrl.u32 %v3953, 7
    %v3955 = vsub.s32 %v3952, %v3954
    %v3956 = vrot.slane %v3942, %v3955
    %v3957 = vcombine.low %v3949, %v3956
    %v3959 = vunpack.c.l.s4 1935823168
    %v3960 = vunpack.c.0.s8 %v3959
    %v3961 = vlaneseq
    %v3962 = vshrl.u32 %v3961, 7
    %v3963 = vsub.s32 %v3960, %v3962
    %v3964 = vrot.slane %v3957, %v3963
    %v3965 = vunpack.c.l.b16 %v3940
    %v3966 = vunpack.c.l.b16 %v3964
    %3967 = vset.pattern.permute.xlu0 8
    %3968 = vperm.xlu0 %3967, %v3965
    %v3969 = vpop.permute.xlu0 %3968
    %3970 = vset.pattern.permute.xlu0 8
    %3971 = vperm.xlu0 %3970, %v3966
    %v3972 = vpop.permute.xlu0 %3971
    %v3973 = vlaneseq
    %v3974 = vshrl.u32 %v3973, 7
    %v3975 = vsub.s32 %v1185, %v3974
    %v3976 = vrot.slane %v3969, %v3975
    %v3977 = vlaneseq
    %v3978 = vshrl.u32 %v3977, 7
    %v3979 = vsub.s32 %v1185, %v3978
    %v3980 = vrot.slane %v3972, %v3979
    %v3981 = vsel %vm366, %v3980, %v3976
    %v3982 = vpack.c.b16 %v3981, %v3981
    %v3984 = vunpack.c.l.s4 1966171168
    %v3985 = vunpack.c.0.s8 %v3984
    %v3986 = vlaneseq
    %v3987 = vshrl.u32 %v3986, 7
    %v3988 = vsub.s32 %v3985, %v3987
    %v3989 = vrot.slane %v3982, %v3988
    %v3991 = vunpack.c.l.s4 1966171168
    %v3992 = vunpack.c.0.s8 %v3991
    %v3993 = vlaneseq
    %v3994 = vshrl.u32 %v3993, 7
    %v3995 = vsub.s32 %v3992, %v3994
    %v3996 = vrot.slane %v3989, %v3995
    %3998 = vst.msk [vmem:[#allocation2] sm:$0x1] %vm1211, %v3996
    %v3999 = vadd.f32 %v3581, %v3589
    %v4000 = vadd.f32 %v3582, %v3590
    %v4001 = vpack.c.bf16 %v3999, %v3999
    %v4002 = vpack.c.bf16 %v4000, %v4000
    %v4006 = vunpack.c.l.s4 1966171168
    %v4007 = vunpack.c.0.s8 %v4006
    %v4008 = vlaneseq
    %v4009 = vshrl.u32 %v4008, 7
    %v4010 = vsub.s32 %v4007, %v4009
    %v4011 = vrot.slane %v4001, %v4010
    %v4012 = vcombine.high %v4011, %v4011
    %v4014 = vunpack.c.l.s4 1966171168
    %v4015 = vunpack.c.0.s8 %v4014
    %v4016 = vlaneseq
    %v4017 = vshrl.u32 %v4016, 7
    %v4018 = vsub.s32 %v4015, %v4017
    %v4019 = vrot.slane %v4011, %v4018
    %v4021 = vunpack.c.l.s4 1966171168
    %v4022 = vunpack.c.0.s8 %v4021
    %v4023 = vlaneseq
    %v4024 = vshrl.u32 %v4023, 7
    %v4025 = vsub.s32 %v4022, %v4024
    %v4026 = vrot.slane %v4012, %v4025
    %v4027 = vcombine.high %v4019, %v4019
    %v4028 = vcombine.high %v4026, %v4026
    %v4030 = vunpack.c.l.s4 1966171168
    %v4031 = vunpack.c.0.s8 %v4030
    %v4032 = vlaneseq
    %v4033 = vshrl.u32 %v4032, 7
    %v4034 = vsub.s32 %v4031, %v4033
    %v4035 = vrot.slane %v4002, %v4034
    %v4036 = vcombine.high %v4035, %v4035
    %v4038 = vunpack.c.l.s4 1966171168
    %v4039 = vunpack.c.0.s8 %v4038
    %v4040 = vlaneseq
    %v4041 = vshrl.u32 %v4040, 7
    %v4042 = vsub.s32 %v4039, %v4041
    %v4043 = vrot.slane %v4035, %v4042
    %v4045 = vunpack.c.l.s4 1966171168
    %v4046 = vunpack.c.0.s8 %v4045
    %v4047 = vlaneseq
    %v4048 = vshrl.u32 %v4047, 7
    %v4049 = vsub.s32 %v4046, %v4048
    %v4050 = vrot.slane %v4036, %v4049
    %v4051 = vcombine.high %v4043, %v4043
    %v4052 = vcombine.high %v4050, %v4050
    %v4053 = vcombine.low %v4019, %v4027
    %v4054 = vcombine.low %v4026, %v4028
    %v4056 = vunpack.c.l.s4 1935823168
    %v4057 = vunpack.c.0.s8 %v4056
    %v4058 = vlaneseq
    %v4059 = vshrl.u32 %v4058, 7
    %v4060 = vsub.s32 %v4057, %v4059
    %v4061 = vrot.slane %v4053, %v4060
    %v4063 = vunpack.c.l.s4 1935823168
    %v4064 = vunpack.c.0.s8 %v4063
    %v4065 = vlaneseq
    %v4066 = vshrl.u32 %v4065, 7
    %v4067 = vsub.s32 %v4064, %v4066
    %v4068 = vrot.slane %v4054, %v4067
    %v4069 = vcombine.low %v4061, %v4068
    %v4071 = vunpack.c.l.s4 1935823168
    %v4072 = vunpack.c.0.s8 %v4071
    %v4073 = vlaneseq
    %v4074 = vshrl.u32 %v4073, 7
    %v4075 = vsub.s32 %v4072, %v4074
    %v4076 = vrot.slane %v4069, %v4075
    %v4077 = vcombine.low %v4043, %v4051
    %v4078 = vcombine.low %v4050, %v4052
    %v4080 = vunpack.c.l.s4 1935823168
    %v4081 = vunpack.c.0.s8 %v4080
    %v4082 = vlaneseq
    %v4083 = vshrl.u32 %v4082, 7
    %v4084 = vsub.s32 %v4081, %v4083
    %v4085 = vrot.slane %v4077, %v4084
    %v4087 = vunpack.c.l.s4 1935823168
    %v4088 = vunpack.c.0.s8 %v4087
    %v4089 = vlaneseq
    %v4090 = vshrl.u32 %v4089, 7
    %v4091 = vsub.s32 %v4088, %v4090
    %v4092 = vrot.slane %v4078, %v4091
    %v4093 = vcombine.low %v4085, %v4092
    %v4095 = vunpack.c.l.s4 1935823168
    %v4096 = vunpack.c.0.s8 %v4095
    %v4097 = vlaneseq
    %v4098 = vshrl.u32 %v4097, 7
    %v4099 = vsub.s32 %v4096, %v4098
    %v4100 = vrot.slane %v4093, %v4099
    %v4101 = vunpack.c.l.b16 %v4076
    %v4102 = vunpack.c.l.b16 %v4100
    %4103 = vset.pattern.permute.xlu0 12
    %4104 = vperm.xlu0 %4103, %v4101
    %v4105 = vpop.permute.xlu0 %4104
    %4106 = vset.pattern.permute.xlu0 12
    %4107 = vperm.xlu0 %4106, %v4102
    %v4108 = vpop.permute.xlu0 %4107
    %v4109 = vlaneseq
    %v4110 = vshrl.u32 %v4109, 7
    %v4111 = vsub.s32 %v1323, %v4110
    %v4112 = vrot.slane %v4105, %v4111
    %v4113 = vlaneseq
    %v4114 = vshrl.u32 %v4113, 7
    %v4115 = vsub.s32 %v1323, %v4114
    %v4116 = vrot.slane %v4108, %v4115
    %v4117 = vsel %vm366, %v4116, %v4112
    %v4118 = vpack.c.b16 %v4117, %v4117
    %v4120 = vunpack.c.l.s4 1966171168
    %v4121 = vunpack.c.0.s8 %v4120
    %v4122 = vlaneseq
    %v4123 = vshrl.u32 %v4122, 7
    %v4124 = vsub.s32 %v4121, %v4123
    %v4125 = vrot.slane %v4118, %v4124
    %v4127 = vunpack.c.l.s4 1966171168
    %v4128 = vunpack.c.0.s8 %v4127
    %v4129 = vlaneseq
    %v4130 = vshrl.u32 %v4129, 7
    %v4131 = vsub.s32 %v4128, %v4130
    %v4132 = vrot.slane %v4125, %v4131
    %4134 = vst.msk [vmem:[#allocation2] sm:$0x1] %vm1349, %v4132
    %4137 = vrot.lane.b32.xlu0 %v3581, 124
    %v4138 = vpop.permute.xlu0 %4137
    %4139 = vrot.lane.b32.xlu0 %v3582, 124
    %v4140 = vpop.permute.xlu0 %4139
    %v4143 = vadd.f32 %v3581, %v4138
    %v4144 = vadd.f32 %v3582, %v4140
    %v4145 = vmul.f32 %v4143, 0.5
    %v4146 = vmul.f32 %v4144, 0.5
    %v4147 = vmax.f32 %v3583, %v3585
    %v4148 = vmax.f32 %v3584, %v3586
    %v4149 = vmax.f32 %v3587, %v3589
    %v4150 = vmax.f32 %v3588, %v3590
    %v4151 = vadd.f32 %v4145, %v4147
    %v4152 = vadd.f32 %v4146, %v4148
    %v4153 = vpack.c.bf16 %v4151, %v4151
    %v4154 = vpack.c.bf16 %v4152, %v4152
    %v4158 = vunpack.c.l.s4 1966171168
    %v4159 = vunpack.c.0.s8 %v4158
    %v4160 = vlaneseq
    %v4161 = vshrl.u32 %v4160, 7
    %v4162 = vsub.s32 %v4159, %v4161
    %v4163 = vrot.slane %v4153, %v4162
    %v4164 = vcombine.high %v4163, %v4163
    %v4166 = vunpack.c.l.s4 1966171168
    %v4167 = vunpack.c.0.s8 %v4166
    %v4168 = vlaneseq
    %v4169 = vshrl.u32 %v4168, 7
    %v4170 = vsub.s32 %v4167, %v4169
    %v4171 = vrot.slane %v4163, %v4170
    %v4173 = vunpack.c.l.s4 1966171168
    %v4174 = vunpack.c.0.s8 %v4173
    %v4175 = vlaneseq
    %v4176 = vshrl.u32 %v4175, 7
    %v4177 = vsub.s32 %v4174, %v4176
    %v4178 = vrot.slane %v4164, %v4177
    %v4179 = vcombine.high %v4171, %v4171
    %v4180 = vcombine.high %v4178, %v4178
    %v4182 = vunpack.c.l.s4 1966171168
    %v4183 = vunpack.c.0.s8 %v4182
    %v4184 = vlaneseq
    %v4185 = vshrl.u32 %v4184, 7
    %v4186 = vsub.s32 %v4183, %v4185
    %v4187 = vrot.slane %v4154, %v4186
    %v4188 = vcombine.high %v4187, %v4187
    %v4190 = vunpack.c.l.s4 1966171168
    %v4191 = vunpack.c.0.s8 %v4190
    %v4192 = vlaneseq
    %v4193 = vshrl.u32 %v4192, 7
    %v4194 = vsub.s32 %v4191, %v4193
    %v4195 = vrot.slane %v4187, %v4194
    %v4197 = vunpack.c.l.s4 1966171168
    %v4198 = vunpack.c.0.s8 %v4197
    %v4199 = vlaneseq
    %v4200 = vshrl.u32 %v4199, 7
    %v4201 = vsub.s32 %v4198, %v4200
    %v4202 = vrot.slane %v4188, %v4201
    %v4203 = vcombine.high %v4195, %v4195
    %v4204 = vcombine.high %v4202, %v4202
    %v4205 = vcombine.low %v4171, %v4179
    %v4206 = vcombine.low %v4178, %v4180
    %v4208 = vunpack.c.l.s4 1935823168
    %v4209 = vunpack.c.0.s8 %v4208
    %v4210 = vlaneseq
    %v4211 = vshrl.u32 %v4210, 7
    %v4212 = vsub.s32 %v4209, %v4211
    %v4213 = vrot.slane %v4205, %v4212
    %v4215 = vunpack.c.l.s4 1935823168
    %v4216 = vunpack.c.0.s8 %v4215
    %v4217 = vlaneseq
    %v4218 = vshrl.u32 %v4217, 7
    %v4219 = vsub.s32 %v4216, %v4218
    %v4220 = vrot.slane %v4206, %v4219
    %v4221 = vcombine.low %v4213, %v4220
    %v4223 = vunpack.c.l.s4 1935823168
    %v4224 = vunpack.c.0.s8 %v4223
    %v4225 = vlaneseq
    %v4226 = vshrl.u32 %v4225, 7
    %v4227 = vsub.s32 %v4224, %v4226
    %v4228 = vrot.slane %v4221, %v4227
    %v4229 = vcombine.low %v4195, %v4203
    %v4230 = vcombine.low %v4202, %v4204
    %v4232 = vunpack.c.l.s4 1935823168
    %v4233 = vunpack.c.0.s8 %v4232
    %v4234 = vlaneseq
    %v4235 = vshrl.u32 %v4234, 7
    %v4236 = vsub.s32 %v4233, %v4235
    %v4237 = vrot.slane %v4229, %v4236
    %v4239 = vunpack.c.l.s4 1935823168
    %v4240 = vunpack.c.0.s8 %v4239
    %v4241 = vlaneseq
    %v4242 = vshrl.u32 %v4241, 7
    %v4243 = vsub.s32 %v4240, %v4242
    %v4244 = vrot.slane %v4230, %v4243
    %v4245 = vcombine.low %v4237, %v4244
    %v4247 = vunpack.c.l.s4 1935823168
    %v4248 = vunpack.c.0.s8 %v4247
    %v4249 = vlaneseq
    %v4250 = vshrl.u32 %v4249, 7
    %v4251 = vsub.s32 %v4248, %v4250
    %v4252 = vrot.slane %v4245, %v4251
    %v4253 = vunpack.c.l.b16 %v4228
    %v4254 = vunpack.c.l.b16 %v4252
    %4255 = vset.pattern.permute.xlu0 0
    %4256 = vperm.xlu0 %4255, %v4253
    %v4257 = vpop.permute.xlu0 %4256
    %4258 = vset.pattern.permute.xlu0 0
    %4259 = vperm.xlu0 %4258, %v4254
    %v4260 = vpop.permute.xlu0 %4259
    %v4261 = vlaneseq
    %v4262 = vshrl.u32 %v4261, 7
    %v4263 = vsub.s32 %v633, %v4262
    %v4264 = vrot.slane %v4257, %v4263
    %v4265 = vlaneseq
    %v4266 = vshrl.u32 %v4265, 7
    %v4267 = vsub.s32 %v633, %v4266
    %v4268 = vrot.slane %v4260, %v4267
    %v4269 = vsel %vm366, %v4268, %v4264
    %v4270 = vpack.c.b16 %v4269, %v4269
    %v4272 = vunpack.c.l.s4 1966171168
    %v4273 = vunpack.c.0.s8 %v4272
    %v4274 = vlaneseq
    %v4275 = vshrl.u32 %v4274, 7
    %v4276 = vsub.s32 %v4273, %v4275
    %v4277 = vrot.slane %v4270, %v4276
    %v4279 = vunpack.c.l.s4 1966171168
    %v4280 = vunpack.c.0.s8 %v4279
    %v4281 = vlaneseq
    %v4282 = vshrl.u32 %v4281, 7
    %v4283 = vsub.s32 %v4280, %v4282
    %v4284 = vrot.slane %v4277, %v4283
    %4286 = vst.msk [vmem:[#allocation2] sm:$0x1] %vm659, %v4284
    %v4287 = vadd.f32 %v4145, %v4149
    %v4288 = vadd.f32 %v4146, %v4150
    %v4289 = vpack.c.bf16 %v4287, %v4287
    %v4290 = vpack.c.bf16 %v4288, %v4288
    %v4294 = vunpack.c.l.s4 1966171168
    %v4295 = vunpack.c.0.s8 %v4294
    %v4296 = vlaneseq
    %v4297 = vshrl.u32 %v4296, 7
    %v4298 = vsub.s32 %v4295, %v4297
    %v4299 = vrot.slane %v4289, %v4298
    %v4300 = vcombine.high %v4299, %v4299
    %v4302 = vunpack.c.l.s4 1966171168
    %v4303 = vunpack.c.0.s8 %v4302
    %v4304 = vlaneseq
    %v4305 = vshrl.u32 %v4304, 7
    %v4306 = vsub.s32 %v4303, %v4305
    %v4307 = vrot.slane %v4299, %v4306
    %v4309 = vunpack.c.l.s4 1966171168
    %v4310 = vunpack.c.0.s8 %v4309
    %v4311 = vlaneseq
    %v4312 = vshrl.u32 %v4311, 7
    %v4313 = vsub.s32 %v4310, %v4312
    %v4314 = vrot.slane %v4300, %v4313
    %v4315 = vcombine.high %v4307, %v4307
    %v4316 = vcombine.high %v4314, %v4314
    %v4318 = vunpack.c.l.s4 1966171168
    %v4319 = vunpack.c.0.s8 %v4318
    %v4320 = vlaneseq
    %v4321 = vshrl.u32 %v4320, 7
    %v4322 = vsub.s32 %v4319, %v4321
    %v4323 = vrot.slane %v4290, %v4322
    %v4324 = vcombine.high %v4323, %v4323
    %v4326 = vunpack.c.l.s4 1966171168
    %v4327 = vunpack.c.0.s8 %v4326
    %v4328 = vlaneseq
    %v4329 = vshrl.u32 %v4328, 7
    %v4330 = vsub.s32 %v4327, %v4329
    %v4331 = vrot.slane %v4323, %v4330
    %v4333 = vunpack.c.l.s4 1966171168
    %v4334 = vunpack.c.0.s8 %v4333
    %v4335 = vlaneseq
    %v4336 = vshrl.u32 %v4335, 7
    %v4337 = vsub.s32 %v4334, %v4336
    %v4338 = vrot.slane %v4324, %v4337
    %v4339 = vcombine.high %v4331, %v4331
    %v4340 = vcombine.high %v4338, %v4338
    %v4341 = vcombine.low %v4307, %v4315
    %v4342 = vcombine.low %v4314, %v4316
    %v4344 = vunpack.c.l.s4 1935823168
    %v4345 = vunpack.c.0.s8 %v4344
    %v4346 = vlaneseq
    %v4347 = vshrl.u32 %v4346, 7
    %v4348 = vsub.s32 %v4345, %v4347
    %v4349 = vrot.slane %v4341, %v4348
    %v4351 = vunpack.c.l.s4 1935823168
    %v4352 = vunpack.c.0.s8 %v4351
    %v4353 = vlaneseq
    %v4354 = vshrl.u32 %v4353, 7
    %v4355 = vsub.s32 %v4352, %v4354
    %v4356 = vrot.slane %v4342, %v4355
    %v4357 = vcombine.low %v4349, %v4356
    %v4359 = vunpack.c.l.s4 1935823168
    %v4360 = vunpack.c.0.s8 %v4359
    %v4361 = vlaneseq
    %v4362 = vshrl.u32 %v4361, 7
    %v4363 = vsub.s32 %v4360, %v4362
    %v4364 = vrot.slane %v4357, %v4363
    %v4365 = vcombine.low %v4331, %v4339
    %v4366 = vcombine.low %v4338, %v4340
    %v4368 = vunpack.c.l.s4 1935823168
    %v4369 = vunpack.c.0.s8 %v4368
    %v4370 = vlaneseq
    %v4371 = vshrl.u32 %v4370, 7
    %v4372 = vsub.s32 %v4369, %v4371
    %v4373 = vrot.slane %v4365, %v4372
    %v4375 = vunpack.c.l.s4 1935823168
    %v4376 = vunpack.c.0.s8 %v4375
    %v4377 = vlaneseq
    %v4378 = vshrl.u32 %v4377, 7
    %v4379 = vsub.s32 %v4376, %v4378
    %v4380 = vrot.slane %v4366, %v4379
    %v4381 = vcombine.low %v4373, %v4380
    %v4383 = vunpack.c.l.s4 1935823168
    %v4384 = vunpack.c.0.s8 %v4383
    %v4385 = vlaneseq
    %v4386 = vshrl.u32 %v4385, 7
    %v4387 = vsub.s32 %v4384, %v4386
    %v4388 = vrot.slane %v4381, %v4387
    %v4389 = vunpack.c.l.b16 %v4364
    %v4390 = vunpack.c.l.b16 %v4388
    %4391 = vset.pattern.permute.xlu0 8
    %4392 = vperm.xlu0 %4391, %v4389
    %v4393 = vpop.permute.xlu0 %4392
    %4394 = vset.pattern.permute.xlu0 8
    %4395 = vperm.xlu0 %4394, %v4390
    %v4396 = vpop.permute.xlu0 %4395
    %v4397 = vlaneseq
    %v4398 = vshrl.u32 %v4397, 7
    %v4399 = vsub.s32 %v771, %v4398
    %v4400 = vrot.slane %v4393, %v4399
    %v4401 = vlaneseq
    %v4402 = vshrl.u32 %v4401, 7
    %v4403 = vsub.s32 %v771, %v4402
    %v4404 = vrot.slane %v4396, %v4403
    %v4405 = vsel %vm366, %v4404, %v4400
    %v4406 = vpack.c.b16 %v4405, %v4405
    %v4408 = vunpack.c.l.s4 1966171168
    %v4409 = vunpack.c.0.s8 %v4408
    %v4410 = vlaneseq
    %v4411 = vshrl.u32 %v4410, 7
    %v4412 = vsub.s32 %v4409, %v4411
    %v4413 = vrot.slane %v4406, %v4412
    %v4415 = vunpack.c.l.s4 1966171168
    %v4416 = vunpack.c.0.s8 %v4415
    %v4417 = vlaneseq
    %v4418 = vshrl.u32 %v4417, 7
    %v4419 = vsub.s32 %v4416, %v4418
    %v4420 = vrot.slane %v4413, %v4419
    %4422 = vst.msk [vmem:[#allocation2] sm:$0x1] %vm797, %v4420
    %4425 = vrot.lane.b32.xlu0 %v4145, 120
    %v4426 = vpop.permute.xlu0 %4425
    %4427 = vrot.lane.b32.xlu0 %v4146, 120
    %v4428 = vpop.permute.xlu0 %4427
    %v4431 = vadd.f32 %v4145, %v4426
    %v4432 = vadd.f32 %v4146, %v4428
    %v4433 = vmul.f32 %v4431, 0.5
    %v4434 = vmul.f32 %v4432, 0.5
    %v4435 = vmax.f32 %v4147, %v4149
    %v4436 = vmax.f32 %v4148, %v4150
    %v4437 = vadd.f32 %v4433, %v4435
    %v4438 = vadd.f32 %v4434, %v4436
    %v4439 = vpack.c.bf16 %v4437, %v4437
    %v4440 = vpack.c.bf16 %v4438, %v4438
    %v4444 = vunpack.c.l.s4 1966171168
    %v4445 = vunpack.c.0.s8 %v4444
    %v4446 = vlaneseq
    %v4447 = vshrl.u32 %v4446, 7
    %v4448 = vsub.s32 %v4445, %v4447
    %v4449 = vrot.slane %v4439, %v4448
    %v4450 = vcombine.high %v4449, %v4449
    %v4452 = vunpack.c.l.s4 1966171168
    %v4453 = vunpack.c.0.s8 %v4452
    %v4454 = vlaneseq
    %v4455 = vshrl.u32 %v4454, 7
    %v4456 = vsub.s32 %v4453, %v4455
    %v4457 = vrot.slane %v4449, %v4456
    %v4459 = vunpack.c.l.s4 1966171168
    %v4460 = vunpack.c.0.s8 %v4459
    %v4461 = vlaneseq
    %v4462 = vshrl.u32 %v4461, 7
    %v4463 = vsub.s32 %v4460, %v4462
    %v4464 = vrot.slane %v4450, %v4463
    %v4465 = vcombine.high %v4457, %v4457
    %v4466 = vcombine.high %v4464, %v4464
    %v4468 = vunpack.c.l.s4 1966171168
    %v4469 = vunpack.c.0.s8 %v4468
    %v4470 = vlaneseq
    %v4471 = vshrl.u32 %v4470, 7
    %v4472 = vsub.s32 %v4469, %v4471
    %v4473 = vrot.slane %v4440, %v4472
    %v4474 = vcombine.high %v4473, %v4473
    %v4476 = vunpack.c.l.s4 1966171168
    %v4477 = vunpack.c.0.s8 %v4476
    %v4478 = vlaneseq
    %v4479 = vshrl.u32 %v4478, 7
    %v4480 = vsub.s32 %v4477, %v4479
    %v4481 = vrot.slane %v4473, %v4480
    %v4483 = vunpack.c.l.s4 1966171168
    %v4484 = vunpack.c.0.s8 %v4483
    %v4485 = vlaneseq
    %v4486 = vshrl.u32 %v4485, 7
    %v4487 = vsub.s32 %v4484, %v4486
    %v4488 = vrot.slane %v4474, %v4487
    %v4489 = vcombine.high %v4481, %v4481
    %v4490 = vcombine.high %v4488, %v4488
    %v4491 = vcombine.low %v4457, %v4465
    %v4492 = vcombine.low %v4464, %v4466
    %v4494 = vunpack.c.l.s4 1935823168
    %v4495 = vunpack.c.0.s8 %v4494
    %v4496 = vlaneseq
    %v4497 = vshrl.u32 %v4496, 7
    %v4498 = vsub.s32 %v4495, %v4497
    %v4499 = vrot.slane %v4491, %v4498
    %v4501 = vunpack.c.l.s4 1935823168
    %v4502 = vunpack.c.0.s8 %v4501
    %v4503 = vlaneseq
    %v4504 = vshrl.u32 %v4503, 7
    %v4505 = vsub.s32 %v4502, %v4504
    %v4506 = vrot.slane %v4492, %v4505
    %v4507 = vcombine.low %v4499, %v4506
    %v4509 = vunpack.c.l.s4 1935823168
    %v4510 = vunpack.c.0.s8 %v4509
    %v4511 = vlaneseq
    %v4512 = vshrl.u32 %v4511, 7
    %v4513 = vsub.s32 %v4510, %v4512
    %v4514 = vrot.slane %v4507, %v4513
    %v4515 = vcombine.low %v4481, %v4489
    %v4516 = vcombine.low %v4488, %v4490
    %v4518 = vunpack.c.l.s4 1935823168
    %v4519 = vunpack.c.0.s8 %v4518
    %v4520 = vlaneseq
    %v4521 = vshrl.u32 %v4520, 7
    %v4522 = vsub.s32 %v4519, %v4521
    %v4523 = vrot.slane %v4515, %v4522
    %v4525 = vunpack.c.l.s4 1935823168
    %v4526 = vunpack.c.0.s8 %v4525
    %v4527 = vlaneseq
    %v4528 = vshrl.u32 %v4527, 7
    %v4529 = vsub.s32 %v4526, %v4528
    %v4530 = vrot.slane %v4516, %v4529
    %v4531 = vcombine.low %v4523, %v4530
    %v4533 = vunpack.c.l.s4 1935823168
    %v4534 = vunpack.c.0.s8 %v4533
    %v4535 = vlaneseq
    %v4536 = vshrl.u32 %v4535, 7
    %v4537 = vsub.s32 %v4534, %v4536
    %v4538 = vrot.slane %v4531, %v4537
    %v4539 = vunpack.c.l.b16 %v4514
    %v4540 = vunpack.c.l.b16 %v4538
    %4541 = vset.pattern.permute.xlu0 0
    %4542 = vperm.xlu0 %4541, %v4539
    %v4543 = vpop.permute.xlu0 %4542
    %4544 = vset.pattern.permute.xlu0 0
    %4545 = vperm.xlu0 %4544, %v4540
    %v4546 = vpop.permute.xlu0 %4545
    %v4547 = vlaneseq
    %v4548 = vshrl.u32 %v4547, 7
    %v4549 = vsub.s32 %v356, %v4548
    %v4550 = vrot.slane %v4543, %v4549
    %v4551 = vlaneseq
    %v4552 = vshrl.u32 %v4551, 7
    %v4553 = vsub.s32 %v356, %v4552
    %v4554 = vrot.slane %v4546, %v4553
    %v4555 = vsel %vm366, %v4554, %v4550
    %v4556 = vpack.c.b16 %v4555, %v4555
    %v4558 = vunpack.c.l.s4 1966171168
    %v4559 = vunpack.c.0.s8 %v4558
    %v4560 = vlaneseq
    %v4561 = vshrl.u32 %v4560, 7
    %v4562 = vsub.s32 %v4559, %v4561
    %v4563 = vrot.slane %v4556, %v4562
    %v4565 = vunpack.c.l.s4 1966171168
    %v4566 = vunpack.c.0.s8 %v4565
    %v4567 = vlaneseq
    %v4568 = vshrl.u32 %v4567, 7
    %v4569 = vsub.s32 %v4566, %v4568
    %v4570 = vrot.slane %v4563, %v4569
    %4572 = vst.msk [vmem:[#allocation2] sm:$0x1] %vm521, %v4570
    %v4573 = vld [vmem:[#allocation2] sm:$0x3]
    %v4574 = vld [vmem:[#allocation3] sm:$0xff]
    %v4575 = vld [vmem:[#allocation3 + $0x8] sm:$0xf]
    %v4576 = vld [vmem:[#allocation3 + $0xc] sm:$0xff]
    %v4577 = vld [vmem:[#allocation3 + $0x14] sm:$0xf]
    %v4578 = vld [vmem:[#allocation3 + $0x18] sm:$0xff]
    %v4579 = vld [vmem:[#allocation3 + $0x20] sm:$0xf]
    %v4580 = vld [vmem:[#allocation3 + $0x24] sm:$0xff]
    %v4581 = vld [vmem:[#allocation3 + $0x2c] sm:$0xf]
    %v4582 = vld [vmem:[#allocation3 + $0x30] sm:$0xff]
    %v4583 = vld [vmem:[#allocation3 + $0x38] sm:$0xf]
    %v4584 = vld [vmem:[#allocation3 + $0x3c] sm:$0xff]
    %v4585 = vld [vmem:[#allocation3 + $0x44] sm:$0xf]
    %v4586 = vld [vmem:[#allocation3 + $0x48] sm:$0xff]
    %v4587 = vld [vmem:[#allocation3 + $0x50] sm:$0xf]
    %v4588 = vld [vmem:[#allocation3 + $0x54] sm:$0xff]
    %v4589 = vld [vmem:[#allocation3 + $0x5c] sm:$0xf]
    %v4590 = vld [vmem:[#allocation3 + $0x60] sm:$0xff]
    %v4591 = vld [vmem:[#allocation3 + $0x68] sm:$0xf]
    %v4592 = vld [vmem:[#allocation3 + $0x6c] sm:$0xff]
    %v4593 = vld [vmem:[#allocation3 + $0x74] sm:$0xf]
    %v4594 = vld [vmem:[#allocation3 + $0x78] sm:$0xff]
    %v4595 = vld [vmem:[#allocation3 + $0x80] sm:$0xf]
    %v4596 = vld [vmem:[#allocation3 + $0x84] sm:$0xff]
    %v4597 = vld [vmem:[#allocation3 + $0x8c] sm:$0xf]
    %v4598 = vld [vmem:[#allocation3 + $0x90] sm:$0xff]
    %v4599 = vld [vmem:[#allocation3 + $0x98] sm:$0xf]
    %v4600 = vld [vmem:[#allocation3 + $0x9c] sm:$0xff]
    %v4601 = vld [vmem:[#allocation3 + $0xa4] sm:$0xf]
    %v4602 = vld [vmem:[#allocation3 + $0xa8] sm:$0xff]
    %v4603 = vld [vmem:[#allocation3 + $0xb0] sm:$0xf]
    %v4604 = vld [vmem:[#allocation3 + $0xb4] sm:$0xff]
    %v4605 = vld [vmem:[#allocation3 + $0xbc] sm:$0xf]
    %v4606 = vld [vmem:[#allocation3 + $0xc0] sm:$0xff]
    %v4607 = vld [vmem:[#allocation3 + $0xc8] sm:$0xf]
    %v4608 = vld [vmem:[#allocation3 + $0xcc] sm:$0xff]
    %v4609 = vld [vmem:[#allocation3 + $0xd4] sm:$0xf]
    %v4610 = vld [vmem:[#allocation3 + $0xd8] sm:$0xff]
    %v4611 = vld [vmem:[#allocation3 + $0xe0] sm:$0xf]
    %v4612 = vld [vmem:[#allocation3 + $0xe4] sm:$0xff]
    %v4613 = vld [vmem:[#allocation3 + $0xec] sm:$0xf]
    %v4614 = vld [vmem:[#allocation3 + $0xf0] sm:$0xff]
    %v4615 = vld [vmem:[#allocation3 + $0xf8] sm:$0xf]
    %v4616 = vld [vmem:[#allocation3 + $0xfc] sm:$0xff]
    %v4617 = vld [vmem:[#allocation3 + $0x104] sm:$0xf]
    %v4618 = vld [vmem:[#allocation3 + $0x108] sm:$0xff]
    %v4619 = vld [vmem:[#allocation3 + $0x110] sm:$0xf]
    %v4620 = vld [vmem:[#allocation3 + $0x114] sm:$0xff]
    %v4621 = vld [vmem:[#allocation3 + $0x11c] sm:$0xf]
    %v4622 = vld [vmem:[#allocation3 + $0x120] sm:$0xff]
    %v4623 = vld [vmem:[#allocation3 + $0x128] sm:$0xf]
    %v4624 = vld [vmem:[#allocation3 + $0x12c] sm:$0xff]
    %v4625 = vld [vmem:[#allocation3 + $0x134] sm:$0xf]
    %v4626 = vld [vmem:[#allocation3 + $0x138] sm:$0xff]
    %v4627 = vld [vmem:[#allocation3 + $0x140] sm:$0xf]
    %v4628 = vld [vmem:[#allocation3 + $0x144] sm:$0xff]
    %v4629 = vld [vmem:[#allocation3 + $0x14c] sm:$0xf]
    %v4630 = vld [vmem:[#allocation3 + $0x150] sm:$0xff]
    %v4631 = vld [vmem:[#allocation3 + $0x158] sm:$0xf]
    %v4632 = vld [vmem:[#allocation3 + $0x15c] sm:$0xff]
    %v4633 = vld [vmem:[#allocation3 + $0x164] sm:$0xf]
    %v4634 = vld [vmem:[#allocation3 + $0x168] sm:$0xff]
    %v4635 = vld [vmem:[#allocation3 + $0x170] sm:$0xf]
    %v4638 = vunpack.c.l.s4 1966171168
    %v4639 = vunpack.c.0.s8 %v4638
    %v4640 = vlaneseq
    %v4641 = vshrl.u32 %v4640, 7
    %v4642 = vsub.s32 %v4639, %v4641
    %v4643 = vrot.slane %v4573, %v4642
    %v4644 = vcombine.high %v4643, %v4643
    %v4646 = vunpack.c.l.s4 1966171168
    %v4647 = vunpack.c.0.s8 %v4646
    %v4648 = vlaneseq
    %v4649 = vshrl.u32 %v4648, 7
    %v4650 = vsub.s32 %v4647, %v4649
    %v4651 = vrot.slane %v4643, %v4650
    %v4653 = vunpack.c.l.s4 1966171168
    %v4654 = vunpack.c.0.s8 %v4653
    %v4655 = vlaneseq
    %v4656 = vshrl.u32 %v4655, 7
    %v4657 = vsub.s32 %v4654, %v4656
    %v4658 = vrot.slane %v4644, %v4657
    %v4722 = vunpack.c.l.b16 %v4574
    %v4723 = vunpack.c.h.b16 %v4574
    %v4724 = vunpack.c.l.b16 %v4575
    %v4725 = vunpack.c.l.b16 %v4576
    %v4726 = vunpack.c.h.b16 %v4576
    %v4727 = vunpack.c.l.b16 %v4577
    %v4728 = vunpack.c.l.b16 %v4578
    %v4729 = vunpack.c.h.b16 %v4578
    %v4730 = vunpack.c.l.b16 %v4579
    %v4731 = vunpack.c.l.b16 %v4580
    %v4732 = vunpack.c.h.b16 %v4580
    %v4733 = vunpack.c.l.b16 %v4581
    %v4734 = vunpack.c.l.b16 %v4582
    %v4735 = vunpack.c.h.b16 %v4582
    %v4736 = vunpack.c.l.b16 %v4583
    %v4737 = vunpack.c.l.b16 %v4584
    %v4738 = vunpack.c.h.b16 %v4584
    %v4739 = vunpack.c.l.b16 %v4585
    %v4740 = vunpack.c.l.b16 %v4586
    %v4741 = vunpack.c.h.b16 %v4586
    %v4742 = vunpack.c.l.b16 %v4587
    %v4743 = vunpack.c.l.b16 %v4588
    %v4744 = vunpack.c.h.b16 %v4588
    %v4745 = vunpack.c.l.b16 %v4589
    %v4746 = vunpack.c.l.b16 %v4590
    %v4747 = vunpack.c.h.b16 %v4590
    %v4748 = vunpack.c.l.b16 %v4591
    %v4749 = vunpack.c.l.b16 %v4592
    %v4750 = vunpack.c.h.b16 %v4592
    %v4751 = vunpack.c.l.b16 %v4593
    %v4752 = vunpack.c.l.b16 %v4594
    %v4753 = vunpack.c.h.b16 %v4594
    %v4754 = vunpack.c.l.b16 %v4595
    %v4755 = vunpack.c.l.b16 %v4596
    %v4756 = vunpack.c.h.b16 %v4596
    %v4757 = vunpack.c.l.b16 %v4597
    %v4758 = vunpack.c.l.b16 %v4598
    %v4759 = vunpack.c.h.b16 %v4598
    %v4760 = vunpack.c.l.b16 %v4599
    %v4761 = vunpack.c.l.b16 %v4600
    %v4762 = vunpack.c.h.b16 %v4600
    %v4763 = vunpack.c.l.b16 %v4601
    %v4764 = vunpack.c.l.b16 %v4602
    %v4765 = vunpack.c.h.b16 %v4602
    %v4766 = vunpack.c.l.b16 %v4603
    %v4767 = vunpack.c.l.b16 %v4604
    %v4768 = vunpack.c.h.b16 %v4604
    %v4769 = vunpack.c.l.b16 %v4605
    %v4770 = vunpack.c.l.b16 %v4606
    %v4771 = vunpack.c.h.b16 %v4606
    %v4772 = vunpack.c.l.b16 %v4607
    %v4773 = vunpack.c.l.b16 %v4608
    %v4774 = vunpack.c.h.b16 %v4608
    %v4775 = vunpack.c.l.b16 %v4609
    %v4776 = vunpack.c.l.b16 %v4610
    %v4777 = vunpack.c.h.b16 %v4610
    %v4778 = vunpack.c.l.b16 %v4611
    %v4779 = vunpack.c.l.b16 %v4612
    %v4780 = vunpack.c.h.b16 %v4612
    %v4781 = vunpack.c.l.b16 %v4613
    %v4782 = vunpack.c.l.b16 %v4614
    %v4783 = vunpack.c.h.b16 %v4614
    %v4784 = vunpack.c.l.b16 %v4615
    %v4785 = vunpack.c.l.b16 %v4616
    %v4786 = vunpack.c.h.b16 %v4616
    %v4787 = vunpack.c.l.b16 %v4617
    %v4788 = vunpack.c.l.b16 %v4618
    %v4789 = vunpack.c.h.b16 %v4618
    %v4790 = vunpack.c.l.b16 %v4619
    %v4791 = vunpack.c.l.b16 %v4620
    %v4792 = vunpack.c.h.b16 %v4620
    %v4793 = vunpack.c.l.b16 %v4621
    %v4794 = vunpack.c.l.b16 %v4622
    %v4795 = vunpack.c.h.b16 %v4622
    %v4796 = vunpack.c.l.b16 %v4623
    %v4797 = vunpack.c.l.b16 %v4624
    %v4798 = vunpack.c.h.b16 %v4624
    %v4799 = vunpack.c.l.b16 %v4625
    %v4800 = vunpack.c.l.b16 %v4626
    %v4801 = vunpack.c.h.b16 %v4626
    %v4802 = vunpack.c.l.b16 %v4627
    %v4803 = vunpack.c.l.b16 %v4628
    %v4804 = vunpack.c.h.b16 %v4628
    %v4805 = vunpack.c.l.b16 %v4629
    %v4806 = vunpack.c.l.b16 %v4630
    %v4807 = vunpack.c.h.b16 %v4630
    %v4808 = vunpack.c.l.b16 %v4631
    %v4809 = vunpack.c.l.b16 %v4632
    %v4810 = vunpack.c.h.b16 %v4632
    %v4811 = vunpack.c.l.b16 %v4633
    %v4812 = vunpack.c.l.b16 %v4634
    %v4813 = vunpack.c.h.b16 %v4634
    %v4814 = vunpack.c.l.b16 %v4635
    %v4815 = vpack.c.b16 %v4725, %v4722
    %v4816 = vpack.c.b16 %v4726, %v4723
    %v4817 = vpack.c.b16 %v4727, %v4724
    %v4818 = vpack.c.b16 %v4731, %v4728
    %v4819 = vpack.c.b16 %v4732, %v4729
    %v4820 = vpack.c.b16 %v4733, %v4730
    %v4821 = vpack.c.b16 %v4737, %v4734
    %v4822 = vpack.c.b16 %v4738, %v4735
    %v4823 = vpack.c.b16 %v4739, %v4736
    %v4824 = vpack.c.b16 %v4743, %v4740
    %v4825 = vpack.c.b16 %v4744, %v4741
    %v4826 = vpack.c.b16 %v4745, %v4742
    %v4827 = vpack.c.b16 %v4749, %v4746
    %v4828 = vpack.c.b16 %v4750, %v4747
    %v4829 = vpack.c.b16 %v4751, %v4748
    %v4830 = vpack.c.b16 %v4755, %v4752
    %v4831 = vpack.c.b16 %v4756, %v4753
    %v4832 = vpack.c.b16 %v4757, %v4754
    %v4833 = vpack.c.b16 %v4761, %v4758
    %v4834 = vpack.c.b16 %v4762, %v4759
    %v4835 = vpack.c.b16 %v4763, %v4760
    %v4836 = vpack.c.b16 %v4767, %v4764
    %v4837 = vpack.c.b16 %v4768, %v4765
    %v4838 = vpack.c.b16 %v4769, %v4766
    %v4839 = vpack.c.b16 %v4773, %v4770
    %v4840 = vpack.c.b16 %v4774, %v4771
    %v4841 = vpack.c.b16 %v4775, %v4772
    %v4842 = vpack.c.b16 %v4779, %v4776
    %v4843 = vpack.c.b16 %v4780, %v4777
    %v4844 = vpack.c.b16 %v4781, %v4778
    %v4845 = vpack.c.b16 %v4785, %v4782
    %v4846 = vpack.c.b16 %v4786, %v4783
    %v4847 = vpack.c.b16 %v4787, %v4784
    %v4848 = vpack.c.b16 %v4791, %v4788
    %v4849 = vpack.c.b16 %v4792, %v4789
    %v4850 = vpack.c.b16 %v4793, %v4790
    %v4851 = vpack.c.b16 %v4797, %v4794
    %v4852 = vpack.c.b16 %v4798, %v4795
    %v4853 = vpack.c.b16 %v4799, %v4796
    %v4854 = vpack.c.b16 %v4803, %v4800
    %v4855 = vpack.c.b16 %v4804, %v4801
    %v4856 = vpack.c.b16 %v4805, %v4802
    %v4857 = vpack.c.b16 %v4809, %v4806
    %v4858 = vpack.c.b16 %v4810, %v4807
    %v4859 = vpack.c.b16 %v4811, %v4808
    %v4860 = vpack.c.b16 %v4812, %v4812
    %v4861 = vpack.c.b16 %v4813, %v4813
    %v4862 = vpack.c.b16 %v4814, %v4814
    %vm4908 = vcmask 982016
    %v4910 = vsel %vm4908, %v4658, 0
    %vm4912 = vcmask 1043456
    %v4914 = vsel %vm4912, %v4860, 0
    %v4917 = vsel %vm4912, %v4861, 0
    %v4920 = vsel %vm4912, %v4862, 0
    %4922 = vmatprep.subr.bf16.mxu0 %v4816
    %4923 = vmatpush1.bf16.msra.mxu0 %v4815
    %4924 = vmatprep.subr.bf16.mxu0 %v4819
    %4925 = vmatpush1.bf16.msra.mxu0 %v4818
    %4926 = vmatprep.subr.bf16.mxu0 %v4822
    %4927 = vmatpush1.bf16.msra.mxu0 %v4821
    %4928 = vmatprep.subr.bf16.mxu0 %v4825
    %4929 = vmatpush1.bf16.msra.mxu0 %v4824
    %4930 = vmatprep.subr.bf16.mxu0 %v4828
    %4931 = vmatpush1.bf16.msra.mxu0 %v4827
    %4932 = vmatprep.subr.bf16.mxu0 %v4831
    %4933 = vmatpush1.bf16.msra.mxu0 %v4830
    %4934 = vmatprep.subr.bf16.mxu0 %v4834
    %4935 = vmatpush1.bf16.msra.mxu0 %v4833
    %4936 = vmatprep.subr.bf16.mxu0 %v4837
    %4937 = vmatpush1.bf16.msra.mxu0 %v4836
    %4938 = vmatprep.subr.bf16.mxu0 %v4840
    %4939 = vmatpush1.bf16.msra.mxu0 %v4839
    %4940 = vmatprep.subr.bf16.mxu0 %v4843
    %4941 = vmatpush1.bf16.msra.mxu0 %v4842
    %4942 = vmatprep.subr.bf16.mxu0 %v4846
    %4943 = vmatpush1.bf16.msra.mxu0 %v4845
    %4944 = vmatprep.subr.bf16.mxu0 %v4849
    %4945 = vmatpush1.bf16.msra.mxu0 %v4848
    %4946 = vmatprep.subr.bf16.mxu0 %v4852
    %4947 = vmatpush1.bf16.msra.mxu0 %v4851
    %4948 = vmatprep.subr.bf16.mxu0 %v4855
    %4949 = vmatpush1.bf16.msra.mxu0 %v4854
    %4950 = vmatprep.subr.bf16.mxu0 %v4858
    %4951 = vmatpush1.bf16.msra.mxu0 %v4857
    %4952 = vmatprep.subr.bf16.mxu0 %v4917
    %4953 = vmatpush1.bf16.msra.mxu0 %v4914
    %4954 = vmatprep.mubr.bf16.mxu0 %v4910
    %4955 = vmatmul.mubr.bf16.gmra.mrb[0].mxu0 %v4651
    %v4956 = vpop.f32.mrb[0].mxu0
    %v4957 = vadd.f32 0.0, %v4956
    %v4958 = vpop.f32.mrb[0].mxu0
    %v4959 = vadd.f32 0.0, %v4958
    %v4960 = vpop.f32.mrb[0].mxu0
    %v4961 = vpop.f32.mrb[0].mxu0
    %4962 = vdwg.mxu0
    %4963 = vmatprep.subr.bf16.mxu0 0
    %4964 = vmatpush1.bf16.msra.mxu0 %v4817
    %4965 = vmatprep.subr.bf16.mxu0 0
    %4966 = vmatpush1.bf16.msra.mxu0 %v4820
    %4967 = vmatprep.subr.bf16.mxu0 0
    %4968 = vmatpush1.bf16.msra.mxu0 %v4823
    %4969 = vmatprep.subr.bf16.mxu0 0
    %4970 = vmatpush1.bf16.msra.mxu0 %v4826
    %4971 = vmatprep.subr.bf16.mxu0 0
    %4972 = vmatpush1.bf16.msra.mxu0 %v4829
    %4973 = vmatprep.subr.bf16.mxu0 0
    %4974 = vmatpush1.bf16.msra.mxu0 %v4832
    %4975 = vmatprep.subr.bf16.mxu0 0
    %4976 = vmatpush1.bf16.msra.mxu0 %v4835
    %4977 = vmatprep.subr.bf16.mxu0 0
    %4978 = vmatpush1.bf16.msra.mxu0 %v4838
    %4979 = vmatprep.subr.bf16.mxu0 0
    %4980 = vmatpush1.bf16.msra.mxu0 %v4841
    %4981 = vmatprep.subr.bf16.mxu0 0
    %4982 = vmatpush1.bf16.msra.mxu0 %v4844
    %4983 = vmatprep.subr.bf16.mxu0 0
    %4984 = vmatpush1.bf16.msra.mxu0 %v4847
    %4985 = vmatprep.subr.bf16.mxu0 0
    %4986 = vmatpush1.bf16.msra.mxu0 %v4850
    %4987 = vmatprep.subr.bf16.mxu0 0
    %4988 = vmatpush1.bf16.msra.mxu0 %v4853
    %4989 = vmatprep.subr.bf16.mxu0 0
    %4990 = vmatpush1.bf16.msra.mxu0 %v4856
    %4991 = vmatprep.subr.bf16.mxu0 0
    %4992 = vmatpush1.bf16.msra.mxu0 %v4859
    %4993 = vmatprep.subr.bf16.mxu0 0
    %4994 = vmatpush1.bf16.msra.mxu0 %v4920
    %4995 = vmatprep.mubr.bf16.mxu0 %v4910
    %4996 = vmatmul.mubr.bf16.gmra.mrb[0].mxu0 %v4651
    %v4997 = vpop.f32.mrb[0].mxu0
    %v4998 = vadd.f32 0.0, %v4997
    %v4999 = vpop.f32.mrb[0].mxu0
    %v5000 = vpop.f32.mrb[0].mxu0
    %v5001 = vpop.f32.mrb[0].mxu0
    %5002 = vdwg.mxu0
    %v5006 = vcombine.low %v4957, %v4959
    %v5008 = vunpack.c.l.s4 1983009808
    %v5009 = vunpack.c.0.s8 %v5008
    %v5010 = vlaneseq
    %v5011 = vshrl.u32 %v5010, 7
    %v5012 = vsub.s32 %v5009, %v5011
    %v5013 = vrot.slane %v5006, %v5012
    %v5015 = vunpack.c.l.s4 1983009808
    %v5016 = vunpack.c.0.s8 %v5015
    %v5017 = vlaneseq
    %v5018 = vshrl.u32 %v5017, 7
    %v5019 = vsub.s32 %v5016, %v5018
    %v5020 = vrot.slane %v4998, %v5019
    %v5021 = vcombine.low %v5013, %v5020
    %5023 = vst [vmem:[#allocation6] sm:$0x3f] %v5021
    // Predicated region
    $region18: #{tpu_custom_call.1} parent=1 // pred_check
      _
    $region19: #{tpu_custom_call.1} parent=1 // pred_check_branch
      %5025 = sbr.rel (0) target = $region21
    $region20: #{tpu_custom_call.1} parent=1 // pred_region
      %s5027 = ssub.s32 96, 96
      %5028 = vsyncadd [#allocation5], %s5027
      %s5030 = sshll.u32 [#allocation6], 4
      %s5031 = int_to_ptr.vmem [resolvable:$true] %s5030
      %5033 = dma.vmem_to_hbm [thread:$0]  %s5031, 96, %s3, [#allocation5]
    $region21: #{tpu_custom_call.1} parent=1 // pred_fallthru
      _
    // Predicated region
    $region22: #{tpu_custom_call.1} parent=1 // pred_check
      _
    $region23: #{tpu_custom_call.1} parent=1 // pred_check_branch
      %5035 = sbr.rel (0) target = $region25
    $region24: #{tpu_custom_call.1} parent=1 // pred_region
      %5036 = dma.done [#allocation5], 96
    $region25: #{tpu_custom_call.1} parent=1 // pred_fallthru
      _
    %5037 = vsyncpa [#allocation4], 1
    %5038 = vsyncpa [#allocation5], 1

// kernel: tpu_custom_call.1
$region0: #{tpu_custom_call.1}
  #allocation0 [shape = 'u32[]', space=smem, size = 0x4, offset = 0x4, fixed_abs, tag = 'smem constant byte address 0x4 - core index']
  #allocation1 [shape = 'u32[144,128]{1,0:T(1,128)}', space=vmem, size = 0x12000, scoped, tag = 'internal scratch']
  #allocation2 [shape = 'bf16[2,248]{1,0:T(2,128)(2,1)}', space=vmem, size = 0x400, scoped, tag = 'scratch operand']
  %s0 = inlined_call_operand.vmem [shape: f32[2,8,256], index: 0, kind: input, shape index: {}]
  %s1 = inlined_call_operand.vmem [shape: f32[256,16], index: 1, kind: input, shape index: {}]
  %s2 = inlined_call_operand.hbm [shape: bf16[248,384], index: 2, kind: input, shape index: {}]
  %s3 = inlined_call_operand.hbm [shape: f32[2,384], index: 3, kind: output, shape index: {}]
  %s4 = sld [smem:[#allocation0]]
  $region26: #{tpu_custom_call.1} parent=0
    _
  %s6 = ssub.s32 1, %s4
  %s7 = scalar_select 0, %s6, %s4
  $region1: #{tpu_custom_call.1} parent=0
    #allocation3 [shape = 'u8[190464]{0}', space=vmem, size = 0x2e800, scoped, tag = 'input window, operand 2, single buffered']
    #allocation4 [shape = 's32[1]{0}', space=sflag, size = 0x4, scoped, tag = 'scoped memory for tpu_custom_call.1']
    #allocation5 [shape = 's32[1]{0}', space=sflag, size = 0x4, scoped, tag = 'scoped memory for tpu_custom_call.1']
    #allocation6 [shape = 'u8[3072]{0}', space=vmem, size = 0xc00, scoped, tag = 'output window, operand 0, single buffered']
    %8 = vsyncpa [#allocation4], 0
    %9 = vsyncpa [#allocation5], 0
    // Predicated region
    $region2: #{tpu_custom_call.1} parent=1 // pred_check
      _
    $region3: #{tpu_custom_call.1} parent=1 // pred_check_branch
      %11 = sbr.rel (0) target = $region5
    $region4: #{tpu_custom_call.1} parent=1 // pred_region
      _
    $region5: #{tpu_custom_call.1} parent=1 // pred_fallthru
      _
    // Predicated region
    $region6: #{tpu_custom_call.1} parent=1 // pred_check
      _
    $region7: #{tpu_custom_call.1} parent=1 // pred_check_branch
      %13 = sbr.rel (0) target = $region9
    $region8: #{tpu_custom_call.1} parent=1 // pred_region
      _
    $region9: #{tpu_custom_call.1} parent=1 // pred_fallthru
      _
    // Predicated region
    $region10: #{tpu_custom_call.1} parent=1 // pred_check
      _
    $region11: #{tpu_custom_call.1} parent=1 // pred_check_branch
      %15 = sbr.rel (0) target = $region13
    $region12: #{tpu_custom_call.1} parent=1 // pred_region
      %s17 = ssub.s32 5952, 5952
      %18 = vsyncadd [#allocation4], %s17
      %s19 = sshll.u32 [#allocation3], 4
      %s20 = int_to_ptr.vmem [resolvable:$true] %s19
      %25 = dma.hbm_to_vmem [thread:$0]  %s2, 5952, %s20, [#allocation4], 192, 192, 12
    $region13: #{tpu_custom_call.1} parent=1 // pred_fallthru
      _
    // Predicated region
    $region14: #{tpu_custom_call.1} parent=1 // pred_check
      _
    $region15: #{tpu_custom_call.1} parent=1 // pred_check_branch
      %27 = sbr.rel (0) target = $region17
    $region16: #{tpu_custom_call.1} parent=1 // pred_region
      %28 = dma.done [#allocation4], 5952
    $region17: #{tpu_custom_call.1} parent=1 // pred_fallthru
      _
    %v30 = vld [vmem:[%s0] sm:$0xff]
    %v31 = vld [vmem:[%s0 + $0x8] sm:$0xff]
    %v32 = vld [vmem:[%s0 + $0x10] sm:$0xff]
    %v33 = vld [vmem:[%s0 + $0x18] sm:$0xff]
    %vm34 = vcmask 130048
    %v35 = vsel %vm34, %v30, -inf
    %36 = vmax.xlane.f32.xlu0 %v35
    %v37 = vpop.xlane.xlu0 %36
    %v38 = vsel %vm34, %v32, -inf
    %39 = vmax.xlane.f32.xlu0 %v38
    %v40 = vpop.xlane.xlu0 %39
    %vm41 = vcmask 261248
    %v42 = vsel %vm41, %v30, -inf
    %43 = vmax.xlane.f32.xlu0 %v42
    %v44 = vpop.xlane.xlu0 %43
    %v45 = vsel %vm41, %v32, -inf
    %46 = vmax.xlane.f32.xlu0 %v45
    %v47 = vpop.xlane.xlu0 %46
    %vm48 = vcmask 392448
    %v49 = vsel %vm48, %v30, -inf
    %50 = vmax.xlane.f32.xlu0 %v49
    %v51 = vpop.xlane.xlu0 %50
    %v52 = vsel %vm48, %v32, -inf
    %53 = vmax.xlane.f32.xlu0 %v52
    %v54 = vpop.xlane.xlu0 %53
    %vm55 = vcmask 523648
    %v56 = vsel %vm55, %v30, -inf
    %57 = vmax.xlane.f32.xlu0 %v56
    %v58 = vpop.xlane.xlu0 %57
    %v59 = vsel %vm55, %v32, -inf
    %60 = vmax.xlane.f32.xlu0 %v59
    %v61 = vpop.xlane.xlu0 %60
    %vm62 = vcmask 654848
    %v63 = vsel %vm62, %v30, -inf
    %64 = vmax.xlane.f32.xlu0 %v63
    %v65 = vpop.xlane.xlu0 %64
    %v66 = vsel %vm62, %v32, -inf
    %67 = vmax.xlane.f32.xlu0 %v66
    %v68 = vpop.xlane.xlu0 %67
    %vm69 = vcmask 786048
    %v70 = vsel %vm69, %v30, -inf
    %71 = vmax.xlane.f32.xlu0 %v70
    %v72 = vpop.xlane.xlu0 %71
    %v73 = vsel %vm69, %v32, -inf
    %74 = vmax.xlane.f32.xlu0 %v73
    %v75 = vpop.xlane.xlu0 %74
    %vm76 = vcmask 917248
    %v77 = vsel %vm76, %v30, -inf
    %78 = vmax.xlane.f32.xlu0 %v77
    %v79 = vpop.xlane.xlu0 %78
    %v80 = vsel %vm76, %v32, -inf
    %81 = vmax.xlane.f32.xlu0 %v80
    %v82 = vpop.xlane.xlu0 %81
    %vm83 = vcmask 1048448
    %v84 = vsel %vm83, %v30, -inf
    %85 = vmax.xlane.f32.xlu0 %v84
    %v86 = vpop.xlane.xlu0 %85
    %v87 = vsel %vm83, %v32, -inf
    %88 = vmax.xlane.f32.xlu0 %v87
    %v89 = vpop.xlane.xlu0 %88
    %v90 = vsel %vm34, %v31, -inf
    %91 = vmax.xlane.f32.xlu0 %v90
    %v92 = vpop.xlane.xlu0 %91
    %v93 = vsel %vm34, %v33, -inf
    %94 = vmax.xlane.f32.xlu0 %v93
    %v95 = vpop.xlane.xlu0 %94
    %v96 = vsel %vm41, %v31, -inf
    %97 = vmax.xlane.f32.xlu0 %v96
    %v98 = vpop.xlane.xlu0 %97
    %v99 = vsel %vm41, %v33, -inf
    %100 = vmax.xlane.f32.xlu0 %v99
    %v101 = vpop.xlane.xlu0 %100
    %v102 = vsel %vm48, %v31, -inf
    %103 = vmax.xlane.f32.xlu0 %v102
    %v104 = vpop.xlane.xlu0 %103
    %v105 = vsel %vm48, %v33, -inf
    %106 = vmax.xlane.f32.xlu0 %v105
    %v107 = vpop.xlane.xlu0 %106
    %v108 = vsel %vm55, %v31, -inf
    %109 = vmax.xlane.f32.xlu0 %v108
    %v110 = vpop.xlane.xlu0 %109
    %v111 = vsel %vm55, %v33, -inf
    %112 = vmax.xlane.f32.xlu0 %v111
    %v113 = vpop.xlane.xlu0 %112
    %v114 = vsel %vm62, %v31, -inf
    %115 = vmax.xlane.f32.xlu0 %v114
    %v116 = vpop.xlane.xlu0 %115
    %v117 = vsel %vm62, %v33, -inf
    %118 = vmax.xlane.f32.xlu0 %v117
    %v119 = vpop.xlane.xlu0 %118
    %v120 = vsel %vm69, %v31, -inf
    %121 = vmax.xlane.f32.xlu0 %v120
    %v122 = vpop.xlane.xlu0 %121
    %v123 = vsel %vm69, %v33, -inf
    %124 = vmax.xlane.f32.xlu0 %v123
    %v125 = vpop.xlane.xlu0 %124
    %v126 = vsel %vm76, %v31, -inf
    %127 = vmax.xlane.f32.xlu0 %v126
    %v128 = vpop.xlane.xlu0 %127
    %v129 = vsel %vm76, %v33, -inf
    %130 = vmax.xlane.f32.xlu0 %v129
    %v131 = vpop.xlane.xlu0 %130
    %v132 = vsel %vm83, %v31, -inf
    %133 = vmax.xlane.f32.xlu0 %v132
    %v134 = vpop.xlane.xlu0 %133
    %v135 = vsel %vm83, %v33, -inf
    %136 = vmax.xlane.f32.xlu0 %v135
    %v137 = vpop.xlane.xlu0 %136
    %v138 = vld [vmem:[%s1] sm:$0xff]
    %v139 = vld [vmem:[%s1 + $0x8] sm:$0xff]
    %v140 = vld [vmem:[%s1 + $0x10] sm:$0xff]
    %v141 = vld [vmem:[%s1 + $0x18] sm:$0xff]
    %v142 = vld [vmem:[%s1 + $0x20] sm:$0xff]
    %v143 = vld [vmem:[%s1 + $0x28] sm:$0xff]
    %v144 = vld [vmem:[%s1 + $0x30] sm:$0xff]
    %v145 = vld [vmem:[%s1 + $0x38] sm:$0xff]
    %v146 = vld [vmem:[%s1 + $0x40] sm:$0xff]
    %v147 = vld [vmem:[%s1 + $0x48] sm:$0xff]
    %v148 = vld [vmem:[%s1 + $0x50] sm:$0xff]
    %v149 = vld [vmem:[%s1 + $0x58] sm:$0xff]
    %v150 = vld [vmem:[%s1 + $0x60] sm:$0xff]
    %v151 = vld [vmem:[%s1 + $0x68] sm:$0xff]
    %v152 = vld [vmem:[%s1 + $0x70] sm:$0xff]
    %v153 = vld [vmem:[%s1 + $0x78] sm:$0xff]
    %v154 = vld [vmem:[%s1 + $0x80] sm:$0xff]
    %v155 = vld [vmem:[%s1 + $0x88] sm:$0xff]
    %v156 = vld [vmem:[%s1 + $0x90] sm:$0xff]
    %v157 = vld [vmem:[%s1 + $0x98] sm:$0xff]
    %v158 = vld [vmem:[%s1 + $0xa0] sm:$0xff]
    %v159 = vld [vmem:[%s1 + $0xa8] sm:$0xff]
    %v160 = vld [vmem:[%s1 + $0xb0] sm:$0xff]
    %v161 = vld [vmem:[%s1 + $0xb8] sm:$0xff]
    %v162 = vld [vmem:[%s1 + $0xc0] sm:$0xff]
    %v163 = vld [vmem:[%s1 + $0xc8] sm:$0xff]
    %v164 = vld [vmem:[%s1 + $0xd0] sm:$0xff]
    %v165 = vld [vmem:[%s1 + $0xd8] sm:$0xff]
    %v166 = vld [vmem:[%s1 + $0xe0] sm:$0xff]
    %v167 = vld [vmem:[%s1 + $0xe8] sm:$0xff]
    %v168 = vld [vmem:[%s1 + $0xf0] sm:$0xff]
    %v169 = vld [vmem:[%s1 + $0xf8] sm:$0xff]
    %170 = vmatprep.subr.mxu0 0.0
    %171 = vmatpush1.msra.mxu0 %v138
    %172 = vmatprep.subr.mxu0 0.0
    %173 = vmatpush1.msra.mxu0 %v139
    %174 = vmatprep.subr.mxu0 0.0
    %175 = vmatpush1.msra.mxu0 %v140
    %176 = vmatprep.subr.mxu0 0.0
    %177 = vmatpush1.msra.mxu0 %v141
    %178 = vmatprep.subr.mxu0 0.0
    %179 = vmatpush1.msra.mxu0 %v142
    %180 = vmatprep.subr.mxu0 0.0
    %181 = vmatpush1.msra.mxu0 %v143
    %182 = vmatprep.subr.mxu0 0.0
    %183 = vmatpush1.msra.mxu0 %v144
    %184 = vmatprep.subr.mxu0 0.0
    %185 = vmatpush1.msra.mxu0 %v145
    %186 = vmatprep.subr.mxu0 0.0
    %187 = vmatpush1.msra.mxu0 %v146
    %188 = vmatprep.subr.mxu0 0.0
    %189 = vmatpush1.msra.mxu0 %v147
    %190 = vmatprep.subr.mxu0 0.0
    %191 = vmatpush1.msra.mxu0 %v148
    %192 = vmatprep.subr.mxu0 0.0
    %193 = vmatpush1.msra.mxu0 %v149
    %194 = vmatprep.subr.mxu0 0.0
    %195 = vmatpush1.msra.mxu0 %v150
    %196 = vmatprep.subr.mxu0 0.0
    %197 = vmatpush1.msra.mxu0 %v151
    %198 = vmatprep.subr.mxu0 0.0
    %199 = vmatpush1.msra.mxu0 %v152
    %200 = vmatprep.subr.mxu0 0.0
    %201 = vmatpush1.msra.mxu0 %v153
    %202 = vmatprep.subr.mxu0 0.0
    %203 = vmatpush1.msra.mxu0 %v154
    %204 = vmatprep.subr.mxu0 0.0
    %205 = vmatpush1.msra.mxu0 %v155
    %206 = vmatprep.subr.mxu0 0.0
    %207 = vmatpush1.msra.mxu0 %v156
    %208 = vmatprep.subr.mxu0 0.0
    %209 = vmatpush1.msra.mxu0 %v157
    %210 = vmatprep.subr.mxu0 0.0
    %211 = vmatpush1.msra.mxu0 %v158
    %212 = vmatprep.subr.mxu0 0.0
    %213 = vmatpush1.msra.mxu0 %v159
    %214 = vmatprep.subr.mxu0 0.0
    %215 = vmatpush1.msra.mxu0 %v160
    %216 = vmatprep.subr.mxu0 0.0
    %217 = vmatpush1.msra.mxu0 %v161
    %218 = vmatprep.subr.mxu0 0.0
    %219 = vmatpush1.msra.mxu0 %v162
    %220 = vmatprep.subr.mxu0 0.0
    %221 = vmatpush1.msra.mxu0 %v163
    %222 = vmatprep.subr.mxu0 0.0
    %223 = vmatpush1.msra.mxu0 %v164
    %224 = vmatprep.subr.mxu0 0.0
    %225 = vmatpush1.msra.mxu0 %v165
    %226 = vmatprep.subr.mxu0 0.0
    %227 = vmatpush1.msra.mxu0 %v166
    %228 = vmatprep.subr.mxu0 0.0
    %229 = vmatpush1.msra.mxu0 %v167
    %230 = vmatprep.subr.mxu0 0.0
    %231 = vmatpush1.msra.mxu0 %v168
    %232 = vmatprep.subr.mxu0 0.0
    %233 = vmatpush1.msra.mxu0 %v169
    %234 = vmatprep.mubr.f32.mxu0 %v31
    %235 = vmatmul.mubr.f32.gmra.mrb[0].mxu0 %v30
    %v236 = vpop.f32.mrb[0].mxu0
    %v237 = vadd.f32 0.0, %v236
    %v238 = vpop.f32.mrb[0].mxu0
    %239 = vmatprep.mubr.f32.mxu0 %v33
    %240 = vmatmul.mubr.f32.gmra.mrb[0].mxu0 %v32
    %v241 = vpop.f32.mrb[0].mxu0
    %v242 = vadd.f32 0.0, %v241
    %v243 = vpop.f32.mrb[0].mxu0
    %244 = vdwg.mxu0
    %v245 = vadd.f32 %v237, %v37
    %v246 = vadd.f32 %v242, %v40
    %v247 = vpack.c.bf16 %v245, %v245
    %v248 = vpack.c.bf16 %v246, %v246
    %v252 = vunpack.c.l.s4 1966171168
    %v253 = vunpack.c.0.s8 %v252
    %v254 = vlaneseq
    %v255 = vshrl.u32 %v254, 7
    %v256 = vsub.s32 %v253, %v255
    %v257 = vrot.slane %v247, %v256
    %v258 = vcombine.high %v257, %v257
    %v260 = vunpack.c.l.s4 1966171168
    %v261 = vunpack.c.0.s8 %v260
    %v262 = vlaneseq
    %v263 = vshrl.u32 %v262, 7
    %v264 = vsub.s32 %v261, %v263
    %v265 = vrot.slane %v257, %v264
    %v267 = vunpack.c.l.s4 1966171168
    %v268 = vunpack.c.0.s8 %v267
    %v269 = vlaneseq
    %v270 = vshrl.u32 %v269, 7
    %v271 = vsub.s32 %v268, %v270
    %v272 = vrot.slane %v258, %v271
    %v273 = vcombine.high %v265, %v265
    %v274 = vcombine.high %v272, %v272
    %v276 = vunpack.c.l.s4 1966171168
    %v277 = vunpack.c.0.s8 %v276
    %v278 = vlaneseq
    %v279 = vshrl.u32 %v278, 7
    %v280 = vsub.s32 %v277, %v279
    %v281 = vrot.slane %v248, %v280
    %v282 = vcombine.high %v281, %v281
    %v284 = vunpack.c.l.s4 1966171168
    %v285 = vunpack.c.0.s8 %v284
    %v286 = vlaneseq
    %v287 = vshrl.u32 %v286, 7
    %v288 = vsub.s32 %v285, %v287
    %v289 = vrot.slane %v281, %v288
    %v291 = vunpack.c.l.s4 1966171168
    %v292 = vunpack.c.0.s8 %v291
    %v293 = vlaneseq
    %v294 = vshrl.u32 %v293, 7
    %v295 = vsub.s32 %v292, %v294
    %v296 = vrot.slane %v282, %v295
    %v297 = vcombine.high %v289, %v289
    %v298 = vcombine.high %v296, %v296
    %v299 = vcombine.low %v265, %v273
    %v300 = vcombine.low %v272, %v274
    %v302 = vunpack.c.l.s4 1935823168
    %v303 = vunpack.c.0.s8 %v302
    %v304 = vlaneseq
    %v305 = vshrl.u32 %v304, 7
    %v306 = vsub.s32 %v303, %v305
    %v307 = vrot.slane %v299, %v306
    %v309 = vunpack.c.l.s4 1935823168
    %v310 = vunpack.c.0.s8 %v309
    %v311 = vlaneseq
    %v312 = vshrl.u32 %v311, 7
    %v313 = vsub.s32 %v310, %v312
    %v314 = vrot.slane %v300, %v313
    %v315 = vcombine.low %v307, %v314
    %v317 = vunpack.c.l.s4 1935823168
    %v318 = vunpack.c.0.s8 %v317
    %v319 = vlaneseq
    %v320 = vshrl.u32 %v319, 7
    %v321 = vsub.s32 %v318, %v320
    %v322 = vrot.slane %v315, %v321
    %v323 = vcombine.low %v289, %v297
    %v324 = vcombine.low %v296, %v298
    %v326 = vunpack.c.l.s4 1935823168
    %v327 = vunpack.c.0.s8 %v326
    %v328 = vlaneseq
    %v329 = vshrl.u32 %v328, 7
    %v330 = vsub.s32 %v327, %v329
    %v331 = vrot.slane %v323, %v330
    %v333 = vunpack.c.l.s4 1935823168
    %v334 = vunpack.c.0.s8 %v333
    %v335 = vlaneseq
    %v336 = vshrl.u32 %v335, 7
    %v337 = vsub.s32 %v334, %v336
    %v338 = vrot.slane %v324, %v337
    %v339 = vcombine.low %v331, %v338
    %v341 = vunpack.c.l.s4 1935823168
    %v342 = vunpack.c.0.s8 %v341
    %v343 = vlaneseq
    %v344 = vshrl.u32 %v343, 7
    %v345 = vsub.s32 %v342, %v344
    %v346 = vrot.slane %v339, %v345
    %v347 = vunpack.c.l.b16 %v322
    %v348 = vunpack.c.l.b16 %v346
    %349 = vset.pattern.permute.xlu0 0
    %350 = vperm.xlu0 %349, %v347
    %v351 = vpop.permute.xlu0 %350
    %352 = vset.pattern.permute.xlu0 0
    %353 = vperm.xlu0 %352, %v348
    %v354 = vpop.permute.xlu0 %353
    %v355 = vlaneseq
    %v356 = vand.u32 %v355, 127
    %v357 = vadd.s32 %v356, 4294967176
    %v358 = vlaneseq
    %v359 = vshrl.u32 %v358, 7
    %v360 = vsub.s32 %v357, %v359
    %v361 = vrot.slane %v351, %v360
    %v362 = vlaneseq
    %v363 = vshrl.u32 %v362, 7
    %v364 = vsub.s32 %v357, %v363
    %v365 = vrot.slane %v354, %v364
    %vm366 = vcmask 1041409
    %v367 = vsel %vm366, %v365, %v361
    %v368 = vpack.c.b16 %v367, %v367
    %v370 = vunpack.c.l.s4 1966171168
    %v371 = vunpack.c.0.s8 %v370
    %v372 = vlaneseq
    %v373 = vshrl.u32 %v372, 7
    %v374 = vsub.s32 %v371, %v373
    %v375 = vrot.slane %v368, %v374
    %v377 = vunpack.c.l.s4 1966171168
    %v378 = vunpack.c.0.s8 %v377
    %v379 = vlaneseq
    %v380 = vshrl.u32 %v379, 7
    %v381 = vsub.s32 %v378, %v380
    %v382 = vrot.slane %v375, %v381
    %vm384 = vcmask 1041344
    %385 = vst.msk [vmem:[#allocation2] sm:$0x1] %vm384, %v382
    %v386 = vadd.f32 %v237, %v44
    %v387 = vadd.f32 %v242, %v47
    %v388 = vpack.c.bf16 %v386, %v386
    %v389 = vpack.c.bf16 %v387, %v387
    %v393 = vunpack.c.l.s4 1966171168
    %v394 = vunpack.c.0.s8 %v393
    %v395 = vlaneseq
    %v396 = vshrl.u32 %v395, 7
    %v397 = vsub.s32 %v394, %v396
    %v398 = vrot.slane %v388, %v397
    %v399 = vcombine.high %v398, %v398
    %v401 = vunpack.c.l.s4 1966171168
    %v402 = vunpack.c.0.s8 %v401
    %v403 = vlaneseq
    %v404 = vshrl.u32 %v403, 7
    %v405 = vsub.s32 %v402, %v404
    %v406 = vrot.slane %v398, %v405
    %v408 = vunpack.c.l.s4 1966171168
    %v409 = vunpack.c.0.s8 %v408
    %v410 = vlaneseq
    %v411 = vshrl.u32 %v410, 7
    %v412 = vsub.s32 %v409, %v411
    %v413 = vrot.slane %v399, %v412
    %v414 = vcombine.high %v406, %v406
    %v415 = vcombine.high %v413, %v413
    %v417 = vunpack.c.l.s4 1966171168
    %v418 = vunpack.c.0.s8 %v417
    %v419 = vlaneseq
    %v420 = vshrl.u32 %v419, 7
    %v421 = vsub.s32 %v418, %v420
    %v422 = vrot.slane %v389, %v421
    %v423 = vcombine.high %v422, %v422
    %v425 = vunpack.c.l.s4 1966171168
    %v426 = vunpack.c.0.s8 %v425
    %v427 = vlaneseq
    %v428 = vshrl.u32 %v427, 7
    %v429 = vsub.s32 %v426, %v428
    %v430 = vrot.slane %v422, %v429
    %v432 = vunpack.c.l.s4 1966171168
    %v433 = vunpack.c.0.s8 %v432
    %v434 = vlaneseq
    %v435 = vshrl.u32 %v434, 7
    %v436 = vsub.s32 %v433, %v435
    %v437 = vrot.slane %v423, %v436
    %v438 = vcombine.high %v430, %v430
    %v439 = vcombine.high %v437, %v437
    %v440 = vcombine.low %v406, %v414
    %v441 = vcombine.low %v413, %v415
    %v443 = vunpack.c.l.s4 1935823168
    %v444 = vunpack.c.0.s8 %v443
    %v445 = vlaneseq
    %v446 = vshrl.u32 %v445, 7
    %v447 = vsub.s32 %v444, %v446
    %v448 = vrot.slane %v440, %v447
    %v450 = vunpack.c.l.s4 1935823168
    %v451 = vunpack.c.0.s8 %v450
    %v452 = vlaneseq
    %v453 = vshrl.u32 %v452, 7
    %v454 = vsub.s32 %v451, %v453
    %v455 = vrot.slane %v441, %v454
    %v456 = vcombine.low %v448, %v455
    %v458 = vunpack.c.l.s4 1935823168
    %v459 = vunpack.c.0.s8 %v458
    %v460 = vlaneseq
    %v461 = vshrl.u32 %v460, 7
    %v462 = vsub.s32 %v459, %v461
    %v463 = vrot.slane %v456, %v462
    %v464 = vcombine.low %v430, %v438
    %v465 = vcombine.low %v437, %v439
    %v467 = vunpack.c.l.s4 1935823168
    %v468 = vunpack.c.0.s8 %v467
    %v469 = vlaneseq
    %v470 = vshrl.u32 %v469, 7
    %v471 = vsub.s32 %v468, %v470
    %v472 = vrot.slane %v464, %v471
    %v474 = vunpack.c.l.s4 1935823168
    %v475 = vunpack.c.0.s8 %v474
    %v476 = vlaneseq
    %v477 = vshrl.u32 %v476, 7
    %v478 = vsub.s32 %v475, %v477
    %v479 = vrot.slane %v465, %v478
    %v480 = vcombine.low %v472, %v479
    %v482 = vunpack.c.l.s4 1935823168
    %v483 = vunpack.c.0.s8 %v482
    %v484 = vlaneseq
    %v485 = vshrl.u32 %v484, 7
    %v486 = vsub.s32 %v483, %v485
    %v487 = vrot.slane %v480, %v486
    %v488 = vunpack.c.l.b16 %v463
    %v489 = vunpack.c.l.b16 %v487
    %490 = vset.pattern.permute.xlu0 1
    %491 = vperm.xlu0 %490, %v488
    %v492 = vpop.permute.xlu0 %491
    %493 = vset.pattern.permute.xlu0 1
    %494 = vperm.xlu0 %493, %v489
    %v495 = vpop.permute.xlu0 %494
    %v496 = vlaneseq
    %v497 = vshrl.u32 %v496, 7
    %v498 = vsub.s32 %v356, %v497
    %v499 = vrot.slane %v492, %v498
    %v500 = vlaneseq
    %v501 = vshrl.u32 %v500, 7
    %v502 = vsub.s32 %v356, %v501
    %v503 = vrot.slane %v495, %v502
    %v504 = vsel %vm366, %v503, %v499
    %v505 = vpack.c.b16 %v504, %v504
    %v507 = vunpack.c.l.s4 1966171168
    %v508 = vunpack.c.0.s8 %v507
    %v509 = vlaneseq
    %v510 = vshrl.u32 %v509, 7
    %v511 = vsub.s32 %v508, %v510
    %v512 = vrot.slane %v505, %v511
    %v514 = vunpack.c.l.s4 1966171168
    %v515 = vunpack.c.0.s8 %v514
    %v516 = vlaneseq
    %v517 = vshrl.u32 %v516, 7
    %v518 = vsub.s32 %v515, %v517
    %v519 = vrot.slane %v512, %v518
    %vm521 = vcmask 57344
    %522 = vst.msk [vmem:[#allocation2 + $0x1] sm:$0x1] %vm521, %v519
    %v523 = vadd.f32 %v237, %v51
    %v524 = vadd.f32 %v242, %v54
    %v525 = vpack.c.bf16 %v523, %v523
    %v526 = vpack.c.bf16 %v524, %v524
    %v530 = vunpack.c.l.s4 1966171168
    %v531 = vunpack.c.0.s8 %v530
    %v532 = vlaneseq
    %v533 = vshrl.u32 %v532, 7
    %v534 = vsub.s32 %v531, %v533
    %v535 = vrot.slane %v525, %v534
    %v536 = vcombine.high %v535, %v535
    %v538 = vunpack.c.l.s4 1966171168
    %v539 = vunpack.c.0.s8 %v538
    %v540 = vlaneseq
    %v541 = vshrl.u32 %v540, 7
    %v542 = vsub.s32 %v539, %v541
    %v543 = vrot.slane %v535, %v542
    %v545 = vunpack.c.l.s4 1966171168
    %v546 = vunpack.c.0.s8 %v545
    %v547 = vlaneseq
    %v548 = vshrl.u32 %v547, 7
    %v549 = vsub.s32 %v546, %v548
    %v550 = vrot.slane %v536, %v549
    %v551 = vcombine.high %v543, %v543
    %v552 = vcombine.high %v550, %v550
    %v554 = vunpack.c.l.s4 1966171168
    %v555 = vunpack.c.0.s8 %v554
    %v556 = vlaneseq
    %v557 = vshrl.u32 %v556, 7
    %v558 = vsub.s32 %v555, %v557
    %v559 = vrot.slane %v526, %v558
    %v560 = vcombine.high %v559, %v559
    %v562 = vunpack.c.l.s4 1966171168
    %v563 = vunpack.c.0.s8 %v562
    %v564 = vlaneseq
    %v565 = vshrl.u32 %v564, 7
    %v566 = vsub.s32 %v563, %v565
    %v567 = vrot.slane %v559, %v566
    %v569 = vunpack.c.l.s4 1966171168
    %v570 = vunpack.c.0.s8 %v569
    %v571 = vlaneseq
    %v572 = vshrl.u32 %v571, 7
    %v573 = vsub.s32 %v570, %v572
    %v574 = vrot.slane %v560, %v573
    %v575 = vcombine.high %v567, %v567
    %v576 = vcombine.high %v574, %v574
    %v577 = vcombine.low %v543, %v551
    %v578 = vcombine.low %v550, %v552
    %v580 = vunpack.c.l.s4 1935823168
    %v581 = vunpack.c.0.s8 %v580
    %v582 = vlaneseq
    %v583 = vshrl.u32 %v582, 7
    %v584 = vsub.s32 %v581, %v583
    %v585 = vrot.slane %v577, %v584
    %v587 = vunpack.c.l.s4 1935823168
    %v588 = vunpack.c.0.s8 %v587
    %v589 = vlaneseq
    %v590 = vshrl.u32 %v589, 7
    %v591 = vsub.s32 %v588, %v590
    %v592 = vrot.slane %v578, %v591
    %v593 = vcombine.low %v585, %v592
    %v595 = vunpack.c.l.s4 1935823168
    %v596 = vunpack.c.0.s8 %v595
    %v597 = vlaneseq
    %v598 = vshrl.u32 %v597, 7
    %v599 = vsub.s32 %v596, %v598
    %v600 = vrot.slane %v593, %v599
    %v601 = vcombine.low %v567, %v575
    %v602 = vcombine.low %v574, %v576
    %v604 = vunpack.c.l.s4 1935823168
    %v605 = vunpack.c.0.s8 %v604
    %v606 = vlaneseq
    %v607 = vshrl.u32 %v606, 7
    %v608 = vsub.s32 %v605, %v607
    %v609 = vrot.slane %v601, %v608
    %v611 = vunpack.c.l.s4 1935823168
    %v612 = vunpack.c.0.s8 %v611
    %v613 = vlaneseq
    %v614 = vshrl.u32 %v613, 7
    %v615 = vsub.s32 %v612, %v614
    %v616 = vrot.slane %v602, %v615
    %v617 = vcombine.low %v609, %v616
    %v619 = vunpack.c.l.s4 1935823168
    %v620 = vunpack.c.0.s8 %v619
    %v621 = vlaneseq
    %v622 = vshrl.u32 %v621, 7
    %v623 = vsub.s32 %v620, %v622
    %v624 = vrot.slane %v617, %v623
    %v625 = vunpack.c.l.b16 %v600
    %v626 = vunpack.c.l.b16 %v624
    %627 = vset.pattern.permute.xlu0 2
    %628 = vperm.xlu0 %627, %v625
    %v629 = vpop.permute.xlu0 %628
    %630 = vset.pattern.permute.xlu0 2
    %631 = vperm.xlu0 %630, %v626
    %v632 = vpop.permute.xlu0 %631
    %v633 = vadd.s32 %v356, 4294967288
    %v634 = vlaneseq
    %v635 = vshrl.u32 %v634, 7
    %v636 = vsub.s32 %v633, %v635
    %v637 = vrot.slane %v629, %v636
    %v638 = vlaneseq
    %v639 = vshrl.u32 %v638, 7
    %v640 = vsub.s32 %v633, %v639
    %v641 = vrot.slane %v632, %v640
    %v642 = vsel %vm366, %v641, %v637
    %v643 = vpack.c.b16 %v642, %v642
    %v645 = vunpack.c.l.s4 1966171168
    %v646 = vunpack.c.0.s8 %v645
    %v647 = vlaneseq
    %v648 = vshrl.u32 %v647, 7
    %v649 = vsub.s32 %v646, %v648
    %v650 = vrot.slane %v643, %v649
    %v652 = vunpack.c.l.s4 1966171168
    %v653 = vunpack.c.0.s8 %v652
    %v654 = vlaneseq
    %v655 = vshrl.u32 %v654, 7
    %v656 = vsub.s32 %v653, %v655
    %v657 = vrot.slane %v650, %v656
    %vm659 = vcmask 122944
    %660 = vst.msk [vmem:[#allocation2 + $0x1] sm:$0x1] %vm659, %v657
    %v661 = vadd.f32 %v237, %v58
    %v662 = vadd.f32 %v242, %v61
    %v663 = vpack.c.bf16 %v661, %v661
    %v664 = vpack.c.bf16 %v662, %v662
    %v668 = vunpack.c.l.s4 1966171168
    %v669 = vunpack.c.0.s8 %v668
    %v670 = vlaneseq
    %v671 = vshrl.u32 %v670, 7
    %v672 = vsub.s32 %v669, %v671
    %v673 = vrot.slane %v663, %v672
    %v674 = vcombine.high %v673, %v673
    %v676 = vunpack.c.l.s4 1966171168
    %v677 = vunpack.c.0.s8 %v676
    %v678 = vlaneseq
    %v679 = vshrl.u32 %v678, 7
    %v680 = vsub.s32 %v677, %v679
    %v681 = vrot.slane %v673, %v680
    %v683 = vunpack.c.l.s4 1966171168
    %v684 = vunpack.c.0.s8 %v683
    %v685 = vlaneseq
    %v686 = vshrl.u32 %v685, 7
    %v687 = vsub.s32 %v684, %v686
    %v688 = vrot.slane %v674, %v687
    %v689 = vcombine.high %v681, %v681
    %v690 = vcombine.high %v688, %v688
    %v692 = vunpack.c.l.s4 1966171168
    %v693 = vunpack.c.0.s8 %v692
    %v694 = vlaneseq
    %v695 = vshrl.u32 %v694, 7
    %v696 = vsub.s32 %v693, %v695
    %v697 = vrot.slane %v664, %v696
    %v698 = vcombine.high %v697, %v697
    %v700 = vunpack.c.l.s4 1966171168
    %v701 = vunpack.c.0.s8 %v700
    %v702 = vlaneseq
    %v703 = vshrl.u32 %v702, 7
    %v704 = vsub.s32 %v701, %v703
    %v705 = vrot.slane %v697, %v704
    %v707 = vunpack.c.l.s4 1966171168
    %v708 = vunpack.c.0.s8 %v707
    %v709 = vlaneseq
    %v710 = vshrl.u32 %v709, 7
    %v711 = vsub.s32 %v708, %v710
    %v712 = vrot.slane %v698, %v711
    %v713 = vcombine.high %v705, %v705
    %v714 = vcombine.high %v712, %v712
    %v715 = vcombine.low %v681, %v689
    %v716 = vcombine.low %v688, %v690
    %v718 = vunpack.c.l.s4 1935823168
    %v719 = vunpack.c.0.s8 %v718
    %v720 = vlaneseq
    %v721 = vshrl.u32 %v720, 7
    %v722 = vsub.s32 %v719, %v721
    %v723 = vrot.slane %v715, %v722
    %v725 = vunpack.c.l.s4 1935823168
    %v726 = vunpack.c.0.s8 %v725
    %v727 = vlaneseq
    %v728 = vshrl.u32 %v727, 7
    %v729 = vsub.s32 %v726, %v728
    %v730 = vrot.slane %v716, %v729
    %v731 = vcombine.low %v723, %v730
    %v733 = vunpack.c.l.s4 1935823168
    %v734 = vunpack.c.0.s8 %v733
    %v735 = vlaneseq
    %v736 = vshrl.u32 %v735, 7
    %v737 = vsub.s32 %v734, %v736
    %v738 = vrot.slane %v731, %v737
    %v739 = vcombine.low %v705, %v713
    %v740 = vcombine.low %v712, %v714
    %v742 = vunpack.c.l.s4 1935823168
    %v743 = vunpack.c.0.s8 %v742
    %v744 = vlaneseq
    %v745 = vshrl.u32 %v744, 7
    %v746 = vsub.s32 %v743, %v745
    %v747 = vrot.slane %v739, %v746
    %v749 = vunpack.c.l.s4 1935823168
    %v750 = vunpack.c.0.s8 %v749
    %v751 = vlaneseq
    %v752 = vshrl.u32 %v751, 7
    %v753 = vsub.s32 %v750, %v752
    %v754 = vrot.slane %v740, %v753
    %v755 = vcombine.low %v747, %v754
    %v757 = vunpack.c.l.s4 1935823168
    %v758 = vunpack.c.0.s8 %v757
    %v759 = vlaneseq
    %v760 = vshrl.u32 %v759, 7
    %v761 = vsub.s32 %v758, %v760
    %v762 = vrot.slane %v755, %v761
    %v763 = vunpack.c.l.b16 %v738
    %v764 = vunpack.c.l.b16 %v762
    %765 = vset.pattern.permute.xlu0 3
    %766 = vperm.xlu0 %765, %v763
    %v767 = vpop.permute.xlu0 %766
    %768 = vset.pattern.permute.xlu0 3
    %769 = vperm.xlu0 %768, %v764
    %v770 = vpop.permute.xlu0 %769
    %v771 = vadd.s32 %v356, 4294967280
    %v772 = vlaneseq
    %v773 = vshrl.u32 %v772, 7
    %v774 = vsub.s32 %v771, %v773
    %v775 = vrot.slane %v767, %v774
    %v776 = vlaneseq
    %v777 = vshrl.u32 %v776, 7
    %v778 = vsub.s32 %v771, %v777
    %v779 = vrot.slane %v770, %v778
    %v780 = vsel %vm366, %v779, %v775
    %v781 = vpack.c.b16 %v780, %v780
    %v783 = vunpack.c.l.s4 1966171168
    %v784 = vunpack.c.0.s8 %v783
    %v785 = vlaneseq
    %v786 = vshrl.u32 %v785, 7
    %v787 = vsub.s32 %v784, %v786
    %v788 = vrot.slane %v781, %v787
    %v790 = vunpack.c.l.s4 1966171168
    %v791 = vunpack.c.0.s8 %v790
    %v792 = vlaneseq
    %v793 = vshrl.u32 %v792, 7
    %v794 = vsub.s32 %v791, %v793
    %v795 = vrot.slane %v788, %v794
    %vm797 = vcmask 188544
    %798 = vst.msk [vmem:[#allocation2 + $0x1] sm:$0x1] %vm797, %v795
    %v799 = vadd.f32 %v237, %v65
    %v800 = vadd.f32 %v242, %v68
    %v801 = vpack.c.bf16 %v799, %v799
    %v802 = vpack.c.bf16 %v800, %v800
    %v806 = vunpack.c.l.s4 1966171168
    %v807 = vunpack.c.0.s8 %v806
    %v808 = vlaneseq
    %v809 = vshrl.u32 %v808, 7
    %v810 = vsub.s32 %v807, %v809
    %v811 = vrot.slane %v801, %v810
    %v812 = vcombine.high %v811, %v811
    %v814 = vunpack.c.l.s4 1966171168
    %v815 = vunpack.c.0.s8 %v814
    %v816 = vlaneseq
    %v817 = vshrl.u32 %v816, 7
    %v818 = vsub.s32 %v815, %v817
    %v819 = vrot.slane %v811, %v818
    %v821 = vunpack.c.l.s4 1966171168
    %v822 = vunpack.c.0.s8 %v821
    %v823 = vlaneseq
    %v824 = vshrl.u32 %v823, 7
    %v825 = vsub.s32 %v822, %v824
    %v826 = vrot.slane %v812, %v825
    %v827 = vcombine.high %v819, %v819
    %v828 = vcombine.high %v826, %v826
    %v830 = vunpack.c.l.s4 1966171168
    %v831 = vunpack.c.0.s8 %v830
    %v832 = vlaneseq
    %v833 = vshrl.u32 %v832, 7
    %v834 = vsub.s32 %v831, %v833
    %v835 = vrot.slane %v802, %v834
    %v836 = vcombine.high %v835, %v835
    %v838 = vunpack.c.l.s4 1966171168
    %v839 = vunpack.c.0.s8 %v838
    %v840 = vlaneseq
    %v841 = vshrl.u32 %v840, 7
    %v842 = vsub.s32 %v839, %v841
    %v843 = vrot.slane %v835, %v842
    %v845 = vunpack.c.l.s4 1966171168
    %v846 = vunpack.c.0.s8 %v845
    %v847 = vlaneseq
    %v848 = vshrl.u32 %v847, 7
    %v849 = vsub.s32 %v846, %v848
    %v850 = vrot.slane %v836, %v849
    %v851 = vcombine.high %v843, %v843
    %v852 = vcombine.high %v850, %v850
    %v853 = vcombine.low %v819, %v827
    %v854 = vcombine.low %v826, %v828
    %v856 = vunpack.c.l.s4 1935823168
    %v857 = vunpack.c.0.s8 %v856
    %v858 = vlaneseq
    %v859 = vshrl.u32 %v858, 7
    %v860 = vsub.s32 %v857, %v859
    %v861 = vrot.slane %v853, %v860
    %v863 = vunpack.c.l.s4 1935823168
    %v864 = vunpack.c.0.s8 %v863
    %v865 = vlaneseq
    %v866 = vshrl.u32 %v865, 7
    %v867 = vsub.s32 %v864, %v866
    %v868 = vrot.slane %v854, %v867
    %v869 = vcombine.low %v861, %v868
    %v871 = vunpack.c.l.s4 1935823168
    %v872 = vunpack.c.0.s8 %v871
    %v873 = vlaneseq
    %v874 = vshrl.u32 %v873, 7
    %v875 = vsub.s32 %v872, %v874
    %v876 = vrot.slane %v869, %v875
    %v877 = vcombine.low %v843, %v851
    %v878 = vcombine.low %v850, %v852
    %v880 = vunpack.c.l.s4 1935823168
    %v881 = vunpack.c.0.s8 %v880
    %v882 = vlaneseq
    %v883 = vshrl.u32 %v882, 7
    %v884 = vsub.s32 %v881, %v883
    %v885 = vrot.slane %v877, %v884
    %v887 = vunpack.c.l.s4 1935823168
    %v888 = vunpack.c.0.s8 %v887
    %v889 = vlaneseq
    %v890 = vshrl.u32 %v889, 7
    %v891 = vsub.s32 %v888, %v890
    %v892 = vrot.slane %v878, %v891
    %v893 = vcombine.low %v885, %v892
    %v895 = vunpack.c.l.s4 1935823168
    %v896 = vunpack.c.0.s8 %v895
    %v897 = vlaneseq
    %v898 = vshrl.u32 %v897, 7
    %v899 = vsub.s32 %v896, %v898
    %v900 = vrot.slane %v893, %v899
    %v901 = vunpack.c.l.b16 %v876
    %v902 = vunpack.c.l.b16 %v900
    %903 = vset.pattern.permute.xlu0 4
    %904 = vperm.xlu0 %903, %v901
    %v905 = vpop.permute.xlu0 %904
    %906 = vset.pattern.permute.xlu0 4
    %907 = vperm.xlu0 %906, %v902
    %v908 = vpop.permute.xlu0 %907
    %v909 = vadd.s32 %v356, 4294967272
    %v910 = vlaneseq
    %v911 = vshrl.u32 %v910, 7
    %v912 = vsub.s32 %v909, %v911
    %v913 = vrot.slane %v905, %v912
    %v914 = vlaneseq
    %v915 = vshrl.u32 %v914, 7
    %v916 = vsub.s32 %v909, %v915
    %v917 = vrot.slane %v908, %v916
    %v918 = vsel %vm366, %v917, %v913
    %v919 = vpack.c.b16 %v918, %v918
    %v921 = vunpack.c.l.s4 1966171168
    %v922 = vunpack.c.0.s8 %v921
    %v923 = vlaneseq
    %v924 = vshrl.u32 %v923, 7
    %v925 = vsub.s32 %v922, %v924
    %v926 = vrot.slane %v919, %v925
    %v928 = vunpack.c.l.s4 1966171168
    %v929 = vunpack.c.0.s8 %v928
    %v930 = vlaneseq
    %v931 = vshrl.u32 %v930, 7
    %v932 = vsub.s32 %v929, %v931
    %v933 = vrot.slane %v926, %v932
    %vm935 = vcmask 254144
    %936 = vst.msk [vmem:[#allocation2 + $0x1] sm:$0x1] %vm935, %v933
    %v937 = vadd.f32 %v237, %v72
    %v938 = vadd.f32 %v242, %v75
    %v939 = vpack.c.bf16 %v937, %v937
    %v940 = vpack.c.bf16 %v938, %v938
    %v944 = vunpack.c.l.s4 1966171168
    %v945 = vunpack.c.0.s8 %v944
    %v946 = vlaneseq
    %v947 = vshrl.u32 %v946, 7
    %v948 = vsub.s32 %v945, %v947
    %v949 = vrot.slane %v939, %v948
    %v950 = vcombine.high %v949, %v949
    %v952 = vunpack.c.l.s4 1966171168
    %v953 = vunpack.c.0.s8 %v952
    %v954 = vlaneseq
    %v955 = vshrl.u32 %v954, 7
    %v956 = vsub.s32 %v953, %v955
    %v957 = vrot.slane %v949, %v956
    %v959 = vunpack.c.l.s4 1966171168
    %v960 = vunpack.c.0.s8 %v959
    %v961 = vlaneseq
    %v962 = vshrl.u32 %v961, 7
    %v963 = vsub.s32 %v960, %v962
    %v964 = vrot.slane %v950, %v963
    %v965 = vcombine.high %v957, %v957
    %v966 = vcombine.high %v964, %v964
    %v968 = vunpack.c.l.s4 1966171168
    %v969 = vunpack.c.0.s8 %v968
    %v970 = vlaneseq
    %v971 = vshrl.u32 %v970, 7
    %v972 = vsub.s32 %v969, %v971
    %v973 = vrot.slane %v940, %v972
    %v974 = vcombine.high %v973, %v973
    %v976 = vunpack.c.l.s4 1966171168
    %v977 = vunpack.c.0.s8 %v976
    %v978 = vlaneseq
    %v979 = vshrl.u32 %v978, 7
    %v980 = vsub.s32 %v977, %v979
    %v981 = vrot.slane %v973, %v980
    %v983 = vunpack.c.l.s4 1966171168
    %v984 = vunpack.c.0.s8 %v983
    %v985 = vlaneseq
    %v986 = vshrl.u32 %v985, 7
    %v987 = vsub.s32 %v984, %v986
    %v988 = vrot.slane %v974, %v987
    %v989 = vcombine.high %v981, %v981
    %v990 = vcombine.high %v988, %v988
    %v991 = vcombine.low %v957, %v965
    %v992 = vcombine.low %v964, %v966
    %v994 = vunpack.c.l.s4 1935823168
    %v995 = vunpack.c.0.s8 %v994
    %v996 = vlaneseq
    %v997 = vshrl.u32 %v996, 7
    %v998 = vsub.s32 %v995, %v997
    %v999 = vrot.slane %v991, %v998
    %v1001 = vunpack.c.l.s4 1935823168
    %v1002 = vunpack.c.0.s8 %v1001
    %v1003 = vlaneseq
    %v1004 = vshrl.u32 %v1003, 7
    %v1005 = vsub.s32 %v1002, %v1004
    %v1006 = vrot.slane %v992, %v1005
    %v1007 = vcombine.low %v999, %v1006
    %v1009 = vunpack.c.l.s4 1935823168
    %v1010 = vunpack.c.0.s8 %v1009
    %v1011 = vlaneseq
    %v1012 = vshrl.u32 %v1011, 7
    %v1013 = vsub.s32 %v1010, %v1012
    %v1014 = vrot.slane %v1007, %v1013
    %v1015 = vcombine.low %v981, %v989
    %v1016 = vcombine.low %v988, %v990
    %v1018 = vunpack.c.l.s4 1935823168
    %v1019 = vunpack.c.0.s8 %v1018
    %v1020 = vlaneseq
    %v1021 = vshrl.u32 %v1020, 7
    %v1022 = vsub.s32 %v1019, %v1021
    %v1023 = vrot.slane %v1015, %v1022
    %v1025 = vunpack.c.l.s4 1935823168
    %v1026 = vunpack.c.0.s8 %v1025
    %v1027 = vlaneseq
    %v1028 = vshrl.u32 %v1027, 7
    %v1029 = vsub.s32 %v1026, %v1028
    %v1030 = vrot.slane %v1016, %v1029
    %v1031 = vcombine.low %v1023, %v1030
    %v1033 = vunpack.c.l.s4 1935823168
    %v1034 = vunpack.c.0.s8 %v1033
    %v1035 = vlaneseq
    %v1036 = vshrl.u32 %v1035, 7
    %v1037 = vsub.s32 %v1034, %v1036
    %v1038 = vrot.slane %v1031, %v1037
    %v1039 = vunpack.c.l.b16 %v1014
    %v1040 = vunpack.c.l.b16 %v1038
    %1041 = vset.pattern.permute.xlu0 5
    %1042 = vperm.xlu0 %1041, %v1039
    %v1043 = vpop.permute.xlu0 %1042
    %1044 = vset.pattern.permute.xlu0 5
    %1045 = vperm.xlu0 %1044, %v1040
    %v1046 = vpop.permute.xlu0 %1045
    %v1047 = vadd.s32 %v356, 4294967264
    %v1048 = vlaneseq
    %v1049 = vshrl.u32 %v1048, 7
    %v1050 = vsub.s32 %v1047, %v1049
    %v1051 = vrot.slane %v1043, %v1050
    %v1052 = vlaneseq
    %v1053 = vshrl.u32 %v1052, 7
    %v1054 = vsub.s32 %v1047, %v1053
    %v1055 = vrot.slane %v1046, %v1054
    %v1056 = vsel %vm366, %v1055, %v1051
    %v1057 = vpack.c.b16 %v1056, %v1056
    %v1059 = vunpack.c.l.s4 1966171168
    %v1060 = vunpack.c.0.s8 %v1059
    %v1061 = vlaneseq
    %v1062 = vshrl.u32 %v1061, 7
    %v1063 = vsub.s32 %v1060, %v1062
    %v1064 = vrot.slane %v1057, %v1063
    %v1066 = vunpack.c.l.s4 1966171168
    %v1067 = vunpack.c.0.s8 %v1066
    %v1068 = vlaneseq
    %v1069 = vshrl.u32 %v1068, 7
    %v1070 = vsub.s32 %v1067, %v1069
    %v1071 = vrot.slane %v1064, %v1070
    %vm1073 = vcmask 319744
    %1074 = vst.msk [vmem:[#allocation2 + $0x1] sm:$0x1] %vm1073, %v1071
    %v1075 = vadd.f32 %v237, %v79
    %v1076 = vadd.f32 %v242, %v82
    %v1077 = vpack.c.bf16 %v1075, %v1075
    %v1078 = vpack.c.bf16 %v1076, %v1076
    %v1082 = vunpack.c.l.s4 1966171168
    %v1083 = vunpack.c.0.s8 %v1082
    %v1084 = vlaneseq
    %v1085 = vshrl.u32 %v1084, 7
    %v1086 = vsub.s32 %v1083, %v1085
    %v1087 = vrot.slane %v1077, %v1086
    %v1088 = vcombine.high %v1087, %v1087
    %v1090 = vunpack.c.l.s4 1966171168
    %v1091 = vunpack.c.0.s8 %v1090
    %v1092 = vlaneseq
    %v1093 = vshrl.u32 %v1092, 7
    %v1094 = vsub.s32 %v1091, %v1093
    %v1095 = vrot.slane %v1087, %v1094
    %v1097 = vunpack.c.l.s4 1966171168
    %v1098 = vunpack.c.0.s8 %v1097
    %v1099 = vlaneseq
    %v1100 = vshrl.u32 %v1099, 7
    %v1101 = vsub.s32 %v1098, %v1100
    %v1102 = vrot.slane %v1088, %v1101
    %v1103 = vcombine.high %v1095, %v1095
    %v1104 = vcombine.high %v1102, %v1102
    %v1106 = vunpack.c.l.s4 1966171168
    %v1107 = vunpack.c.0.s8 %v1106
    %v1108 = vlaneseq
    %v1109 = vshrl.u32 %v1108, 7
    %v1110 = vsub.s32 %v1107, %v1109
    %v1111 = vrot.slane %v1078, %v1110
    %v1112 = vcombine.high %v1111, %v1111
    %v1114 = vunpack.c.l.s4 1966171168
    %v1115 = vunpack.c.0.s8 %v1114
    %v1116 = vlaneseq
    %v1117 = vshrl.u32 %v1116, 7
    %v1118 = vsub.s32 %v1115, %v1117
    %v1119 = vrot.slane %v1111, %v1118
    %v1121 = vunpack.c.l.s4 1966171168
    %v1122 = vunpack.c.0.s8 %v1121
    %v1123 = vlaneseq
    %v1124 = vshrl.u32 %v1123, 7
    %v1125 = vsub.s32 %v1122, %v1124
    %v1126 = vrot.slane %v1112, %v1125
    %v1127 = vcombine.high %v1119, %v1119
    %v1128 = vcombine.high %v1126, %v1126
    %v1129 = vcombine.low %v1095, %v1103
    %v1130 = vcombine.low %v1102, %v1104
    %v1132 = vunpack.c.l.s4 1935823168
    %v1133 = vunpack.c.0.s8 %v1132
    %v1134 = vlaneseq
    %v1135 = vshrl.u32 %v1134, 7
    %v1136 = vsub.s32 %v1133, %v1135
    %v1137 = vrot.slane %v1129, %v1136
    %v1139 = vunpack.c.l.s4 1935823168
    %v1140 = vunpack.c.0.s8 %v1139
    %v1141 = vlaneseq
    %v1142 = vshrl.u32 %v1141, 7
    %v1143 = vsub.s32 %v1140, %v1142
    %v1144 = vrot.slane %v1130, %v1143
    %v1145 = vcombine.low %v1137, %v1144
    %v1147 = vunpack.c.l.s4 1935823168
    %v1148 = vunpack.c.0.s8 %v1147
    %v1149 = vlaneseq
    %v1150 = vshrl.u32 %v1149, 7
    %v1151 = vsub.s32 %v1148, %v1150
    %v1152 = vrot.slane %v1145, %v1151
    %v1153 = vcombine.low %v1119, %v1127
    %v1154 = vcombine.low %v1126, %v1128
    %v1156 = vunpack.c.l.s4 1935823168
    %v1157 = vunpack.c.0.s8 %v1156
    %v1158 = vlaneseq
    %v1159 = vshrl.u32 %v1158, 7
    %v1160 = vsub.s32 %v1157, %v1159
    %v1161 = vrot.slane %v1153, %v1160
    %v1163 = vunpack.c.l.s4 1935823168
    %v1164 = vunpack.c.0.s8 %v1163
    %v1165 = vlaneseq
    %v1166 = vshrl.u32 %v1165, 7
    %v1167 = vsub.s32 %v1164, %v1166
    %v1168 = vrot.slane %v1154, %v1167
    %v1169 = vcombine.low %v1161, %v1168
    %v1171 = vunpack.c.l.s4 1935823168
    %v1172 = vunpack.c.0.s8 %v1171
    %v1173 = vlaneseq
    %v1174 = vshrl.u32 %v1173, 7
    %v1175 = vsub.s32 %v1172, %v1174
    %v1176 = vrot.slane %v1169, %v1175
    %v1177 = vunpack.c.l.b16 %v1152
    %v1178 = vunpack.c.l.b16 %v1176
    %1179 = vset.pattern.permute.xlu0 6
    %1180 = vperm.xlu0 %1179, %v1177
    %v1181 = vpop.permute.xlu0 %1180
    %1182 = vset.pattern.permute.xlu0 6
    %1183 = vperm.xlu0 %1182, %v1178
    %v1184 = vpop.permute.xlu0 %1183
    %v1185 = vadd.s32 %v356, 4294967256
    %v1186 = vlaneseq
    %v1187 = vshrl.u32 %v1186, 7
    %v1188 = vsub.s32 %v1185, %v1187
    %v1189 = vrot.slane %v1181, %v1188
    %v1190 = vlaneseq
    %v1191 = vshrl.u32 %v1190, 7
    %v1192 = vsub.s32 %v1185, %v1191
    %v1193 = vrot.slane %v1184, %v1192
    %v1194 = vsel %vm366, %v1193, %v1189
    %v1195 = vpack.c.b16 %v1194, %v1194
    %v1197 = vunpack.c.l.s4 1966171168
    %v1198 = vunpack.c.0.s8 %v1197
    %v1199 = vlaneseq
    %v1200 = vshrl.u32 %v1199, 7
    %v1201 = vsub.s32 %v1198, %v1200
    %v1202 = vrot.slane %v1195, %v1201
    %v1204 = vunpack.c.l.s4 1966171168
    %v1205 = vunpack.c.0.s8 %v1204
    %v1206 = vlaneseq
    %v1207 = vshrl.u32 %v1206, 7
    %v1208 = vsub.s32 %v1205, %v1207
    %v1209 = vrot.slane %v1202, %v1208
    %vm1211 = vcmask 385344
    %1212 = vst.msk [vmem:[#allocation2 + $0x1] sm:$0x1] %vm1211, %v1209
    %v1213 = vadd.f32 %v237, %v86
    %v1214 = vadd.f32 %v242, %v89
    %v1215 = vpack.c.bf16 %v1213, %v1213
    %v1216 = vpack.c.bf16 %v1214, %v1214
    %v1220 = vunpack.c.l.s4 1966171168
    %v1221 = vunpack.c.0.s8 %v1220
    %v1222 = vlaneseq
    %v1223 = vshrl.u32 %v1222, 7
    %v1224 = vsub.s32 %v1221, %v1223
    %v1225 = vrot.slane %v1215, %v1224
    %v1226 = vcombine.high %v1225, %v1225
    %v1228 = vunpack.c.l.s4 1966171168
    %v1229 = vunpack.c.0.s8 %v1228
    %v1230 = vlaneseq
    %v1231 = vshrl.u32 %v1230, 7
    %v1232 = vsub.s32 %v1229, %v1231
    %v1233 = vrot.slane %v1225, %v1232
    %v1235 = vunpack.c.l.s4 1966171168
    %v1236 = vunpack.c.0.s8 %v1235
    %v1237 = vlaneseq
    %v1238 = vshrl.u32 %v1237, 7
    %v1239 = vsub.s32 %v1236, %v1238
    %v1240 = vrot.slane %v1226, %v1239
    %v1241 = vcombine.high %v1233, %v1233
    %v1242 = vcombine.high %v1240, %v1240
    %v1244 = vunpack.c.l.s4 1966171168
    %v1245 = vunpack.c.0.s8 %v1244
    %v1246 = vlaneseq
    %v1247 = vshrl.u32 %v1246, 7
    %v1248 = vsub.s32 %v1245, %v1247
    %v1249 = vrot.slane %v1216, %v1248
    %v1250 = vcombine.high %v1249, %v1249
    %v1252 = vunpack.c.l.s4 1966171168
    %v1253 = vunpack.c.0.s8 %v1252
    %v1254 = vlaneseq
    %v1255 = vshrl.u32 %v1254, 7
    %v1256 = vsub.s32 %v1253, %v1255
    %v1257 = vrot.slane %v1249, %v1256
    %v1259 = vunpack.c.l.s4 1966171168
    %v1260 = vunpack.c.0.s8 %v1259
    %v1261 = vlaneseq
    %v1262 = vshrl.u32 %v1261, 7
    %v1263 = vsub.s32 %v1260, %v1262
    %v1264 = vrot.slane %v1250, %v1263
    %v1265 = vcombine.high %v1257, %v1257
    %v1266 = vcombine.high %v1264, %v1264
    %v1267 = vcombine.low %v1233, %v1241
    %v1268 = vcombine.low %v1240, %v1242
    %v1270 = vunpack.c.l.s4 1935823168
    %v1271 = vunpack.c.0.s8 %v1270
    %v1272 = vlaneseq
    %v1273 = vshrl.u32 %v1272, 7
    %v1274 = vsub.s32 %v1271, %v1273
    %v1275 = vrot.slane %v1267, %v1274
    %v1277 = vunpack.c.l.s4 1935823168
    %v1278 = vunpack.c.0.s8 %v1277
    %v1279 = vlaneseq
    %v1280 = vshrl.u32 %v1279, 7
    %v1281 = vsub.s32 %v1278, %v1280
    %v1282 = vrot.slane %v1268, %v1281
    %v1283 = vcombine.low %v1275, %v1282
    %v1285 = vunpack.c.l.s4 1935823168
    %v1286 = vunpack.c.0.s8 %v1285
    %v1287 = vlaneseq
    %v1288 = vshrl.u32 %v1287, 7
    %v1289 = vsub.s32 %v1286, %v1288
    %v1290 = vrot.slane %v1283, %v1289
    %v1291 = vcombine.low %v1257, %v1265
    %v1292 = vcombine.low %v1264, %v1266
    %v1294 = vunpack.c.l.s4 1935823168
    %v1295 = vunpack.c.0.s8 %v1294
    %v1296 = vlaneseq
    %v1297 = vshrl.u32 %v1296, 7
    %v1298 = vsub.s32 %v1295, %v1297
    %v1299 = vrot.slane %v1291, %v1298
    %v1301 = vunpack.c.l.s4 1935823168
    %v1302 = vunpack.c.0.s8 %v1301
    %v1303 = vlaneseq
    %v1304 = vshrl.u32 %v1303, 7
    %v1305 = vsub.s32 %v1302, %v1304
    %v1306 = vrot.slane %v1292, %v1305
    %v1307 = vcombine.low %v1299, %v1306
    %v1309 = vunpack.c.l.s4 1935823168
    %v1310 = vunpack.c.0.s8 %v1309
    %v1311 = vlaneseq
    %v1312 = vshrl.u32 %v1311, 7
    %v1313 = vsub.s32 %v1310, %v1312
    %v1314 = vrot.slane %v1307, %v1313
    %v1315 = vunpack.c.l.b16 %v1290
    %v1316 = vunpack.c.l.b16 %v1314
    %1317 = vset.pattern.permute.xlu0 7
    %1318 = vperm.xlu0 %1317, %v1315
    %v1319 = vpop.permute.xlu0 %1318
    %1320 = vset.pattern.permute.xlu0 7
    %1321 = vperm.xlu0 %1320, %v1316
    %v1322 = vpop.permute.xlu0 %1321
    %v1323 = vadd.s32 %v356, 4294967248
    %v1324 = vlaneseq
    %v1325 = vshrl.u32 %v1324, 7
    %v1326 = vsub.s32 %v1323, %v1325
    %v1327 = vrot.slane %v1319, %v1326
    %v1328 = vlaneseq
    %v1329 = vshrl.u32 %v1328, 7
    %v1330 = vsub.s32 %v1323, %v1329
    %v1331 = vrot.slane %v1322, %v1330
    %v1332 = vsel %vm366, %v1331, %v1327
    %v1333 = vpack.c.b16 %v1332, %v1332
    %v1335 = vunpack.c.l.s4 1966171168
    %v1336 = vunpack.c.0.s8 %v1335
    %v1337 = vlaneseq
    %v1338 = vshrl.u32 %v1337, 7
    %v1339 = vsub.s32 %v1336, %v1338
    %v1340 = vrot.slane %v1333, %v1339
    %v1342 = vunpack.c.l.s4 1966171168
    %v1343 = vunpack.c.0.s8 %v1342
    %v1344 = vlaneseq
    %v1345 = vshrl.u32 %v1344, 7
    %v1346 = vsub.s32 %v1343, %v1345
    %v1347 = vrot.slane %v1340, %v1346
    %vm1349 = vcmask 450944
    %1350 = vst.msk [vmem:[#allocation2 + $0x1] sm:$0x1] %vm1349, %v1347
    %v1351 = vadd.f32 %v237, %v92
    %v1352 = vadd.f32 %v242, %v95
    %v1353 = vpack.c.bf16 %v1351, %v1351
    %v1354 = vpack.c.bf16 %v1352, %v1352
    %v1358 = vunpack.c.l.s4 1966171168
    %v1359 = vunpack.c.0.s8 %v1358
    %v1360 = vlaneseq
    %v1361 = vshrl.u32 %v1360, 7
    %v1362 = vsub.s32 %v1359, %v1361
    %v1363 = vrot.slane %v1353, %v1362
    %v1364 = vcombine.high %v1363, %v1363
    %v1366 = vunpack.c.l.s4 1966171168
    %v1367 = vunpack.c.0.s8 %v1366
    %v1368 = vlaneseq
    %v1369 = vshrl.u32 %v1368, 7
    %v1370 = vsub.s32 %v1367, %v1369
    %v1371 = vrot.slane %v1363, %v1370
    %v1373 = vunpack.c.l.s4 1966171168
    %v1374 = vunpack.c.0.s8 %v1373
    %v1375 = vlaneseq
    %v1376 = vshrl.u32 %v1375, 7
    %v1377 = vsub.s32 %v1374, %v1376
    %v1378 = vrot.slane %v1364, %v1377
    %v1379 = vcombine.high %v1371, %v1371
    %v1380 = vcombine.high %v1378, %v1378
    %v1382 = vunpack.c.l.s4 1966171168
    %v1383 = vunpack.c.0.s8 %v1382
    %v1384 = vlaneseq
    %v1385 = vshrl.u32 %v1384, 7
    %v1386 = vsub.s32 %v1383, %v1385
    %v1387 = vrot.slane %v1354, %v1386
    %v1388 = vcombine.high %v1387, %v1387
    %v1390 = vunpack.c.l.s4 1966171168
    %v1391 = vunpack.c.0.s8 %v1390
    %v1392 = vlaneseq
    %v1393 = vshrl.u32 %v1392, 7
    %v1394 = vsub.s32 %v1391, %v1393
    %v1395 = vrot.slane %v1387, %v1394
    %v1397 = vunpack.c.l.s4 1966171168
    %v1398 = vunpack.c.0.s8 %v1397
    %v1399 = vlaneseq
    %v1400 = vshrl.u32 %v1399, 7
    %v1401 = vsub.s32 %v1398, %v1400
    %v1402 = vrot.slane %v1388, %v1401
    %v1403 = vcombine.high %v1395, %v1395
    %v1404 = vcombine.high %v1402, %v1402
    %v1405 = vcombine.low %v1371, %v1379
    %v1406 = vcombine.low %v1378, %v1380
    %v1408 = vunpack.c.l.s4 1935823168
    %v1409 = vunpack.c.0.s8 %v1408
    %v1410 = vlaneseq
    %v1411 = vshrl.u32 %v1410, 7
    %v1412 = vsub.s32 %v1409, %v1411
    %v1413 = vrot.slane %v1405, %v1412
    %v1415 = vunpack.c.l.s4 1935823168
    %v1416 = vunpack.c.0.s8 %v1415
    %v1417 = vlaneseq
    %v1418 = vshrl.u32 %v1417, 7
    %v1419 = vsub.s32 %v1416, %v1418
    %v1420 = vrot.slane %v1406, %v1419
    %v1421 = vcombine.low %v1413, %v1420
    %v1423 = vunpack.c.l.s4 1935823168
    %v1424 = vunpack.c.0.s8 %v1423
    %v1425 = vlaneseq
    %v1426 = vshrl.u32 %v1425, 7
    %v1427 = vsub.s32 %v1424, %v1426
    %v1428 = vrot.slane %v1421, %v1427
    %v1429 = vcombine.low %v1395, %v1403
    %v1430 = vcombine.low %v1402, %v1404
    %v1432 = vunpack.c.l.s4 1935823168
    %v1433 = vunpack.c.0.s8 %v1432
    %v1434 = vlaneseq
    %v1435 = vshrl.u32 %v1434, 7
    %v1436 = vsub.s32 %v1433, %v1435
    %v1437 = vrot.slane %v1429, %v1436
    %v1439 = vunpack.c.l.s4 1935823168
    %v1440 = vunpack.c.0.s8 %v1439
    %v1441 = vlaneseq
    %v1442 = vshrl.u32 %v1441, 7
    %v1443 = vsub.s32 %v1440, %v1442
    %v1444 = vrot.slane %v1430, %v1443
    %v1445 = vcombine.low %v1437, %v1444
    %v1447 = vunpack.c.l.s4 1935823168
    %v1448 = vunpack.c.0.s8 %v1447
    %v1449 = vlaneseq
    %v1450 = vshrl.u32 %v1449, 7
    %v1451 = vsub.s32 %v1448, %v1450
    %v1452 = vrot.slane %v1445, %v1451
    %v1453 = vunpack.c.l.b16 %v1428
    %v1454 = vunpack.c.l.b16 %v1452
    %1455 = vset.pattern.permute.xlu0 8
    %1456 = vperm.xlu0 %1455, %v1453
    %v1457 = vpop.permute.xlu0 %1456
    %1458 = vset.pattern.permute.xlu0 8
    %1459 = vperm.xlu0 %1458, %v1454
    %v1460 = vpop.permute.xlu0 %1459
    %v1461 = vadd.s32 %v356, 4294967240
    %v1462 = vlaneseq
    %v1463 = vshrl.u32 %v1462, 7
    %v1464 = vsub.s32 %v1461, %v1463
    %v1465 = vrot.slane %v1457, %v1464
    %v1466 = vlaneseq
    %v1467 = vshrl.u32 %v1466, 7
    %v1468 = vsub.s32 %v1461, %v1467
    %v1469 = vrot.slane %v1460, %v1468
    %v1470 = vsel %vm366, %v1469, %v1465
    %v1471 = vpack.c.b16 %v1470, %v1470
    %v1473 = vunpack.c.l.s4 1966171168
    %v1474 = vunpack.c.0.s8 %v1473
    %v1475 = vlaneseq
    %v1476 = vshrl.u32 %v1475, 7
    %v1477 = vsub.s32 %v1474, %v1476
    %v1478 = vrot.slane %v1471, %v1477
    %v1480 = vunpack.c.l.s4 1966171168
    %v1481 = vunpack.c.0.s8 %v1480
    %v1482 = vlaneseq
    %v1483 = vshrl.u32 %v1482, 7
    %v1484 = vsub.s32 %v1481, %v1483
    %v1485 = vrot.slane %v1478, %v1484
    %vm1487 = vcmask 516544
    %1488 = vst.msk [vmem:[#allocation2 + $0x1] sm:$0x1] %vm1487, %v1485
    %v1489 = vadd.f32 %v237, %v98
    %v1490 = vadd.f32 %v242, %v101
    %v1491 = vpack.c.bf16 %v1489, %v1489
    %v1492 = vpack.c.bf16 %v1490, %v1490
    %v1496 = vunpack.c.l.s4 1966171168
    %v1497 = vunpack.c.0.s8 %v1496
    %v1498 = vlaneseq
    %v1499 = vshrl.u32 %v1498, 7
    %v1500 = vsub.s32 %v1497, %v1499
    %v1501 = vrot.slane %v1491, %v1500
    %v1502 = vcombine.high %v1501, %v1501
    %v1504 = vunpack.c.l.s4 1966171168
    %v1505 = vunpack.c.0.s8 %v1504
    %v1506 = vlaneseq
    %v1507 = vshrl.u32 %v1506, 7
    %v1508 = vsub.s32 %v1505, %v1507
    %v1509 = vrot.slane %v1501, %v1508
    %v1511 = vunpack.c.l.s4 1966171168
    %v1512 = vunpack.c.0.s8 %v1511
    %v1513 = vlaneseq
    %v1514 = vshrl.u32 %v1513, 7
    %v1515 = vsub.s32 %v1512, %v1514
    %v1516 = vrot.slane %v1502, %v1515
    %v1517 = vcombine.high %v1509, %v1509
    %v1518 = vcombine.high %v1516, %v1516
    %v1520 = vunpack.c.l.s4 1966171168
    %v1521 = vunpack.c.0.s8 %v1520
    %v1522 = vlaneseq
    %v1523 = vshrl.u32 %v1522, 7
    %v1524 = vsub.s32 %v1521, %v1523
    %v1525 = vrot.slane %v1492, %v1524
    %v1526 = vcombine.high %v1525, %v1525
    %v1528 = vunpack.c.l.s4 1966171168
    %v1529 = vunpack.c.0.s8 %v1528
    %v1530 = vlaneseq
    %v1531 = vshrl.u32 %v1530, 7
    %v1532 = vsub.s32 %v1529, %v1531
    %v1533 = vrot.slane %v1525, %v1532
    %v1535 = vunpack.c.l.s4 1966171168
    %v1536 = vunpack.c.0.s8 %v1535
    %v1537 = vlaneseq
    %v1538 = vshrl.u32 %v1537, 7
    %v1539 = vsub.s32 %v1536, %v1538
    %v1540 = vrot.slane %v1526, %v1539
    %v1541 = vcombine.high %v1533, %v1533
    %v1542 = vcombine.high %v1540, %v1540
    %v1543 = vcombine.low %v1509, %v1517
    %v1544 = vcombine.low %v1516, %v1518
    %v1546 = vunpack.c.l.s4 1935823168
    %v1547 = vunpack.c.0.s8 %v1546
    %v1548 = vlaneseq
    %v1549 = vshrl.u32 %v1548, 7
    %v1550 = vsub.s32 %v1547, %v1549
    %v1551 = vrot.slane %v1543, %v1550
    %v1553 = vunpack.c.l.s4 1935823168
    %v1554 = vunpack.c.0.s8 %v1553
    %v1555 = vlaneseq
    %v1556 = vshrl.u32 %v1555, 7
    %v1557 = vsub.s32 %v1554, %v1556
    %v1558 = vrot.slane %v1544, %v1557
    %v1559 = vcombine.low %v1551, %v1558
    %v1561 = vunpack.c.l.s4 1935823168
    %v1562 = vunpack.c.0.s8 %v1561
    %v1563 = vlaneseq
    %v1564 = vshrl.u32 %v1563, 7
    %v1565 = vsub.s32 %v1562, %v1564
    %v1566 = vrot.slane %v1559, %v1565
    %v1567 = vcombine.low %v1533, %v1541
    %v1568 = vcombine.low %v1540, %v1542
    %v1570 = vunpack.c.l.s4 1935823168
    %v1571 = vunpack.c.0.s8 %v1570
    %v1572 = vlaneseq
    %v1573 = vshrl.u32 %v1572, 7
    %v1574 = vsub.s32 %v1571, %v1573
    %v1575 = vrot.slane %v1567, %v1574
    %v1577 = vunpack.c.l.s4 1935823168
    %v1578 = vunpack.c.0.s8 %v1577
    %v1579 = vlaneseq
    %v1580 = vshrl.u32 %v1579, 7
    %v1581 = vsub.s32 %v1578, %v1580
    %v1582 = vrot.slane %v1568, %v1581
    %v1583 = vcombine.low %v1575, %v1582
    %v1585 = vunpack.c.l.s4 1935823168
    %v1586 = vunpack.c.0.s8 %v1585
    %v1587 = vlaneseq
    %v1588 = vshrl.u32 %v1587, 7
    %v1589 = vsub.s32 %v1586, %v1588
    %v1590 = vrot.slane %v1583, %v1589
    %v1591 = vunpack.c.l.b16 %v1566
    %v1592 = vunpack.c.l.b16 %v1590
    %1593 = vset.pattern.permute.xlu0 9
    %1594 = vperm.xlu0 %1593, %v1591
    %v1595 = vpop.permute.xlu0 %1594
    %1596 = vset.pattern.permute.xlu0 9
    %1597 = vperm.xlu0 %1596, %v1592
    %v1598 = vpop.permute.xlu0 %1597
    %v1599 = vadd.s32 %v356, 4294967232
    %v1600 = vlaneseq
    %v1601 = vshrl.u32 %v1600, 7
    %v1602 = vsub.s32 %v1599, %v1601
    %v1603 = vrot.slane %v1595, %v1602
    %v1604 = vlaneseq
    %v1605 = vshrl.u32 %v1604, 7
    %v1606 = vsub.s32 %v1599, %v1605
    %v1607 = vrot.slane %v1598, %v1606
    %v1608 = vsel %vm366, %v1607, %v1603
    %v1609 = vpack.c.b16 %v1608, %v1608
    %v1611 = vunpack.c.l.s4 1966171168
    %v1612 = vunpack.c.0.s8 %v1611
    %v1613 = vlaneseq
    %v1614 = vshrl.u32 %v1613, 7
    %v1615 = vsub.s32 %v1612, %v1614
    %v1616 = vrot.slane %v1609, %v1615
    %v1618 = vunpack.c.l.s4 1966171168
    %v1619 = vunpack.c.0.s8 %v1618
    %v1620 = vlaneseq
    %v1621 = vshrl.u32 %v1620, 7
    %v1622 = vsub.s32 %v1619, %v1621
    %v1623 = vrot.slane %v1616, %v1622
    %vm1625 = vcmask 582144
    %1626 = vst.msk [vmem:[#allocation2 + $0x1] sm:$0x1] %vm1625, %v1623
    %v1627 = vadd.f32 %v237, %v104
    %v1628 = vadd.f32 %v242, %v107
    %v1629 = vpack.c.bf16 %v1627, %v1627
    %v1630 = vpack.c.bf16 %v1628, %v1628
    %v1634 = vunpack.c.l.s4 1966171168
    %v1635 = vunpack.c.0.s8 %v1634
    %v1636 = vlaneseq
    %v1637 = vshrl.u32 %v1636, 7
    %v1638 = vsub.s32 %v1635, %v1637
    %v1639 = vrot.slane %v1629, %v1638
    %v1640 = vcombine.high %v1639, %v1639
    %v1642 = vunpack.c.l.s4 1966171168
    %v1643 = vunpack.c.0.s8 %v1642
    %v1644 = vlaneseq
    %v1645 = vshrl.u32 %v1644, 7
    %v1646 = vsub.s32 %v1643, %v1645
    %v1647 = vrot.slane %v1639, %v1646
    %v1649 = vunpack.c.l.s4 1966171168
    %v1650 = vunpack.c.0.s8 %v1649
    %v1651 = vlaneseq
    %v1652 = vshrl.u32 %v1651, 7
    %v1653 = vsub.s32 %v1650, %v1652
    %v1654 = vrot.slane %v1640, %v1653
    %v1655 = vcombine.high %v1647, %v1647
    %v1656 = vcombine.high %v1654, %v1654
    %v1658 = vunpack.c.l.s4 1966171168
    %v1659 = vunpack.c.0.s8 %v1658
    %v1660 = vlaneseq
    %v1661 = vshrl.u32 %v1660, 7
    %v1662 = vsub.s32 %v1659, %v1661
    %v1663 = vrot.slane %v1630, %v1662
    %v1664 = vcombine.high %v1663, %v1663
    %v1666 = vunpack.c.l.s4 1966171168
    %v1667 = vunpack.c.0.s8 %v1666
    %v1668 = vlaneseq
    %v1669 = vshrl.u32 %v1668, 7
    %v1670 = vsub.s32 %v1667, %v1669
    %v1671 = vrot.slane %v1663, %v1670
    %v1673 = vunpack.c.l.s4 1966171168
    %v1674 = vunpack.c.0.s8 %v1673
    %v1675 = vlaneseq
    %v1676 = vshrl.u32 %v1675, 7
    %v1677 = vsub.s32 %v1674, %v1676
    %v1678 = vrot.slane %v1664, %v1677
    %v1679 = vcombine.high %v1671, %v1671
    %v1680 = vcombine.high %v1678, %v1678
    %v1681 = vcombine.low %v1647, %v1655
    %v1682 = vcombine.low %v1654, %v1656
    %v1684 = vunpack.c.l.s4 1935823168
    %v1685 = vunpack.c.0.s8 %v1684
    %v1686 = vlaneseq
    %v1687 = vshrl.u32 %v1686, 7
    %v1688 = vsub.s32 %v1685, %v1687
    %v1689 = vrot.slane %v1681, %v1688
    %v1691 = vunpack.c.l.s4 1935823168
    %v1692 = vunpack.c.0.s8 %v1691
    %v1693 = vlaneseq
    %v1694 = vshrl.u32 %v1693, 7
    %v1695 = vsub.s32 %v1692, %v1694
    %v1696 = vrot.slane %v1682, %v1695
    %v1697 = vcombine.low %v1689, %v1696
    %v1699 = vunpack.c.l.s4 1935823168
    %v1700 = vunpack.c.0.s8 %v1699
    %v1701 = vlaneseq
    %v1702 = vshrl.u32 %v1701, 7
    %v1703 = vsub.s32 %v1700, %v1702
    %v1704 = vrot.slane %v1697, %v1703
    %v1705 = vcombine.low %v1671, %v1679
    %v1706 = vcombine.low %v1678, %v1680
    %v1708 = vunpack.c.l.s4 1935823168
    %v1709 = vunpack.c.0.s8 %v1708
    %v1710 = vlaneseq
    %v1711 = vshrl.u32 %v1710, 7
    %v1712 = vsub.s32 %v1709, %v1711
    %v1713 = vrot.slane %v1705, %v1712
    %v1715 = vunpack.c.l.s4 1935823168
    %v1716 = vunpack.c.0.s8 %v1715
    %v1717 = vlaneseq
    %v1718 = vshrl.u32 %v1717, 7
    %v1719 = vsub.s32 %v1716, %v1718
    %v1720 = vrot.slane %v1706, %v1719
    %v1721 = vcombine.low %v1713, %v1720
    %v1723 = vunpack.c.l.s4 1935823168
    %v1724 = vunpack.c.0.s8 %v1723
    %v1725 = vlaneseq
    %v1726 = vshrl.u32 %v1725, 7
    %v1727 = vsub.s32 %v1724, %v1726
    %v1728 = vrot.slane %v1721, %v1727
    %v1729 = vunpack.c.l.b16 %v1704
    %v1730 = vunpack.c.l.b16 %v1728
    %1731 = vset.pattern.permute.xlu0 10
    %1732 = vperm.xlu0 %1731, %v1729
    %v1733 = vpop.permute.xlu0 %1732
    %1734 = vset.pattern.permute.xlu0 10
    %1735 = vperm.xlu0 %1734, %v1730
    %v1736 = vpop.permute.xlu0 %1735
    %v1737 = vadd.s32 %v356, 4294967224
    %v1738 = vlaneseq
    %v1739 = vshrl.u32 %v1738, 7
    %v1740 = vsub.s32 %v1737, %v1739
    %v1741 = vrot.slane %v1733, %v1740
    %v1742 = vlaneseq
    %v1743 = vshrl.u32 %v1742, 7
    %v1744 = vsub.s32 %v1737, %v1743
    %v1745 = vrot.slane %v1736, %v1744
    %v1746 = vsel %vm366, %v1745, %v1741
    %v1747 = vpack.c.b16 %v1746, %v1746
    %v1749 = vunpack.c.l.s4 1966171168
    %v1750 = vunpack.c.0.s8 %v1749
    %v1751 = vlaneseq
    %v1752 = vshrl.u32 %v1751, 7
    %v1753 = vsub.s32 %v1750, %v1752
    %v1754 = vrot.slane %v1747, %v1753
    %v1756 = vunpack.c.l.s4 1966171168
    %v1757 = vunpack.c.0.s8 %v1756
    %v1758 = vlaneseq
    %v1759 = vshrl.u32 %v1758, 7
    %v1760 = vsub.s32 %v1757, %v1759
    %v1761 = vrot.slane %v1754, %v1760
    %vm1763 = vcmask 647744
    %1764 = vst.msk [vmem:[#allocation2 + $0x1] sm:$0x1] %vm1763, %v1761
    %v1765 = vadd.f32 %v237, %v110
    %v1766 = vadd.f32 %v242, %v113
    %v1767 = vpack.c.bf16 %v1765, %v1765
    %v1768 = vpack.c.bf16 %v1766, %v1766
    %v1772 = vunpack.c.l.s4 1966171168
    %v1773 = vunpack.c.0.s8 %v1772
    %v1774 = vlaneseq
    %v1775 = vshrl.u32 %v1774, 7
    %v1776 = vsub.s32 %v1773, %v1775
    %v1777 = vrot.slane %v1767, %v1776
    %v1778 = vcombine.high %v1777, %v1777
    %v1780 = vunpack.c.l.s4 1966171168
    %v1781 = vunpack.c.0.s8 %v1780
    %v1782 = vlaneseq
    %v1783 = vshrl.u32 %v1782, 7
    %v1784 = vsub.s32 %v1781, %v1783
    %v1785 = vrot.slane %v1777, %v1784
    %v1787 = vunpack.c.l.s4 1966171168
    %v1788 = vunpack.c.0.s8 %v1787
    %v1789 = vlaneseq
    %v1790 = vshrl.u32 %v1789, 7
    %v1791 = vsub.s32 %v1788, %v1790
    %v1792 = vrot.slane %v1778, %v1791
    %v1793 = vcombine.high %v1785, %v1785
    %v1794 = vcombine.high %v1792, %v1792
    %v1796 = vunpack.c.l.s4 1966171168
    %v1797 = vunpack.c.0.s8 %v1796
    %v1798 = vlaneseq
    %v1799 = vshrl.u32 %v1798, 7
    %v1800 = vsub.s32 %v1797, %v1799
    %v1801 = vrot.slane %v1768, %v1800
    %v1802 = vcombine.high %v1801, %v1801
    %v1804 = vunpack.c.l.s4 1966171168
    %v1805 = vunpack.c.0.s8 %v1804
    %v1806 = vlaneseq
    %v1807 = vshrl.u32 %v1806, 7
    %v1808 = vsub.s32 %v1805, %v1807
    %v1809 = vrot.slane %v1801, %v1808
    %v1811 = vunpack.c.l.s4 1966171168
    %v1812 = vunpack.c.0.s8 %v1811
    %v1813 = vlaneseq
    %v1814 = vshrl.u32 %v1813, 7
    %v1815 = vsub.s32 %v1812, %v1814
    %v1816 = vrot.slane %v1802, %v1815
    %v1817 = vcombine.high %v1809, %v1809
    %v1818 = vcombine.high %v1816, %v1816
    %v1819 = vcombine.low %v1785, %v1793
    %v1820 = vcombine.low %v1792, %v1794
    %v1822 = vunpack.c.l.s4 1935823168
    %v1823 = vunpack.c.0.s8 %v1822
    %v1824 = vlaneseq
    %v1825 = vshrl.u32 %v1824, 7
    %v1826 = vsub.s32 %v1823, %v1825
    %v1827 = vrot.slane %v1819, %v1826
    %v1829 = vunpack.c.l.s4 1935823168
    %v1830 = vunpack.c.0.s8 %v1829
    %v1831 = vlaneseq
    %v1832 = vshrl.u32 %v1831, 7
    %v1833 = vsub.s32 %v1830, %v1832
    %v1834 = vrot.slane %v1820, %v1833
    %v1835 = vcombine.low %v1827, %v1834
    %v1837 = vunpack.c.l.s4 1935823168
    %v1838 = vunpack.c.0.s8 %v1837
    %v1839 = vlaneseq
    %v1840 = vshrl.u32 %v1839, 7
    %v1841 = vsub.s32 %v1838, %v1840
    %v1842 = vrot.slane %v1835, %v1841
    %v1843 = vcombine.low %v1809, %v1817
    %v1844 = vcombine.low %v1816, %v1818
    %v1846 = vunpack.c.l.s4 1935823168
    %v1847 = vunpack.c.0.s8 %v1846
    %v1848 = vlaneseq
    %v1849 = vshrl.u32 %v1848, 7
    %v1850 = vsub.s32 %v1847, %v1849
    %v1851 = vrot.slane %v1843, %v1850
    %v1853 = vunpack.c.l.s4 1935823168
    %v1854 = vunpack.c.0.s8 %v1853
    %v1855 = vlaneseq
    %v1856 = vshrl.u32 %v1855, 7
    %v1857 = vsub.s32 %v1854, %v1856
    %v1858 = vrot.slane %v1844, %v1857
    %v1859 = vcombine.low %v1851, %v1858
    %v1861 = vunpack.c.l.s4 1935823168
    %v1862 = vunpack.c.0.s8 %v1861
    %v1863 = vlaneseq
    %v1864 = vshrl.u32 %v1863, 7
    %v1865 = vsub.s32 %v1862, %v1864
    %v1866 = vrot.slane %v1859, %v1865
    %v1867 = vunpack.c.l.b16 %v1842
    %v1868 = vunpack.c.l.b16 %v1866
    %1869 = vset.pattern.permute.xlu0 11
    %1870 = vperm.xlu0 %1869, %v1867
    %v1871 = vpop.permute.xlu0 %1870
    %1872 = vset.pattern.permute.xlu0 11
    %1873 = vperm.xlu0 %1872, %v1868
    %v1874 = vpop.permute.xlu0 %1873
    %v1875 = vadd.s32 %v356, 4294967216
    %v1876 = vlaneseq
    %v1877 = vshrl.u32 %v1876, 7
    %v1878 = vsub.s32 %v1875, %v1877
    %v1879 = vrot.slane %v1871, %v1878
    %v1880 = vlaneseq
    %v1881 = vshrl.u32 %v1880, 7
    %v1882 = vsub.s32 %v1875, %v1881
    %v1883 = vrot.slane %v1874, %v1882
    %v1884 = vsel %vm366, %v1883, %v1879
    %v1885 = vpack.c.b16 %v1884, %v1884
    %v1887 = vunpack.c.l.s4 1966171168
    %v1888 = vunpack.c.0.s8 %v1887
    %v1889 = vlaneseq
    %v1890 = vshrl.u32 %v1889, 7
    %v1891 = vsub.s32 %v1888, %v1890
    %v1892 = vrot.slane %v1885, %v1891
    %v1894 = vunpack.c.l.s4 1966171168
    %v1895 = vunpack.c.0.s8 %v1894
    %v1896 = vlaneseq
    %v1897 = vshrl.u32 %v1896, 7
    %v1898 = vsub.s32 %v1895, %v1897
    %v1899 = vrot.slane %v1892, %v1898
    %vm1901 = vcmask 713344
    %1902 = vst.msk [vmem:[#allocation2 + $0x1] sm:$0x1] %vm1901, %v1899
    %v1903 = vadd.f32 %v237, %v116
    %v1904 = vadd.f32 %v242, %v119
    %v1905 = vpack.c.bf16 %v1903, %v1903
    %v1906 = vpack.c.bf16 %v1904, %v1904
    %v1910 = vunpack.c.l.s4 1966171168
    %v1911 = vunpack.c.0.s8 %v1910
    %v1912 = vlaneseq
    %v1913 = vshrl.u32 %v1912, 7
    %v1914 = vsub.s32 %v1911, %v1913
    %v1915 = vrot.slane %v1905, %v1914
    %v1916 = vcombine.high %v1915, %v1915
    %v1918 = vunpack.c.l.s4 1966171168
    %v1919 = vunpack.c.0.s8 %v1918
    %v1920 = vlaneseq
    %v1921 = vshrl.u32 %v1920, 7
    %v1922 = vsub.s32 %v1919, %v1921
    %v1923 = vrot.slane %v1915, %v1922
    %v1925 = vunpack.c.l.s4 1966171168
    %v1926 = vunpack.c.0.s8 %v1925
    %v1927 = vlaneseq
    %v1928 = vshrl.u32 %v1927, 7
    %v1929 = vsub.s32 %v1926, %v1928
    %v1930 = vrot.slane %v1916, %v1929
    %v1931 = vcombine.high %v1923, %v1923
    %v1932 = vcombine.high %v1930, %v1930
    %v1934 = vunpack.c.l.s4 1966171168
    %v1935 = vunpack.c.0.s8 %v1934
    %v1936 = vlaneseq
    %v1937 = vshrl.u32 %v1936, 7
    %v1938 = vsub.s32 %v1935, %v1937
    %v1939 = vrot.slane %v1906, %v1938
    %v1940 = vcombine.high %v1939, %v1939
    %v1942 = vunpack.c.l.s4 1966171168
    %v1943 = vunpack.c.0.s8 %v1942
    %v1944 = vlaneseq
    %v1945 = vshrl.u32 %v1944, 7
    %v1946 = vsub.s32 %v1943, %v1945
    %v1947 = vrot.slane %v1939, %v1946
    %v1949 = vunpack.c.l.s4 1966171168
    %v1950 = vunpack.c.0.s8 %v1949
    %v1951 = vlaneseq
    %v1952 = vshrl.u32 %v1951, 7
    %v1953 = vsub.s32 %v1950, %v1952
    %v1954 = vrot.slane %v1940, %v1953
    %v1955 = vcombine.high %v1947, %v1947
    %v1956 = vcombine.high %v1954, %v1954
    %v1957 = vcombine.low %v1923, %v1931
    %v1958 = vcombine.low %v1930, %v1932
    %v1960 = vunpack.c.l.s4 1935823168
    %v1961 = vunpack.c.0.s8 %v1960
    %v1962 = vlaneseq
    %v1963 = vshrl.u32 %v1962, 7
    %v1964 = vsub.s32 %v1961, %v1963
    %v1965 = vrot.slane %v1957, %v1964
    %v1967 = vunpack.c.l.s4 1935823168
    %v1968 = vunpack.c.0.s8 %v1967
    %v1969 = vlaneseq
    %v1970 = vshrl.u32 %v1969, 7
    %v1971 = vsub.s32 %v1968, %v1970
    %v1972 = vrot.slane %v1958, %v1971
    %v1973 = vcombine.low %v1965, %v1972
    %v1975 = vunpack.c.l.s4 1935823168
    %v1976 = vunpack.c.0.s8 %v1975
    %v1977 = vlaneseq
    %v1978 = vshrl.u32 %v1977, 7
    %v1979 = vsub.s32 %v1976, %v1978
    %v1980 = vrot.slane %v1973, %v1979
    %v1981 = vcombine.low %v1947, %v1955
    %v1982 = vcombine.low %v1954, %v1956
    %v1984 = vunpack.c.l.s4 1935823168
    %v1985 = vunpack.c.0.s8 %v1984
    %v1986 = vlaneseq
    %v1987 = vshrl.u32 %v1986, 7
    %v1988 = vsub.s32 %v1985, %v1987
    %v1989 = vrot.slane %v1981, %v1988
    %v1991 = vunpack.c.l.s4 1935823168
    %v1992 = vunpack.c.0.s8 %v1991
    %v1993 = vlaneseq
    %v1994 = vshrl.u32 %v1993, 7
    %v1995 = vsub.s32 %v1992, %v1994
    %v1996 = vrot.slane %v1982, %v1995
    %v1997 = vcombine.low %v1989, %v1996
    %v1999 = vunpack.c.l.s4 1935823168
    %v2000 = vunpack.c.0.s8 %v1999
    %v2001 = vlaneseq
    %v2002 = vshrl.u32 %v2001, 7
    %v2003 = vsub.s32 %v2000, %v2002
    %v2004 = vrot.slane %v1997, %v2003
    %v2005 = vunpack.c.l.b16 %v1980
    %v2006 = vunpack.c.l.b16 %v2004
    %2007 = vset.pattern.permute.xlu0 12
    %2008 = vperm.xlu0 %2007, %v2005
    %v2009 = vpop.permute.xlu0 %2008
    %2010 = vset.pattern.permute.xlu0 12
    %2011 = vperm.xlu0 %2010, %v2006
    %v2012 = vpop.permute.xlu0 %2011
    %v2013 = vadd.s32 %v356, 4294967208
    %v2014 = vlaneseq
    %v2015 = vshrl.u32 %v2014, 7
    %v2016 = vsub.s32 %v2013, %v2015
    %v2017 = vrot.slane %v2009, %v2016
    %v2018 = vlaneseq
    %v2019 = vshrl.u32 %v2018, 7
    %v2020 = vsub.s32 %v2013, %v2019
    %v2021 = vrot.slane %v2012, %v2020
    %v2022 = vsel %vm366, %v2021, %v2017
    %v2023 = vpack.c.b16 %v2022, %v2022
    %v2025 = vunpack.c.l.s4 1966171168
    %v2026 = vunpack.c.0.s8 %v2025
    %v2027 = vlaneseq
    %v2028 = vshrl.u32 %v2027, 7
    %v2029 = vsub.s32 %v2026, %v2028
    %v2030 = vrot.slane %v2023, %v2029
    %v2032 = vunpack.c.l.s4 1966171168
    %v2033 = vunpack.c.0.s8 %v2032
    %v2034 = vlaneseq
    %v2035 = vshrl.u32 %v2034, 7
    %v2036 = vsub.s32 %v2033, %v2035
    %v2037 = vrot.slane %v2030, %v2036
    %vm2039 = vcmask 778944
    %2040 = vst.msk [vmem:[#allocation2 + $0x1] sm:$0x1] %vm2039, %v2037
    %v2041 = vadd.f32 %v237, %v122
    %v2042 = vadd.f32 %v242, %v125
    %v2043 = vpack.c.bf16 %v2041, %v2041
    %v2044 = vpack.c.bf16 %v2042, %v2042
    %v2048 = vunpack.c.l.s4 1966171168
    %v2049 = vunpack.c.0.s8 %v2048
    %v2050 = vlaneseq
    %v2051 = vshrl.u32 %v2050, 7
    %v2052 = vsub.s32 %v2049, %v2051
    %v2053 = vrot.slane %v2043, %v2052
    %v2054 = vcombine.high %v2053, %v2053
    %v2056 = vunpack.c.l.s4 1966171168
    %v2057 = vunpack.c.0.s8 %v2056
    %v2058 = vlaneseq
    %v2059 = vshrl.u32 %v2058, 7
    %v2060 = vsub.s32 %v2057, %v2059
    %v2061 = vrot.slane %v2053, %v2060
    %v2063 = vunpack.c.l.s4 1966171168
    %v2064 = vunpack.c.0.s8 %v2063
    %v2065 = vlaneseq
    %v2066 = vshrl.u32 %v2065, 7
    %v2067 = vsub.s32 %v2064, %v2066
    %v2068 = vrot.slane %v2054, %v2067
    %v2069 = vcombine.high %v2061, %v2061
    %v2070 = vcombine.high %v2068, %v2068
    %v2072 = vunpack.c.l.s4 1966171168
    %v2073 = vunpack.c.0.s8 %v2072
    %v2074 = vlaneseq
    %v2075 = vshrl.u32 %v2074, 7
    %v2076 = vsub.s32 %v2073, %v2075
    %v2077 = vrot.slane %v2044, %v2076
    %v2078 = vcombine.high %v2077, %v2077
    %v2080 = vunpack.c.l.s4 1966171168
    %v2081 = vunpack.c.0.s8 %v2080
    %v2082 = vlaneseq
    %v2083 = vshrl.u32 %v2082, 7
    %v2084 = vsub.s32 %v2081, %v2083
    %v2085 = vrot.slane %v2077, %v2084
    %v2087 = vunpack.c.l.s4 1966171168
    %v2088 = vunpack.c.0.s8 %v2087
    %v2089 = vlaneseq
    %v2090 = vshrl.u32 %v2089, 7
    %v2091 = vsub.s32 %v2088, %v2090
    %v2092 = vrot.slane %v2078, %v2091
    %v2093 = vcombine.high %v2085, %v2085
    %v2094 = vcombine.high %v2092, %v2092
    %v2095 = vcombine.low %v2061, %v2069
    %v2096 = vcombine.low %v2068, %v2070
    %v2098 = vunpack.c.l.s4 1935823168
    %v2099 = vunpack.c.0.s8 %v2098
    %v2100 = vlaneseq
    %v2101 = vshrl.u32 %v2100, 7
    %v2102 = vsub.s32 %v2099, %v2101
    %v2103 = vrot.slane %v2095, %v2102
    %v2105 = vunpack.c.l.s4 1935823168
    %v2106 = vunpack.c.0.s8 %v2105
    %v2107 = vlaneseq
    %v2108 = vshrl.u32 %v2107, 7
    %v2109 = vsub.s32 %v2106, %v2108
    %v2110 = vrot.slane %v2096, %v2109
    %v2111 = vcombine.low %v2103, %v2110
    %v2113 = vunpack.c.l.s4 1935823168
    %v2114 = vunpack.c.0.s8 %v2113
    %v2115 = vlaneseq
    %v2116 = vshrl.u32 %v2115, 7
    %v2117 = vsub.s32 %v2114, %v2116
    %v2118 = vrot.slane %v2111, %v2117
    %v2119 = vcombine.low %v2085, %v2093
    %v2120 = vcombine.low %v2092, %v2094
    %v2122 = vunpack.c.l.s4 1935823168
    %v2123 = vunpack.c.0.s8 %v2122
    %v2124 = vlaneseq
    %v2125 = vshrl.u32 %v2124, 7
    %v2126 = vsub.s32 %v2123, %v2125
    %v2127 = vrot.slane %v2119, %v2126
    %v2129 = vunpack.c.l.s4 1935823168
    %v2130 = vunpack.c.0.s8 %v2129
    %v2131 = vlaneseq
    %v2132 = vshrl.u32 %v2131, 7
    %v2133 = vsub.s32 %v2130, %v2132
    %v2134 = vrot.slane %v2120, %v2133
    %v2135 = vcombine.low %v2127, %v2134
    %v2137 = vunpack.c.l.s4 1935823168
    %v2138 = vunpack.c.0.s8 %v2137
    %v2139 = vlaneseq
    %v2140 = vshrl.u32 %v2139, 7
    %v2141 = vsub.s32 %v2138, %v2140
    %v2142 = vrot.slane %v2135, %v2141
    %v2143 = vunpack.c.l.b16 %v2118
    %v2144 = vunpack.c.l.b16 %v2142
    %2145 = vset.pattern.permute.xlu0 13
    %2146 = vperm.xlu0 %2145, %v2143
    %v2147 = vpop.permute.xlu0 %2146
    %2148 = vset.pattern.permute.xlu0 13
    %2149 = vperm.xlu0 %2148, %v2144
    %v2150 = vpop.permute.xlu0 %2149
    %v2151 = vadd.s32 %v356, 4294967200
    %v2152 = vlaneseq
    %v2153 = vshrl.u32 %v2152, 7
    %v2154 = vsub.s32 %v2151, %v2153
    %v2155 = vrot.slane %v2147, %v2154
    %v2156 = vlaneseq
    %v2157 = vshrl.u32 %v2156, 7
    %v2158 = vsub.s32 %v2151, %v2157
    %v2159 = vrot.slane %v2150, %v2158
    %v2160 = vsel %vm366, %v2159, %v2155
    %v2161 = vpack.c.b16 %v2160, %v2160
    %v2163 = vunpack.c.l.s4 1966171168
    %v2164 = vunpack.c.0.s8 %v2163
    %v2165 = vlaneseq
    %v2166 = vshrl.u32 %v2165, 7
    %v2167 = vsub.s32 %v2164, %v2166
    %v2168 = vrot.slane %v2161, %v2167
    %v2170 = vunpack.c.l.s4 1966171168
    %v2171 = vunpack.c.0.s8 %v2170
    %v2172 = vlaneseq
    %v2173 = vshrl.u32 %v2172, 7
    %v2174 = vsub.s32 %v2171, %v2173
    %v2175 = vrot.slane %v2168, %v2174
    %vm2177 = vcmask 844544
    %2178 = vst.msk [vmem:[#allocation2 + $0x1] sm:$0x1] %vm2177, %v2175
    %v2179 = vadd.f32 %v237, %v128
    %v2180 = vadd.f32 %v242, %v131
    %v2181 = vpack.c.bf16 %v2179, %v2179
    %v2182 = vpack.c.bf16 %v2180, %v2180
    %v2186 = vunpack.c.l.s4 1966171168
    %v2187 = vunpack.c.0.s8 %v2186
    %v2188 = vlaneseq
    %v2189 = vshrl.u32 %v2188, 7
    %v2190 = vsub.s32 %v2187, %v2189
    %v2191 = vrot.slane %v2181, %v2190
    %v2192 = vcombine.high %v2191, %v2191
    %v2194 = vunpack.c.l.s4 1966171168
    %v2195 = vunpack.c.0.s8 %v2194
    %v2196 = vlaneseq
    %v2197 = vshrl.u32 %v2196, 7
    %v2198 = vsub.s32 %v2195, %v2197
    %v2199 = vrot.slane %v2191, %v2198
    %v2201 = vunpack.c.l.s4 1966171168
    %v2202 = vunpack.c.0.s8 %v2201
    %v2203 = vlaneseq
    %v2204 = vshrl.u32 %v2203, 7
    %v2205 = vsub.s32 %v2202, %v2204
    %v2206 = vrot.slane %v2192, %v2205
    %v2207 = vcombine.high %v2199, %v2199
    %v2208 = vcombine.high %v2206, %v2206
    %v2210 = vunpack.c.l.s4 1966171168
    %v2211 = vunpack.c.0.s8 %v2210
    %v2212 = vlaneseq
    %v2213 = vshrl.u32 %v2212, 7
    %v2214 = vsub.s32 %v2211, %v2213
    %v2215 = vrot.slane %v2182, %v2214
    %v2216 = vcombine.high %v2215, %v2215
    %v2218 = vunpack.c.l.s4 1966171168
    %v2219 = vunpack.c.0.s8 %v2218
    %v2220 = vlaneseq
    %v2221 = vshrl.u32 %v2220, 7
    %v2222 = vsub.s32 %v2219, %v2221
    %v2223 = vrot.slane %v2215, %v2222
    %v2225 = vunpack.c.l.s4 1966171168
    %v2226 = vunpack.c.0.s8 %v2225
    %v2227 = vlaneseq
    %v2228 = vshrl.u32 %v2227, 7
    %v2229 = vsub.s32 %v2226, %v2228
    %v2230 = vrot.slane %v2216, %v2229
    %v2231 = vcombine.high %v2223, %v2223
    %v2232 = vcombine.high %v2230, %v2230
    %v2233 = vcombine.low %v2199, %v2207
    %v2234 = vcombine.low %v2206, %v2208
    %v2236 = vunpack.c.l.s4 1935823168
    %v2237 = vunpack.c.0.s8 %v2236
    %v2238 = vlaneseq
    %v2239 = vshrl.u32 %v2238, 7
    %v2240 = vsub.s32 %v2237, %v2239
    %v2241 = vrot.slane %v2233, %v2240
    %v2243 = vunpack.c.l.s4 1935823168
    %v2244 = vunpack.c.0.s8 %v2243
    %v2245 = vlaneseq
    %v2246 = vshrl.u32 %v2245, 7
    %v2247 = vsub.s32 %v2244, %v2246
    %v2248 = vrot.slane %v2234, %v2247
    %v2249 = vcombine.low %v2241, %v2248
    %v2251 = vunpack.c.l.s4 1935823168
    %v2252 = vunpack.c.0.s8 %v2251
    %v2253 = vlaneseq
    %v2254 = vshrl.u32 %v2253, 7
    %v2255 = vsub.s32 %v2252, %v2254
    %v2256 = vrot.slane %v2249, %v2255
    %v2257 = vcombine.low %v2223, %v2231
    %v2258 = vcombine.low %v2230, %v2232
    %v2260 = vunpack.c.l.s4 1935823168
    %v2261 = vunpack.c.0.s8 %v2260
    %v2262 = vlaneseq
    %v2263 = vshrl.u32 %v2262, 7
    %v2264 = vsub.s32 %v2261, %v2263
    %v2265 = vrot.slane %v2257, %v2264
    %v2267 = vunpack.c.l.s4 1935823168
    %v2268 = vunpack.c.0.s8 %v2267
    %v2269 = vlaneseq
    %v2270 = vshrl.u32 %v2269, 7
    %v2271 = vsub.s32 %v2268, %v2270
    %v2272 = vrot.slane %v2258, %v2271
    %v2273 = vcombine.low %v2265, %v2272
    %v2275 = vunpack.c.l.s4 1935823168
    %v2276 = vunpack.c.0.s8 %v2275
    %v2277 = vlaneseq
    %v2278 = vshrl.u32 %v2277, 7
    %v2279 = vsub.s32 %v2276, %v2278
    %v2280 = vrot.slane %v2273, %v2279
    %v2281 = vunpack.c.l.b16 %v2256
    %v2282 = vunpack.c.l.b16 %v2280
    %2283 = vset.pattern.permute.xlu0 14
    %2284 = vperm.xlu0 %2283, %v2281
    %v2285 = vpop.permute.xlu0 %2284
    %2286 = vset.pattern.permute.xlu0 14
    %2287 = vperm.xlu0 %2286, %v2282
    %v2288 = vpop.permute.xlu0 %2287
    %v2289 = vadd.s32 %v356, 4294967192
    %v2290 = vlaneseq
    %v2291 = vshrl.u32 %v2290, 7
    %v2292 = vsub.s32 %v2289, %v2291
    %v2293 = vrot.slane %v2285, %v2292
    %v2294 = vlaneseq
    %v2295 = vshrl.u32 %v2294, 7
    %v2296 = vsub.s32 %v2289, %v2295
    %v2297 = vrot.slane %v2288, %v2296
    %v2298 = vsel %vm366, %v2297, %v2293
    %v2299 = vpack.c.b16 %v2298, %v2298
    %v2301 = vunpack.c.l.s4 1966171168
    %v2302 = vunpack.c.0.s8 %v2301
    %v2303 = vlaneseq
    %v2304 = vshrl.u32 %v2303, 7
    %v2305 = vsub.s32 %v2302, %v2304
    %v2306 = vrot.slane %v2299, %v2305
    %v2308 = vunpack.c.l.s4 1966171168
    %v2309 = vunpack.c.0.s8 %v2308
    %v2310 = vlaneseq
    %v2311 = vshrl.u32 %v2310, 7
    %v2312 = vsub.s32 %v2309, %v2311
    %v2313 = vrot.slane %v2306, %v2312
    %vm2315 = vcmask 910144
    %2316 = vst.msk [vmem:[#allocation2 + $0x1] sm:$0x1] %vm2315, %v2313
    %v2317 = vadd.f32 %v237, %v134
    %v2318 = vadd.f32 %v242, %v137
    %v2319 = vpack.c.bf16 %v2317, %v2317
    %v2320 = vpack.c.bf16 %v2318, %v2318
    %v2324 = vunpack.c.l.s4 1966171168
    %v2325 = vunpack.c.0.s8 %v2324
    %v2326 = vlaneseq
    %v2327 = vshrl.u32 %v2326, 7
    %v2328 = vsub.s32 %v2325, %v2327
    %v2329 = vrot.slane %v2319, %v2328
    %v2330 = vcombine.high %v2329, %v2329
    %v2332 = vunpack.c.l.s4 1966171168
    %v2333 = vunpack.c.0.s8 %v2332
    %v2334 = vlaneseq
    %v2335 = vshrl.u32 %v2334, 7
    %v2336 = vsub.s32 %v2333, %v2335
    %v2337 = vrot.slane %v2329, %v2336
    %v2339 = vunpack.c.l.s4 1966171168
    %v2340 = vunpack.c.0.s8 %v2339
    %v2341 = vlaneseq
    %v2342 = vshrl.u32 %v2341, 7
    %v2343 = vsub.s32 %v2340, %v2342
    %v2344 = vrot.slane %v2330, %v2343
    %v2345 = vcombine.high %v2337, %v2337
    %v2346 = vcombine.high %v2344, %v2344
    %v2348 = vunpack.c.l.s4 1966171168
    %v2349 = vunpack.c.0.s8 %v2348
    %v2350 = vlaneseq
    %v2351 = vshrl.u32 %v2350, 7
    %v2352 = vsub.s32 %v2349, %v2351
    %v2353 = vrot.slane %v2320, %v2352
    %v2354 = vcombine.high %v2353, %v2353
    %v2356 = vunpack.c.l.s4 1966171168
    %v2357 = vunpack.c.0.s8 %v2356
    %v2358 = vlaneseq
    %v2359 = vshrl.u32 %v2358, 7
    %v2360 = vsub.s32 %v2357, %v2359
    %v2361 = vrot.slane %v2353, %v2360
    %v2363 = vunpack.c.l.s4 1966171168
    %v2364 = vunpack.c.0.s8 %v2363
    %v2365 = vlaneseq
    %v2366 = vshrl.u32 %v2365, 7
    %v2367 = vsub.s32 %v2364, %v2366
    %v2368 = vrot.slane %v2354, %v2367
    %v2369 = vcombine.high %v2361, %v2361
    %v2370 = vcombine.high %v2368, %v2368
    %v2371 = vcombine.low %v2337, %v2345
    %v2372 = vcombine.low %v2344, %v2346
    %v2374 = vunpack.c.l.s4 1935823168
    %v2375 = vunpack.c.0.s8 %v2374
    %v2376 = vlaneseq
    %v2377 = vshrl.u32 %v2376, 7
    %v2378 = vsub.s32 %v2375, %v2377
    %v2379 = vrot.slane %v2371, %v2378
    %v2381 = vunpack.c.l.s4 1935823168
    %v2382 = vunpack.c.0.s8 %v2381
    %v2383 = vlaneseq
    %v2384 = vshrl.u32 %v2383, 7
    %v2385 = vsub.s32 %v2382, %v2384
    %v2386 = vrot.slane %v2372, %v2385
    %v2387 = vcombine.low %v2379, %v2386
    %v2389 = vunpack.c.l.s4 1935823168
    %v2390 = vunpack.c.0.s8 %v2389
    %v2391 = vlaneseq
    %v2392 = vshrl.u32 %v2391, 7
    %v2393 = vsub.s32 %v2390, %v2392
    %v2394 = vrot.slane %v2387, %v2393
    %v2395 = vcombine.low %v2361, %v2369
    %v2396 = vcombine.low %v2368, %v2370
    %v2398 = vunpack.c.l.s4 1935823168
    %v2399 = vunpack.c.0.s8 %v2398
    %v2400 = vlaneseq
    %v2401 = vshrl.u32 %v2400, 7
    %v2402 = vsub.s32 %v2399, %v2401
    %v2403 = vrot.slane %v2395, %v2402
    %v2405 = vunpack.c.l.s4 1935823168
    %v2406 = vunpack.c.0.s8 %v2405
    %v2407 = vlaneseq
    %v2408 = vshrl.u32 %v2407, 7
    %v2409 = vsub.s32 %v2406, %v2408
    %v2410 = vrot.slane %v2396, %v2409
    %v2411 = vcombine.low %v2403, %v2410
    %v2413 = vunpack.c.l.s4 1935823168
    %v2414 = vunpack.c.0.s8 %v2413
    %v2415 = vlaneseq
    %v2416 = vshrl.u32 %v2415, 7
    %v2417 = vsub.s32 %v2414, %v2416
    %v2418 = vrot.slane %v2411, %v2417
    %v2419 = vunpack.c.l.b16 %v2394
    %v2420 = vunpack.c.l.b16 %v2418
    %2421 = vset.pattern.permute.xlu0 15
    %2422 = vperm.xlu0 %2421, %v2419
    %v2423 = vpop.permute.xlu0 %2422
    %2424 = vset.pattern.permute.xlu0 15
    %2425 = vperm.xlu0 %2424, %v2420
    %v2426 = vpop.permute.xlu0 %2425
    %v2427 = vadd.s32 %v356, 4294967184
    %v2428 = vlaneseq
    %v2429 = vshrl.u32 %v2428, 7
    %v2430 = vsub.s32 %v2427, %v2429
    %v2431 = vrot.slane %v2423, %v2430
    %v2432 = vlaneseq
    %v2433 = vshrl.u32 %v2432, 7
    %v2434 = vsub.s32 %v2427, %v2433
    %v2435 = vrot.slane %v2426, %v2434
    %v2436 = vsel %vm366, %v2435, %v2431
    %v2437 = vpack.c.b16 %v2436, %v2436
    %v2439 = vunpack.c.l.s4 1966171168
    %v2440 = vunpack.c.0.s8 %v2439
    %v2441 = vlaneseq
    %v2442 = vshrl.u32 %v2441, 7
    %v2443 = vsub.s32 %v2440, %v2442
    %v2444 = vrot.slane %v2437, %v2443
    %v2446 = vunpack.c.l.s4 1966171168
    %v2447 = vunpack.c.0.s8 %v2446
    %v2448 = vlaneseq
    %v2449 = vshrl.u32 %v2448, 7
    %v2450 = vsub.s32 %v2447, %v2449
    %v2451 = vrot.slane %v2444, %v2450
    %vm2453 = vcmask 975744
    %2454 = vst.msk [vmem:[#allocation2 + $0x1] sm:$0x1] %vm2453, %v2451
    %2457 = vrot.lane.b32.xlu0 %v237, 127
    %v2458 = vpop.permute.xlu0 %2457
    %2459 = vrot.lane.b32.xlu0 %v242, 127
    %v2460 = vpop.permute.xlu0 %2459
    %v2463 = vadd.f32 %v237, %v2458
    %v2464 = vadd.f32 %v242, %v2460
    %v2465 = vmul.f32 %v2463, 0.5
    %v2466 = vmul.f32 %v2464, 0.5
    %v2467 = vmax.f32 %v37, %v44
    %v2468 = vmax.f32 %v40, %v47
    %v2469 = vmax.f32 %v51, %v58
    %v2470 = vmax.f32 %v54, %v61
    %v2471 = vmax.f32 %v65, %v72
    %v2472 = vmax.f32 %v68, %v75
    %v2473 = vmax.f32 %v79, %v86
    %v2474 = vmax.f32 %v82, %v89
    %v2475 = vmax.f32 %v92, %v98
    %v2476 = vmax.f32 %v95, %v101
    %v2477 = vmax.f32 %v104, %v110
    %v2478 = vmax.f32 %v107, %v113
    %v2479 = vmax.f32 %v116, %v122
    %v2480 = vmax.f32 %v119, %v125
    %v2481 = vmax.f32 %v128, %v134
    %v2482 = vmax.f32 %v131, %v137
    %v2483 = vadd.f32 %v2465, %v2467
    %v2484 = vadd.f32 %v2466, %v2468
    %v2485 = vpack.c.bf16 %v2483, %v2483
    %v2486 = vpack.c.bf16 %v2484, %v2484
    %v2490 = vunpack.c.l.s4 1966171168
    %v2491 = vunpack.c.0.s8 %v2490
    %v2492 = vlaneseq
    %v2493 = vshrl.u32 %v2492, 7
    %v2494 = vsub.s32 %v2491, %v2493
    %v2495 = vrot.slane %v2485, %v2494
    %v2496 = vcombine.high %v2495, %v2495
    %v2498 = vunpack.c.l.s4 1966171168
    %v2499 = vunpack.c.0.s8 %v2498
    %v2500 = vlaneseq
    %v2501 = vshrl.u32 %v2500, 7
    %v2502 = vsub.s32 %v2499, %v2501
    %v2503 = vrot.slane %v2495, %v2502
    %v2505 = vunpack.c.l.s4 1966171168
    %v2506 = vunpack.c.0.s8 %v2505
    %v2507 = vlaneseq
    %v2508 = vshrl.u32 %v2507, 7
    %v2509 = vsub.s32 %v2506, %v2508
    %v2510 = vrot.slane %v2496, %v2509
    %v2511 = vcombine.high %v2503, %v2503
    %v2512 = vcombine.high %v2510, %v2510
    %v2514 = vunpack.c.l.s4 1966171168
    %v2515 = vunpack.c.0.s8 %v2514
    %v2516 = vlaneseq
    %v2517 = vshrl.u32 %v2516, 7
    %v2518 = vsub.s32 %v2515, %v2517
    %v2519 = vrot.slane %v2486, %v2518
    %v2520 = vcombine.high %v2519, %v2519
    %v2522 = vunpack.c.l.s4 1966171168
    %v2523 = vunpack.c.0.s8 %v2522
    %v2524 = vlaneseq
    %v2525 = vshrl.u32 %v2524, 7
    %v2526 = vsub.s32 %v2523, %v2525
    %v2527 = vrot.slane %v2519, %v2526
    %v2529 = vunpack.c.l.s4 1966171168
    %v2530 = vunpack.c.0.s8 %v2529
    %v2531 = vlaneseq
    %v2532 = vshrl.u32 %v2531, 7
    %v2533 = vsub.s32 %v2530, %v2532
    %v2534 = vrot.slane %v2520, %v2533
    %v2535 = vcombine.high %v2527, %v2527
    %v2536 = vcombine.high %v2534, %v2534
    %v2537 = vcombine.low %v2503, %v2511
    %v2538 = vcombine.low %v2510, %v2512
    %v2540 = vunpack.c.l.s4 1935823168
    %v2541 = vunpack.c.0.s8 %v2540
    %v2542 = vlaneseq
    %v2543 = vshrl.u32 %v2542, 7
    %v2544 = vsub.s32 %v2541, %v2543
    %v2545 = vrot.slane %v2537, %v2544
    %v2547 = vunpack.c.l.s4 1935823168
    %v2548 = vunpack.c.0.s8 %v2547
    %v2549 = vlaneseq
    %v2550 = vshrl.u32 %v2549, 7
    %v2551 = vsub.s32 %v2548, %v2550
    %v2552 = vrot.slane %v2538, %v2551
    %v2553 = vcombine.low %v2545, %v2552
    %v2555 = vunpack.c.l.s4 1935823168
    %v2556 = vunpack.c.0.s8 %v2555
    %v2557 = vlaneseq
    %v2558 = vshrl.u32 %v2557, 7
    %v2559 = vsub.s32 %v2556, %v2558
    %v2560 = vrot.slane %v2553, %v2559
    %v2561 = vcombine.low %v2527, %v2535
    %v2562 = vcombine.low %v2534, %v2536
    %v2564 = vunpack.c.l.s4 1935823168
    %v2565 = vunpack.c.0.s8 %v2564
    %v2566 = vlaneseq
    %v2567 = vshrl.u32 %v2566, 7
    %v2568 = vsub.s32 %v2565, %v2567
    %v2569 = vrot.slane %v2561, %v2568
    %v2571 = vunpack.c.l.s4 1935823168
    %v2572 = vunpack.c.0.s8 %v2571
    %v2573 = vlaneseq
    %v2574 = vshrl.u32 %v2573, 7
    %v2575 = vsub.s32 %v2572, %v2574
    %v2576 = vrot.slane %v2562, %v2575
    %v2577 = vcombine.low %v2569, %v2576
    %v2579 = vunpack.c.l.s4 1935823168
    %v2580 = vunpack.c.0.s8 %v2579
    %v2581 = vlaneseq
    %v2582 = vshrl.u32 %v2581, 7
    %v2583 = vsub.s32 %v2580, %v2582
    %v2584 = vrot.slane %v2577, %v2583
    %v2585 = vunpack.c.l.b16 %v2560
    %v2586 = vunpack.c.l.b16 %v2584
    %2587 = vset.pattern.permute.xlu0 0
    %2588 = vperm.xlu0 %2587, %v2585
    %v2589 = vpop.permute.xlu0 %2588
    %2590 = vset.pattern.permute.xlu0 0
    %2591 = vperm.xlu0 %2590, %v2586
    %v2592 = vpop.permute.xlu0 %2591
    %v2593 = vlaneseq
    %v2594 = vshrl.u32 %v2593, 7
    %v2595 = vsub.s32 %v1461, %v2594
    %v2596 = vrot.slane %v2589, %v2595
    %v2597 = vlaneseq
    %v2598 = vshrl.u32 %v2597, 7
    %v2599 = vsub.s32 %v1461, %v2598
    %v2600 = vrot.slane %v2592, %v2599
    %v2601 = vsel %vm366, %v2600, %v2596
    %v2602 = vpack.c.b16 %v2601, %v2601
    %v2604 = vunpack.c.l.s4 1966171168
    %v2605 = vunpack.c.0.s8 %v2604
    %v2606 = vlaneseq
    %v2607 = vshrl.u32 %v2606, 7
    %v2608 = vsub.s32 %v2605, %v2607
    %v2609 = vrot.slane %v2602, %v2608
    %v2611 = vunpack.c.l.s4 1966171168
    %v2612 = vunpack.c.0.s8 %v2611
    %v2613 = vlaneseq
    %v2614 = vshrl.u32 %v2613, 7
    %v2615 = vsub.s32 %v2612, %v2614
    %v2616 = vrot.slane %v2609, %v2615
    %2618 = vst.msk [vmem:[#allocation2] sm:$0x1] %vm1487, %v2616
    %v2619 = vadd.f32 %v2465, %v2469
    %v2620 = vadd.f32 %v2466, %v2470
    %v2621 = vpack.c.bf16 %v2619, %v2619
    %v2622 = vpack.c.bf16 %v2620, %v2620
    %v2626 = vunpack.c.l.s4 1966171168
    %v2627 = vunpack.c.0.s8 %v2626
    %v2628 = vlaneseq
    %v2629 = vshrl.u32 %v2628, 7
    %v2630 = vsub.s32 %v2627, %v2629
    %v2631 = vrot.slane %v2621, %v2630
    %v2632 = vcombine.high %v2631, %v2631
    %v2634 = vunpack.c.l.s4 1966171168
    %v2635 = vunpack.c.0.s8 %v2634
    %v2636 = vlaneseq
    %v2637 = vshrl.u32 %v2636, 7
    %v2638 = vsub.s32 %v2635, %v2637
    %v2639 = vrot.slane %v2631, %v2638
    %v2641 = vunpack.c.l.s4 1966171168
    %v2642 = vunpack.c.0.s8 %v2641
    %v2643 = vlaneseq
    %v2644 = vshrl.u32 %v2643, 7
    %v2645 = vsub.s32 %v2642, %v2644
    %v2646 = vrot.slane %v2632, %v2645
    %v2647 = vcombine.high %v2639, %v2639
    %v2648 = vcombine.high %v2646, %v2646
    %v2650 = vunpack.c.l.s4 1966171168
    %v2651 = vunpack.c.0.s8 %v2650
    %v2652 = vlaneseq
    %v2653 = vshrl.u32 %v2652, 7
    %v2654 = vsub.s32 %v2651, %v2653
    %v2655 = vrot.slane %v2622, %v2654
    %v2656 = vcombine.high %v2655, %v2655
    %v2658 = vunpack.c.l.s4 1966171168
    %v2659 = vunpack.c.0.s8 %v2658
    %v2660 = vlaneseq
    %v2661 = vshrl.u32 %v2660, 7
    %v2662 = vsub.s32 %v2659, %v2661
    %v2663 = vrot.slane %v2655, %v2662
    %v2665 = vunpack.c.l.s4 1966171168
    %v2666 = vunpack.c.0.s8 %v2665
    %v2667 = vlaneseq
    %v2668 = vshrl.u32 %v2667, 7
    %v2669 = vsub.s32 %v2666, %v2668
    %v2670 = vrot.slane %v2656, %v2669
    %v2671 = vcombine.high %v2663, %v2663
    %v2672 = vcombine.high %v2670, %v2670
    %v2673 = vcombine.low %v2639, %v2647
    %v2674 = vcombine.low %v2646, %v2648
    %v2676 = vunpack.c.l.s4 1935823168
    %v2677 = vunpack.c.0.s8 %v2676
    %v2678 = vlaneseq
    %v2679 = vshrl.u32 %v2678, 7
    %v2680 = vsub.s32 %v2677, %v2679
    %v2681 = vrot.slane %v2673, %v2680
    %v2683 = vunpack.c.l.s4 1935823168
    %v2684 = vunpack.c.0.s8 %v2683
    %v2685 = vlaneseq
    %v2686 = vshrl.u32 %v2685, 7
    %v2687 = vsub.s32 %v2684, %v2686
    %v2688 = vrot.slane %v2674, %v2687
    %v2689 = vcombine.low %v2681, %v2688
    %v2691 = vunpack.c.l.s4 1935823168
    %v2692 = vunpack.c.0.s8 %v2691
    %v2693 = vlaneseq
    %v2694 = vshrl.u32 %v2693, 7
    %v2695 = vsub.s32 %v2692, %v2694
    %v2696 = vrot.slane %v2689, %v2695
    %v2697 = vcombine.low %v2663, %v2671
    %v2698 = vcombine.low %v2670, %v2672
    %v2700 = vunpack.c.l.s4 1935823168
    %v2701 = vunpack.c.0.s8 %v2700
    %v2702 = vlaneseq
    %v2703 = vshrl.u32 %v2702, 7
    %v2704 = vsub.s32 %v2701, %v2703
    %v2705 = vrot.slane %v2697, %v2704
    %v2707 = vunpack.c.l.s4 1935823168
    %v2708 = vunpack.c.0.s8 %v2707
    %v2709 = vlaneseq
    %v2710 = vshrl.u32 %v2709, 7
    %v2711 = vsub.s32 %v2708, %v2710
    %v2712 = vrot.slane %v2698, %v2711
    %v2713 = vcombine.low %v2705, %v2712
    %v2715 = vunpack.c.l.s4 1935823168
    %v2716 = vunpack.c.0.s8 %v2715
    %v2717 = vlaneseq
    %v2718 = vshrl.u32 %v2717, 7
    %v2719 = vsub.s32 %v2716, %v2718
    %v2720 = vrot.slane %v2713, %v2719
    %v2721 = vunpack.c.l.b16 %v2696
    %v2722 = vunpack.c.l.b16 %v2720
    %2723 = vset.pattern.permute.xlu0 2
    %2724 = vperm.xlu0 %2723, %v2721
    %v2725 = vpop.permute.xlu0 %2724
    %2726 = vset.pattern.permute.xlu0 2
    %2727 = vperm.xlu0 %2726, %v2722
    %v2728 = vpop.permute.xlu0 %2727
    %v2729 = vlaneseq
    %v2730 = vshrl.u32 %v2729, 7
    %v2731 = vsub.s32 %v1599, %v2730
    %v2732 = vrot.slane %v2725, %v2731
    %v2733 = vlaneseq
    %v2734 = vshrl.u32 %v2733, 7
    %v2735 = vsub.s32 %v1599, %v2734
    %v2736 = vrot.slane %v2728, %v2735
    %v2737 = vsel %vm366, %v2736, %v2732
    %v2738 = vpack.c.b16 %v2737, %v2737
    %v2740 = vunpack.c.l.s4 1966171168
    %v2741 = vunpack.c.0.s8 %v2740
    %v2742 = vlaneseq
    %v2743 = vshrl.u32 %v2742, 7
    %v2744 = vsub.s32 %v2741, %v2743
    %v2745 = vrot.slane %v2738, %v2744
    %v2747 = vunpack.c.l.s4 1966171168
    %v2748 = vunpack.c.0.s8 %v2747
    %v2749 = vlaneseq
    %v2750 = vshrl.u32 %v2749, 7
    %v2751 = vsub.s32 %v2748, %v2750
    %v2752 = vrot.slane %v2745, %v2751
    %2754 = vst.msk [vmem:[#allocation2] sm:$0x1] %vm1625, %v2752
    %v2755 = vadd.f32 %v2465, %v2471
    %v2756 = vadd.f32 %v2466, %v2472
    %v2757 = vpack.c.bf16 %v2755, %v2755
    %v2758 = vpack.c.bf16 %v2756, %v2756
    %v2762 = vunpack.c.l.s4 1966171168
    %v2763 = vunpack.c.0.s8 %v2762
    %v2764 = vlaneseq
    %v2765 = vshrl.u32 %v2764, 7
    %v2766 = vsub.s32 %v2763, %v2765
    %v2767 = vrot.slane %v2757, %v2766
    %v2768 = vcombine.high %v2767, %v2767
    %v2770 = vunpack.c.l.s4 1966171168
    %v2771 = vunpack.c.0.s8 %v2770
    %v2772 = vlaneseq
    %v2773 = vshrl.u32 %v2772, 7
    %v2774 = vsub.s32 %v2771, %v2773
    %v2775 = vrot.slane %v2767, %v2774
    %v2777 = vunpack.c.l.s4 1966171168
    %v2778 = vunpack.c.0.s8 %v2777
    %v2779 = vlaneseq
    %v2780 = vshrl.u32 %v2779, 7
    %v2781 = vsub.s32 %v2778, %v2780
    %v2782 = vrot.slane %v2768, %v2781
    %v2783 = vcombine.high %v2775, %v2775
    %v2784 = vcombine.high %v2782, %v2782
    %v2786 = vunpack.c.l.s4 1966171168
    %v2787 = vunpack.c.0.s8 %v2786
    %v2788 = vlaneseq
    %v2789 = vshrl.u32 %v2788, 7
    %v2790 = vsub.s32 %v2787, %v2789
    %v2791 = vrot.slane %v2758, %v2790
    %v2792 = vcombine.high %v2791, %v2791
    %v2794 = vunpack.c.l.s4 1966171168
    %v2795 = vunpack.c.0.s8 %v2794
    %v2796 = vlaneseq
    %v2797 = vshrl.u32 %v2796, 7
    %v2798 = vsub.s32 %v2795, %v2797
    %v2799 = vrot.slane %v2791, %v2798
    %v2801 = vunpack.c.l.s4 1966171168
    %v2802 = vunpack.c.0.s8 %v2801
    %v2803 = vlaneseq
    %v2804 = vshrl.u32 %v2803, 7
    %v2805 = vsub.s32 %v2802, %v2804
    %v2806 = vrot.slane %v2792, %v2805
    %v2807 = vcombine.high %v2799, %v2799
    %v2808 = vcombine.high %v2806, %v2806
    %v2809 = vcombine.low %v2775, %v2783
    %v2810 = vcombine.low %v2782, %v2784
    %v2812 = vunpack.c.l.s4 1935823168
    %v2813 = vunpack.c.0.s8 %v2812
    %v2814 = vlaneseq
    %v2815 = vshrl.u32 %v2814, 7
    %v2816 = vsub.s32 %v2813, %v2815
    %v2817 = vrot.slane %v2809, %v2816
    %v2819 = vunpack.c.l.s4 1935823168
    %v2820 = vunpack.c.0.s8 %v2819
    %v2821 = vlaneseq
    %v2822 = vshrl.u32 %v2821, 7
    %v2823 = vsub.s32 %v2820, %v2822
    %v2824 = vrot.slane %v2810, %v2823
    %v2825 = vcombine.low %v2817, %v2824
    %v2827 = vunpack.c.l.s4 1935823168
    %v2828 = vunpack.c.0.s8 %v2827
    %v2829 = vlaneseq
    %v2830 = vshrl.u32 %v2829, 7
    %v2831 = vsub.s32 %v2828, %v2830
    %v2832 = vrot.slane %v2825, %v2831
    %v2833 = vcombine.low %v2799, %v2807
    %v2834 = vcombine.low %v2806, %v2808
    %v2836 = vunpack.c.l.s4 1935823168
    %v2837 = vunpack.c.0.s8 %v2836
    %v2838 = vlaneseq
    %v2839 = vshrl.u32 %v2838, 7
    %v2840 = vsub.s32 %v2837, %v2839
    %v2841 = vrot.slane %v2833, %v2840
    %v2843 = vunpack.c.l.s4 1935823168
    %v2844 = vunpack.c.0.s8 %v2843
    %v2845 = vlaneseq
    %v2846 = vshrl.u32 %v2845, 7
    %v2847 = vsub.s32 %v2844, %v2846
    %v2848 = vrot.slane %v2834, %v2847
    %v2849 = vcombine.low %v2841, %v2848
    %v2851 = vunpack.c.l.s4 1935823168
    %v2852 = vunpack.c.0.s8 %v2851
    %v2853 = vlaneseq
    %v2854 = vshrl.u32 %v2853, 7
    %v2855 = vsub.s32 %v2852, %v2854
    %v2856 = vrot.slane %v2849, %v2855
    %v2857 = vunpack.c.l.b16 %v2832
    %v2858 = vunpack.c.l.b16 %v2856
    %2859 = vset.pattern.permute.xlu0 4
    %2860 = vperm.xlu0 %2859, %v2857
    %v2861 = vpop.permute.xlu0 %2860
    %2862 = vset.pattern.permute.xlu0 4
    %2863 = vperm.xlu0 %2862, %v2858
    %v2864 = vpop.permute.xlu0 %2863
    %v2865 = vlaneseq
    %v2866 = vshrl.u32 %v2865, 7
    %v2867 = vsub.s32 %v1737, %v2866
    %v2868 = vrot.slane %v2861, %v2867
    %v2869 = vlaneseq
    %v2870 = vshrl.u32 %v2869, 7
    %v2871 = vsub.s32 %v1737, %v2870
    %v2872 = vrot.slane %v2864, %v2871
    %v2873 = vsel %vm366, %v2872, %v2868
    %v2874 = vpack.c.b16 %v2873, %v2873
    %v2876 = vunpack.c.l.s4 1966171168
    %v2877 = vunpack.c.0.s8 %v2876
    %v2878 = vlaneseq
    %v2879 = vshrl.u32 %v2878, 7
    %v2880 = vsub.s32 %v2877, %v2879
    %v2881 = vrot.slane %v2874, %v2880
    %v2883 = vunpack.c.l.s4 1966171168
    %v2884 = vunpack.c.0.s8 %v2883
    %v2885 = vlaneseq
    %v2886 = vshrl.u32 %v2885, 7
    %v2887 = vsub.s32 %v2884, %v2886
    %v2888 = vrot.slane %v2881, %v2887
    %2890 = vst.msk [vmem:[#allocation2] sm:$0x1] %vm1763, %v2888
    %v2891 = vadd.f32 %v2465, %v2473
    %v2892 = vadd.f32 %v2466, %v2474
    %v2893 = vpack.c.bf16 %v2891, %v2891
    %v2894 = vpack.c.bf16 %v2892, %v2892
    %v2898 = vunpack.c.l.s4 1966171168
    %v2899 = vunpack.c.0.s8 %v2898
    %v2900 = vlaneseq
    %v2901 = vshrl.u32 %v2900, 7
    %v2902 = vsub.s32 %v2899, %v2901
    %v2903 = vrot.slane %v2893, %v2902
    %v2904 = vcombine.high %v2903, %v2903
    %v2906 = vunpack.c.l.s4 1966171168
    %v2907 = vunpack.c.0.s8 %v2906
    %v2908 = vlaneseq
    %v2909 = vshrl.u32 %v2908, 7
    %v2910 = vsub.s32 %v2907, %v2909
    %v2911 = vrot.slane %v2903, %v2910
    %v2913 = vunpack.c.l.s4 1966171168
    %v2914 = vunpack.c.0.s8 %v2913
    %v2915 = vlaneseq
    %v2916 = vshrl.u32 %v2915, 7
    %v2917 = vsub.s32 %v2914, %v2916
    %v2918 = vrot.slane %v2904, %v2917
    %v2919 = vcombine.high %v2911, %v2911
    %v2920 = vcombine.high %v2918, %v2918
    %v2922 = vunpack.c.l.s4 1966171168
    %v2923 = vunpack.c.0.s8 %v2922
    %v2924 = vlaneseq
    %v2925 = vshrl.u32 %v2924, 7
    %v2926 = vsub.s32 %v2923, %v2925
    %v2927 = vrot.slane %v2894, %v2926
    %v2928 = vcombine.high %v2927, %v2927
    %v2930 = vunpack.c.l.s4 1966171168
    %v2931 = vunpack.c.0.s8 %v2930
    %v2932 = vlaneseq
    %v2933 = vshrl.u32 %v2932, 7
    %v2934 = vsub.s32 %v2931, %v2933
    %v2935 = vrot.slane %v2927, %v2934
    %v2937 = vunpack.c.l.s4 1966171168
    %v2938 = vunpack.c.0.s8 %v2937
    %v2939 = vlaneseq
    %v2940 = vshrl.u32 %v2939, 7
    %v2941 = vsub.s32 %v2938, %v2940
    %v2942 = vrot.slane %v2928, %v2941
    %v2943 = vcombine.high %v2935, %v2935
    %v2944 = vcombine.high %v2942, %v2942
    %v2945 = vcombine.low %v2911, %v2919
    %v2946 = vcombine.low %v2918, %v2920
    %v2948 = vunpack.c.l.s4 1935823168
    %v2949 = vunpack.c.0.s8 %v2948
    %v2950 = vlaneseq
    %v2951 = vshrl.u32 %v2950, 7
    %v2952 = vsub.s32 %v2949, %v2951
    %v2953 = vrot.slane %v2945, %v2952
    %v2955 = vunpack.c.l.s4 1935823168
    %v2956 = vunpack.c.0.s8 %v2955
    %v2957 = vlaneseq
    %v2958 = vshrl.u32 %v2957, 7
    %v2959 = vsub.s32 %v2956, %v2958
    %v2960 = vrot.slane %v2946, %v2959
    %v2961 = vcombine.low %v2953, %v2960
    %v2963 = vunpack.c.l.s4 1935823168
    %v2964 = vunpack.c.0.s8 %v2963
    %v2965 = vlaneseq
    %v2966 = vshrl.u32 %v2965, 7
    %v2967 = vsub.s32 %v2964, %v2966
    %v2968 = vrot.slane %v2961, %v2967
    %v2969 = vcombine.low %v2935, %v2943
    %v2970 = vcombine.low %v2942, %v2944
    %v2972 = vunpack.c.l.s4 1935823168
    %v2973 = vunpack.c.0.s8 %v2972
    %v2974 = vlaneseq
    %v2975 = vshrl.u32 %v2974, 7
    %v2976 = vsub.s32 %v2973, %v2975
    %v2977 = vrot.slane %v2969, %v2976
    %v2979 = vunpack.c.l.s4 1935823168
    %v2980 = vunpack.c.0.s8 %v2979
    %v2981 = vlaneseq
    %v2982 = vshrl.u32 %v2981, 7
    %v2983 = vsub.s32 %v2980, %v2982
    %v2984 = vrot.slane %v2970, %v2983
    %v2985 = vcombine.low %v2977, %v2984
    %v2987 = vunpack.c.l.s4 1935823168
    %v2988 = vunpack.c.0.s8 %v2987
    %v2989 = vlaneseq
    %v2990 = vshrl.u32 %v2989, 7
    %v2991 = vsub.s32 %v2988, %v2990
    %v2992 = vrot.slane %v2985, %v2991
    %v2993 = vunpack.c.l.b16 %v2968
    %v2994 = vunpack.c.l.b16 %v2992
    %2995 = vset.pattern.permute.xlu0 6
    %2996 = vperm.xlu0 %2995, %v2993
    %v2997 = vpop.permute.xlu0 %2996
    %2998 = vset.pattern.permute.xlu0 6
    %2999 = vperm.xlu0 %2998, %v2994
    %v3000 = vpop.permute.xlu0 %2999
    %v3001 = vlaneseq
    %v3002 = vshrl.u32 %v3001, 7
    %v3003 = vsub.s32 %v1875, %v3002
    %v3004 = vrot.slane %v2997, %v3003
    %v3005 = vlaneseq
    %v3006 = vshrl.u32 %v3005, 7
    %v3007 = vsub.s32 %v1875, %v3006
    %v3008 = vrot.slane %v3000, %v3007
    %v3009 = vsel %vm366, %v3008, %v3004
    %v3010 = vpack.c.b16 %v3009, %v3009
    %v3012 = vunpack.c.l.s4 1966171168
    %v3013 = vunpack.c.0.s8 %v3012
    %v3014 = vlaneseq
    %v3015 = vshrl.u32 %v3014, 7
    %v3016 = vsub.s32 %v3013, %v3015
    %v3017 = vrot.slane %v3010, %v3016
    %v3019 = vunpack.c.l.s4 1966171168
    %v3020 = vunpack.c.0.s8 %v3019
    %v3021 = vlaneseq
    %v3022 = vshrl.u32 %v3021, 7
    %v3023 = vsub.s32 %v3020, %v3022
    %v3024 = vrot.slane %v3017, %v3023
    %3026 = vst.msk [vmem:[#allocation2] sm:$0x1] %vm1901, %v3024
    %v3027 = vadd.f32 %v2465, %v2475
    %v3028 = vadd.f32 %v2466, %v2476
    %v3029 = vpack.c.bf16 %v3027, %v3027
    %v3030 = vpack.c.bf16 %v3028, %v3028
    %v3034 = vunpack.c.l.s4 1966171168
    %v3035 = vunpack.c.0.s8 %v3034
    %v3036 = vlaneseq
    %v3037 = vshrl.u32 %v3036, 7
    %v3038 = vsub.s32 %v3035, %v3037
    %v3039 = vrot.slane %v3029, %v3038
    %v3040 = vcombine.high %v3039, %v3039
    %v3042 = vunpack.c.l.s4 1966171168
    %v3043 = vunpack.c.0.s8 %v3042
    %v3044 = vlaneseq
    %v3045 = vshrl.u32 %v3044, 7
    %v3046 = vsub.s32 %v3043, %v3045
    %v3047 = vrot.slane %v3039, %v3046
    %v3049 = vunpack.c.l.s4 1966171168
    %v3050 = vunpack.c.0.s8 %v3049
    %v3051 = vlaneseq
    %v3052 = vshrl.u32 %v3051, 7
    %v3053 = vsub.s32 %v3050, %v3052
    %v3054 = vrot.slane %v3040, %v3053
    %v3055 = vcombine.high %v3047, %v3047
    %v3056 = vcombine.high %v3054, %v3054
    %v3058 = vunpack.c.l.s4 1966171168
    %v3059 = vunpack.c.0.s8 %v3058
    %v3060 = vlaneseq
    %v3061 = vshrl.u32 %v3060, 7
    %v3062 = vsub.s32 %v3059, %v3061
    %v3063 = vrot.slane %v3030, %v3062
    %v3064 = vcombine.high %v3063, %v3063
    %v3066 = vunpack.c.l.s4 1966171168
    %v3067 = vunpack.c.0.s8 %v3066
    %v3068 = vlaneseq
    %v3069 = vshrl.u32 %v3068, 7
    %v3070 = vsub.s32 %v3067, %v3069
    %v3071 = vrot.slane %v3063, %v3070
    %v3073 = vunpack.c.l.s4 1966171168
    %v3074 = vunpack.c.0.s8 %v3073
    %v3075 = vlaneseq
    %v3076 = vshrl.u32 %v3075, 7
    %v3077 = vsub.s32 %v3074, %v3076
    %v3078 = vrot.slane %v3064, %v3077
    %v3079 = vcombine.high %v3071, %v3071
    %v3080 = vcombine.high %v3078, %v3078
    %v3081 = vcombine.low %v3047, %v3055
    %v3082 = vcombine.low %v3054, %v3056
    %v3084 = vunpack.c.l.s4 1935823168
    %v3085 = vunpack.c.0.s8 %v3084
    %v3086 = vlaneseq
    %v3087 = vshrl.u32 %v3086, 7
    %v3088 = vsub.s32 %v3085, %v3087
    %v3089 = vrot.slane %v3081, %v3088
    %v3091 = vunpack.c.l.s4 1935823168
    %v3092 = vunpack.c.0.s8 %v3091
    %v3093 = vlaneseq
    %v3094 = vshrl.u32 %v3093, 7
    %v3095 = vsub.s32 %v3092, %v3094
    %v3096 = vrot.slane %v3082, %v3095
    %v3097 = vcombine.low %v3089, %v3096
    %v3099 = vunpack.c.l.s4 1935823168
    %v3100 = vunpack.c.0.s8 %v3099
    %v3101 = vlaneseq
    %v3102 = vshrl.u32 %v3101, 7
    %v3103 = vsub.s32 %v3100, %v3102
    %v3104 = vrot.slane %v3097, %v3103
    %v3105 = vcombine.low %v3071, %v3079
    %v3106 = vcombine.low %v3078, %v3080
    %v3108 = vunpack.c.l.s4 1935823168
    %v3109 = vunpack.c.0.s8 %v3108
    %v3110 = vlaneseq
    %v3111 = vshrl.u32 %v3110, 7
    %v3112 = vsub.s32 %v3109, %v3111
    %v3113 = vrot.slane %v3105, %v3112
    %v3115 = vunpack.c.l.s4 1935823168
    %v3116 = vunpack.c.0.s8 %v3115
    %v3117 = vlaneseq
    %v3118 = vshrl.u32 %v3117, 7
    %v3119 = vsub.s32 %v3116, %v3118
    %v3120 = vrot.slane %v3106, %v3119
    %v3121 = vcombine.low %v3113, %v3120
    %v3123 = vunpack.c.l.s4 1935823168
    %v3124 = vunpack.c.0.s8 %v3123
    %v3125 = vlaneseq
    %v3126 = vshrl.u32 %v3125, 7
    %v3127 = vsub.s32 %v3124, %v3126
    %v3128 = vrot.slane %v3121, %v3127
    %v3129 = vunpack.c.l.b16 %v3104
    %v3130 = vunpack.c.l.b16 %v3128
    %3131 = vset.pattern.permute.xlu0 8
    %3132 = vperm.xlu0 %3131, %v3129
    %v3133 = vpop.permute.xlu0 %3132
    %3134 = vset.pattern.permute.xlu0 8
    %3135 = vperm.xlu0 %3134, %v3130
    %v3136 = vpop.permute.xlu0 %3135
    %v3137 = vlaneseq
    %v3138 = vshrl.u32 %v3137, 7
    %v3139 = vsub.s32 %v2013, %v3138
    %v3140 = vrot.slane %v3133, %v3139
    %v3141 = vlaneseq
    %v3142 = vshrl.u32 %v3141, 7
    %v3143 = vsub.s32 %v2013, %v3142
    %v3144 = vrot.slane %v3136, %v3143
    %v3145 = vsel %vm366, %v3144, %v3140
    %v3146 = vpack.c.b16 %v3145, %v3145
    %v3148 = vunpack.c.l.s4 1966171168
    %v3149 = vunpack.c.0.s8 %v3148
    %v3150 = vlaneseq
    %v3151 = vshrl.u32 %v3150, 7
    %v3152 = vsub.s32 %v3149, %v3151
    %v3153 = vrot.slane %v3146, %v3152
    %v3155 = vunpack.c.l.s4 1966171168
    %v3156 = vunpack.c.0.s8 %v3155
    %v3157 = vlaneseq
    %v3158 = vshrl.u32 %v3157, 7
    %v3159 = vsub.s32 %v3156, %v3158
    %v3160 = vrot.slane %v3153, %v3159
    %3162 = vst.msk [vmem:[#allocation2] sm:$0x1] %vm2039, %v3160
    %v3163 = vadd.f32 %v2465, %v2477
    %v3164 = vadd.f32 %v2466, %v2478
    %v3165 = vpack.c.bf16 %v3163, %v3163
    %v3166 = vpack.c.bf16 %v3164, %v3164
    %v3170 = vunpack.c.l.s4 1966171168
    %v3171 = vunpack.c.0.s8 %v3170
    %v3172 = vlaneseq
    %v3173 = vshrl.u32 %v3172, 7
    %v3174 = vsub.s32 %v3171, %v3173
    %v3175 = vrot.slane %v3165, %v3174
    %v3176 = vcombine.high %v3175, %v3175
    %v3178 = vunpack.c.l.s4 1966171168
    %v3179 = vunpack.c.0.s8 %v3178
    %v3180 = vlaneseq
    %v3181 = vshrl.u32 %v3180, 7
    %v3182 = vsub.s32 %v3179, %v3181
    %v3183 = vrot.slane %v3175, %v3182
    %v3185 = vunpack.c.l.s4 1966171168
    %v3186 = vunpack.c.0.s8 %v3185
    %v3187 = vlaneseq
    %v3188 = vshrl.u32 %v3187, 7
    %v3189 = vsub.s32 %v3186, %v3188
    %v3190 = vrot.slane %v3176, %v3189
    %v3191 = vcombine.high %v3183, %v3183
    %v3192 = vcombine.high %v3190, %v3190
    %v3194 = vunpack.c.l.s4 1966171168
    %v3195 = vunpack.c.0.s8 %v3194
    %v3196 = vlaneseq
    %v3197 = vshrl.u32 %v3196, 7
    %v3198 = vsub.s32 %v3195, %v3197
    %v3199 = vrot.slane %v3166, %v3198
    %v3200 = vcombine.high %v3199, %v3199
    %v3202 = vunpack.c.l.s4 1966171168
    %v3203 = vunpack.c.0.s8 %v3202
    %v3204 = vlaneseq
    %v3205 = vshrl.u32 %v3204, 7
    %v3206 = vsub.s32 %v3203, %v3205
    %v3207 = vrot.slane %v3199, %v3206
    %v3209 = vunpack.c.l.s4 1966171168
    %v3210 = vunpack.c.0.s8 %v3209
    %v3211 = vlaneseq
    %v3212 = vshrl.u32 %v3211, 7
    %v3213 = vsub.s32 %v3210, %v3212
    %v3214 = vrot.slane %v3200, %v3213
    %v3215 = vcombine.high %v3207, %v3207
    %v3216 = vcombine.high %v3214, %v3214
    %v3217 = vcombine.low %v3183, %v3191
    %v3218 = vcombine.low %v3190, %v3192
    %v3220 = vunpack.c.l.s4 1935823168
    %v3221 = vunpack.c.0.s8 %v3220
    %v3222 = vlaneseq
    %v3223 = vshrl.u32 %v3222, 7
    %v3224 = vsub.s32 %v3221, %v3223
    %v3225 = vrot.slane %v3217, %v3224
    %v3227 = vunpack.c.l.s4 1935823168
    %v3228 = vunpack.c.0.s8 %v3227
    %v3229 = vlaneseq
    %v3230 = vshrl.u32 %v3229, 7
    %v3231 = vsub.s32 %v3228, %v3230
    %v3232 = vrot.slane %v3218, %v3231
    %v3233 = vcombine.low %v3225, %v3232
    %v3235 = vunpack.c.l.s4 1935823168
    %v3236 = vunpack.c.0.s8 %v3235
    %v3237 = vlaneseq
    %v3238 = vshrl.u32 %v3237, 7
    %v3239 = vsub.s32 %v3236, %v3238
    %v3240 = vrot.slane %v3233, %v3239
    %v3241 = vcombine.low %v3207, %v3215
    %v3242 = vcombine.low %v3214, %v3216
    %v3244 = vunpack.c.l.s4 1935823168
    %v3245 = vunpack.c.0.s8 %v3244
    %v3246 = vlaneseq
    %v3247 = vshrl.u32 %v3246, 7
    %v3248 = vsub.s32 %v3245, %v3247
    %v3249 = vrot.slane %v3241, %v3248
    %v3251 = vunpack.c.l.s4 1935823168
    %v3252 = vunpack.c.0.s8 %v3251
    %v3253 = vlaneseq
    %v3254 = vshrl.u32 %v3253, 7
    %v3255 = vsub.s32 %v3252, %v3254
    %v3256 = vrot.slane %v3242, %v3255
    %v3257 = vcombine.low %v3249, %v3256
    %v3259 = vunpack.c.l.s4 1935823168
    %v3260 = vunpack.c.0.s8 %v3259
    %v3261 = vlaneseq
    %v3262 = vshrl.u32 %v3261, 7
    %v3263 = vsub.s32 %v3260, %v3262
    %v3264 = vrot.slane %v3257, %v3263
    %v3265 = vunpack.c.l.b16 %v3240
    %v3266 = vunpack.c.l.b16 %v3264
    %3267 = vset.pattern.permute.xlu0 10
    %3268 = vperm.xlu0 %3267, %v3265
    %v3269 = vpop.permute.xlu0 %3268
    %3270 = vset.pattern.permute.xlu0 10
    %3271 = vperm.xlu0 %3270, %v3266
    %v3272 = vpop.permute.xlu0 %3271
    %v3273 = vlaneseq
    %v3274 = vshrl.u32 %v3273, 7
    %v3275 = vsub.s32 %v2151, %v3274
    %v3276 = vrot.slane %v3269, %v3275
    %v3277 = vlaneseq
    %v3278 = vshrl.u32 %v3277, 7
    %v3279 = vsub.s32 %v2151, %v3278
    %v3280 = vrot.slane %v3272, %v3279
    %v3281 = vsel %vm366, %v3280, %v3276
    %v3282 = vpack.c.b16 %v3281, %v3281
    %v3284 = vunpack.c.l.s4 1966171168
    %v3285 = vunpack.c.0.s8 %v3284
    %v3286 = vlaneseq
    %v3287 = vshrl.u32 %v3286, 7
    %v3288 = vsub.s32 %v3285, %v3287
    %v3289 = vrot.slane %v3282, %v3288
    %v3291 = vunpack.c.l.s4 1966171168
    %v3292 = vunpack.c.0.s8 %v3291
    %v3293 = vlaneseq
    %v3294 = vshrl.u32 %v3293, 7
    %v3295 = vsub.s32 %v3292, %v3294
    %v3296 = vrot.slane %v3289, %v3295
    %3298 = vst.msk [vmem:[#allocation2] sm:$0x1] %vm2177, %v3296
    %v3299 = vadd.f32 %v2465, %v2479
    %v3300 = vadd.f32 %v2466, %v2480
    %v3301 = vpack.c.bf16 %v3299, %v3299
    %v3302 = vpack.c.bf16 %v3300, %v3300
    %v3306 = vunpack.c.l.s4 1966171168
    %v3307 = vunpack.c.0.s8 %v3306
    %v3308 = vlaneseq
    %v3309 = vshrl.u32 %v3308, 7
    %v3310 = vsub.s32 %v3307, %v3309
    %v3311 = vrot.slane %v3301, %v3310
    %v3312 = vcombine.high %v3311, %v3311
    %v3314 = vunpack.c.l.s4 1966171168
    %v3315 = vunpack.c.0.s8 %v3314
    %v3316 = vlaneseq
    %v3317 = vshrl.u32 %v3316, 7
    %v3318 = vsub.s32 %v3315, %v3317
    %v3319 = vrot.slane %v3311, %v3318
    %v3321 = vunpack.c.l.s4 1966171168
    %v3322 = vunpack.c.0.s8 %v3321
    %v3323 = vlaneseq
    %v3324 = vshrl.u32 %v3323, 7
    %v3325 = vsub.s32 %v3322, %v3324
    %v3326 = vrot.slane %v3312, %v3325
    %v3327 = vcombine.high %v3319, %v3319
    %v3328 = vcombine.high %v3326, %v3326
    %v3330 = vunpack.c.l.s4 1966171168
    %v3331 = vunpack.c.0.s8 %v3330
    %v3332 = vlaneseq
    %v3333 = vshrl.u32 %v3332, 7
    %v3334 = vsub.s32 %v3331, %v3333
    %v3335 = vrot.slane %v3302, %v3334
    %v3336 = vcombine.high %v3335, %v3335
    %v3338 = vunpack.c.l.s4 1966171168
    %v3339 = vunpack.c.0.s8 %v3338
    %v3340 = vlaneseq
    %v3341 = vshrl.u32 %v3340, 7
    %v3342 = vsub.s32 %v3339, %v3341
    %v3343 = vrot.slane %v3335, %v3342
    %v3345 = vunpack.c.l.s4 1966171168
    %v3346 = vunpack.c.0.s8 %v3345
    %v3347 = vlaneseq
    %v3348 = vshrl.u32 %v3347, 7
    %v3349 = vsub.s32 %v3346, %v3348
    %v3350 = vrot.slane %v3336, %v3349
    %v3351 = vcombine.high %v3343, %v3343
    %v3352 = vcombine.high %v3350, %v3350
    %v3353 = vcombine.low %v3319, %v3327
    %v3354 = vcombine.low %v3326, %v3328
    %v3356 = vunpack.c.l.s4 1935823168
    %v3357 = vunpack.c.0.s8 %v3356
    %v3358 = vlaneseq
    %v3359 = vshrl.u32 %v3358, 7
    %v3360 = vsub.s32 %v3357, %v3359
    %v3361 = vrot.slane %v3353, %v3360
    %v3363 = vunpack.c.l.s4 1935823168
    %v3364 = vunpack.c.0.s8 %v3363
    %v3365 = vlaneseq
    %v3366 = vshrl.u32 %v3365, 7
    %v3367 = vsub.s32 %v3364, %v3366
    %v3368 = vrot.slane %v3354, %v3367
    %v3369 = vcombine.low %v3361, %v3368
    %v3371 = vunpack.c.l.s4 1935823168
    %v3372 = vunpack.c.0.s8 %v3371
    %v3373 = vlaneseq
    %v3374 = vshrl.u32 %v3373, 7
    %v3375 = vsub.s32 %v3372, %v3374
    %v3376 = vrot.slane %v3369, %v3375
    %v3377 = vcombine.low %v3343, %v3351
    %v3378 = vcombine.low %v3350, %v3352
    %v3380 = vunpack.c.l.s4 1935823168
    %v3381 = vunpack.c.0.s8 %v3380
    %v3382 = vlaneseq
    %v3383 = vshrl.u32 %v3382, 7
    %v3384 = vsub.s32 %v3381, %v3383
    %v3385 = vrot.slane %v3377, %v3384
    %v3387 = vunpack.c.l.s4 1935823168
    %v3388 = vunpack.c.0.s8 %v3387
    %v3389 = vlaneseq
    %v3390 = vshrl.u32 %v3389, 7
    %v3391 = vsub.s32 %v3388, %v3390
    %v3392 = vrot.slane %v3378, %v3391
    %v3393 = vcombine.low %v3385, %v3392
    %v3395 = vunpack.c.l.s4 1935823168
    %v3396 = vunpack.c.0.s8 %v3395
    %v3397 = vlaneseq
    %v3398 = vshrl.u32 %v3397, 7
    %v3399 = vsub.s32 %v3396, %v3398
    %v3400 = vrot.slane %v3393, %v3399
    %v3401 = vunpack.c.l.b16 %v3376
    %v3402 = vunpack.c.l.b16 %v3400
    %3403 = vset.pattern.permute.xlu0 12
    %3404 = vperm.xlu0 %3403, %v3401
    %v3405 = vpop.permute.xlu0 %3404
    %3406 = vset.pattern.permute.xlu0 12
    %3407 = vperm.xlu0 %3406, %v3402
    %v3408 = vpop.permute.xlu0 %3407
    %v3409 = vlaneseq
    %v3410 = vshrl.u32 %v3409, 7
    %v3411 = vsub.s32 %v2289, %v3410
    %v3412 = vrot.slane %v3405, %v3411
    %v3413 = vlaneseq
    %v3414 = vshrl.u32 %v3413, 7
    %v3415 = vsub.s32 %v2289, %v3414
    %v3416 = vrot.slane %v3408, %v3415
    %v3417 = vsel %vm366, %v3416, %v3412
    %v3418 = vpack.c.b16 %v3417, %v3417
    %v3420 = vunpack.c.l.s4 1966171168
    %v3421 = vunpack.c.0.s8 %v3420
    %v3422 = vlaneseq
    %v3423 = vshrl.u32 %v3422, 7
    %v3424 = vsub.s32 %v3421, %v3423
    %v3425 = vrot.slane %v3418, %v3424
    %v3427 = vunpack.c.l.s4 1966171168
    %v3428 = vunpack.c.0.s8 %v3427
    %v3429 = vlaneseq
    %v3430 = vshrl.u32 %v3429, 7
    %v3431 = vsub.s32 %v3428, %v3430
    %v3432 = vrot.slane %v3425, %v3431
    %3434 = vst.msk [vmem:[#allocation2] sm:$0x1] %vm2315, %v3432
    %v3435 = vadd.f32 %v2465, %v2481
    %v3436 = vadd.f32 %v2466, %v2482
    %v3437 = vpack.c.bf16 %v3435, %v3435
    %v3438 = vpack.c.bf16 %v3436, %v3436
    %v3442 = vunpack.c.l.s4 1966171168
    %v3443 = vunpack.c.0.s8 %v3442
    %v3444 = vlaneseq
    %v3445 = vshrl.u32 %v3444, 7
    %v3446 = vsub.s32 %v3443, %v3445
    %v3447 = vrot.slane %v3437, %v3446
    %v3448 = vcombine.high %v3447, %v3447
    %v3450 = vunpack.c.l.s4 1966171168
    %v3451 = vunpack.c.0.s8 %v3450
    %v3452 = vlaneseq
    %v3453 = vshrl.u32 %v3452, 7
    %v3454 = vsub.s32 %v3451, %v3453
    %v3455 = vrot.slane %v3447, %v3454
    %v3457 = vunpack.c.l.s4 1966171168
    %v3458 = vunpack.c.0.s8 %v3457
    %v3459 = vlaneseq
    %v3460 = vshrl.u32 %v3459, 7
    %v3461 = vsub.s32 %v3458, %v3460
    %v3462 = vrot.slane %v3448, %v3461
    %v3463 = vcombine.high %v3455, %v3455
    %v3464 = vcombine.high %v3462, %v3462
    %v3466 = vunpack.c.l.s4 1966171168
    %v3467 = vunpack.c.0.s8 %v3466
    %v3468 = vlaneseq
    %v3469 = vshrl.u32 %v3468, 7
    %v3470 = vsub.s32 %v3467, %v3469
    %v3471 = vrot.slane %v3438, %v3470
    %v3472 = vcombine.high %v3471, %v3471
    %v3474 = vunpack.c.l.s4 1966171168
    %v3475 = vunpack.c.0.s8 %v3474
    %v3476 = vlaneseq
    %v3477 = vshrl.u32 %v3476, 7
    %v3478 = vsub.s32 %v3475, %v3477
    %v3479 = vrot.slane %v3471, %v3478
    %v3481 = vunpack.c.l.s4 1966171168
    %v3482 = vunpack.c.0.s8 %v3481
    %v3483 = vlaneseq
    %v3484 = vshrl.u32 %v3483, 7
    %v3485 = vsub.s32 %v3482, %v3484
    %v3486 = vrot.slane %v3472, %v3485
    %v3487 = vcombine.high %v3479, %v3479
    %v3488 = vcombine.high %v3486, %v3486
    %v3489 = vcombine.low %v3455, %v3463
    %v3490 = vcombine.low %v3462, %v3464
    %v3492 = vunpack.c.l.s4 1935823168
    %v3493 = vunpack.c.0.s8 %v3492
    %v3494 = vlaneseq
    %v3495 = vshrl.u32 %v3494, 7
    %v3496 = vsub.s32 %v3493, %v3495
    %v3497 = vrot.slane %v3489, %v3496
    %v3499 = vunpack.c.l.s4 1935823168
    %v3500 = vunpack.c.0.s8 %v3499
    %v3501 = vlaneseq
    %v3502 = vshrl.u32 %v3501, 7
    %v3503 = vsub.s32 %v3500, %v3502
    %v3504 = vrot.slane %v3490, %v3503
    %v3505 = vcombine.low %v3497, %v3504
    %v3507 = vunpack.c.l.s4 1935823168
    %v3508 = vunpack.c.0.s8 %v3507
    %v3509 = vlaneseq
    %v3510 = vshrl.u32 %v3509, 7
    %v3511 = vsub.s32 %v3508, %v3510
    %v3512 = vrot.slane %v3505, %v3511
    %v3513 = vcombine.low %v3479, %v3487
    %v3514 = vcombine.low %v3486, %v3488
    %v3516 = vunpack.c.l.s4 1935823168
    %v3517 = vunpack.c.0.s8 %v3516
    %v3518 = vlaneseq
    %v3519 = vshrl.u32 %v3518, 7
    %v3520 = vsub.s32 %v3517, %v3519
    %v3521 = vrot.slane %v3513, %v3520
    %v3523 = vunpack.c.l.s4 1935823168
    %v3524 = vunpack.c.0.s8 %v3523
    %v3525 = vlaneseq
    %v3526 = vshrl.u32 %v3525, 7
    %v3527 = vsub.s32 %v3524, %v3526
    %v3528 = vrot.slane %v3514, %v3527
    %v3529 = vcombine.low %v3521, %v3528
    %v3531 = vunpack.c.l.s4 1935823168
    %v3532 = vunpack.c.0.s8 %v3531
    %v3533 = vlaneseq
    %v3534 = vshrl.u32 %v3533, 7
    %v3535 = vsub.s32 %v3532, %v3534
    %v3536 = vrot.slane %v3529, %v3535
    %v3537 = vunpack.c.l.b16 %v3512
    %v3538 = vunpack.c.l.b16 %v3536
    %3539 = vset.pattern.permute.xlu0 14
    %3540 = vperm.xlu0 %3539, %v3537
    %v3541 = vpop.permute.xlu0 %3540
    %3542 = vset.pattern.permute.xlu0 14
    %3543 = vperm.xlu0 %3542, %v3538
    %v3544 = vpop.permute.xlu0 %3543
    %v3545 = vlaneseq
    %v3546 = vshrl.u32 %v3545, 7
    %v3547 = vsub.s32 %v2427, %v3546
    %v3548 = vrot.slane %v3541, %v3547
    %v3549 = vlaneseq
    %v3550 = vshrl.u32 %v3549, 7
    %v3551 = vsub.s32 %v2427, %v3550
    %v3552 = vrot.slane %v3544, %v3551
    %v3553 = vsel %vm366, %v3552, %v3548
    %v3554 = vpack.c.b16 %v3553, %v3553
    %v3556 = vunpack.c.l.s4 1966171168
    %v3557 = vunpack.c.0.s8 %v3556
    %v3558 = vlaneseq
    %v3559 = vshrl.u32 %v3558, 7
    %v3560 = vsub.s32 %v3557, %v3559
    %v3561 = vrot.slane %v3554, %v3560
    %v3563 = vunpack.c.l.s4 1966171168
    %v3564 = vunpack.c.0.s8 %v3563
    %v3565 = vlaneseq
    %v3566 = vshrl.u32 %v3565, 7
    %v3567 = vsub.s32 %v3564, %v3566
    %v3568 = vrot.slane %v3561, %v3567
    %3570 = vst.msk [vmem:[#allocation2] sm:$0x1] %vm2453, %v3568
    %3573 = vrot.lane.b32.xlu0 %v2465, 126
    %v3574 = vpop.permute.xlu0 %3573
    %3575 = vrot.lane.b32.xlu0 %v2466, 126
    %v3576 = vpop.permute.xlu0 %3575
    %v3579 = vadd.f32 %v2465, %v3574
    %v3580 = vadd.f32 %v2466, %v3576
    %v3581 = vmul.f32 %v3579, 0.5
    %v3582 = vmul.f32 %v3580, 0.5
    %v3583 = vmax.f32 %v2467, %v2469
    %v3584 = vmax.f32 %v2468, %v2470
    %v3585 = vmax.f32 %v2471, %v2473
    %v3586 = vmax.f32 %v2472, %v2474
    %v3587 = vmax.f32 %v2475, %v2477
    %v3588 = vmax.f32 %v2476, %v2478
    %v3589 = vmax.f32 %v2479, %v2481
    %v3590 = vmax.f32 %v2480, %v2482
    %v3591 = vadd.f32 %v3581, %v3583
    %v3592 = vadd.f32 %v3582, %v3584
    %v3593 = vpack.c.bf16 %v3591, %v3591
    %v3594 = vpack.c.bf16 %v3592, %v3592
    %v3598 = vunpack.c.l.s4 1966171168
    %v3599 = vunpack.c.0.s8 %v3598
    %v3600 = vlaneseq
    %v3601 = vshrl.u32 %v3600, 7
    %v3602 = vsub.s32 %v3599, %v3601
    %v3603 = vrot.slane %v3593, %v3602
    %v3604 = vcombine.high %v3603, %v3603
    %v3606 = vunpack.c.l.s4 1966171168
    %v3607 = vunpack.c.0.s8 %v3606
    %v3608 = vlaneseq
    %v3609 = vshrl.u32 %v3608, 7
    %v3610 = vsub.s32 %v3607, %v3609
    %v3611 = vrot.slane %v3603, %v3610
    %v3613 = vunpack.c.l.s4 1966171168
    %v3614 = vunpack.c.0.s8 %v3613
    %v3615 = vlaneseq
    %v3616 = vshrl.u32 %v3615, 7
    %v3617 = vsub.s32 %v3614, %v3616
    %v3618 = vrot.slane %v3604, %v3617
    %v3619 = vcombine.high %v3611, %v3611
    %v3620 = vcombine.high %v3618, %v3618
    %v3622 = vunpack.c.l.s4 1966171168
    %v3623 = vunpack.c.0.s8 %v3622
    %v3624 = vlaneseq
    %v3625 = vshrl.u32 %v3624, 7
    %v3626 = vsub.s32 %v3623, %v3625
    %v3627 = vrot.slane %v3594, %v3626
    %v3628 = vcombine.high %v3627, %v3627
    %v3630 = vunpack.c.l.s4 1966171168
    %v3631 = vunpack.c.0.s8 %v3630
    %v3632 = vlaneseq
    %v3633 = vshrl.u32 %v3632, 7
    %v3634 = vsub.s32 %v3631, %v3633
    %v3635 = vrot.slane %v3627, %v3634
    %v3637 = vunpack.c.l.s4 1966171168
    %v3638 = vunpack.c.0.s8 %v3637
    %v3639 = vlaneseq
    %v3640 = vshrl.u32 %v3639, 7
    %v3641 = vsub.s32 %v3638, %v3640
    %v3642 = vrot.slane %v3628, %v3641
    %v3643 = vcombine.high %v3635, %v3635
    %v3644 = vcombine.high %v3642, %v3642
    %v3645 = vcombine.low %v3611, %v3619
    %v3646 = vcombine.low %v3618, %v3620
    %v3648 = vunpack.c.l.s4 1935823168
    %v3649 = vunpack.c.0.s8 %v3648
    %v3650 = vlaneseq
    %v3651 = vshrl.u32 %v3650, 7
    %v3652 = vsub.s32 %v3649, %v3651
    %v3653 = vrot.slane %v3645, %v3652
    %v3655 = vunpack.c.l.s4 1935823168
    %v3656 = vunpack.c.0.s8 %v3655
    %v3657 = vlaneseq
    %v3658 = vshrl.u32 %v3657, 7
    %v3659 = vsub.s32 %v3656, %v3658
    %v3660 = vrot.slane %v3646, %v3659
    %v3661 = vcombine.low %v3653, %v3660
    %v3663 = vunpack.c.l.s4 1935823168
    %v3664 = vunpack.c.0.s8 %v3663
    %v3665 = vlaneseq
    %v3666 = vshrl.u32 %v3665, 7
    %v3667 = vsub.s32 %v3664, %v3666
    %v3668 = vrot.slane %v3661, %v3667
    %v3669 = vcombine.low %v3635, %v3643
    %v3670 = vcombine.low %v3642, %v3644
    %v3672 = vunpack.c.l.s4 1935823168
    %v3673 = vunpack.c.0.s8 %v3672
    %v3674 = vlaneseq
    %v3675 = vshrl.u32 %v3674, 7
    %v3676 = vsub.s32 %v3673, %v3675
    %v3677 = vrot.slane %v3669, %v3676
    %v3679 = vunpack.c.l.s4 1935823168
    %v3680 = vunpack.c.0.s8 %v3679
    %v3681 = vlaneseq
    %v3682 = vshrl.u32 %v3681, 7
    %v3683 = vsub.s32 %v3680, %v3682
    %v3684 = vrot.slane %v3670, %v3683
    %v3685 = vcombine.low %v3677, %v3684
    %v3687 = vunpack.c.l.s4 1935823168
    %v3688 = vunpack.c.0.s8 %v3687
    %v3689 = vlaneseq
    %v3690 = vshrl.u32 %v3689, 7
    %v3691 = vsub.s32 %v3688, %v3690
    %v3692 = vrot.slane %v3685, %v3691
    %v3693 = vunpack.c.l.b16 %v3668
    %v3694 = vunpack.c.l.b16 %v3692
    %3695 = vset.pattern.permute.xlu0 0
    %3696 = vperm.xlu0 %3695, %v3693
    %v3697 = vpop.permute.xlu0 %3696
    %3698 = vset.pattern.permute.xlu0 0
    %3699 = vperm.xlu0 %3698, %v3694
    %v3700 = vpop.permute.xlu0 %3699
    %v3701 = vlaneseq
    %v3702 = vshrl.u32 %v3701, 7
    %v3703 = vsub.s32 %v909, %v3702
    %v3704 = vrot.slane %v3697, %v3703
    %v3705 = vlaneseq
    %v3706 = vshrl.u32 %v3705, 7
    %v3707 = vsub.s32 %v909, %v3706
    %v3708 = vrot.slane %v3700, %v3707
    %v3709 = vsel %vm366, %v3708, %v3704
    %v3710 = vpack.c.b16 %v3709, %v3709
    %v3712 = vunpack.c.l.s4 1966171168
    %v3713 = vunpack.c.0.s8 %v3712
    %v3714 = vlaneseq
    %v3715 = vshrl.u32 %v3714, 7
    %v3716 = vsub.s32 %v3713, %v3715
    %v3717 = vrot.slane %v3710, %v3716
    %v3719 = vunpack.c.l.s4 1966171168
    %v3720 = vunpack.c.0.s8 %v3719
    %v3721 = vlaneseq
    %v3722 = vshrl.u32 %v3721, 7
    %v3723 = vsub.s32 %v3720, %v3722
    %v3724 = vrot.slane %v3717, %v3723
    %3726 = vst.msk [vmem:[#allocation2] sm:$0x1] %vm935, %v3724
    %v3727 = vadd.f32 %v3581, %v3585
    %v3728 = vadd.f32 %v3582, %v3586
    %v3729 = vpack.c.bf16 %v3727, %v3727
    %v3730 = vpack.c.bf16 %v3728, %v3728
    %v3734 = vunpack.c.l.s4 1966171168
    %v3735 = vunpack.c.0.s8 %v3734
    %v3736 = vlaneseq
    %v3737 = vshrl.u32 %v3736, 7
    %v3738 = vsub.s32 %v3735, %v3737
    %v3739 = vrot.slane %v3729, %v3738
    %v3740 = vcombine.high %v3739, %v3739
    %v3742 = vunpack.c.l.s4 1966171168
    %v3743 = vunpack.c.0.s8 %v3742
    %v3744 = vlaneseq
    %v3745 = vshrl.u32 %v3744, 7
    %v3746 = vsub.s32 %v3743, %v3745
    %v3747 = vrot.slane %v3739, %v3746
    %v3749 = vunpack.c.l.s4 1966171168
    %v3750 = vunpack.c.0.s8 %v3749
    %v3751 = vlaneseq
    %v3752 = vshrl.u32 %v3751, 7
    %v3753 = vsub.s32 %v3750, %v3752
    %v3754 = vrot.slane %v3740, %v3753
    %v3755 = vcombine.high %v3747, %v3747
    %v3756 = vcombine.high %v3754, %v3754
    %v3758 = vunpack.c.l.s4 1966171168
    %v3759 = vunpack.c.0.s8 %v3758
    %v3760 = vlaneseq
    %v3761 = vshrl.u32 %v3760, 7
    %v3762 = vsub.s32 %v3759, %v3761
    %v3763 = vrot.slane %v3730, %v3762
    %v3764 = vcombine.high %v3763, %v3763
    %v3766 = vunpack.c.l.s4 1966171168
    %v3767 = vunpack.c.0.s8 %v3766
    %v3768 = vlaneseq
    %v3769 = vshrl.u32 %v3768, 7
    %v3770 = vsub.s32 %v3767, %v3769
    %v3771 = vrot.slane %v3763, %v3770
    %v3773 = vunpack.c.l.s4 1966171168
    %v3774 = vunpack.c.0.s8 %v3773
    %v3775 = vlaneseq
    %v3776 = vshrl.u32 %v3775, 7
    %v3777 = vsub.s32 %v3774, %v3776
    %v3778 = vrot.slane %v3764, %v3777
    %v3779 = vcombine.high %v3771, %v3771
    %v3780 = vcombine.high %v3778, %v3778
    %v3781 = vcombine.low %v3747, %v3755
    %v3782 = vcombine.low %v3754, %v3756
    %v3784 = vunpack.c.l.s4 1935823168
    %v3785 = vunpack.c.0.s8 %v3784
    %v3786 = vlaneseq
    %v3787 = vshrl.u32 %v3786, 7
    %v3788 = vsub.s32 %v3785, %v3787
    %v3789 = vrot.slane %v3781, %v3788
    %v3791 = vunpack.c.l.s4 1935823168
    %v3792 = vunpack.c.0.s8 %v3791
    %v3793 = vlaneseq
    %v3794 = vshrl.u32 %v3793, 7
    %v3795 = vsub.s32 %v3792, %v3794
    %v3796 = vrot.slane %v3782, %v3795
    %v3797 = vcombine.low %v3789, %v3796
    %v3799 = vunpack.c.l.s4 1935823168
    %v3800 = vunpack.c.0.s8 %v3799
    %v3801 = vlaneseq
    %v3802 = vshrl.u32 %v3801, 7
    %v3803 = vsub.s32 %v3800, %v3802
    %v3804 = vrot.slane %v3797, %v3803
    %v3805 = vcombine.low %v3771, %v3779
    %v3806 = vcombine.low %v3778, %v3780
    %v3808 = vunpack.c.l.s4 1935823168
    %v3809 = vunpack.c.0.s8 %v3808
    %v3810 = vlaneseq
    %v3811 = vshrl.u32 %v3810, 7
    %v3812 = vsub.s32 %v3809, %v3811
    %v3813 = vrot.slane %v3805, %v3812
    %v3815 = vunpack.c.l.s4 1935823168
    %v3816 = vunpack.c.0.s8 %v3815
    %v3817 = vlaneseq
    %v3818 = vshrl.u32 %v3817, 7
    %v3819 = vsub.s32 %v3816, %v3818
    %v3820 = vrot.slane %v3806, %v3819
    %v3821 = vcombine.low %v3813, %v3820
    %v3823 = vunpack.c.l.s4 1935823168
    %v3824 = vunpack.c.0.s8 %v3823
    %v3825 = vlaneseq
    %v3826 = vshrl.u32 %v3825, 7
    %v3827 = vsub.s32 %v3824, %v3826
    %v3828 = vrot.slane %v3821, %v3827
    %v3829 = vunpack.c.l.b16 %v3804
    %v3830 = vunpack.c.l.b16 %v3828
    %3831 = vset.pattern.permute.xlu0 4
    %3832 = vperm.xlu0 %3831, %v3829
    %v3833 = vpop.permute.xlu0 %3832
    %3834 = vset.pattern.permute.xlu0 4
    %3835 = vperm.xlu0 %3834, %v3830
    %v3836 = vpop.permute.xlu0 %3835
    %v3837 = vlaneseq
    %v3838 = vshrl.u32 %v3837, 7
    %v3839 = vsub.s32 %v1047, %v3838
    %v3840 = vrot.slane %v3833, %v3839
    %v3841 = vlaneseq
    %v3842 = vshrl.u32 %v3841, 7
    %v3843 = vsub.s32 %v1047, %v3842
    %v3844 = vrot.slane %v3836, %v3843
    %v3845 = vsel %vm366, %v3844, %v3840
    %v3846 = vpack.c.b16 %v3845, %v3845
    %v3848 = vunpack.c.l.s4 1966171168
    %v3849 = vunpack.c.0.s8 %v3848
    %v3850 = vlaneseq
    %v3851 = vshrl.u32 %v3850, 7
    %v3852 = vsub.s32 %v3849, %v3851
    %v3853 = vrot.slane %v3846, %v3852
    %v3855 = vunpack.c.l.s4 1966171168
    %v3856 = vunpack.c.0.s8 %v3855
    %v3857 = vlaneseq
    %v3858 = vshrl.u32 %v3857, 7
    %v3859 = vsub.s32 %v3856, %v3858
    %v3860 = vrot.slane %v3853, %v3859
    %3862 = vst.msk [vmem:[#allocation2] sm:$0x1] %vm1073, %v3860
    %v3863 = vadd.f32 %v3581, %v3587
    %v3864 = vadd.f32 %v3582, %v3588
    %v3865 = vpack.c.bf16 %v3863, %v3863
    %v3866 = vpack.c.bf16 %v3864, %v3864
    %v3870 = vunpack.c.l.s4 1966171168
    %v3871 = vunpack.c.0.s8 %v3870
    %v3872 = vlaneseq
    %v3873 = vshrl.u32 %v3872, 7
    %v3874 = vsub.s32 %v3871, %v3873
    %v3875 = vrot.slane %v3865, %v3874
    %v3876 = vcombine.high %v3875, %v3875
    %v3878 = vunpack.c.l.s4 1966171168
    %v3879 = vunpack.c.0.s8 %v3878
    %v3880 = vlaneseq
    %v3881 = vshrl.u32 %v3880, 7
    %v3882 = vsub.s32 %v3879, %v3881
    %v3883 = vrot.slane %v3875, %v3882
    %v3885 = vunpack.c.l.s4 1966171168
    %v3886 = vunpack.c.0.s8 %v3885
    %v3887 = vlaneseq
    %v3888 = vshrl.u32 %v3887, 7
    %v3889 = vsub.s32 %v3886, %v3888
    %v3890 = vrot.slane %v3876, %v3889
    %v3891 = vcombine.high %v3883, %v3883
    %v3892 = vcombine.high %v3890, %v3890
    %v3894 = vunpack.c.l.s4 1966171168
    %v3895 = vunpack.c.0.s8 %v3894
    %v3896 = vlaneseq
    %v3897 = vshrl.u32 %v3896, 7
    %v3898 = vsub.s32 %v3895, %v3897
    %v3899 = vrot.slane %v3866, %v3898
    %v3900 = vcombine.high %v3899, %v3899
    %v3902 = vunpack.c.l.s4 1966171168
    %v3903 = vunpack.c.0.s8 %v3902
    %v3904 = vlaneseq
    %v3905 = vshrl.u32 %v3904, 7
    %v3906 = vsub.s32 %v3903, %v3905
    %v3907 = vrot.slane %v3899, %v3906
    %v3909 = vunpack.c.l.s4 1966171168
    %v3910 = vunpack.c.0.s8 %v3909
    %v3911 = vlaneseq
    %v3912 = vshrl.u32 %v3911, 7
    %v3913 = vsub.s32 %v3910, %v3912
    %v3914 = vrot.slane %v3900, %v3913
    %v3915 = vcombine.high %v3907, %v3907
    %v3916 = vcombine.high %v3914, %v3914
    %v3917 = vcombine.low %v3883, %v3891
    %v3918 = vcombine.low %v3890, %v3892
    %v3920 = vunpack.c.l.s4 1935823168
    %v3921 = vunpack.c.0.s8 %v3920
    %v3922 = vlaneseq
    %v3923 = vshrl.u32 %v3922, 7
    %v3924 = vsub.s32 %v3921, %v3923
    %v3925 = vrot.slane %v3917, %v3924
    %v3927 = vunpack.c.l.s4 1935823168
    %v3928 = vunpack.c.0.s8 %v3927
    %v3929 = vlaneseq
    %v3930 = vshrl.u32 %v3929, 7
    %v3931 = vsub.s32 %v3928, %v3930
    %v3932 = vrot.slane %v3918, %v3931
    %v3933 = vcombine.low %v3925, %v3932
    %v3935 = vunpack.c.l.s4 1935823168
    %v3936 = vunpack.c.0.s8 %v3935
    %v3937 = vlaneseq
    %v3938 = vshrl.u32 %v3937, 7
    %v3939 = vsub.s32 %v3936, %v3938
    %v3940 = vrot.slane %v3933, %v3939
    %v3941 = vcombine.low %v3907, %v3915
    %v3942 = vcombine.low %v3914, %v3916
    %v3944 = vunpack.c.l.s4 1935823168
    %v3945 = vunpack.c.0.s8 %v3944
    %v3946 = vlaneseq
    %v3947 = vshrl.u32 %v3946, 7
    %v3948 = vsub.s32 %v3945, %v3947
    %v3949 = vrot.slane %v3941, %v3948
    %v3951 = vunpack.c.l.s4 1935823168
    %v3952 = vunpack.c.0.s8 %v3951
    %v3953 = vlaneseq
    %v3954 = vshrl.u32 %v3953, 7
    %v3955 = vsub.s32 %v3952, %v3954
    %v3956 = vrot.slane %v3942, %v3955
    %v3957 = vcombine.low %v3949, %v3956
    %v3959 = vunpack.c.l.s4 1935823168
    %v3960 = vunpack.c.0.s8 %v3959
    %v3961 = vlaneseq
    %v3962 = vshrl.u32 %v3961, 7
    %v3963 = vsub.s32 %v3960, %v3962
    %v3964 = vrot.slane %v3957, %v3963
    %v3965 = vunpack.c.l.b16 %v3940
    %v3966 = vunpack.c.l.b16 %v3964
    %3967 = vset.pattern.permute.xlu0 8
    %3968 = vperm.xlu0 %3967, %v3965
    %v3969 = vpop.permute.xlu0 %3968
    %3970 = vset.pattern.permute.xlu0 8
    %3971 = vperm.xlu0 %3970, %v3966
    %v3972 = vpop.permute.xlu0 %3971
    %v3973 = vlaneseq
    %v3974 = vshrl.u32 %v3973, 7
    %v3975 = vsub.s32 %v1185, %v3974
    %v3976 = vrot.slane %v3969, %v3975
    %v3977 = vlaneseq
    %v3978 = vshrl.u32 %v3977, 7
    %v3979 = vsub.s32 %v1185, %v3978
    %v3980 = vrot.slane %v3972, %v3979
    %v3981 = vsel %vm366, %v3980, %v3976
    %v3982 = vpack.c.b16 %v3981, %v3981
    %v3984 = vunpack.c.l.s4 1966171168
    %v3985 = vunpack.c.0.s8 %v3984
    %v3986 = vlaneseq
    %v3987 = vshrl.u32 %v3986, 7
    %v3988 = vsub.s32 %v3985, %v3987
    %v3989 = vrot.slane %v3982, %v3988
    %v3991 = vunpack.c.l.s4 1966171168
    %v3992 = vunpack.c.0.s8 %v3991
    %v3993 = vlaneseq
    %v3994 = vshrl.u32 %v3993, 7
    %v3995 = vsub.s32 %v3992, %v3994
    %v3996 = vrot.slane %v3989, %v3995
    %3998 = vst.msk [vmem:[#allocation2] sm:$0x1] %vm1211, %v3996
    %v3999 = vadd.f32 %v3581, %v3589
    %v4000 = vadd.f32 %v3582, %v3590
    %v4001 = vpack.c.bf16 %v3999, %v3999
    %v4002 = vpack.c.bf16 %v4000, %v4000
    %v4006 = vunpack.c.l.s4 1966171168
    %v4007 = vunpack.c.0.s8 %v4006
    %v4008 = vlaneseq
    %v4009 = vshrl.u32 %v4008, 7
    %v4010 = vsub.s32 %v4007, %v4009
    %v4011 = vrot.slane %v4001, %v4010
    %v4012 = vcombine.high %v4011, %v4011
    %v4014 = vunpack.c.l.s4 1966171168
    %v4015 = vunpack.c.0.s8 %v4014
    %v4016 = vlaneseq
    %v4017 = vshrl.u32 %v4016, 7
    %v4018 = vsub.s32 %v4015, %v4017
    %v4019 = vrot.slane %v4011, %v4018
    %v4021 = vunpack.c.l.s4 1966171168
    %v4022 = vunpack.c.0.s8 %v4021
    %v4023 = vlaneseq
    %v4024 = vshrl.u32 %v4023, 7
    %v4025 = vsub.s32 %v4022, %v4024
    %v4026 = vrot.slane %v4012, %v4025
    %v4027 = vcombine.high %v4019, %v4019
    %v4028 = vcombine.high %v4026, %v4026
    %v4030 = vunpack.c.l.s4 1966171168
    %v4031 = vunpack.c.0.s8 %v4030
    %v4032 = vlaneseq
    %v4033 = vshrl.u32 %v4032, 7
    %v4034 = vsub.s32 %v4031, %v4033
    %v4035 = vrot.slane %v4002, %v4034
    %v4036 = vcombine.high %v4035, %v4035
    %v4038 = vunpack.c.l.s4 1966171168
    %v4039 = vunpack.c.0.s8 %v4038
    %v4040 = vlaneseq
    %v4041 = vshrl.u32 %v4040, 7
    %v4042 = vsub.s32 %v4039, %v4041
    %v4043 = vrot.slane %v4035, %v4042
    %v4045 = vunpack.c.l.s4 1966171168
    %v4046 = vunpack.c.0.s8 %v4045
    %v4047 = vlaneseq
    %v4048 = vshrl.u32 %v4047, 7
    %v4049 = vsub.s32 %v4046, %v4048
    %v4050 = vrot.slane %v4036, %v4049
    %v4051 = vcombine.high %v4043, %v4043
    %v4052 = vcombine.high %v4050, %v4050
    %v4053 = vcombine.low %v4019, %v4027
    %v4054 = vcombine.low %v4026, %v4028
    %v4056 = vunpack.c.l.s4 1935823168
    %v4057 = vunpack.c.0.s8 %v4056
    %v4058 = vlaneseq
    %v4059 = vshrl.u32 %v4058, 7
    %v4060 = vsub.s32 %v4057, %v4059
    %v4061 = vrot.slane %v4053, %v4060
    %v4063 = vunpack.c.l.s4 1935823168
    %v4064 = vunpack.c.0.s8 %v4063
    %v4065 = vlaneseq
    %v4066 = vshrl.u32 %v4065, 7
    %v4067 = vsub.s32 %v4064, %v4066
    %v4068 = vrot.slane %v4054, %v4067
    %v4069 = vcombine.low %v4061, %v4068
    %v4071 = vunpack.c.l.s4 1935823168
    %v4072 = vunpack.c.0.s8 %v4071
    %v4073 = vlaneseq
    %v4074 = vshrl.u32 %v4073, 7
    %v4075 = vsub.s32 %v4072, %v4074
    %v4076 = vrot.slane %v4069, %v4075
    %v4077 = vcombine.low %v4043, %v4051
    %v4078 = vcombine.low %v4050, %v4052
    %v4080 = vunpack.c.l.s4 1935823168
    %v4081 = vunpack.c.0.s8 %v4080
    %v4082 = vlaneseq
    %v4083 = vshrl.u32 %v4082, 7
    %v4084 = vsub.s32 %v4081, %v4083
    %v4085 = vrot.slane %v4077, %v4084
    %v4087 = vunpack.c.l.s4 1935823168
    %v4088 = vunpack.c.0.s8 %v4087
    %v4089 = vlaneseq
    %v4090 = vshrl.u32 %v4089, 7
    %v4091 = vsub.s32 %v4088, %v4090
    %v4092 = vrot.slane %v4078, %v4091
    %v4093 = vcombine.low %v4085, %v4092
    %v4095 = vunpack.c.l.s4 1935823168
    %v4096 = vunpack.c.0.s8 %v4095
    %v4097 = vlaneseq
    %v4098 = vshrl.u32 %v4097, 7
    %v4099 = vsub.s32 %v4096, %v4098
    %v4100 = vrot.slane %v4093, %v4099
    %v4101 = vunpack.c.l.b16 %v4076
    %v4102 = vunpack.c.l.b16 %v4100
    %4103 = vset.pattern.permute.xlu0 12
    %4104 = vperm.xlu0 %4103, %v4101
    %v4105 = vpop.permute.xlu0 %4104
    %4106 = vset.pattern.permute.xlu0 12
    %4107 = vperm.xlu0 %4106, %v4102
    %v4108 = vpop.permute.xlu0 %4107
    %v4109 = vlaneseq
    %v4110 = vshrl.u32 %v4109, 7
    %v4111 = vsub.s32 %v1323, %v4110
    %v4112 = vrot.slane %v4105, %v4111
    %v4113 = vlaneseq
    %v4114 = vshrl.u32 %v4113, 7
    %v4115 = vsub.s32 %v1323, %v4114
    %v4116 = vrot.slane %v4108, %v4115
    %v4117 = vsel %vm366, %v4116, %v4112
    %v4118 = vpack.c.b16 %v4117, %v4117
    %v4120 = vunpack.c.l.s4 1966171168
    %v4121 = vunpack.c.0.s8 %v4120
    %v4122 = vlaneseq
    %v4123 = vshrl.u32 %v4122, 7
    %v4124 = vsub.s32 %v4121, %v4123
    %v4125 = vrot.slane %v4118, %v4124
    %v4127 = vunpack.c.l.s4 1966171168
    %v4128 = vunpack.c.0.s8 %v4127
    %v4129 = vlaneseq
    %v4130 = vshrl.u32 %v4129, 7
    %v4131 = vsub.s32 %v4128, %v4130
    %v4132 = vrot.slane %v4125, %v4131
    %4134 = vst.msk [vmem:[#allocation2] sm:$0x1] %vm1349, %v4132
    %4137 = vrot.lane.b32.xlu0 %v3581, 124
    %v4138 = vpop.permute.xlu0 %4137
    %4139 = vrot.lane.b32.xlu0 %v3582, 124
    %v4140 = vpop.permute.xlu0 %4139
    %v4143 = vadd.f32 %v3581, %v4138
    %v4144 = vadd.f32 %v3582, %v4140
    %v4145 = vmul.f32 %v4143, 0.5
    %v4146 = vmul.f32 %v4144, 0.5
    %v4147 = vmax.f32 %v3583, %v3585
    %v4148 = vmax.f32 %v3584, %v3586
    %v4149 = vmax.f32 %v3587, %v3589
    %v4150 = vmax.f32 %v3588, %v3590
    %v4151 = vadd.f32 %v4145, %v4147
    %v4152 = vadd.f32 %v4146, %v4148
    %v4153 = vpack.c.bf16 %v4151, %v4151
    %v4154 = vpack.c.bf16 %v4152, %v4152
    %v4158 = vunpack.c.l.s4 1966171168
    %v4159 = vunpack.c.0.s8 %v4158
    %v4160 = vlaneseq
    %v4161 = vshrl.u32 %v4160, 7
    %v4162 = vsub.s32 %v4159, %v4161
    %v4163 = vrot.slane %v4153, %v4162
    %v4164 = vcombine.high %v4163, %v4163
    %v4166 = vunpack.c.l.s4 1966171168
    %v4167 = vunpack.c.0.s8 %v4166
    %v4168 = vlaneseq
    %v4169 = vshrl.u32 %v4168, 7
    %v4170 = vsub.s32 %v4167, %v4169
    %v4171 = vrot.slane %v4163, %v4170
    %v4173 = vunpack.c.l.s4 1966171168
    %v4174 = vunpack.c.0.s8 %v4173
    %v4175 = vlaneseq
    %v4176 = vshrl.u32 %v4175, 7
    %v4177 = vsub.s32 %v4174, %v4176
    %v4178 = vrot.slane %v4164, %v4177
    %v4179 = vcombine.high %v4171, %v4171
    %v4180 = vcombine.high %v4178, %v4178
    %v4182 = vunpack.c.l.s4 1966171168
    %v4183 = vunpack.c.0.s8 %v4182
    %v4184 = vlaneseq
    %v4185 = vshrl.u32 %v4184, 7
    %v4186 = vsub.s32 %v4183, %v4185
    %v4187 = vrot.slane %v4154, %v4186
    %v4188 = vcombine.high %v4187, %v4187
    %v4190 = vunpack.c.l.s4 1966171168
    %v4191 = vunpack.c.0.s8 %v4190
    %v4192 = vlaneseq
    %v4193 = vshrl.u32 %v4192, 7
    %v4194 = vsub.s32 %v4191, %v4193
    %v4195 = vrot.slane %v4187, %v4194
    %v4197 = vunpack.c.l.s4 1966171168
    %v4198 = vunpack.c.0.s8 %v4197
    %v4199 = vlaneseq
    %v4200 = vshrl.u32 %v4199, 7
    %v4201 = vsub.s32 %v4198, %v4200
    %v4202 = vrot.slane %v4188, %v4201
    %v4203 = vcombine.high %v4195, %v4195
    %v4204 = vcombine.high %v4202, %v4202
    %v4205 = vcombine.low %v4171, %v4179
    %v4206 = vcombine.low %v4178, %v4180
    %v4208 = vunpack.c.l.s4 1935823168
    %v4209 = vunpack.c.0.s8 %v4208
    %v4210 = vlaneseq
    %v4211 = vshrl.u32 %v4210, 7
    %v4212 = vsub.s32 %v4209, %v4211
    %v4213 = vrot.slane %v4205, %v4212
    %v4215 = vunpack.c.l.s4 1935823168
    %v4216 = vunpack.c.0.s8 %v4215
    %v4217 = vlaneseq
    %v4218 = vshrl.u32 %v4217, 7
    %v4219 = vsub.s32 %v4216, %v4218
    %v4220 = vrot.slane %v4206, %v4219
    %v4221 = vcombine.low %v4213, %v4220
    %v4223 = vunpack.c.l.s4 1935823168
    %v4224 = vunpack.c.0.s8 %v4223
    %v4225 = vlaneseq
    %v4226 = vshrl.u32 %v4225, 7
    %v4227 = vsub.s32 %v4224, %v4226
    %v4228 = vrot.slane %v4221, %v4227
    %v4229 = vcombine.low %v4195, %v4203
    %v4230 = vcombine.low %v4202, %v4204
    %v4232 = vunpack.c.l.s4 1935823168
    %v4233 = vunpack.c.0.s8 %v4232
    %v4234 = vlaneseq
    %v4235 = vshrl.u32 %v4234, 7
    %v4236 = vsub.s32 %v4233, %v4235
    %v4237 = vrot.slane %v4229, %v4236
    %v4239 = vunpack.c.l.s4 1935823168
    %v4240 = vunpack.c.0.s8 %v4239
    %v4241 = vlaneseq
    %v4242 = vshrl.u32 %v4241, 7
    %v4243 = vsub.s32 %v4240, %v4242
    %v4244 = vrot.slane %v4230, %v4243
    %v4245 = vcombine.low %v4237, %v4244
    %v4247 = vunpack.c.l.s4 1935823168
    %v4248 = vunpack.c.0.s8 %v4247
    %v4249 = vlaneseq
    %v4250 = vshrl.u32 %v4249, 7
    %v4251 = vsub.s32 %v4248, %v4250
    %v4252 = vrot.slane %v4245, %v4251
    %v4253 = vunpack.c.l.b16 %v4228
    %v4254 = vunpack.c.l.b16 %v4252
    %4255 = vset.pattern.permute.xlu0 0
    %4256 = vperm.xlu0 %4255, %v4253
    %v4257 = vpop.permute.xlu0 %4256
    %4258 = vset.pattern.permute.xlu0 0
    %4259 = vperm.xlu0 %4258, %v4254
    %v4260 = vpop.permute.xlu0 %4259
    %v4261 = vlaneseq
    %v4262 = vshrl.u32 %v4261, 7
    %v4263 = vsub.s32 %v633, %v4262
    %v4264 = vrot.slane %v4257, %v4263
    %v4265 = vlaneseq
    %v4266 = vshrl.u32 %v4265, 7
    %v4267 = vsub.s32 %v633, %v4266
    %v4268 = vrot.slane %v4260, %v4267
    %v4269 = vsel %vm366, %v4268, %v4264
    %v4270 = vpack.c.b16 %v4269, %v4269
    %v4272 = vunpack.c.l.s4 1966171168
    %v4273 = vunpack.c.0.s8 %v4272
    %v4274 = vlaneseq
    %v4275 = vshrl.u32 %v4274, 7
    %v4276 = vsub.s32 %v4273, %v4275
    %v4277 = vrot.slane %v4270, %v4276
    %v4279 = vunpack.c.l.s4 1966171168
    %v4280 = vunpack.c.0.s8 %v4279
    %v4281 = vlaneseq
    %v4282 = vshrl.u32 %v4281, 7
    %v4283 = vsub.s32 %v4280, %v4282
    %v4284 = vrot.slane %v4277, %v4283
    %4286 = vst.msk [vmem:[#allocation2] sm:$0x1] %vm659, %v4284
    %v4287 = vadd.f32 %v4145, %v4149
    %v4288 = vadd.f32 %v4146, %v4150
    %v4289 = vpack.c.bf16 %v4287, %v4287
    %v4290 = vpack.c.bf16 %v4288, %v4288
    %v4294 = vunpack.c.l.s4 1966171168
    %v4295 = vunpack.c.0.s8 %v4294
    %v4296 = vlaneseq
    %v4297 = vshrl.u32 %v4296, 7
    %v4298 = vsub.s32 %v4295, %v4297
    %v4299 = vrot.slane %v4289, %v4298
    %v4300 = vcombine.high %v4299, %v4299
    %v4302 = vunpack.c.l.s4 1966171168
    %v4303 = vunpack.c.0.s8 %v4302
    %v4304 = vlaneseq
    %v4305 = vshrl.u32 %v4304, 7
    %v4306 = vsub.s32 %v4303, %v4305
    %v4307 = vrot.slane %v4299, %v4306
    %v4309 = vunpack.c.l.s4 1966171168
    %v4310 = vunpack.c.0.s8 %v4309
    %v4311 = vlaneseq
    %v4312 = vshrl.u32 %v4311, 7
    %v4313 = vsub.s32 %v4310, %v4312
    %v4314 = vrot.slane %v4300, %v4313
    %v4315 = vcombine.high %v4307, %v4307
    %v4316 = vcombine.high %v4314, %v4314
    %v4318 = vunpack.c.l.s4 1966171168
    %v4319 = vunpack.c.0.s8 %v4318
    %v4320 = vlaneseq
    %v4321 = vshrl.u32 %v4320, 7
    %v4322 = vsub.s32 %v4319, %v4321
    %v4323 = vrot.slane %v4290, %v4322
    %v4324 = vcombine.high %v4323, %v4323
    %v4326 = vunpack.c.l.s4 1966171168
    %v4327 = vunpack.c.0.s8 %v4326
    %v4328 = vlaneseq
    %v4329 = vshrl.u32 %v4328, 7
    %v4330 = vsub.s32 %v4327, %v4329
    %v4331 = vrot.slane %v4323, %v4330
    %v4333 = vunpack.c.l.s4 1966171168
    %v4334 = vunpack.c.0.s8 %v4333
    %v4335 = vlaneseq
    %v4336 = vshrl.u32 %v4335, 7
    %v4337 = vsub.s32 %v4334, %v4336
    %v4338 = vrot.slane %v4324, %v4337
    %v4339 = vcombine.high %v4331, %v4331
    %v4340 = vcombine.high %v4338, %v4338
    %v4341 = vcombine.low %v4307, %v4315
    %v4342 = vcombine.low %v4314, %v4316
    %v4344 = vunpack.c.l.s4 1935823168
    %v4345 = vunpack.c.0.s8 %v4344
    %v4346 = vlaneseq
    %v4347 = vshrl.u32 %v4346, 7
    %v4348 = vsub.s32 %v4345, %v4347
    %v4349 = vrot.slane %v4341, %v4348
    %v4351 = vunpack.c.l.s4 1935823168
    %v4352 = vunpack.c.0.s8 %v4351
    %v4353 = vlaneseq
    %v4354 = vshrl.u32 %v4353, 7
    %v4355 = vsub.s32 %v4352, %v4354
    %v4356 = vrot.slane %v4342, %v4355
    %v4357 = vcombine.low %v4349, %v4356
    %v4359 = vunpack.c.l.s4 1935823168
    %v4360 = vunpack.c.0.s8 %v4359
    %v4361 = vlaneseq
    %v4362 = vshrl.u32 %v4361, 7
    %v4363 = vsub.s32 %v4360, %v4362
    %v4364 = vrot.slane %v4357, %v4363
    %v4365 = vcombine.low %v4331, %v4339
    %v4366 = vcombine.low %v4338, %v4340
    %v4368 = vunpack.c.l.s4 1935823168
    %v4369 = vunpack.c.0.s8 %v4368
    %v4370 = vlaneseq
    %v4371 = vshrl.u32 %v4370, 7
    %v4372 = vsub.s32 %v4369, %v4371
    %v4373 = vrot.slane %v4365, %v4372
    %v4375 = vunpack.c.l.s4 1935823168
    %v4376 = vunpack.c.0.s8 %v4375
    %v4377 = vlaneseq
    %v4378 = vshrl.u32 %v4377, 7
    %v4379 = vsub.s32 %v4376, %v4378
    %v4380 = vrot.slane %v4366, %v4379
    %v4381 = vcombine.low %v4373, %v4380
    %v4383 = vunpack.c.l.s4 1935823168
    %v4384 = vunpack.c.0.s8 %v4383
    %v4385 = vlaneseq
    %v4386 = vshrl.u32 %v4385, 7
    %v4387 = vsub.s32 %v4384, %v4386
    %v4388 = vrot.slane %v4381, %v4387
    %v4389 = vunpack.c.l.b16 %v4364
    %v4390 = vunpack.c.l.b16 %v4388
    %4391 = vset.pattern.permute.xlu0 8
    %4392 = vperm.xlu0 %4391, %v4389
    %v4393 = vpop.permute.xlu0 %4392
    %4394 = vset.pattern.permute.xlu0 8
    %4395 = vperm.xlu0 %4394, %v4390
    %v4396 = vpop.permute.xlu0 %4395
    %v4397 = vlaneseq
    %v4398 = vshrl.u32 %v4397, 7
    %v4399 = vsub.s32 %v771, %v4398
    %v4400 = vrot.slane %v4393, %v4399
    %v4401 = vlaneseq
    %v4402 = vshrl.u32 %v4401, 7
    %v4403 = vsub.s32 %v771, %v4402
    %v4404 = vrot.slane %v4396, %v4403
    %v4405 = vsel %vm366, %v4404, %v4400
    %v4406 = vpack.c.b16 %v4405, %v4405
    %v4408 = vunpack.c.l.s4 1966171168
    %v4409 = vunpack.c.0.s8 %v4408
    %v4410 = vlaneseq
    %v4411 = vshrl.u32 %v4410, 7
    %v4412 = vsub.s32 %v4409, %v4411
    %v4413 = vrot.slane %v4406, %v4412
    %v4415 = vunpack.c.l.s4 1966171168
    %v4416 = vunpack.c.0.s8 %v4415
    %v4417 = vlaneseq
    %v4418 = vshrl.u32 %v4417, 7
    %v4419 = vsub.s32 %v4416, %v4418
    %v4420 = vrot.slane %v4413, %v4419
    %4422 = vst.msk [vmem:[#allocation2] sm:$0x1] %vm797, %v4420
    %4425 = vrot.lane.b32.xlu0 %v4145, 120
    %v4426 = vpop.permute.xlu0 %4425
    %4427 = vrot.lane.b32.xlu0 %v4146, 120
    %v4428 = vpop.permute.xlu0 %4427
    %v4431 = vadd.f32 %v4145, %v4426
    %v4432 = vadd.f32 %v4146, %v4428
    %v4433 = vmul.f32 %v4431, 0.5
    %v4434 = vmul.f32 %v4432, 0.5
    %v4435 = vmax.f32 %v4147, %v4149
    %v4436 = vmax.f32 %v4148, %v4150
    %v4437 = vadd.f32 %v4433, %v4435
    %v4438 = vadd.f32 %v4434, %v4436
    %v4439 = vpack.c.bf16 %v4437, %v4437
    %v4440 = vpack.c.bf16 %v4438, %v4438
    %v4444 = vunpack.c.l.s4 1966171168
    %v4445 = vunpack.c.0.s8 %v4444
    %v4446 = vlaneseq
    %v4447 = vshrl.u32 %v4446, 7
    %v4448 = vsub.s32 %v4445, %v4447
    %v4449 = vrot.slane %v4439, %v4448
    %v4450 = vcombine.high %v4449, %v4449
    %v4452 = vunpack.c.l.s4 1966171168
    %v4453 = vunpack.c.0.s8 %v4452
    %v4454 = vlaneseq
    %v4455 = vshrl.u32 %v4454, 7
    %v4456 = vsub.s32 %v4453, %v4455
    %v4457 = vrot.slane %v4449, %v4456
    %v4459 = vunpack.c.l.s4 1966171168
    %v4460 = vunpack.c.0.s8 %v4459
    %v4461 = vlaneseq
    %v4462 = vshrl.u32 %v4461, 7
    %v4463 = vsub.s32 %v4460, %v4462
    %v4464 = vrot.slane %v4450, %v4463
    %v4465 = vcombine.high %v4457, %v4457
    %v4466 = vcombine.high %v4464, %v4464
    %v4468 = vunpack.c.l.s4 1966171168
    %v4469 = vunpack.c.0.s8 %v4468
    %v4470 = vlaneseq
    %v4471 = vshrl.u32 %v4470, 7
    %v4472 = vsub.s32 %v4469, %v4471
    %v4473 = vrot.slane %v4440, %v4472
    %v4474 = vcombine.high %v4473, %v4473
    %v4476 = vunpack.c.l.s4 1966171168
    %v4477 = vunpack.c.0.s8 %v4476
    %v4478 = vlaneseq
    %v4479 = vshrl.u32 %v4478, 7
    %v4480 = vsub.s32 %v4477, %v4479
    %v4481 = vrot.slane %v4473, %v4480
    %v4483 = vunpack.c.l.s4 1966171168
    %v4484 = vunpack.c.0.s8 %v4483
    %v4485 = vlaneseq
    %v4486 = vshrl.u32 %v4485, 7
    %v4487 = vsub.s32 %v4484, %v4486
    %v4488 = vrot.slane %v4474, %v4487
    %v4489 = vcombine.high %v4481, %v4481
    %v4490 = vcombine.high %v4488, %v4488
    %v4491 = vcombine.low %v4457, %v4465
    %v4492 = vcombine.low %v4464, %v4466
    %v4494 = vunpack.c.l.s4 1935823168
    %v4495 = vunpack.c.0.s8 %v4494
    %v4496 = vlaneseq
    %v4497 = vshrl.u32 %v4496, 7
    %v4498 = vsub.s32 %v4495, %v4497
    %v4499 = vrot.slane %v4491, %v4498
    %v4501 = vunpack.c.l.s4 1935823168
    %v4502 = vunpack.c.0.s8 %v4501
    %v4503 = vlaneseq
    %v4504 = vshrl.u32 %v4503, 7
    %v4505 = vsub.s32 %v4502, %v4504
    %v4506 = vrot.slane %v4492, %v4505
    %v4507 = vcombine.low %v4499, %v4506
    %v4509 = vunpack.c.l.s4 1935823168
    %v4510 = vunpack.c.0.s8 %v4509
    %v4511 = vlaneseq
    %v4512 = vshrl.u32 %v4511, 7
    %v4513 = vsub.s32 %v4510, %v4512
    %v4514 = vrot.slane %v4507, %v4513
    %v4515 = vcombine.low %v4481, %v4489
    %v4516 = vcombine.low %v4488, %v4490
    %v4518 = vunpack.c.l.s4 1935823168
    %v4519 = vunpack.c.0.s8 %v4518
    %v4520 = vlaneseq
    %v4521 = vshrl.u32 %v4520, 7
    %v4522 = vsub.s32 %v4519, %v4521
    %v4523 = vrot.slane %v4515, %v4522
    %v4525 = vunpack.c.l.s4 1935823168
    %v4526 = vunpack.c.0.s8 %v4525
    %v4527 = vlaneseq
    %v4528 = vshrl.u32 %v4527, 7
    %v4529 = vsub.s32 %v4526, %v4528
    %v4530 = vrot.slane %v4516, %v4529
    %v4531 = vcombine.low %v4523, %v4530
    %v4533 = vunpack.c.l.s4 1935823168
    %v4534 = vunpack.c.0.s8 %v4533
    %v4535 = vlaneseq
    %v4536 = vshrl.u32 %v4535, 7
    %v4537 = vsub.s32 %v4534, %v4536
    %v4538 = vrot.slane %v4531, %v4537
    %v4539 = vunpack.c.l.b16 %v4514
    %v4540 = vunpack.c.l.b16 %v4538
    %4541 = vset.pattern.permute.xlu0 0
    %4542 = vperm.xlu0 %4541, %v4539
    %v4543 = vpop.permute.xlu0 %4542
    %4544 = vset.pattern.permute.xlu0 0
    %4545 = vperm.xlu0 %4544, %v4540
    %v4546 = vpop.permute.xlu0 %4545
    %v4547 = vlaneseq
    %v4548 = vshrl.u32 %v4547, 7
    %v4549 = vsub.s32 %v356, %v4548
    %v4550 = vrot.slane %v4543, %v4549
    %v4551 = vlaneseq
    %v4552 = vshrl.u32 %v4551, 7
    %v4553 = vsub.s32 %v356, %v4552
    %v4554 = vrot.slane %v4546, %v4553
    %v4555 = vsel %vm366, %v4554, %v4550
    %v4556 = vpack.c.b16 %v4555, %v4555
    %v4558 = vunpack.c.l.s4 1966171168
    %v4559 = vunpack.c.0.s8 %v4558
    %v4560 = vlaneseq
    %v4561 = vshrl.u32 %v4560, 7
    %v4562 = vsub.s32 %v4559, %v4561
    %v4563 = vrot.slane %v4556, %v4562
    %v4565 = vunpack.c.l.s4 1966171168
    %v4566 = vunpack.c.0.s8 %v4565
    %v4567 = vlaneseq
    %v4568 = vshrl.u32 %v4567, 7
    %v4569 = vsub.s32 %v4566, %v4568
    %v4570 = vrot.slane %v4563, %v4569
    %4572 = vst.msk [vmem:[#allocation2] sm:$0x1] %vm521, %v4570
    %v4573 = vld [vmem:[#allocation2] sm:$0x3]
    %v4574 = vld [vmem:[#allocation3] sm:$0xff]
    %v4575 = vld [vmem:[#allocation3 + $0x8] sm:$0xf]
    %v4576 = vld [vmem:[#allocation3 + $0xc] sm:$0xff]
    %v4577 = vld [vmem:[#allocation3 + $0x14] sm:$0xf]
    %v4578 = vld [vmem:[#allocation3 + $0x18] sm:$0xff]
    %v4579 = vld [vmem:[#allocation3 + $0x20] sm:$0xf]
    %v4580 = vld [vmem:[#allocation3 + $0x24] sm:$0xff]
    %v4581 = vld [vmem:[#allocation3 + $0x2c] sm:$0xf]
    %v4582 = vld [vmem:[#allocation3 + $0x30] sm:$0xff]
    %v4583 = vld [vmem:[#allocation3 + $0x38] sm:$0xf]
    %v4584 = vld [vmem:[#allocation3 + $0x3c] sm:$0xff]
    %v4585 = vld [vmem:[#allocation3 + $0x44] sm:$0xf]
    %v4586 = vld [vmem:[#allocation3 + $0x48] sm:$0xff]
    %v4587 = vld [vmem:[#allocation3 + $0x50] sm:$0xf]
    %v4588 = vld [vmem:[#allocation3 + $0x54] sm:$0xff]
    %v4589 = vld [vmem:[#allocation3 + $0x5c] sm:$0xf]
    %v4590 = vld [vmem:[#allocation3 + $0x60] sm:$0xff]
    %v4591 = vld [vmem:[#allocation3 + $0x68] sm:$0xf]
    %v4592 = vld [vmem:[#allocation3 + $0x6c] sm:$0xff]
    %v4593 = vld [vmem:[#allocation3 + $0x74] sm:$0xf]
    %v4594 = vld [vmem:[#allocation3 + $0x78] sm:$0xff]
    %v4595 = vld [vmem:[#allocation3 + $0x80] sm:$0xf]
    %v4596 = vld [vmem:[#allocation3 + $0x84] sm:$0xff]
    %v4597 = vld [vmem:[#allocation3 + $0x8c] sm:$0xf]
    %v4598 = vld [vmem:[#allocation3 + $0x90] sm:$0xff]
    %v4599 = vld [vmem:[#allocation3 + $0x98] sm:$0xf]
    %v4600 = vld [vmem:[#allocation3 + $0x9c] sm:$0xff]
    %v4601 = vld [vmem:[#allocation3 + $0xa4] sm:$0xf]
    %v4602 = vld [vmem:[#allocation3 + $0xa8] sm:$0xff]
    %v4603 = vld [vmem:[#allocation3 + $0xb0] sm:$0xf]
    %v4604 = vld [vmem:[#allocation3 + $0xb4] sm:$0xff]
    %v4605 = vld [vmem:[#allocation3 + $0xbc] sm:$0xf]
    %v4606 = vld [vmem:[#allocation3 + $0xc0] sm:$0xff]
    %v4607 = vld [vmem:[#allocation3 + $0xc8] sm:$0xf]
    %v4608 = vld [vmem:[#allocation3 + $0xcc] sm:$0xff]
    %v4609 = vld [vmem:[#allocation3 + $0xd4] sm:$0xf]
    %v4610 = vld [vmem:[#allocation3 + $0xd8] sm:$0xff]
    %v4611 = vld [vmem:[#allocation3 + $0xe0] sm:$0xf]
    %v4612 = vld [vmem:[#allocation3 + $0xe4] sm:$0xff]
    %v4613 = vld [vmem:[#allocation3 + $0xec] sm:$0xf]
    %v4614 = vld [vmem:[#allocation3 + $0xf0] sm:$0xff]
    %v4615 = vld [vmem:[#allocation3 + $0xf8] sm:$0xf]
    %v4616 = vld [vmem:[#allocation3 + $0xfc] sm:$0xff]
    %v4617 = vld [vmem:[#allocation3 + $0x104] sm:$0xf]
    %v4618 = vld [vmem:[#allocation3 + $0x108] sm:$0xff]
    %v4619 = vld [vmem:[#allocation3 + $0x110] sm:$0xf]
    %v4620 = vld [vmem:[#allocation3 + $0x114] sm:$0xff]
    %v4621 = vld [vmem:[#allocation3 + $0x11c] sm:$0xf]
    %v4622 = vld [vmem:[#allocation3 + $0x120] sm:$0xff]
    %v4623 = vld [vmem:[#allocation3 + $0x128] sm:$0xf]
    %v4624 = vld [vmem:[#allocation3 + $0x12c] sm:$0xff]
    %v4625 = vld [vmem:[#allocation3 + $0x134] sm:$0xf]
    %v4626 = vld [vmem:[#allocation3 + $0x138] sm:$0xff]
    %v4627 = vld [vmem:[#allocation3 + $0x140] sm:$0xf]
    %v4628 = vld [vmem:[#allocation3 + $0x144] sm:$0xff]
    %v4629 = vld [vmem:[#allocation3 + $0x14c] sm:$0xf]
    %v4630 = vld [vmem:[#allocation3 + $0x150] sm:$0xff]
    %v4631 = vld [vmem:[#allocation3 + $0x158] sm:$0xf]
    %v4632 = vld [vmem:[#allocation3 + $0x15c] sm:$0xff]
    %v4633 = vld [vmem:[#allocation3 + $0x164] sm:$0xf]
    %v4634 = vld [vmem:[#allocation3 + $0x168] sm:$0xff]
    %v4635 = vld [vmem:[#allocation3 + $0x170] sm:$0xf]
    %v4638 = vunpack.c.l.s4 1966171168
    %v4639 = vunpack.c.0.s8 %v4638
    %v4640 = vlaneseq
    %v4641 = vshrl.u32 %v4640, 7
    %v4642 = vsub.s32 %v4639, %v4641
    %v4643 = vrot.slane %v4573, %v4642
    %v4644 = vcombine.high %v4643, %v4643
    %v4646 = vunpack.c.l.s4 1966171168
    %v4647 = vunpack.c.0.s8 %v4646
    %v4648 = vlaneseq
    %v4649 = vshrl.u32 %v4648, 7
    %v4650 = vsub.s32 %v4647, %v4649
    %v4651 = vrot.slane %v4643, %v4650
    %v4653 = vunpack.c.l.s4 1966171168
    %v4654 = vunpack.c.0.s8 %v4653
    %v4655 = vlaneseq
    %v4656 = vshrl.u32 %v4655, 7
    %v4657 = vsub.s32 %v4654, %v4656
    %v4658 = vrot.slane %v4644, %v4657
    %v4722 = vunpack.c.l.b16 %v4574
    %v4723 = vunpack.c.h.b16 %v4574
    %v4724 = vunpack.c.l.b16 %v4575
    %v4725 = vunpack.c.l.b16 %v4576
    %v4726 = vunpack.c.h.b16 %v4576
    %v4727 = vunpack.c.l.b16 %v4577
    %v4728 = vunpack.c.l.b16 %v4578
    %v4729 = vunpack.c.h.b16 %v4578
    %v4730 = vunpack.c.l.b16 %v4579
    %v4731 = vunpack.c.l.b16 %v4580
    %v4732 = vunpack.c.h.b16 %v4580
    %v4733 = vunpack.c.l.b16 %v4581
    %v4734 = vunpack.c.l.b16 %v4582
    %v4735 = vunpack.c.h.b16 %v4582
    %v4736 = vunpack.c.l.b16 %v4583
    %v4737 = vunpack.c.l.b16 %v4584
    %v4738 = vunpack.c.h.b16 %v4584
    %v4739 = vunpack.c.l.b16 %v4585
    %v4740 = vunpack.c.l.b16 %v4586
    %v4741 = vunpack.c.h.b16 %v4586
    %v4742 = vunpack.c.l.b16 %v4587
    %v4743 = vunpack.c.l.b16 %v4588
    %v4744 = vunpack.c.h.b16 %v4588
    %v4745 = vunpack.c.l.b16 %v4589
    %v4746 = vunpack.c.l.b16 %v4590
    %v4747 = vunpack.c.h.b16 %v4590
    %v4748 = vunpack.c.l.b16 %v4591
    %v4749 = vunpack.c.l.b16 %v4592
    %v4750 = vunpack.c.h.b16 %v4592
    %v4751 = vunpack.c.l.b16 %v4593
    %v4752 = vunpack.c.l.b16 %v4594
    %v4753 = vunpack.c.h.b16 %v4594
    %v4754 = vunpack.c.l.b16 %v4595
    %v4755 = vunpack.c.l.b16 %v4596
    %v4756 = vunpack.c.h.b16 %v4596
    %v4757 = vunpack.c.l.b16 %v4597
    %v4758 = vunpack.c.l.b16 %v4598
    %v4759 = vunpack.c.h.b16 %v4598
    %v4760 = vunpack.c.l.b16 %v4599
    %v4761 = vunpack.c.l.b16 %v4600
    %v4762 = vunpack.c.h.b16 %v4600
    %v4763 = vunpack.c.l.b16 %v4601
    %v4764 = vunpack.c.l.b16 %v4602
    %v4765 = vunpack.c.h.b16 %v4602
    %v4766 = vunpack.c.l.b16 %v4603
    %v4767 = vunpack.c.l.b16 %v4604
    %v4768 = vunpack.c.h.b16 %v4604
    %v4769 = vunpack.c.l.b16 %v4605
    %v4770 = vunpack.c.l.b16 %v4606
    %v4771 = vunpack.c.h.b16 %v4606
    %v4772 = vunpack.c.l.b16 %v4607
    %v4773 = vunpack.c.l.b16 %v4608
    %v4774 = vunpack.c.h.b16 %v4608
    %v4775 = vunpack.c.l.b16 %v4609
    %v4776 = vunpack.c.l.b16 %v4610
    %v4777 = vunpack.c.h.b16 %v4610
    %v4778 = vunpack.c.l.b16 %v4611
    %v4779 = vunpack.c.l.b16 %v4612
    %v4780 = vunpack.c.h.b16 %v4612
    %v4781 = vunpack.c.l.b16 %v4613
    %v4782 = vunpack.c.l.b16 %v4614
    %v4783 = vunpack.c.h.b16 %v4614
    %v4784 = vunpack.c.l.b16 %v4615
    %v4785 = vunpack.c.l.b16 %v4616
    %v4786 = vunpack.c.h.b16 %v4616
    %v4787 = vunpack.c.l.b16 %v4617
    %v4788 = vunpack.c.l.b16 %v4618
    %v4789 = vunpack.c.h.b16 %v4618
    %v4790 = vunpack.c.l.b16 %v4619
    %v4791 = vunpack.c.l.b16 %v4620
    %v4792 = vunpack.c.h.b16 %v4620
    %v4793 = vunpack.c.l.b16 %v4621
    %v4794 = vunpack.c.l.b16 %v4622
    %v4795 = vunpack.c.h.b16 %v4622
    %v4796 = vunpack.c.l.b16 %v4623
    %v4797 = vunpack.c.l.b16 %v4624
    %v4798 = vunpack.c.h.b16 %v4624
    %v4799 = vunpack.c.l.b16 %v4625
    %v4800 = vunpack.c.l.b16 %v4626
    %v4801 = vunpack.c.h.b16 %v4626
    %v4802 = vunpack.c.l.b16 %v4627
    %v4803 = vunpack.c.l.b16 %v4628
    %v4804 = vunpack.c.h.b16 %v4628
    %v4805 = vunpack.c.l.b16 %v4629
    %v4806 = vunpack.c.l.b16 %v4630
    %v4807 = vunpack.c.h.b16 %v4630
    %v4808 = vunpack.c.l.b16 %v4631
    %v4809 = vunpack.c.l.b16 %v4632
    %v4810 = vunpack.c.h.b16 %v4632
    %v4811 = vunpack.c.l.b16 %v4633
    %v4812 = vunpack.c.l.b16 %v4634
    %v4813 = vunpack.c.h.b16 %v4634
    %v4814 = vunpack.c.l.b16 %v4635
    %v4815 = vpack.c.b16 %v4725, %v4722
    %v4816 = vpack.c.b16 %v4726, %v4723
    %v4817 = vpack.c.b16 %v4727, %v4724
    %v4818 = vpack.c.b16 %v4731, %v4728
    %v4819 = vpack.c.b16 %v4732, %v4729
    %v4820 = vpack.c.b16 %v4733, %v4730
    %v4821 = vpack.c.b16 %v4737, %v4734
    %v4822 = vpack.c.b16 %v4738, %v4735
    %v4823 = vpack.c.b16 %v4739, %v4736
    %v4824 = vpack.c.b16 %v4743, %v4740
    %v4825 = vpack.c.b16 %v4744, %v4741
    %v4826 = vpack.c.b16 %v4745, %v4742
    %v4827 = vpack.c.b16 %v4749, %v4746
    %v4828 = vpack.c.b16 %v4750, %v4747
    %v4829 = vpack.c.b16 %v4751, %v4748
    %v4830 = vpack.c.b16 %v4755, %v4752
    %v4831 = vpack.c.b16 %v4756, %v4753
    %v4832 = vpack.c.b16 %v4757, %v4754
    %v4833 = vpack.c.b16 %v4761, %v4758
    %v4834 = vpack.c.b16 %v4762, %v4759
    %v4835 = vpack.c.b16 %v4763, %v4760
    %v4836 = vpack.c.b16 %v4767, %v4764
    %v4837 = vpack.c.b16 %v4768, %v4765
    %v4838 = vpack.c.b16 %v4769, %v4766
    %v4839 = vpack.c.b16 %v4773, %v4770
    %v4840 = vpack.c.b16 %v4774, %v4771
    %v4841 = vpack.c.b16 %v4775, %v4772
    %v4842 = vpack.c.b16 %v4779, %v4776
    %v4843 = vpack.c.b16 %v4780, %v4777
    %v4844 = vpack.c.b16 %v4781, %v4778
    %v4845 = vpack.c.b16 %v4785, %v4782
    %v4846 = vpack.c.b16 %v4786, %v4783
    %v4847 = vpack.c.b16 %v4787, %v4784
    %v4848 = vpack.c.b16 %v4791, %v4788
    %v4849 = vpack.c.b16 %v4792, %v4789
    %v4850 = vpack.c.b16 %v4793, %v4790
    %v4851 = vpack.c.b16 %v4797, %v4794
    %v4852 = vpack.c.b16 %v4798, %v4795
    %v4853 = vpack.c.b16 %v4799, %v4796
    %v4854 = vpack.c.b16 %v4803, %v4800
    %v4855 = vpack.c.b16 %v4804, %v4801
    %v4856 = vpack.c.b16 %v4805, %v4802
    %v4857 = vpack.c.b16 %v4809, %v4806
    %v4858 = vpack.c.b16 %v4810, %v4807
    %v4859 = vpack.c.b16 %v4811, %v4808
    %v4860 = vpack.c.b16 %v4812, %v4812
    %v4861 = vpack.c.b16 %v4813, %v4813
    %v4862 = vpack.c.b16 %v4814, %v4814
    %vm4908 = vcmask 982016
    %v4910 = vsel %vm4908, %v4658, 0
    %vm4912 = vcmask 1043456
    %v4914 = vsel %vm4912, %v4860, 0
    %v4917 = vsel %vm4912, %v4861, 0
    %v4920 = vsel %vm4912, %v4862, 0
    %4922 = vmatprep.subr.bf16.mxu0 %v4816
    %4923 = vmatpush1.bf16.msra.mxu0 %v4815
    %4924 = vmatprep.subr.bf16.mxu0 %v4819
    %4925 = vmatpush1.bf16.msra.mxu0 %v4818
    %4926 = vmatprep.subr.bf16.mxu0 %v4822
    %4927 = vmatpush1.bf16.msra.mxu0 %v4821
    %4928 = vmatprep.subr.bf16.mxu0 %v4825
    %4929 = vmatpush1.bf16.msra.mxu0 %v4824
    %4930 = vmatprep.subr.bf16.mxu0 %v4828
    %4931 = vmatpush1.bf16.msra.mxu0 %v4827
    %4932 = vmatprep.subr.bf16.mxu0 %v4831
    %4933 = vmatpush1.bf16.msra.mxu0 %v4830
    %4934 = vmatprep.subr.bf16.mxu0 %v4834
    %4935 = vmatpush1.bf16.msra.mxu0 %v4833
    %4936 = vmatprep.subr.bf16.mxu0 %v4837
    %4937 = vmatpush1.bf16.msra.mxu0 %v4836
    %4938 = vmatprep.subr.bf16.mxu0 %v4840
    %4939 = vmatpush1.bf16.msra.mxu0 %v4839
    %4940 = vmatprep.subr.bf16.mxu0 %v4843
    %4941 = vmatpush1.bf16.msra.mxu0 %v4842
    %4942 = vmatprep.subr.bf16.mxu0 %v4846
    %4943 = vmatpush1.bf16.msra.mxu0 %v4845
    %4944 = vmatprep.subr.bf16.mxu0 %v4849
    %4945 = vmatpush1.bf16.msra.mxu0 %v4848
    %4946 = vmatprep.subr.bf16.mxu0 %v4852
    %4947 = vmatpush1.bf16.msra.mxu0 %v4851
    %4948 = vmatprep.subr.bf16.mxu0 %v4855
    %4949 = vmatpush1.bf16.msra.mxu0 %v4854
    %4950 = vmatprep.subr.bf16.mxu0 %v4858
    %4951 = vmatpush1.bf16.msra.mxu0 %v4857
    %4952 = vmatprep.subr.bf16.mxu0 %v4917
    %4953 = vmatpush1.bf16.msra.mxu0 %v4914
    %4954 = vmatprep.mubr.bf16.mxu0 %v4910
    %4955 = vmatmul.mubr.bf16.gmra.mrb[0].mxu0 %v4651
    %v4956 = vpop.f32.mrb[0].mxu0
    %v4957 = vadd.f32 0.0, %v4956
    %v4958 = vpop.f32.mrb[0].mxu0
    %v4959 = vadd.f32 0.0, %v4958
    %v4960 = vpop.f32.mrb[0].mxu0
    %v4961 = vpop.f32.mrb[0].mxu0
    %4962 = vdwg.mxu0
    %4963 = vmatprep.subr.bf16.mxu0 0
    %4964 = vmatpush1.bf16.msra.mxu0 %v4817
    %4965 = vmatprep.subr.bf16.mxu0 0
    %4966 = vmatpush1.bf16.msra.mxu0 %v4820
    %4967 = vmatprep.subr.bf16.mxu0 0
    %4968 = vmatpush1.bf16.msra.mxu0 %v4823
    %4969 = vmatprep.subr.bf16.mxu0 0
    %4970 = vmatpush1.bf16.msra.mxu0 %v4826
    %4971 = vmatprep.subr.bf16.mxu0 0
    %4972 = vmatpush1.bf16.msra.mxu0 %v4829
    %4973 = vmatprep.subr.bf16.mxu0 0
    %4974 = vmatpush1.bf16.msra.mxu0 %v4832
    %4975 = vmatprep.subr.bf16.mxu0 0
    %4976 = vmatpush1.bf16.msra.mxu0 %v4835
    %4977 = vmatprep.subr.bf16.mxu0 0
    %4978 = vmatpush1.bf16.msra.mxu0 %v4838
    %4979 = vmatprep.subr.bf16.mxu0 0
    %4980 = vmatpush1.bf16.msra.mxu0 %v4841
    %4981 = vmatprep.subr.bf16.mxu0 0
    %4982 = vmatpush1.bf16.msra.mxu0 %v4844
    %4983 = vmatprep.subr.bf16.mxu0 0
    %4984 = vmatpush1.bf16.msra.mxu0 %v4847
    %4985 = vmatprep.subr.bf16.mxu0 0
    %4986 = vmatpush1.bf16.msra.mxu0 %v4850
    %4987 = vmatprep.subr.bf16.mxu0 0
    %4988 = vmatpush1.bf16.msra.mxu0 %v4853
    %4989 = vmatprep.subr.bf16.mxu0 0
    %4990 = vmatpush1.bf16.msra.mxu0 %v4856
    %4991 = vmatprep.subr.bf16.mxu0 0
    %4992 = vmatpush1.bf16.msra.mxu0 %v4859
    %4993 = vmatprep.subr.bf16.mxu0 0
    %4994 = vmatpush1.bf16.msra.mxu0 %v4920
    %4995 = vmatprep.mubr.bf16.mxu0 %v4910
    %4996 = vmatmul.mubr.bf16.gmra.mrb[0].mxu0 %v4651
    %v4997 = vpop.f32.mrb[0].mxu0
    %v4998 = vadd.f32 0.0, %v4997
    %v4999 = vpop.f32.mrb[0].mxu0
    %v5000 = vpop.f32.mrb[0].mxu0
    %v5001 = vpop.f32.mrb[0].mxu0
    %5002 = vdwg.mxu0
    %v5006 = vcombine.low %v4957, %v4959
    %v5008 = vunpack.c.l.s4 1983009808
    %v5009 = vunpack.c.0.s8 %v5008
    %v5010 = vlaneseq
    %v5011 = vshrl.u32 %v5010, 7
    %v5012 = vsub.s32 %v5009, %v5011
    %v5013 = vrot.slane %v5006, %v5012
    %v5015 = vunpack.c.l.s4 1983009808
    %v5016 = vunpack.c.0.s8 %v5015
    %v5017 = vlaneseq
    %v5018 = vshrl.u32 %v5017, 7
    %v5019 = vsub.s32 %v5016, %v5018
    %v5020 = vrot.slane %v4998, %v5019
    %v5021 = vcombine.low %v5013, %v5020
    %5023 = vst [vmem:[#allocation6] sm:$0x3f] %v5021
    // Predicated region
    $region18: #{tpu_custom_call.1} parent=1 // pred_check
      _
    $region19: #{tpu_custom_call.1} parent=1 // pred_check_branch
      %5025 = sbr.rel (0) target = $region21
    $region20: #{tpu_custom_call.1} parent=1 // pred_region
      %s5027 = ssub.s32 96, 96
      %5028 = vsyncadd [#allocation5], %s5027
      %s5030 = sshll.u32 [#allocation6], 4
      %s5031 = int_to_ptr.vmem [resolvable:$true] %s5030
      %5033 = dma.vmem_to_hbm [thread:$0]  %s5031, 96, %s3, [#allocation5]
    $region21: #{tpu_custom_call.1} parent=1 // pred_fallthru
      _
    // Predicated region
    $region22: #{tpu_custom_call.1} parent=1 // pred_check
      _
    $region23: #{tpu_custom_call.1} parent=1 // pred_check_branch
      %5035 = sbr.rel (0) target = $region25
    $region24: #{tpu_custom_call.1} parent=1 // pred_region
      %5036 = dma.done [#allocation5], 96
    $region25: #{tpu_custom_call.1} parent=1 // pred_fallthru
      _
    %5037 = vsyncpa [#allocation4], 1
    %5038 = vsyncpa [#allocation5], 1

</llo_original>
